<compile_context>
chip_gen: v7x
topology: tpu7x:2x2x1
jax: 0.10.0
libtpu: 0.0.40
codegen_flags: <defaults>
</compile_context>

<pallas_src>
import functools

import jax
import jax.numpy as jnp
import numpy as np
from jax import lax
from jax.experimental import pallas as pl
from jax.experimental.pallas import tpu as pltpu


def _round_up(x, m):
    return (x + m - 1) // m * m


def _auto_tuning(seq_len):
    """Generation-aware (time_chunk, vmem_limit_bytes) defaults."""
    kind = ""
    try:
        kind = jax.devices()[0].device_kind.lower()
    except Exception:  # pragma: no cover - CPU / interpret fallbacks
        pass
    if ("v7" in kind) or ("7x" in kind):
        tt, vmem = 8, 48 * 1024 * 1024        # 64 MiB/TC: stay under ~56 MiB
    elif ("v6" in kind) or ("v5" in kind):
        tt, vmem = 16, 64 * 1024 * 1024       # 128 MiB physical VMEM
    else:
        tt, vmem = 8, 48 * 1024 * 1024
    tt = max(1, min(tt, _round_up(max(int(seq_len), 1), 8)))
    return tt, vmem


# ----------------------------------------------------------------------------
# Fused bidirectional LSTM kernel, chunked over time.
# Grid = (T_pad // TT,), sequential ("arbitrary").  h/c for both directions
# live in VMEM scratch; the max-pool accumulator is an output block resident
# across the whole grid.  W_hh / lens are whole-array VMEM residents.
# ----------------------------------------------------------------------------
def _bilstm_chunk_kernel(t_eff_ref, gf_ref, gb_ref, lens_ref, whhf_ref, whhb_ref,
                         *refs, hidden_p, time_chunk, seq_len, need_seq, unroll):
    if need_seq:
        seqf_ref, seqb_ref, pooled_ref, hf_s, cf_s, hb_s, cb_s = refs
    else:
        pooled_ref, hf_s, cf_s, hb_s, cb_s = refs
        seqf_ref = seqb_ref = None

    Hp = hidden_p
    TT = time_chunk
    j = pl.program_id(0)

    @pl.when(j == 0)
    def _():
        hf_s[...] = jnp.zeros_like(hf_s)
        cf_s[...] = jnp.zeros_like(cf_s)
        hb_s[...] = jnp.zeros_like(hb_s)
        cb_s[...] = jnp.zeros_like(cb_s)
        pooled_ref[...] = jnp.full(pooled_ref.shape, -jnp.inf, pooled_ref.dtype)

    t_eff = t_eff_ref[0]                      # max(sent_len), from SMEM
    lens = lens_ref[...]                      # (B, 1) int32, VMEM-resident
    # W_hh arrives already cast to the matmul dtype (bf16 in production) and
    # is single-buffered / resident in VMEM for the whole grid.
    whh_f = whhf_ref[...]
    whh_b = whhb_ref[...]
    mdt = whh_f.dtype

    def cell(gates, c_prev):
        # PyTorch gate order i, f, g, o; each gate is a lane-aligned Hp slab.
        i = jax.nn.sigmoid(gates[:, 0 * Hp:1 * Hp])
        f = jax.nn.sigmoid(gates[:, 1 * Hp:2 * Hp])
        g = jnp.tanh(gates[:, 2 * Hp:3 * Hp])
        o = jax.nn.sigmoid(gates[:, 3 * Hp:4 * Hp])
        c_new = f * c_prev + i * g
        h_new = o * jnp.tanh(c_new)
        return h_new, c_new

    def step(s, carry):
        h_f, c_f, h_b, c_b, p_f, p_b = carry
        t_f = j * TT + s                      # forward time index
        t_b = (seq_len - 1) - t_f             # backward time index

        # Gate streams may be bf16: upcast and accumulate in f32.
        g_f = gf_ref[s].astype(jnp.float32) + jnp.dot(
            h_f.astype(mdt), whh_f, preferred_element_type=jnp.float32)
        g_b = gb_ref[TT - 1 - s].astype(jnp.float32) + jnp.dot(
            h_b.astype(mdt), whh_b, preferred_element_type=jnp.float32)

        hf_new, cf_new = cell(g_f, c_f)
        hb_new, cb_new = cell(g_b, c_b)

        # packed-sequence semantics: state only advances while t < len[b].
        # Hoist the (B,1)->(B,Hp) broadcasts once per direction (no CSE).
        mask_f = jnp.broadcast_to(t_f < lens, h_f.shape)
        mask_b = jnp.broadcast_to(t_b < lens, h_b.shape)

        h_f = jnp.where(mask_f, hf_new, h_f)
        c_f = jnp.where(mask_f, cf_new, c_f)
        h_b = jnp.where(mask_b, hb_new, h_b)
        c_b = jnp.where(mask_b, cb_new, c_b)

        if need_seq:
            # pad_packed_sequence pads with exact zeros for the next layer
            seqf_ref[s] = jnp.where(mask_f, hf_new, 0.0).astype(seqf_ref.dtype)
            seqb_ref[TT - 1 - s] = jnp.where(mask_b, hb_new, 0.0).astype(
                seqb_ref.dtype)

        # positions t >= max(len) never exist in the PyTorch padded output,
        # so they must not contribute to the max (-inf); positions with
        # len[b] <= t < max(len) contribute exact zeros, matching torch.max.
        pad_f = jnp.where(t_f < t_eff, 0.0, -jnp.inf)
        pad_b = jnp.where(t_b < t_eff, 0.0, -jnp.inf)
        p_f = jnp.maximum(p_f, jnp.where(mask_f, hf_new, pad_f))
        p_b = jnp.maximum(p_b, jnp.where(mask_b, hb_new, pad_b))
        return (h_f, c_f, h_b, c_b, p_f, p_b)

    carry0 = (hf_s[...], cf_s[...], hb_s[...], cb_s[...],
              pooled_ref[:, :Hp], pooled_ref[:, Hp:])
    h_f, c_f, h_b, c_b, p_f, p_b = lax.fori_loop(0, TT, step, carry0,
                                                 unroll=unroll)

    hf_s[...] = h_f
    cf_s[...] = c_f
    hb_s[...] = h_b
    cb_s[...] = c_b
    pooled_ref[:, :Hp] = p_f
    pooled_ref[:, Hp:] = p_b


def _run_fused_layer(t_eff, gates_f, gates_b, lens2d, whh_f, whh_b, *,
                     hidden_p, time_chunk, need_seq, vmem_limit_bytes):
    """One bidirectional layer.  gates_*: (T_pad, B_pad, 4*Hp) precomputed
    input projections (stream dtype).  Returns (seq_f, seq_b, pooled) if
    need_seq else pooled."""
    T_pad, B_pad, _ = gates_f.shape
    Hp = hidden_p
    TT = time_chunk
    NB = T_pad // TT
    seq_dtype = gates_f.dtype
    # Cap the unroll so the carry (6x (B,Hp) f32 + two gate slabs) does not
    # blow past the 64-vreg file at larger TT.
    unroll = TT if TT <= 8 else 4

    kernel = functools.partial(
        _bilstm_chunk_kernel, hidden_p=Hp, time_chunk=TT, seq_len=T_pad,
        need_seq=need_seq, unroll=unroll)

    fwd_map = lambda j, te: (j, 0, 0)
    bwd_map = lambda j, te: (NB - 1 - j, 0, 0)
    const2 = lambda j, te: (0, 0)
    # Whole-array, single-buffered VMEM residents (grid-invariant operands):
    resident = pl.BlockSpec(memory_space=pltpu.MemorySpace.VMEM)

    in_specs = [
        pl.BlockSpec((TT, B_pad, 4 * Hp), fwd_map),   # fwd input gates chunk
        pl.BlockSpec((TT, B_pad, 4 * Hp), bwd_map),   # bwd input gates chunk
        resident,                                     # lengths (B_pad, 1)
        resident,                                     # W_hh fwd (pre-cast)
        resident,                                     # W_hh bwd (pre-cast)
    ]
    pooled_shape = jax.ShapeDtypeStruct((B_pad, 2 * Hp), jnp.float32)
    pooled_spec = pl.BlockSpec((B_pad, 2 * Hp), const2)
    if need_seq:
        out_shape = (jax.ShapeDtypeStruct((T_pad, B_pad, Hp), seq_dtype),
                     jax.ShapeDtypeStruct((T_pad, B_pad, Hp), seq_dtype),
                     pooled_shape)
        out_specs = (pl.BlockSpec((TT, B_pad, Hp), fwd_map),
                     pl.BlockSpec((TT, B_pad, Hp), bwd_map),
                     pooled_spec)
    else:
        out_shape = pooled_shape
        out_specs = pooled_spec

    return pl.pallas_call(
        kernel,
        out_shape=out_shape,
        grid_spec=pltpu.PrefetchScalarGridSpec(
            num_scalar_prefetch=1,                    # t_eff = max(sent_len)
            grid=(NB,),
            in_specs=in_specs,
            out_specs=out_specs,
            scratch_shapes=[pltpu.VMEM((B_pad, Hp), jnp.float32)
                            for _ in range(4)],       # h_f, c_f, h_b, c_b
        ),
        compiler_params=pltpu.CompilerParams(
            dimension_semantics=("arbitrary",),       # recurrence is sequential
            vmem_limit_bytes=vmem_limit_bytes),
    )(t_eff, gates_f, gates_b, lens2d, whh_f, whh_b)


# ----------------------------------------------------------------------------
# Encoder wrapper: padding, hoisted input projections, layer stacking.
# Fully jittable (no host-side max over sent_len).
# ----------------------------------------------------------------------------
def bilstm_maxpool_encoder(sent, sent_len, params, *, hidden, time_chunk=None,
                           vmem_limit_bytes=None,
                           stream_dtype=jnp.bfloat16,
                           matmul_dtype=jnp.bfloat16):
    """sent: (T, B, word_emb_dim) float32; sent_len: (B,) int.
    params: output of pack_params().  Returns (B, 2*hidden) float32.
    stream_dtype: dtype of the gate / inter-layer sequence HBM streams.
    matmul_dtype: dtype of W_hh and the recurrent MXU matmul inputs."""
    T, B, _ = sent.shape
    Hp = _round_up(hidden, 128)
    auto_tt, auto_vmem = _auto_tuning(T)
    TT = time_chunk if time_chunk is not None else auto_tt
    vmem_limit = vmem_limit_bytes if vmem_limit_bytes is not None else auto_vmem
    T_pad = _round_up(T, TT)
    B_pad = _round_up(B, 8)

    x = jnp.asarray(sent, jnp.float32)
    x = jnp.pad(x, ((0, T_pad - T), (0, B_pad - B), (0, 0)))
    lens = jnp.asarray(sent_len, jnp.int32)
    # TODO(synk): sent_len == 0 yields an all-zero embedding row here, whereas
    # PyTorch's pack_padded_sequence would raise on zero-length sequences.
    t_eff = jnp.max(lens).astype(jnp.int32).reshape(1)
    lens2d = jnp.pad(lens, (0, B_pad - B)).reshape(B_pad, 1)

    x_s = x.astype(stream_dtype)

    n_layers = len(params)
    seq_f = seq_b = pooled = None
    for li, ((wih_f, whh_f, b_f), (wih_b, whh_b, b_b)) in enumerate(params):
        # Hoisted input projection: one big matmul per direction (XLA/MXU),
        # accumulated in f32, streamed to the kernel in stream_dtype.
        if li == 0:
            gf = jnp.einsum('tbd,dg->tbg', x_s, wih_f.astype(stream_dtype),
                            preferred_element_type=jnp.float32) + b_f
            gb = jnp.einsum('tbd,dg->tbg', x_s, wih_b.astype(stream_dtype),
                            preferred_element_type=jnp.float32) + b_b
        else:
            gf = (jnp.einsum('tbh,hg->tbg', seq_f,
                             wih_f[:Hp].astype(stream_dtype),
                             preferred_element_type=jnp.float32)
                  + jnp.einsum('tbh,hg->tbg', seq_b,
                               wih_f[Hp:].astype(stream_dtype),
                               preferred_element_type=jnp.float32) + b_f)
            gb = (jnp.einsum('tbh,hg->tbg', seq_f,
                             wih_b[:Hp].astype(stream_dtype),
                             preferred_element_type=jnp.float32)
                  + jnp.einsum('tbh,hg->tbg', seq_b,
                               wih_b[Hp:].astype(stream_dtype),
                               preferred_element_type=jnp.float32) + b_b)
        gf = gf.astype(stream_dtype)
        gb = gb.astype(stream_dtype)
        need_seq = li < n_layers - 1          # final layer: pooled only
        outs = _run_fused_layer(
            t_eff, gf, gb, lens2d,
            # Pre-cast W_hh outside the kernel (halves weight DMA/residency
            # and removes the per-grid-step VPU convert).
            whh_f.astype(matmul_dtype), whh_b.astype(matmul_dtype),
            hidden_p=Hp, time_chunk=TT, need_seq=need_seq,
            vmem_limit_bytes=vmem_limit)
        if need_seq:
            seq_f, seq_b, pooled = outs
        else:
            pooled = outs

    return jnp.concatenate([pooled[:B, :hidden], pooled[:B, Hp:Hp + hidden]],
                           axis=-1)


# ----------------------------------------------------------------------------
# Parameters: raw PyTorch-layout weights + conversion to the padded kernel layout.
# ----------------------------------------------------------------------------
def init_params(key, word_emb_dim, hidden, layers):
    """PyTorch-default LSTM init U(-1/sqrt(H), 1/sqrt(H)).  Returns, per layer
    and direction, (w_ih (4H,Din), w_hh (4H,H), b_ih (4H,), b_hh (4H,))."""
    k = 1.0 / np.sqrt(hidden)
    params = []
    for layer in range(layers):
        din = word_emb_dim if layer == 0 else 2 * hidden
        dirs = []
        for _ in range(2):  # forward, backward
            key, k1, k2, k3, k4 = jax.random.split(key, 5)
            w_ih = jax.random.uniform(k1, (4 * hidden, din), jnp.float32, -k, k)
            w_hh = jax.random.uniform(k2, (4 * hidden, hidden), jnp.float32, -k, k)
            b_ih = jax.random.uniform(k3, (4 * hidden,), jnp.float32, -k, k)
            b_hh = jax.random.uniform(k4, (4 * hidden,), jnp.float32, -k, k)
            dirs.append((w_ih, w_hh, b_ih, b_hh))
        params.append(tuple(dirs))
    return params


def pack_params(raw_params, hidden):
    """Convert torch-layout weights to the padded, lane-aligned kernel layout.
    Gate g (order i,f,g,o) occupies lanes [g*Hp, g*Hp+H); padding weights are 0
    so the padded hidden lanes stay exactly 0 through the recurrence."""
    H = hidden
    Hp = _round_up(H, 128)
    packed = []
    for li, layer in enumerate(raw_params):
        dirs = []
        for (w_ih, w_hh, b_ih, b_hh) in layer:
            w_ih = np.asarray(w_ih)
            w_hh = np.asarray(w_hh)
            b = np.asarray(b_ih) + np.asarray(b_hh)
            if li == 0:
                wih_p = np.zeros((w_ih.shape[1], 4 * Hp), np.float32)
                for g in range(4):
                    wih_p[:, g * Hp:g * Hp + H] = w_ih[g * H:(g + 1) * H, :].T
            else:
                # input of layer >= 2 is [seq_f (Hp) | seq_b (Hp)]
                wih_p = np.zeros((2 * Hp, 4 * Hp), np.float32)
                for g in range(4):
                    blk = w_ih[g * H:(g + 1) * H, :]        # (H, 2H)
                    wih_p[:H, g * Hp:g * Hp + H] = blk[:, :H].T
                    wih_p[Hp:Hp + H, g * Hp:g * Hp + H] = blk[:, H:].T
            whh_p = np.zeros((Hp, 4 * Hp), np.float32)
            b_p = np.zeros((4 * Hp,), np.float32)
            for g in range(4):
                whh_p[:H, g * Hp:g * Hp + H] = w_hh[g * H:(g + 1) * H, :].T
                b_p[g * Hp:g * Hp + H] = b[g * H:(g + 1) * H]
            dirs.append((jnp.asarray(wih_p), jnp.asarray(whh_p), jnp.asarray(b_p)))
        packed.append(tuple(dirs))
    return packed


# ----------------------------------------------------------------------------
# Pure-JAX reference (PyTorch semantics) for correctness checking.
# ----------------------------------------------------------------------------
def _ref_dir(x, lens, w_ih, w_hh, b_ih, b_hh, hidden, reverse):
    T, B, _ = x.shape
    H = hidden
    wih_t, whh_t, b = w_ih.T, w_hh.T, b_ih + b_hh

    def step(carry, t):
        h, c = carry
        gates = x[t] @ wih_t + h @ whh_t + b
        i = jax.nn.sigmoid(gates[:, :H])
        f = jax.nn.sigmoid(gates[:, H:2 * H])
        g = jnp.tanh(gates[:, 2 * H:3 * H])
        o = jax.nn.sigmoid(gates[:, 3 * H:])
        c_new = f * c + i * g
        h_new = o * jnp.tanh(c_new)
        active = (t < lens)[:, None]
        return ((jnp.where(active, h_new, h), jnp.where(active, c_new, c)),
                jnp.where(active, h_new, 0.0))

    ts = jnp.arange(T - 1, -1, -1) if reverse else jnp.arange(T)
    init = (jnp.zeros((B, H), jnp.float32), jnp.zeros((B, H), jnp.float32))
    _, outs = lax.scan(step, init, ts)
    return outs[::-1] if reverse else outs


def ref_encoder(sent, sent_len, raw_params, hidden):
    t_eff = int(np.max(np.asarray(sent_len)))
    x = jnp.asarray(sent, jnp.float32)[:t_eff]
    lens = jnp.asarray(sent_len, jnp.int32)
    for fwd, bwd in raw_params:
        of = _ref_dir(x, lens, *fwd, hidden, False)
        ob = _ref_dir(x, lens, *bwd, hidden, True)
        x = jnp.concatenate([of, ob], axis=-1)
    return jnp.max(x, axis=0)


if __name__ == "__main__":
    config = {"word_emb_dim": 16, "bilstm_dim": 32, "lstm_layers": 2}
    T, B = 8, 4

    key = jax.random.PRNGKey(0)
    k_sent, k_par = jax.random.split(key)
    sent = jax.random.normal(k_sent, (T, B, config["word_emb_dim"]), jnp.float32)
    sent_len = jnp.array([8, 5, 3, 6], dtype=jnp.int32)   # padded batch

    raw_params = init_params(k_par, config["word_emb_dim"], config["bilstm_dim"],
                             config["lstm_layers"])
    params = pack_params(raw_params, config["bilstm_dim"])
    ref = ref_encoder(sent, sent_len, raw_params, config["bilstm_dim"])

    # 1) Full-f32 path: strict check against the f32 PyTorch-semantics reference.
    enc_f32 = jax.jit(functools.partial(
        bilstm_maxpool_encoder, hidden=config["bilstm_dim"],
        stream_dtype=jnp.float32, matmul_dtype=jnp.float32))
    emb = jax.block_until_ready(enc_f32(sent, sent_len, params))
    assert emb.shape == (B, 2 * config["bilstm_dim"])
    np.testing.assert_allclose(np.asarray(emb), np.asarray(ref),
                               rtol=1e-2, atol=1e-2)

    # 2) Production path: bf16 gate/seq streams + bf16 W_hh on the MXU with
    #    f32 recurrence state/accumulation.  Loose sanity check only (bf16
    #    drift over a serial recurrence must be re-validated at real T/H).
    enc_bf16 = jax.jit(functools.partial(
        bilstm_maxpool_encoder, hidden=config["bilstm_dim"],
        stream_dtype=jnp.bfloat16, matmul_dtype=jnp.bfloat16))
    emb_bf16 = jax.block_until_ready(enc_bf16(sent, sent_len, params))
    err = float(np.max(np.abs(np.asarray(emb_bf16) - np.asarray(ref))))
    assert err < 0.25, f"bf16 path diverged: max abs err {err}"

    print("KERNEL_OK")
</pallas_src>

<mosaic_0001>
module attributes {stable_mosaic.version = 11 : i64} {
  func.func @_bilstm_chunk_kernel(%arg0: i32, %arg1: memref<1xi32, #tpu.memory_space<smem>>, %arg2: memref<8x8x512xf32, #tpu.memory_space<vmem>>, %arg3: memref<8x8x512xf32, #tpu.memory_space<vmem>>, %arg4: memref<8x1xi32, #tpu.memory_space<vmem>>, %arg5: memref<128x512xf32, #tpu.memory_space<vmem>>, %arg6: memref<128x512xf32, #tpu.memory_space<vmem>>, %arg7: memref<8x8x128xf32, #tpu.memory_space<vmem>>, %arg8: memref<8x8x128xf32, #tpu.memory_space<vmem>>, %arg9: memref<8x256xf32, #tpu.memory_space<vmem>>, %arg10: memref<8x128xf32, #tpu.memory_space<vmem>>, %arg11: memref<8x128xf32, #tpu.memory_space<vmem>>, %arg12: memref<8x128xf32, #tpu.memory_space<vmem>>, %arg13: memref<8x128xf32, #tpu.memory_space<vmem>>) attributes {dimension_semantics = [#tpu.dimension_semantics<arbitrary>], iteration_bounds = array<i64: 1>, scalar_prefetch = 1 : i64, scratch_operands = 4 : i64, tpu.core_type = #tpu.core_type<tc>, window_params = [{transform_indices = @transform_0, window_bounds = array<i64: 8, 8, 512>}, {transform_indices = @transform_1, window_bounds = array<i64: 8, 8, 512>}, {pipeline_mode = #tpu.pipeline_mode<synchronous>, transform_indices = @transform_2, window_bounds = array<i64: 8, 1>}, {pipeline_mode = #tpu.pipeline_mode<synchronous>, transform_indices = @transform_3, window_bounds = array<i64: 128, 512>}, {pipeline_mode = #tpu.pipeline_mode<synchronous>, transform_indices = @transform_4, window_bounds = array<i64: 128, 512>}, {transform_indices = @transform_5, window_bounds = array<i64: 8, 8, 128>}, {transform_indices = @transform_6, window_bounds = array<i64: 8, 8, 128>}, {pipeline_mode = #tpu.pipeline_mode<synchronous>, transform_indices = @transform_7, window_bounds = array<i64: 8, 256>}]} {
    %c0_i32 = arith.constant 0 : i32
    %0 = arith.cmpi eq, %arg0, %c0_i32 : i32
    %1 = arith.extui %0 : i1 to i32
    %c0_i32_0 = arith.constant 0 : i32
    %2 = arith.cmpi ne, %1, %c0_i32_0 : i32
    scf.if %2 {
      %cst_238 = arith.constant 0.000000e+00 : f32
      %811 = vector.broadcast %cst_238 : f32 to vector<8x128xf32>
      %c0_239 = arith.constant 0 : index
      %c0_240 = arith.constant 0 : index
      %812 = vector.load %arg10[%c0_239, %c0_240] : memref<8x128xf32, #tpu.memory_space<vmem>>, vector<8x128xf32>
      tpu.vector_store %arg10[%c0_239, %c0_240], %811 {strides = array<i32>} : memref<8x128xf32, #tpu.memory_space<vmem>>, vector<8x128xf32>,
      %cst_241 = arith.constant 0.000000e+00 : f32
      %813 = vector.broadcast %cst_241 : f32 to vector<8x128xf32>
      %c0_242 = arith.constant 0 : index
      %c0_243 = arith.constant 0 : index
      %814 = vector.load %arg11[%c0_242, %c0_243] : memref<8x128xf32, #tpu.memory_space<vmem>>, vector<8x128xf32>
      tpu.vector_store %arg11[%c0_242, %c0_243], %813 {strides = array<i32>} : memref<8x128xf32, #tpu.memory_space<vmem>>, vector<8x128xf32>,
      %cst_244 = arith.constant 0.000000e+00 : f32
      %815 = vector.broadcast %cst_244 : f32 to vector<8x128xf32>
      %c0_245 = arith.constant 0 : index
      %c0_246 = arith.constant 0 : index
      %816 = vector.load %arg12[%c0_245, %c0_246] : memref<8x128xf32, #tpu.memory_space<vmem>>, vector<8x128xf32>
      tpu.vector_store %arg12[%c0_245, %c0_246], %815 {strides = array<i32>} : memref<8x128xf32, #tpu.memory_space<vmem>>, vector<8x128xf32>,
      %cst_247 = arith.constant 0.000000e+00 : f32
      %817 = vector.broadcast %cst_247 : f32 to vector<8x128xf32>
      %c0_248 = arith.constant 0 : index
      %c0_249 = arith.constant 0 : index
      %818 = vector.load %arg13[%c0_248, %c0_249] : memref<8x128xf32, #tpu.memory_space<vmem>>, vector<8x128xf32>
      tpu.vector_store %arg13[%c0_248, %c0_249], %817 {strides = array<i32>} : memref<8x128xf32, #tpu.memory_space<vmem>>, vector<8x128xf32>,
      %cst_250 = arith.constant 0xFF800000 : f32
      %819 = vector.broadcast %cst_250 : f32 to vector<8x256xf32>
      %c0_251 = arith.constant 0 : index
      %c0_252 = arith.constant 0 : index
      %820 = vector.load %arg9[%c0_251, %c0_252] : memref<8x256xf32, #tpu.memory_space<vmem>>, vector<8x256xf32>
      tpu.vector_store %arg9[%c0_251, %c0_252], %819 {strides = array<i32>} : memref<8x256xf32, #tpu.memory_space<vmem>>, vector<8x256xf32>,
    } else {
    }
    %c0 = arith.constant 0 : index
    %3 = memref.load %arg1[%c0] : memref<1xi32, #tpu.memory_space<smem>>
    %c0_1 = arith.constant 0 : index
    %c0_2 = arith.constant 0 : index
    %4 = vector.load %arg4[%c0_1, %c0_2] : memref<8x1xi32, #tpu.memory_space<vmem>>, vector<8x1xi32>
    %c0_3 = arith.constant 0 : index
    %c0_4 = arith.constant 0 : index
    %5 = vector.load %arg5[%c0_3, %c0_4] : memref<128x512xf32, #tpu.memory_space<vmem>>, vector<128x512xf32>
    %c0_5 = arith.constant 0 : index
    %c0_6 = arith.constant 0 : index
    %6 = vector.load %arg6[%c0_5, %c0_6] : memref<128x512xf32, #tpu.memory_space<vmem>>, vector<128x512xf32>
    %c0_7 = arith.constant 0 : index
    %c0_8 = arith.constant 0 : index
    %7 = vector.load %arg10[%c0_7, %c0_8] : memref<8x128xf32, #tpu.memory_space<vmem>>, vector<8x128xf32>
    %c0_9 = arith.constant 0 : index
    %c0_10 = arith.constant 0 : index
    %8 = vector.load %arg11[%c0_9, %c0_10] : memref<8x128xf32, #tpu.memory_space<vmem>>, vector<8x128xf32>
    %c0_11 = arith.constant 0 : index
    %c0_12 = arith.constant 0 : index
    %9 = vector.load %arg12[%c0_11, %c0_12] : memref<8x128xf32, #tpu.memory_space<vmem>>, vector<8x128xf32>
    %c0_13 = arith.constant 0 : index
    %c0_14 = arith.constant 0 : index
    %10 = vector.load %arg13[%c0_13, %c0_14] : memref<8x128xf32, #tpu.memory_space<vmem>>, vector<8x128xf32>
    %c0_15 = arith.constant 0 : index
    %c0_16 = arith.constant 0 : index
    %11 = vector.load %arg9[%c0_15, %c0_16] : memref<8x256xf32, #tpu.memory_space<vmem>>, vector<8x128xf32>
    %c0_17 = arith.constant 0 : index
    %c128 = arith.constant 128 : index
    %12 = vector.load %arg9[%c0_17, %c128] : memref<8x256xf32, #tpu.memory_space<vmem>>, vector<8x128xf32>
    %c0_i32_18 = arith.constant 0 : i32
    %c8_i32 = arith.constant 8 : i32
    %13 = arith.muli %arg0, %c8_i32 : i32
    %14 = arith.addi %13, %c0_i32_18 : i32
    %c7_i32 = arith.constant 7 : i32
    %15 = arith.subi %c7_i32, %14 : i32
    %16 = arith.index_cast %c0_i32_18 : i32 to index
    %c0_19 = arith.constant 0 : index
    %c0_20 = arith.constant 0 : index
    %17 = vector.load %arg2[%16, %c0_19, %c0_20] : memref<8x8x512xf32, #tpu.memory_space<vmem>>, vector<1x8x512xf32>
    %18 = vector.shape_cast %17 : vector<1x8x512xf32> to vector<8x512xf32>
    %cst = arith.constant dense<0.000000e+00> : vector<8x512xf32>
    %19 = tpu.matmul %7, %5, %cst {dimension_numbers = #tpu.dot_dimension_numbers<[1], [0], [0], [1], [0, 0, 1, 1], [], []>} : vector<8x128xf32>, vector<128x512xf32>, vector<8x512xf32> -> vector<8x512xf32>
    %20 = arith.addf %18, %19 : vector<8x512xf32>
    %c7_i32_21 = arith.constant 7 : i32
    %21 = arith.subi %c7_i32_21, %c0_i32_18 : i32
    %22 = arith.index_cast %21 : i32 to index
    %c0_22 = arith.constant 0 : index
    %c0_23 = arith.constant 0 : index
    %23 = vector.load %arg3[%22, %c0_22, %c0_23] : memref<8x8x512xf32, #tpu.memory_space<vmem>>, vector<1x8x512xf32>
    %24 = vector.shape_cast %23 : vector<1x8x512xf32> to vector<8x512xf32>
    %cst_24 = arith.constant dense<0.000000e+00> : vector<8x512xf32>
    %25 = tpu.matmul %9, %6, %cst_24 {dimension_numbers = #tpu.dot_dimension_numbers<[1], [0], [0], [1], [0, 0, 1, 1], [], []>} : vector<8x128xf32>, vector<128x512xf32>, vector<8x512xf32> -> vector<8x512xf32>
    %26 = arith.addf %24, %25 : vector<8x512xf32>
    %27 = vector.extract_strided_slice %20 {offsets = [0, 0], sizes = [8, 128], strides = [1, 1]} : vector<8x512xf32> to vector<8x128xf32>
    %28 = arith.negf %27 : vector<8x128xf32>
    %29 = math.exp %28 : vector<8x128xf32>
    %cst_25 = arith.constant 1.000000e+00 : f32
    %30 = vector.broadcast %cst_25 : f32 to vector<8x128xf32>
    %31 = arith.addf %30, %29 : vector<8x128xf32>
    %32 = arith.divf %30, %31 : vector<8x128xf32>
    %33 = vector.extract_strided_slice %20 {offsets = [0, 128], sizes = [8, 128], strides = [1, 1]} : vector<8x512xf32> to vector<8x128xf32>
    %34 = arith.negf %33 : vector<8x128xf32>
    %35 = math.exp %34 : vector<8x128xf32>
    %cst_26 = arith.constant 1.000000e+00 : f32
    %36 = vector.broadcast %cst_26 : f32 to vector<8x128xf32>
    %37 = arith.addf %36, %35 : vector<8x128xf32>
    %38 = arith.divf %36, %37 : vector<8x128xf32>
    %39 = vector.extract_strided_slice %20 {offsets = [0, 256], sizes = [8, 128], strides = [1, 1]} : vector<8x512xf32> to vector<8x128xf32>
    %40 = math.tanh %39 : vector<8x128xf32>
    %41 = vector.extract_strided_slice %20 {offsets = [0, 384], sizes = [8, 128], strides = [1, 1]} : vector<8x512xf32> to vector<8x128xf32>
    %42 = arith.negf %41 : vector<8x128xf32>
    %43 = math.exp %42 : vector<8x128xf32>
    %cst_27 = arith.constant 1.000000e+00 : f32
    %44 = vector.broadcast %cst_27 : f32 to vector<8x128xf32>
    %45 = arith.addf %44, %43 : vector<8x128xf32>
    %46 = arith.divf %44, %45 : vector<8x128xf32>
    %47 = arith.mulf %38, %8 : vector<8x128xf32>
    %48 = arith.mulf %32, %40 : vector<8x128xf32>
    %49 = arith.addf %47, %48 : vector<8x128xf32>
    %50 = math.tanh %49 : vector<8x128xf32>
    %51 = arith.mulf %46, %50 : vector<8x128xf32>
    %52 = vector.extract_strided_slice %26 {offsets = [0, 0], sizes = [8, 128], strides = [1, 1]} : vector<8x512xf32> to vector<8x128xf32>
    %53 = arith.negf %52 : vector<8x128xf32>
    %54 = math.exp %53 : vector<8x128xf32>
    %cst_28 = arith.constant 1.000000e+00 : f32
    %55 = vector.broadcast %cst_28 : f32 to vector<8x128xf32>
    %56 = arith.addf %55, %54 : vector<8x128xf32>
    %57 = arith.divf %55, %56 : vector<8x128xf32>
    %58 = vector.extract_strided_slice %26 {offsets = [0, 128], sizes = [8, 128], strides = [1, 1]} : vector<8x512xf32> to vector<8x128xf32>
    %59 = arith.negf %58 : vector<8x128xf32>
    %60 = math.exp %59 : vector<8x128xf32>
    %cst_29 = arith.constant 1.000000e+00 : f32
    %61 = vector.broadcast %cst_29 : f32 to vector<8x128xf32>
    %62 = arith.addf %61, %60 : vector<8x128xf32>
    %63 = arith.divf %61, %62 : vector<8x128xf32>
    %64 = vector.extract_strided_slice %26 {offsets = [0, 256], sizes = [8, 128], strides = [1, 1]} : vector<8x512xf32> to vector<8x128xf32>
    %65 = math.tanh %64 : vector<8x128xf32>
    %66 = vector.extract_strided_slice %26 {offsets = [0, 384], sizes = [8, 128], strides = [1, 1]} : vector<8x512xf32> to vector<8x128xf32>
    %67 = arith.negf %66 : vector<8x128xf32>
    %68 = math.exp %67 : vector<8x128xf32>
    %cst_30 = arith.constant 1.000000e+00 : f32
    %69 = vector.broadcast %cst_30 : f32 to vector<8x128xf32>
    %70 = arith.addf %69, %68 : vector<8x128xf32>
    %71 = arith.divf %69, %70 : vector<8x128xf32>
    %72 = arith.mulf %63, %10 : vector<8x128xf32>
    %73 = arith.mulf %57, %65 : vector<8x128xf32>
    %74 = arith.addf %72, %73 : vector<8x128xf32>
    %75 = math.tanh %74 : vector<8x128xf32>
    %76 = arith.mulf %71, %75 : vector<8x128xf32>
    %77 = vector.broadcast %14 : i32 to vector<8x1xi32>
    %78 = arith.cmpi slt, %77, %4 : vector<8x1xi32>
    %79 = vector.shape_cast %78 : vector<8x1xi1> to vector<8x1xi1>
    %80 = vector.broadcast %79 : vector<8x1xi1> to vector<8x128xi1>
    %81 = vector.broadcast %15 : i32 to vector<8x1xi32>
    %82 = arith.cmpi slt, %81, %4 : vector<8x1xi32>
    %83 = vector.shape_cast %82 : vector<8x1xi1> to vector<8x1xi1>
    %84 = vector.broadcast %83 : vector<8x1xi1> to vector<8x128xi1>
    %85 = arith.select %80, %51, %7 : vector<8x128xi1>, vector<8x128xf32>
    %86 = arith.select %80, %49, %8 : vector<8x128xi1>, vector<8x128xf32>
    %87 = arith.select %84, %76, %9 : vector<8x128xi1>, vector<8x128xf32>
    %88 = arith.select %84, %74, %10 : vector<8x128xi1>, vector<8x128xf32>
    %cst_31 = arith.constant 0.000000e+00 : f32
    %89 = vector.broadcast %cst_31 : f32 to vector<8x128xf32>
    %90 = arith.select %80, %51, %89 : vector<8x128xi1>, vector<8x128xf32>
    %91 = arith.index_cast %c0_i32_18 : i32 to index
    %c0_32 = arith.constant 0 : index
    %c0_33 = arith.constant 0 : index
    %92 = vector.load %arg7[%91, %c0_32, %c0_33] : memref<8x8x128xf32, #tpu.memory_space<vmem>>, vector<1x8x128xf32>
    %93 = vector.shape_cast %92 : vector<1x8x128xf32> to vector<8x128xf32>
    %94 = vector.shape_cast %90 : vector<8x128xf32> to vector<1x8x128xf32>
    tpu.vector_store %arg7[%91, %c0_32, %c0_33], %94 {strides = array<i32>} : memref<8x8x128xf32, #tpu.memory_space<vmem>>, vector<1x8x128xf32>,
    %cst_34 = arith.constant 0.000000e+00 : f32
    %95 = vector.broadcast %cst_34 : f32 to vector<8x128xf32>
    %96 = arith.select %84, %76, %95 : vector<8x128xi1>, vector<8x128xf32>
    %c7_i32_35 = arith.constant 7 : i32
    %97 = arith.subi %c7_i32_35, %c0_i32_18 : i32
    %98 = arith.index_cast %97 : i32 to index
    %c0_36 = arith.constant 0 : index
    %c0_37 = arith.constant 0 : index
    %99 = vector.load %arg8[%98, %c0_36, %c0_37] : memref<8x8x128xf32, #tpu.memory_space<vmem>>, vector<1x8x128xf32>
    %100 = vector.shape_cast %99 : vector<1x8x128xf32> to vector<8x128xf32>
    %101 = vector.shape_cast %96 : vector<8x128xf32> to vector<1x8x128xf32>
    tpu.vector_store %arg8[%98, %c0_36, %c0_37], %101 {strides = array<i32>} : memref<8x8x128xf32, #tpu.memory_space<vmem>>, vector<1x8x128xf32>,
    %102 = arith.cmpi slt, %14, %3 : i32
    %cst_38 = arith.constant 0.000000e+00 : f32
    %cst_39 = arith.constant 0xFF800000 : f32
    %103 = arith.select %102, %cst_38, %cst_39 : f32
    %104 = arith.cmpi slt, %15, %3 : i32
    %cst_40 = arith.constant 0.000000e+00 : f32
    %cst_41 = arith.constant 0xFF800000 : f32
    %105 = arith.select %104, %cst_40, %cst_41 : f32
    %106 = vector.broadcast %103 : f32 to vector<8x128xf32>
    %107 = arith.select %80, %51, %106 : vector<8x128xi1>, vector<8x128xf32>
    %108 = arith.maximumf %11, %107 : vector<8x128xf32>
    %109 = vector.broadcast %105 : f32 to vector<8x128xf32>
    %110 = arith.select %84, %76, %109 : vector<8x128xi1>, vector<8x128xf32>
    %111 = arith.maximumf %12, %110 : vector<8x128xf32>
    %c1_i32 = arith.constant 1 : i32
    %c8_i32_42 = arith.constant 8 : i32
    %112 = arith.muli %arg0, %c8_i32_42 : i32
    %113 = arith.addi %112, %c1_i32 : i32
    %c7_i32_43 = arith.constant 7 : i32
    %114 = arith.subi %c7_i32_43, %113 : i32
    %115 = arith.index_cast %c1_i32 : i32 to index
    %c0_44 = arith.constant 0 : index
    %c0_45 = arith.constant 0 : index
    %116 = vector.load %arg2[%115, %c0_44, %c0_45] : memref<8x8x512xf32, #tpu.memory_space<vmem>>, vector<1x8x512xf32>
    %117 = vector.shape_cast %116 : vector<1x8x512xf32> to vector<8x512xf32>
    %cst_46 = arith.constant dense<0.000000e+00> : vector<8x512xf32>
    %118 = tpu.matmul %85, %5, %cst_46 {dimension_numbers = #tpu.dot_dimension_numbers<[1], [0], [0], [1], [0, 0, 1, 1], [], []>} : vector<8x128xf32>, vector<128x512xf32>, vector<8x512xf32> -> vector<8x512xf32>
    %119 = arith.addf %117, %118 : vector<8x512xf32>
    %c7_i32_47 = arith.constant 7 : i32
    %120 = arith.subi %c7_i32_47, %c1_i32 : i32
    %121 = arith.index_cast %120 : i32 to index
    %c0_48 = arith.constant 0 : index
    %c0_49 = arith.constant 0 : index
    %122 = vector.load %arg3[%121, %c0_48, %c0_49] : memref<8x8x512xf32, #tpu.memory_space<vmem>>, vector<1x8x512xf32>
    %123 = vector.shape_cast %122 : vector<1x8x512xf32> to vector<8x512xf32>
    %cst_50 = arith.constant dense<0.000000e+00> : vector<8x512xf32>
    %124 = tpu.matmul %87, %6, %cst_50 {dimension_numbers = #tpu.dot_dimension_numbers<[1], [0], [0], [1], [0, 0, 1, 1], [], []>} : vector<8x128xf32>, vector<128x512xf32>, vector<8x512xf32> -> vector<8x512xf32>
    %125 = arith.addf %123, %124 : vector<8x512xf32>
    %126 = vector.extract_strided_slice %119 {offsets = [0, 0], sizes = [8, 128], strides = [1, 1]} : vector<8x512xf32> to vector<8x128xf32>
    %127 = arith.negf %126 : vector<8x128xf32>
    %128 = math.exp %127 : vector<8x128xf32>
    %cst_51 = arith.constant 1.000000e+00 : f32
    %129 = vector.broadcast %cst_51 : f32 to vector<8x128xf32>
    %130 = arith.addf %129, %128 : vector<8x128xf32>
    %131 = arith.divf %129, %130 : vector<8x128xf32>
    %132 = vector.extract_strided_slice %119 {offsets = [0, 128], sizes = [8, 128], strides = [1, 1]} : vector<8x512xf32> to vector<8x128xf32>
    %133 = arith.negf %132 : vector<8x128xf32>
    %134 = math.exp %133 : vector<8x128xf32>
    %cst_52 = arith.constant 1.000000e+00 : f32
    %135 = vector.broadcast %cst_52 : f32 to vector<8x128xf32>
    %136 = arith.addf %135, %134 : vector<8x128xf32>
    %137 = arith.divf %135, %136 : vector<8x128xf32>
    %138 = vector.extract_strided_slice %119 {offsets = [0, 256], sizes = [8, 128], strides = [1, 1]} : vector<8x512xf32> to vector<8x128xf32>
    %139 = math.tanh %138 : vector<8x128xf32>
    %140 = vector.extract_strided_slice %119 {offsets = [0, 384], sizes = [8, 128], strides = [1, 1]} : vector<8x512xf32> to vector<8x128xf32>
    %141 = arith.negf %140 : vector<8x128xf32>
    %142 = math.exp %141 : vector<8x128xf32>
    %cst_53 = arith.constant 1.000000e+00 : f32
    %143 = vector.broadcast %cst_53 : f32 to vector<8x128xf32>
    %144 = arith.addf %143, %142 : vector<8x128xf32>
    %145 = arith.divf %143, %144 : vector<8x128xf32>
    %146 = arith.mulf %137, %86 : vector<8x128xf32>
    %147 = arith.mulf %131, %139 : vector<8x128xf32>
    %148 = arith.addf %146, %147 : vector<8x128xf32>
    %149 = math.tanh %148 : vector<8x128xf32>
    %150 = arith.mulf %145, %149 : vector<8x128xf32>
    %151 = vector.extract_strided_slice %125 {offsets = [0, 0], sizes = [8, 128], strides = [1, 1]} : vector<8x512xf32> to vector<8x128xf32>
    %152 = arith.negf %151 : vector<8x128xf32>
    %153 = math.exp %152 : vector<8x128xf32>
    %cst_54 = arith.constant 1.000000e+00 : f32
    %154 = vector.broadcast %cst_54 : f32 to vector<8x128xf32>
    %155 = arith.addf %154, %153 : vector<8x128xf32>
    %156 = arith.divf %154, %155 : vector<8x128xf32>
    %157 = vector.extract_strided_slice %125 {offsets = [0, 128], sizes = [8, 128], strides = [1, 1]} : vector<8x512xf32> to vector<8x128xf32>
    %158 = arith.negf %157 : vector<8x128xf32>
    %159 = math.exp %158 : vector<8x128xf32>
    %cst_55 = arith.constant 1.000000e+00 : f32
    %160 = vector.broadcast %cst_55 : f32 to vector<8x128xf32>
    %161 = arith.addf %160, %159 : vector<8x128xf32>
    %162 = arith.divf %160, %161 : vector<8x128xf32>
    %163 = vector.extract_strided_slice %125 {offsets = [0, 256], sizes = [8, 128], strides = [1, 1]} : vector<8x512xf32> to vector<8x128xf32>
    %164 = math.tanh %163 : vector<8x128xf32>
    %165 = vector.extract_strided_slice %125 {offsets = [0, 384], sizes = [8, 128], strides = [1, 1]} : vector<8x512xf32> to vector<8x128xf32>
    %166 = arith.negf %165 : vector<8x128xf32>
    %167 = math.exp %166 : vector<8x128xf32>
    %cst_56 = arith.constant 1.000000e+00 : f32
    %168 = vector.broadcast %cst_56 : f32 to vector<8x128xf32>
    %169 = arith.addf %168, %167 : vector<8x128xf32>
    %170 = arith.divf %168, %169 : vector<8x128xf32>
    %171 = arith.mulf %162, %88 : vector<8x128xf32>
    %172 = arith.mulf %156, %164 : vector<8x128xf32>
    %173 = arith.addf %171, %172 : vector<8x128xf32>
    %174 = math.tanh %173 : vector<8x128xf32>
    %175 = arith.mulf %170, %174 : vector<8x128xf32>
    %176 = vector.broadcast %113 : i32 to vector<8x1xi32>
    %177 = arith.cmpi slt, %176, %4 : vector<8x1xi32>
    %178 = vector.shape_cast %177 : vector<8x1xi1> to vector<8x1xi1>
    %179 = vector.broadcast %178 : vector<8x1xi1> to vector<8x128xi1>
    %180 = vector.broadcast %114 : i32 to vector<8x1xi32>
    %181 = arith.cmpi slt, %180, %4 : vector<8x1xi32>
    %182 = vector.shape_cast %181 : vector<8x1xi1> to vector<8x1xi1>
    %183 = vector.broadcast %182 : vector<8x1xi1> to vector<8x128xi1>
    %184 = arith.select %179, %150, %85 : vector<8x128xi1>, vector<8x128xf32>
    %185 = arith.select %179, %148, %86 : vector<8x128xi1>, vector<8x128xf32>
    %186 = arith.select %183, %175, %87 : vector<8x128xi1>, vector<8x128xf32>
    %187 = arith.select %183, %173, %88 : vector<8x128xi1>, vector<8x128xf32>
    %cst_57 = arith.constant 0.000000e+00 : f32
    %188 = vector.broadcast %cst_57 : f32 to vector<8x128xf32>
    %189 = arith.select %179, %150, %188 : vector<8x128xi1>, vector<8x128xf32>
    %190 = arith.index_cast %c1_i32 : i32 to index
    %c0_58 = arith.constant 0 : index
    %c0_59 = arith.constant 0 : index
    %191 = vector.load %arg7[%190, %c0_58, %c0_59] : memref<8x8x128xf32, #tpu.memory_space<vmem>>, vector<1x8x128xf32>
    %192 = vector.shape_cast %191 : vector<1x8x128xf32> to vector<8x128xf32>
    %193 = vector.shape_cast %189 : vector<8x128xf32> to vector<1x8x128xf32>
    tpu.vector_store %arg7[%190, %c0_58, %c0_59], %193 {strides = array<i32>} : memref<8x8x128xf32, #tpu.memory_space<vmem>>, vector<1x8x128xf32>,
    %cst_60 = arith.constant 0.000000e+00 : f32
    %194 = vector.broadcast %cst_60 : f32 to vector<8x128xf32>
    %195 = arith.select %183, %175, %194 : vector<8x128xi1>, vector<8x128xf32>
    %c7_i32_61 = arith.constant 7 : i32
    %196 = arith.subi %c7_i32_61, %c1_i32 : i32
    %197 = arith.index_cast %196 : i32 to index
    %c0_62 = arith.constant 0 : index
    %c0_63 = arith.constant 0 : index
    %198 = vector.load %arg8[%197, %c0_62, %c0_63] : memref<8x8x128xf32, #tpu.memory_space<vmem>>, vector<1x8x128xf32>
    %199 = vector.shape_cast %198 : vector<1x8x128xf32> to vector<8x128xf32>
    %200 = vector.shape_cast %195 : vector<8x128xf32> to vector<1x8x128xf32>
    tpu.vector_store %arg8[%197, %c0_62, %c0_63], %200 {strides = array<i32>} : memref<8x8x128xf32, #tpu.memory_space<vmem>>, vector<1x8x128xf32>,
    %201 = arith.cmpi slt, %113, %3 : i32
    %cst_64 = arith.constant 0.000000e+00 : f32
    %cst_65 = arith.constant 0xFF800000 : f32
    %202 = arith.select %201, %cst_64, %cst_65 : f32
    %203 = arith.cmpi slt, %114, %3 : i32
    %cst_66 = arith.constant 0.000000e+00 : f32
    %cst_67 = arith.constant 0xFF800000 : f32
    %204 = arith.select %203, %cst_66, %cst_67 : f32
    %205 = vector.broadcast %202 : f32 to vector<8x128xf32>
    %206 = arith.select %179, %150, %205 : vector<8x128xi1>, vector<8x128xf32>
    %207 = arith.maximumf %108, %206 : vector<8x128xf32>
    %208 = vector.broadcast %204 : f32 to vector<8x128xf32>
    %209 = arith.select %183, %175, %208 : vector<8x128xi1>, vector<8x128xf32>
    %210 = arith.maximumf %111, %209 : vector<8x128xf32>
    %c2_i32 = arith.constant 2 : i32
    %c8_i32_68 = arith.constant 8 : i32
    %211 = arith.muli %arg0, %c8_i32_68 : i32
    %212 = arith.addi %211, %c2_i32 : i32
    %c7_i32_69 = arith.constant 7 : i32
    %213 = arith.subi %c7_i32_69, %212 : i32
    %214 = arith.index_cast %c2_i32 : i32 to index
    %c0_70 = arith.constant 0 : index
    %c0_71 = arith.constant 0 : index
    %215 = vector.load %arg2[%214, %c0_70, %c0_71] : memref<8x8x512xf32, #tpu.memory_space<vmem>>, vector<1x8x512xf32>
    %216 = vector.shape_cast %215 : vector<1x8x512xf32> to vector<8x512xf32>
    %cst_72 = arith.constant dense<0.000000e+00> : vector<8x512xf32>
    %217 = tpu.matmul %184, %5, %cst_72 {dimension_numbers = #tpu.dot_dimension_numbers<[1], [0], [0], [1], [0, 0, 1, 1], [], []>} : vector<8x128xf32>, vector<128x512xf32>, vector<8x512xf32> -> vector<8x512xf32>
    %218 = arith.addf %216, %217 : vector<8x512xf32>
    %c7_i32_73 = arith.constant 7 : i32
    %219 = arith.subi %c7_i32_73, %c2_i32 : i32
    %220 = arith.index_cast %219 : i32 to index
    %c0_74 = arith.constant 0 : index
    %c0_75 = arith.constant 0 : index
    %221 = vector.load %arg3[%220, %c0_74, %c0_75] : memref<8x8x512xf32, #tpu.memory_space<vmem>>, vector<1x8x512xf32>
    %222 = vector.shape_cast %221 : vector<1x8x512xf32> to vector<8x512xf32>
    %cst_76 = arith.constant dense<0.000000e+00> : vector<8x512xf32>
    %223 = tpu.matmul %186, %6, %cst_76 {dimension_numbers = #tpu.dot_dimension_numbers<[1], [0], [0], [1], [0, 0, 1, 1], [], []>} : vector<8x128xf32>, vector<128x512xf32>, vector<8x512xf32> -> vector<8x512xf32>
    %224 = arith.addf %222, %223 : vector<8x512xf32>
    %225 = vector.extract_strided_slice %218 {offsets = [0, 0], sizes = [8, 128], strides = [1, 1]} : vector<8x512xf32> to vector<8x128xf32>
    %226 = arith.negf %225 : vector<8x128xf32>
    %227 = math.exp %226 : vector<8x128xf32>
    %cst_77 = arith.constant 1.000000e+00 : f32
    %228 = vector.broadcast %cst_77 : f32 to vector<8x128xf32>
    %229 = arith.addf %228, %227 : vector<8x128xf32>
    %230 = arith.divf %228, %229 : vector<8x128xf32>
    %231 = vector.extract_strided_slice %218 {offsets = [0, 128], sizes = [8, 128], strides = [1, 1]} : vector<8x512xf32> to vector<8x128xf32>
    %232 = arith.negf %231 : vector<8x128xf32>
    %233 = math.exp %232 : vector<8x128xf32>
    %cst_78 = arith.constant 1.000000e+00 : f32
    %234 = vector.broadcast %cst_78 : f32 to vector<8x128xf32>
    %235 = arith.addf %234, %233 : vector<8x128xf32>
    %236 = arith.divf %234, %235 : vector<8x128xf32>
    %237 = vector.extract_strided_slice %218 {offsets = [0, 256], sizes = [8, 128], strides = [1, 1]} : vector<8x512xf32> to vector<8x128xf32>
    %238 = math.tanh %237 : vector<8x128xf32>
    %239 = vector.extract_strided_slice %218 {offsets = [0, 384], sizes = [8, 128], strides = [1, 1]} : vector<8x512xf32> to vector<8x128xf32>
    %240 = arith.negf %239 : vector<8x128xf32>
    %241 = math.exp %240 : vector<8x128xf32>
    %cst_79 = arith.constant 1.000000e+00 : f32
    %242 = vector.broadcast %cst_79 : f32 to vector<8x128xf32>
    %243 = arith.addf %242, %241 : vector<8x128xf32>
    %244 = arith.divf %242, %243 : vector<8x128xf32>
    %245 = arith.mulf %236, %185 : vector<8x128xf32>
    %246 = arith.mulf %230, %238 : vector<8x128xf32>
    %247 = arith.addf %245, %246 : vector<8x128xf32>
    %248 = math.tanh %247 : vector<8x128xf32>
    %249 = arith.mulf %244, %248 : vector<8x128xf32>
    %250 = vector.extract_strided_slice %224 {offsets = [0, 0], sizes = [8, 128], strides = [1, 1]} : vector<8x512xf32> to vector<8x128xf32>
    %251 = arith.negf %250 : vector<8x128xf32>
    %252 = math.exp %251 : vector<8x128xf32>
    %cst_80 = arith.constant 1.000000e+00 : f32
    %253 = vector.broadcast %cst_80 : f32 to vector<8x128xf32>
    %254 = arith.addf %253, %252 : vector<8x128xf32>
    %255 = arith.divf %253, %254 : vector<8x128xf32>
    %256 = vector.extract_strided_slice %224 {offsets = [0, 128], sizes = [8, 128], strides = [1, 1]} : vector<8x512xf32> to vector<8x128xf32>
    %257 = arith.negf %256 : vector<8x128xf32>
    %258 = math.exp %257 : vector<8x128xf32>
    %cst_81 = arith.constant 1.000000e+00 : f32
    %259 = vector.broadcast %cst_81 : f32 to vector<8x128xf32>
    %260 = arith.addf %259, %258 : vector<8x128xf32>
    %261 = arith.divf %259, %260 : vector<8x128xf32>
    %262 = vector.extract_strided_slice %224 {offsets = [0, 256], sizes = [8, 128], strides = [1, 1]} : vector<8x512xf32> to vector<8x128xf32>
    %263 = math.tanh %262 : vector<8x128xf32>
    %264 = vector.extract_strided_slice %224 {offsets = [0, 384], sizes = [8, 128], strides = [1, 1]} : vector<8x512xf32> to vector<8x128xf32>
    %265 = arith.negf %264 : vector<8x128xf32>
    %266 = math.exp %265 : vector<8x128xf32>
    %cst_82 = arith.constant 1.000000e+00 : f32
    %267 = vector.broadcast %cst_82 : f32 to vector<8x128xf32>
    %268 = arith.addf %267, %266 : vector<8x128xf32>
    %269 = arith.divf %267, %268 : vector<8x128xf32>
    %270 = arith.mulf %261, %187 : vector<8x128xf32>
    %271 = arith.mulf %255, %263 : vector<8x128xf32>
    %272 = arith.addf %270, %271 : vector<8x128xf32>
    %273 = math.tanh %272 : vector<8x128xf32>
    %274 = arith.mulf %269, %273 : vector<8x128xf32>
    %275 = vector.broadcast %212 : i32 to vector<8x1xi32>
    %276 = arith.cmpi slt, %275, %4 : vector<8x1xi32>
    %277 = vector.shape_cast %276 : vector<8x1xi1> to vector<8x1xi1>
    %278 = vector.broadcast %277 : vector<8x1xi1> to vector<8x128xi1>
    %279 = vector.broadcast %213 : i32 to vector<8x1xi32>
    %280 = arith.cmpi slt, %279, %4 : vector<8x1xi32>
    %281 = vector.shape_cast %280 : vector<8x1xi1> to vector<8x1xi1>
    %282 = vector.broadcast %281 : vector<8x1xi1> to vector<8x128xi1>
    %283 = arith.select %278, %249, %184 : vector<8x128xi1>, vector<8x128xf32>
    %284 = arith.select %278, %247, %185 : vector<8x128xi1>, vector<8x128xf32>
    %285 = arith.select %282, %274, %186 : vector<8x128xi1>, vector<8x128xf32>
    %286 = arith.select %282, %272, %187 : vector<8x128xi1>, vector<8x128xf32>
    %cst_83 = arith.constant 0.000000e+00 : f32
    %287 = vector.broadcast %cst_83 : f32 to vector<8x128xf32>
    %288 = arith.select %278, %249, %287 : vector<8x128xi1>, vector<8x128xf32>
    %289 = arith.index_cast %c2_i32 : i32 to index
    %c0_84 = arith.constant 0 : index
    %c0_85 = arith.constant 0 : index
    %290 = vector.load %arg7[%289, %c0_84, %c0_85] : memref<8x8x128xf32, #tpu.memory_space<vmem>>, vector<1x8x128xf32>
    %291 = vector.shape_cast %290 : vector<1x8x128xf32> to vector<8x128xf32>
    %292 = vector.shape_cast %288 : vector<8x128xf32> to vector<1x8x128xf32>
    tpu.vector_store %arg7[%289, %c0_84, %c0_85], %292 {strides = array<i32>} : memref<8x8x128xf32, #tpu.memory_space<vmem>>, vector<1x8x128xf32>,
    %cst_86 = arith.constant 0.000000e+00 : f32
    %293 = vector.broadcast %cst_86 : f32 to vector<8x128xf32>
    %294 = arith.select %282, %274, %293 : vector<8x128xi1>, vector<8x128xf32>
    %c7_i32_87 = arith.constant 7 : i32
    %295 = arith.subi %c7_i32_87, %c2_i32 : i32
    %296 = arith.index_cast %295 : i32 to index
    %c0_88 = arith.constant 0 : index
    %c0_89 = arith.constant 0 : index
    %297 = vector.load %arg8[%296, %c0_88, %c0_89] : memref<8x8x128xf32, #tpu.memory_space<vmem>>, vector<1x8x128xf32>
    %298 = vector.shape_cast %297 : vector<1x8x128xf32> to vector<8x128xf32>
    %299 = vector.shape_cast %294 : vector<8x128xf32> to vector<1x8x128xf32>
    tpu.vector_store %arg8[%296, %c0_88, %c0_89], %299 {strides = array<i32>} : memref<8x8x128xf32, #tpu.memory_space<vmem>>, vector<1x8x128xf32>,
    %300 = arith.cmpi slt, %212, %3 : i32
    %cst_90 = arith.constant 0.000000e+00 : f32
    %cst_91 = arith.constant 0xFF800000 : f32
    %301 = arith.select %300, %cst_90, %cst_91 : f32
    %302 = arith.cmpi slt, %213, %3 : i32
    %cst_92 = arith.constant 0.000000e+00 : f32
    %cst_93 = arith.constant 0xFF800000 : f32
    %303 = arith.select %302, %cst_92, %cst_93 : f32
    %304 = vector.broadcast %301 : f32 to vector<8x128xf32>
    %305 = arith.select %278, %249, %304 : vector<8x128xi1>, vector<8x128xf32>
    %306 = arith.maximumf %207, %305 : vector<8x128xf32>
    %307 = vector.broadcast %303 : f32 to vector<8x128xf32>
    %308 = arith.select %282, %274, %307 : vector<8x128xi1>, vector<8x128xf32>
    %309 = arith.maximumf %210, %308 : vector<8x128xf32>
    %c3_i32 = arith.constant 3 : i32
    %c8_i32_94 = arith.constant 8 : i32
    %310 = arith.muli %arg0, %c8_i32_94 : i32
    %311 = arith.addi %310, %c3_i32 : i32
    %c7_i32_95 = arith.constant 7 : i32
    %312 = arith.subi %c7_i32_95, %311 : i32
    %313 = arith.index_cast %c3_i32 : i32 to index
    %c0_96 = arith.constant 0 : index
    %c0_97 = arith.constant 0 : index
    %314 = vector.load %arg2[%313, %c0_96, %c0_97] : memref<8x8x512xf32, #tpu.memory_space<vmem>>, vector<1x8x512xf32>
    %315 = vector.shape_cast %314 : vector<1x8x512xf32> to vector<8x512xf32>
    %cst_98 = arith.constant dense<0.000000e+00> : vector<8x512xf32>
    %316 = tpu.matmul %283, %5, %cst_98 {dimension_numbers = #tpu.dot_dimension_numbers<[1], [0], [0], [1], [0, 0, 1, 1], [], []>} : vector<8x128xf32>, vector<128x512xf32>, vector<8x512xf32> -> vector<8x512xf32>
    %317 = arith.addf %315, %316 : vector<8x512xf32>
    %c7_i32_99 = arith.constant 7 : i32
    %318 = arith.subi %c7_i32_99, %c3_i32 : i32
    %319 = arith.index_cast %318 : i32 to index
    %c0_100 = arith.constant 0 : index
    %c0_101 = arith.constant 0 : index
    %320 = vector.load %arg3[%319, %c0_100, %c0_101] : memref<8x8x512xf32, #tpu.memory_space<vmem>>, vector<1x8x512xf32>
    %321 = vector.shape_cast %320 : vector<1x8x512xf32> to vector<8x512xf32>
    %cst_102 = arith.constant dense<0.000000e+00> : vector<8x512xf32>
    %322 = tpu.matmul %285, %6, %cst_102 {dimension_numbers = #tpu.dot_dimension_numbers<[1], [0], [0], [1], [0, 0, 1, 1], [], []>} : vector<8x128xf32>, vector<128x512xf32>, vector<8x512xf32> -> vector<8x512xf32>
    %323 = arith.addf %321, %322 : vector<8x512xf32>
    %324 = vector.extract_strided_slice %317 {offsets = [0, 0], sizes = [8, 128], strides = [1, 1]} : vector<8x512xf32> to vector<8x128xf32>
    %325 = arith.negf %324 : vector<8x128xf32>
    %326 = math.exp %325 : vector<8x128xf32>
    %cst_103 = arith.constant 1.000000e+00 : f32
    %327 = vector.broadcast %cst_103 : f32 to vector<8x128xf32>
    %328 = arith.addf %327, %326 : vector<8x128xf32>
    %329 = arith.divf %327, %328 : vector<8x128xf32>
    %330 = vector.extract_strided_slice %317 {offsets = [0, 128], sizes = [8, 128], strides = [1, 1]} : vector<8x512xf32> to vector<8x128xf32>
    %331 = arith.negf %330 : vector<8x128xf32>
    %332 = math.exp %331 : vector<8x128xf32>
    %cst_104 = arith.constant 1.000000e+00 : f32
    %333 = vector.broadcast %cst_104 : f32 to vector<8x128xf32>
    %334 = arith.addf %333, %332 : vector<8x128xf32>
    %335 = arith.divf %333, %334 : vector<8x128xf32>
    %336 = vector.extract_strided_slice %317 {offsets = [0, 256], sizes = [8, 128], strides = [1, 1]} : vector<8x512xf32> to vector<8x128xf32>
    %337 = math.tanh %336 : vector<8x128xf32>
    %338 = vector.extract_strided_slice %317 {offsets = [0, 384], sizes = [8, 128], strides = [1, 1]} : vector<8x512xf32> to vector<8x128xf32>
    %339 = arith.negf %338 : vector<8x128xf32>
    %340 = math.exp %339 : vector<8x128xf32>
    %cst_105 = arith.constant 1.000000e+00 : f32
    %341 = vector.broadcast %cst_105 : f32 to vector<8x128xf32>
    %342 = arith.addf %341, %340 : vector<8x128xf32>
    %343 = arith.divf %341, %342 : vector<8x128xf32>
    %344 = arith.mulf %335, %284 : vector<8x128xf32>
    %345 = arith.mulf %329, %337 : vector<8x128xf32>
    %346 = arith.addf %344, %345 : vector<8x128xf32>
    %347 = math.tanh %346 : vector<8x128xf32>
    %348 = arith.mulf %343, %347 : vector<8x128xf32>
    %349 = vector.extract_strided_slice %323 {offsets = [0, 0], sizes = [8, 128], strides = [1, 1]} : vector<8x512xf32> to vector<8x128xf32>
    %350 = arith.negf %349 : vector<8x128xf32>
    %351 = math.exp %350 : vector<8x128xf32>
    %cst_106 = arith.constant 1.000000e+00 : f32
    %352 = vector.broadcast %cst_106 : f32 to vector<8x128xf32>
    %353 = arith.addf %352, %351 : vector<8x128xf32>
    %354 = arith.divf %352, %353 : vector<8x128xf32>
    %355 = vector.extract_strided_slice %323 {offsets = [0, 128], sizes = [8, 128], strides = [1, 1]} : vector<8x512xf32> to vector<8x128xf32>
    %356 = arith.negf %355 : vector<8x128xf32>
    %357 = math.exp %356 : vector<8x128xf32>
    %cst_107 = arith.constant 1.000000e+00 : f32
    %358 = vector.broadcast %cst_107 : f32 to vector<8x128xf32>
    %359 = arith.addf %358, %357 : vector<8x128xf32>
    %360 = arith.divf %358, %359 : vector<8x128xf32>
    %361 = vector.extract_strided_slice %323 {offsets = [0, 256], sizes = [8, 128], strides = [1, 1]} : vector<8x512xf32> to vector<8x128xf32>
    %362 = math.tanh %361 : vector<8x128xf32>
    %363 = vector.extract_strided_slice %323 {offsets = [0, 384], sizes = [8, 128], strides = [1, 1]} : vector<8x512xf32> to vector<8x128xf32>
    %364 = arith.negf %363 : vector<8x128xf32>
    %365 = math.exp %364 : vector<8x128xf32>
    %cst_108 = arith.constant 1.000000e+00 : f32
    %366 = vector.broadcast %cst_108 : f32 to vector<8x128xf32>
    %367 = arith.addf %366, %365 : vector<8x128xf32>
    %368 = arith.divf %366, %367 : vector<8x128xf32>
    %369 = arith.mulf %360, %286 : vector<8x128xf32>
    %370 = arith.mulf %354, %362 : vector<8x128xf32>
    %371 = arith.addf %369, %370 : vector<8x128xf32>
    %372 = math.tanh %371 : vector<8x128xf32>
    %373 = arith.mulf %368, %372 : vector<8x128xf32>
    %374 = vector.broadcast %311 : i32 to vector<8x1xi32>
    %375 = arith.cmpi slt, %374, %4 : vector<8x1xi32>
    %376 = vector.shape_cast %375 : vector<8x1xi1> to vector<8x1xi1>
    %377 = vector.broadcast %376 : vector<8x1xi1> to vector<8x128xi1>
    %378 = vector.broadcast %312 : i32 to vector<8x1xi32>
    %379 = arith.cmpi slt, %378, %4 : vector<8x1xi32>
    %380 = vector.shape_cast %379 : vector<8x1xi1> to vector<8x1xi1>
    %381 = vector.broadcast %380 : vector<8x1xi1> to vector<8x128xi1>
    %382 = arith.select %377, %348, %283 : vector<8x128xi1>, vector<8x128xf32>
    %383 = arith.select %377, %346, %284 : vector<8x128xi1>, vector<8x128xf32>
    %384 = arith.select %381, %373, %285 : vector<8x128xi1>, vector<8x128xf32>
    %385 = arith.select %381, %371, %286 : vector<8x128xi1>, vector<8x128xf32>
    %cst_109 = arith.constant 0.000000e+00 : f32
    %386 = vector.broadcast %cst_109 : f32 to vector<8x128xf32>
    %387 = arith.select %377, %348, %386 : vector<8x128xi1>, vector<8x128xf32>
    %388 = arith.index_cast %c3_i32 : i32 to index
    %c0_110 = arith.constant 0 : index
    %c0_111 = arith.constant 0 : index
    %389 = vector.load %arg7[%388, %c0_110, %c0_111] : memref<8x8x128xf32, #tpu.memory_space<vmem>>, vector<1x8x128xf32>
    %390 = vector.shape_cast %389 : vector<1x8x128xf32> to vector<8x128xf32>
    %391 = vector.shape_cast %387 : vector<8x128xf32> to vector<1x8x128xf32>
    tpu.vector_store %arg7[%388, %c0_110, %c0_111], %391 {strides = array<i32>} : memref<8x8x128xf32, #tpu.memory_space<vmem>>, vector<1x8x128xf32>,
    %cst_112 = arith.constant 0.000000e+00 : f32
    %392 = vector.broadcast %cst_112 : f32 to vector<8x128xf32>
    %393 = arith.select %381, %373, %392 : vector<8x128xi1>, vector<8x128xf32>
    %c7_i32_113 = arith.constant 7 : i32
    %394 = arith.subi %c7_i32_113, %c3_i32 : i32
    %395 = arith.index_cast %394 : i32 to index
    %c0_114 = arith.constant 0 : index
    %c0_115 = arith.constant 0 : index
    %396 = vector.load %arg8[%395, %c0_114, %c0_115] : memref<8x8x128xf32, #tpu.memory_space<vmem>>, vector<1x8x128xf32>
    %397 = vector.shape_cast %396 : vector<1x8x128xf32> to vector<8x128xf32>
    %398 = vector.shape_cast %393 : vector<8x128xf32> to vector<1x8x128xf32>
    tpu.vector_store %arg8[%395, %c0_114, %c0_115], %398 {strides = array<i32>} : memref<8x8x128xf32, #tpu.memory_space<vmem>>, vector<1x8x128xf32>,
    %399 = arith.cmpi slt, %311, %3 : i32
    %cst_116 = arith.constant 0.000000e+00 : f32
    %cst_117 = arith.constant 0xFF800000 : f32
    %400 = arith.select %399, %cst_116, %cst_117 : f32
    %401 = arith.cmpi slt, %312, %3 : i32
    %cst_118 = arith.constant 0.000000e+00 : f32
    %cst_119 = arith.constant 0xFF800000 : f32
    %402 = arith.select %401, %cst_118, %cst_119 : f32
    %403 = vector.broadcast %400 : f32 to vector<8x128xf32>
    %404 = arith.select %377, %348, %403 : vector<8x128xi1>, vector<8x128xf32>
    %405 = arith.maximumf %306, %404 : vector<8x128xf32>
    %406 = vector.broadcast %402 : f32 to vector<8x128xf32>
    %407 = arith.select %381, %373, %406 : vector<8x128xi1>, vector<8x128xf32>
    %408 = arith.maximumf %309, %407 : vector<8x128xf32>
    %c4_i32 = arith.constant 4 : i32
    %c8_i32_120 = arith.constant 8 : i32
    %409 = arith.muli %arg0, %c8_i32_120 : i32
    %410 = arith.addi %409, %c4_i32 : i32
    %c7_i32_121 = arith.constant 7 : i32
    %411 = arith.subi %c7_i32_121, %410 : i32
    %412 = arith.index_cast %c4_i32 : i32 to index
    %c0_122 = arith.constant 0 : index
    %c0_123 = arith.constant 0 : index
    %413 = vector.load %arg2[%412, %c0_122, %c0_123] : memref<8x8x512xf32, #tpu.memory_space<vmem>>, vector<1x8x512xf32>
    %414 = vector.shape_cast %413 : vector<1x8x512xf32> to vector<8x512xf32>
    %cst_124 = arith.constant dense<0.000000e+00> : vector<8x512xf32>
    %415 = tpu.matmul %382, %5, %cst_124 {dimension_numbers = #tpu.dot_dimension_numbers<[1], [0], [0], [1], [0, 0, 1, 1], [], []>} : vector<8x128xf32>, vector<128x512xf32>, vector<8x512xf32> -> vector<8x512xf32>
    %416 = arith.addf %414, %415 : vector<8x512xf32>
    %c7_i32_125 = arith.constant 7 : i32
    %417 = arith.subi %c7_i32_125, %c4_i32 : i32
    %418 = arith.index_cast %417 : i32 to index
    %c0_126 = arith.constant 0 : index
    %c0_127 = arith.constant 0 : index
    %419 = vector.load %arg3[%418, %c0_126, %c0_127] : memref<8x8x512xf32, #tpu.memory_space<vmem>>, vector<1x8x512xf32>
    %420 = vector.shape_cast %419 : vector<1x8x512xf32> to vector<8x512xf32>
    %cst_128 = arith.constant dense<0.000000e+00> : vector<8x512xf32>
    %421 = tpu.matmul %384, %6, %cst_128 {dimension_numbers = #tpu.dot_dimension_numbers<[1], [0], [0], [1], [0, 0, 1, 1], [], []>} : vector<8x128xf32>, vector<128x512xf32>, vector<8x512xf32> -> vector<8x512xf32>
    %422 = arith.addf %420, %421 : vector<8x512xf32>
    %423 = vector.extract_strided_slice %416 {offsets = [0, 0], sizes = [8, 128], strides = [1, 1]} : vector<8x512xf32> to vector<8x128xf32>
    %424 = arith.negf %423 : vector<8x128xf32>
    %425 = math.exp %424 : vector<8x128xf32>
    %cst_129 = arith.constant 1.000000e+00 : f32
    %426 = vector.broadcast %cst_129 : f32 to vector<8x128xf32>
    %427 = arith.addf %426, %425 : vector<8x128xf32>
    %428 = arith.divf %426, %427 : vector<8x128xf32>
    %429 = vector.extract_strided_slice %416 {offsets = [0, 128], sizes = [8, 128], strides = [1, 1]} : vector<8x512xf32> to vector<8x128xf32>
    %430 = arith.negf %429 : vector<8x128xf32>
    %431 = math.exp %430 : vector<8x128xf32>
    %cst_130 = arith.constant 1.000000e+00 : f32
    %432 = vector.broadcast %cst_130 : f32 to vector<8x128xf32>
    %433 = arith.addf %432, %431 : vector<8x128xf32>
    %434 = arith.divf %432, %433 : vector<8x128xf32>
    %435 = vector.extract_strided_slice %416 {offsets = [0, 256], sizes = [8, 128], strides = [1, 1]} : vector<8x512xf32> to vector<8x128xf32>
    %436 = math.tanh %435 : vector<8x128xf32>
    %437 = vector.extract_strided_slice %416 {offsets = [0, 384], sizes = [8, 128], strides = [1, 1]} : vector<8x512xf32> to vector<8x128xf32>
    %438 = arith.negf %437 : vector<8x128xf32>
    %439 = math.exp %438 : vector<8x128xf32>
    %cst_131 = arith.constant 1.000000e+00 : f32
    %440 = vector.broadcast %cst_131 : f32 to vector<8x128xf32>
    %441 = arith.addf %440, %439 : vector<8x128xf32>
    %442 = arith.divf %440, %441 : vector<8x128xf32>
    %443 = arith.mulf %434, %383 : vector<8x128xf32>
    %444 = arith.mulf %428, %436 : vector<8x128xf32>
    %445 = arith.addf %443, %444 : vector<8x128xf32>
    %446 = math.tanh %445 : vector<8x128xf32>
    %447 = arith.mulf %442, %446 : vector<8x128xf32>
    %448 = vector.extract_strided_slice %422 {offsets = [0, 0], sizes = [8, 128], strides = [1, 1]} : vector<8x512xf32> to vector<8x128xf32>
    %449 = arith.negf %448 : vector<8x128xf32>
    %450 = math.exp %449 : vector<8x128xf32>
    %cst_132 = arith.constant 1.000000e+00 : f32
    %451 = vector.broadcast %cst_132 : f32 to vector<8x128xf32>
    %452 = arith.addf %451, %450 : vector<8x128xf32>
    %453 = arith.divf %451, %452 : vector<8x128xf32>
    %454 = vector.extract_strided_slice %422 {offsets = [0, 128], sizes = [8, 128], strides = [1, 1]} : vector<8x512xf32> to vector<8x128xf32>
    %455 = arith.negf %454 : vector<8x128xf32>
    %456 = math.exp %455 : vector<8x128xf32>
    %cst_133 = arith.constant 1.000000e+00 : f32
    %457 = vector.broadcast %cst_133 : f32 to vector<8x128xf32>
    %458 = arith.addf %457, %456 : vector<8x128xf32>
    %459 = arith.divf %457, %458 : vector<8x128xf32>
    %460 = vector.extract_strided_slice %422 {offsets = [0, 256], sizes = [8, 128], strides = [1, 1]} : vector<8x512xf32> to vector<8x128xf32>
    %461 = math.tanh %460 : vector<8x128xf32>
    %462 = vector.extract_strided_slice %422 {offsets = [0, 384], sizes = [8, 128], strides = [1, 1]} : vector<8x512xf32> to vector<8x128xf32>
    %463 = arith.negf %462 : vector<8x128xf32>
    %464 = math.exp %463 : vector<8x128xf32>
    %cst_134 = arith.constant 1.000000e+00 : f32
    %465 = vector.broadcast %cst_134 : f32 to vector<8x128xf32>
    %466 = arith.addf %465, %464 : vector<8x128xf32>
    %467 = arith.divf %465, %466 : vector<8x128xf32>
    %468 = arith.mulf %459, %385 : vector<8x128xf32>
    %469 = arith.mulf %453, %461 : vector<8x128xf32>
    %470 = arith.addf %468, %469 : vector<8x128xf32>
    %471 = math.tanh %470 : vector<8x128xf32>
    %472 = arith.mulf %467, %471 : vector<8x128xf32>
    %473 = vector.broadcast %410 : i32 to vector<8x1xi32>
    %474 = arith.cmpi slt, %473, %4 : vector<8x1xi32>
    %475 = vector.shape_cast %474 : vector<8x1xi1> to vector<8x1xi1>
    %476 = vector.broadcast %475 : vector<8x1xi1> to vector<8x128xi1>
    %477 = vector.broadcast %411 : i32 to vector<8x1xi32>
    %478 = arith.cmpi slt, %477, %4 : vector<8x1xi32>
    %479 = vector.shape_cast %478 : vector<8x1xi1> to vector<8x1xi1>
    %480 = vector.broadcast %479 : vector<8x1xi1> to vector<8x128xi1>
    %481 = arith.select %476, %447, %382 : vector<8x128xi1>, vector<8x128xf32>
    %482 = arith.select %476, %445, %383 : vector<8x128xi1>, vector<8x128xf32>
    %483 = arith.select %480, %472, %384 : vector<8x128xi1>, vector<8x128xf32>
    %484 = arith.select %480, %470, %385 : vector<8x128xi1>, vector<8x128xf32>
    %cst_135 = arith.constant 0.000000e+00 : f32
    %485 = vector.broadcast %cst_135 : f32 to vector<8x128xf32>
    %486 = arith.select %476, %447, %485 : vector<8x128xi1>, vector<8x128xf32>
    %487 = arith.index_cast %c4_i32 : i32 to index
    %c0_136 = arith.constant 0 : index
    %c0_137 = arith.constant 0 : index
    %488 = vector.load %arg7[%487, %c0_136, %c0_137] : memref<8x8x128xf32, #tpu.memory_space<vmem>>, vector<1x8x128xf32>
    %489 = vector.shape_cast %488 : vector<1x8x128xf32> to vector<8x128xf32>
    %490 = vector.shape_cast %486 : vector<8x128xf32> to vector<1x8x128xf32>
    tpu.vector_store %arg7[%487, %c0_136, %c0_137], %490 {strides = array<i32>} : memref<8x8x128xf32, #tpu.memory_space<vmem>>, vector<1x8x128xf32>,
    %cst_138 = arith.constant 0.000000e+00 : f32
    %491 = vector.broadcast %cst_138 : f32 to vector<8x128xf32>
    %492 = arith.select %480, %472, %491 : vector<8x128xi1>, vector<8x128xf32>
    %c7_i32_139 = arith.constant 7 : i32
    %493 = arith.subi %c7_i32_139, %c4_i32 : i32
    %494 = arith.index_cast %493 : i32 to index
    %c0_140 = arith.constant 0 : index
    %c0_141 = arith.constant 0 : index
    %495 = vector.load %arg8[%494, %c0_140, %c0_141] : memref<8x8x128xf32, #tpu.memory_space<vmem>>, vector<1x8x128xf32>
    %496 = vector.shape_cast %495 : vector<1x8x128xf32> to vector<8x128xf32>
    %497 = vector.shape_cast %492 : vector<8x128xf32> to vector<1x8x128xf32>
    tpu.vector_store %arg8[%494, %c0_140, %c0_141], %497 {strides = array<i32>} : memref<8x8x128xf32, #tpu.memory_space<vmem>>, vector<1x8x128xf32>,
    %498 = arith.cmpi slt, %410, %3 : i32
    %cst_142 = arith.constant 0.000000e+00 : f32
    %cst_143 = arith.constant 0xFF800000 : f32
    %499 = arith.select %498, %cst_142, %cst_143 : f32
    %500 = arith.cmpi slt, %411, %3 : i32
    %cst_144 = arith.constant 0.000000e+00 : f32
    %cst_145 = arith.constant 0xFF800000 : f32
    %501 = arith.select %500, %cst_144, %cst_145 : f32
    %502 = vector.broadcast %499 : f32 to vector<8x128xf32>
    %503 = arith.select %476, %447, %502 : vector<8x128xi1>, vector<8x128xf32>
    %504 = arith.maximumf %405, %503 : vector<8x128xf32>
    %505 = vector.broadcast %501 : f32 to vector<8x128xf32>
    %506 = arith.select %480, %472, %505 : vector<8x128xi1>, vector<8x128xf32>
    %507 = arith.maximumf %408, %506 : vector<8x128xf32>
    %c5_i32 = arith.constant 5 : i32
    %c8_i32_146 = arith.constant 8 : i32
    %508 = arith.muli %arg0, %c8_i32_146 : i32
    %509 = arith.addi %508, %c5_i32 : i32
    %c7_i32_147 = arith.constant 7 : i32
    %510 = arith.subi %c7_i32_147, %509 : i32
    %511 = arith.index_cast %c5_i32 : i32 to index
    %c0_148 = arith.constant 0 : index
    %c0_149 = arith.constant 0 : index
    %512 = vector.load %arg2[%511, %c0_148, %c0_149] : memref<8x8x512xf32, #tpu.memory_space<vmem>>, vector<1x8x512xf32>
    %513 = vector.shape_cast %512 : vector<1x8x512xf32> to vector<8x512xf32>
    %cst_150 = arith.constant dense<0.000000e+00> : vector<8x512xf32>
    %514 = tpu.matmul %481, %5, %cst_150 {dimension_numbers = #tpu.dot_dimension_numbers<[1], [0], [0], [1], [0, 0, 1, 1], [], []>} : vector<8x128xf32>, vector<128x512xf32>, vector<8x512xf32> -> vector<8x512xf32>
    %515 = arith.addf %513, %514 : vector<8x512xf32>
    %c7_i32_151 = arith.constant 7 : i32
    %516 = arith.subi %c7_i32_151, %c5_i32 : i32
    %517 = arith.index_cast %516 : i32 to index
    %c0_152 = arith.constant 0 : index
    %c0_153 = arith.constant 0 : index
    %518 = vector.load %arg3[%517, %c0_152, %c0_153] : memref<8x8x512xf32, #tpu.memory_space<vmem>>, vector<1x8x512xf32>
    %519 = vector.shape_cast %518 : vector<1x8x512xf32> to vector<8x512xf32>
    %cst_154 = arith.constant dense<0.000000e+00> : vector<8x512xf32>
    %520 = tpu.matmul %483, %6, %cst_154 {dimension_numbers = #tpu.dot_dimension_numbers<[1], [0], [0], [1], [0, 0, 1, 1], [], []>} : vector<8x128xf32>, vector<128x512xf32>, vector<8x512xf32> -> vector<8x512xf32>
    %521 = arith.addf %519, %520 : vector<8x512xf32>
    %522 = vector.extract_strided_slice %515 {offsets = [0, 0], sizes = [8, 128], strides = [1, 1]} : vector<8x512xf32> to vector<8x128xf32>
    %523 = arith.negf %522 : vector<8x128xf32>
    %524 = math.exp %523 : vector<8x128xf32>
    %cst_155 = arith.constant 1.000000e+00 : f32
    %525 = vector.broadcast %cst_155 : f32 to vector<8x128xf32>
    %526 = arith.addf %525, %524 : vector<8x128xf32>
    %527 = arith.divf %525, %526 : vector<8x128xf32>
    %528 = vector.extract_strided_slice %515 {offsets = [0, 128], sizes = [8, 128], strides = [1, 1]} : vector<8x512xf32> to vector<8x128xf32>
    %529 = arith.negf %528 : vector<8x128xf32>
    %530 = math.exp %529 : vector<8x128xf32>
    %cst_156 = arith.constant 1.000000e+00 : f32
    %531 = vector.broadcast %cst_156 : f32 to vector<8x128xf32>
    %532 = arith.addf %531, %530 : vector<8x128xf32>
    %533 = arith.divf %531, %532 : vector<8x128xf32>
    %534 = vector.extract_strided_slice %515 {offsets = [0, 256], sizes = [8, 128], strides = [1, 1]} : vector<8x512xf32> to vector<8x128xf32>
    %535 = math.tanh %534 : vector<8x128xf32>
    %536 = vector.extract_strided_slice %515 {offsets = [0, 384], sizes = [8, 128], strides = [1, 1]} : vector<8x512xf32> to vector<8x128xf32>
    %537 = arith.negf %536 : vector<8x128xf32>
    %538 = math.exp %537 : vector<8x128xf32>
    %cst_157 = arith.constant 1.000000e+00 : f32
    %539 = vector.broadcast %cst_157 : f32 to vector<8x128xf32>
    %540 = arith.addf %539, %538 : vector<8x128xf32>
    %541 = arith.divf %539, %540 : vector<8x128xf32>
    %542 = arith.mulf %533, %482 : vector<8x128xf32>
    %543 = arith.mulf %527, %535 : vector<8x128xf32>
    %544 = arith.addf %542, %543 : vector<8x128xf32>
    %545 = math.tanh %544 : vector<8x128xf32>
    %546 = arith.mulf %541, %545 : vector<8x128xf32>
    %547 = vector.extract_strided_slice %521 {offsets = [0, 0], sizes = [8, 128], strides = [1, 1]} : vector<8x512xf32> to vector<8x128xf32>
    %548 = arith.negf %547 : vector<8x128xf32>
    %549 = math.exp %548 : vector<8x128xf32>
    %cst_158 = arith.constant 1.000000e+00 : f32
    %550 = vector.broadcast %cst_158 : f32 to vector<8x128xf32>
    %551 = arith.addf %550, %549 : vector<8x128xf32>
    %552 = arith.divf %550, %551 : vector<8x128xf32>
    %553 = vector.extract_strided_slice %521 {offsets = [0, 128], sizes = [8, 128], strides = [1, 1]} : vector<8x512xf32> to vector<8x128xf32>
    %554 = arith.negf %553 : vector<8x128xf32>
    %555 = math.exp %554 : vector<8x128xf32>
    %cst_159 = arith.constant 1.000000e+00 : f32
    %556 = vector.broadcast %cst_159 : f32 to vector<8x128xf32>
    %557 = arith.addf %556, %555 : vector<8x128xf32>
    %558 = arith.divf %556, %557 : vector<8x128xf32>
    %559 = vector.extract_strided_slice %521 {offsets = [0, 256], sizes = [8, 128], strides = [1, 1]} : vector<8x512xf32> to vector<8x128xf32>
    %560 = math.tanh %559 : vector<8x128xf32>
    %561 = vector.extract_strided_slice %521 {offsets = [0, 384], sizes = [8, 128], strides = [1, 1]} : vector<8x512xf32> to vector<8x128xf32>
    %562 = arith.negf %561 : vector<8x128xf32>
    %563 = math.exp %562 : vector<8x128xf32>
    %cst_160 = arith.constant 1.000000e+00 : f32
    %564 = vector.broadcast %cst_160 : f32 to vector<8x128xf32>
    %565 = arith.addf %564, %563 : vector<8x128xf32>
    %566 = arith.divf %564, %565 : vector<8x128xf32>
    %567 = arith.mulf %558, %484 : vector<8x128xf32>
    %568 = arith.mulf %552, %560 : vector<8x128xf32>
    %569 = arith.addf %567, %568 : vector<8x128xf32>
    %570 = math.tanh %569 : vector<8x128xf32>
    %571 = arith.mulf %566, %570 : vector<8x128xf32>
    %572 = vector.broadcast %509 : i32 to vector<8x1xi32>
    %573 = arith.cmpi slt, %572, %4 : vector<8x1xi32>
    %574 = vector.shape_cast %573 : vector<8x1xi1> to vector<8x1xi1>
    %575 = vector.broadcast %574 : vector<8x1xi1> to vector<8x128xi1>
    %576 = vector.broadcast %510 : i32 to vector<8x1xi32>
    %577 = arith.cmpi slt, %576, %4 : vector<8x1xi32>
    %578 = vector.shape_cast %577 : vector<8x1xi1> to vector<8x1xi1>
    %579 = vector.broadcast %578 : vector<8x1xi1> to vector<8x128xi1>
    %580 = arith.select %575, %546, %481 : vector<8x128xi1>, vector<8x128xf32>
    %581 = arith.select %575, %544, %482 : vector<8x128xi1>, vector<8x128xf32>
    %582 = arith.select %579, %571, %483 : vector<8x128xi1>, vector<8x128xf32>
    %583 = arith.select %579, %569, %484 : vector<8x128xi1>, vector<8x128xf32>
    %cst_161 = arith.constant 0.000000e+00 : f32
    %584 = vector.broadcast %cst_161 : f32 to vector<8x128xf32>
    %585 = arith.select %575, %546, %584 : vector<8x128xi1>, vector<8x128xf32>
    %586 = arith.index_cast %c5_i32 : i32 to index
    %c0_162 = arith.constant 0 : index
    %c0_163 = arith.constant 0 : index
    %587 = vector.load %arg7[%586, %c0_162, %c0_163] : memref<8x8x128xf32, #tpu.memory_space<vmem>>, vector<1x8x128xf32>
    %588 = vector.shape_cast %587 : vector<1x8x128xf32> to vector<8x128xf32>
    %589 = vector.shape_cast %585 : vector<8x128xf32> to vector<1x8x128xf32>
    tpu.vector_store %arg7[%586, %c0_162, %c0_163], %589 {strides = array<i32>} : memref<8x8x128xf32, #tpu.memory_space<vmem>>, vector<1x8x128xf32>,
    %cst_164 = arith.constant 0.000000e+00 : f32
    %590 = vector.broadcast %cst_164 : f32 to vector<8x128xf32>
    %591 = arith.select %579, %571, %590 : vector<8x128xi1>, vector<8x128xf32>
    %c7_i32_165 = arith.constant 7 : i32
    %592 = arith.subi %c7_i32_165, %c5_i32 : i32
    %593 = arith.index_cast %592 : i32 to index
    %c0_166 = arith.constant 0 : index
    %c0_167 = arith.constant 0 : index
    %594 = vector.load %arg8[%593, %c0_166, %c0_167] : memref<8x8x128xf32, #tpu.memory_space<vmem>>, vector<1x8x128xf32>
    %595 = vector.shape_cast %594 : vector<1x8x128xf32> to vector<8x128xf32>
    %596 = vector.shape_cast %591 : vector<8x128xf32> to vector<1x8x128xf32>
    tpu.vector_store %arg8[%593, %c0_166, %c0_167], %596 {strides = array<i32>} : memref<8x8x128xf32, #tpu.memory_space<vmem>>, vector<1x8x128xf32>,
    %597 = arith.cmpi slt, %509, %3 : i32
    %cst_168 = arith.constant 0.000000e+00 : f32
    %cst_169 = arith.constant 0xFF800000 : f32
    %598 = arith.select %597, %cst_168, %cst_169 : f32
    %599 = arith.cmpi slt, %510, %3 : i32
    %cst_170 = arith.constant 0.000000e+00 : f32
    %cst_171 = arith.constant 0xFF800000 : f32
    %600 = arith.select %599, %cst_170, %cst_171 : f32
    %601 = vector.broadcast %598 : f32 to vector<8x128xf32>
    %602 = arith.select %575, %546, %601 : vector<8x128xi1>, vector<8x128xf32>
    %603 = arith.maximumf %504, %602 : vector<8x128xf32>
    %604 = vector.broadcast %600 : f32 to vector<8x128xf32>
    %605 = arith.select %579, %571, %604 : vector<8x128xi1>, vector<8x128xf32>
    %606 = arith.maximumf %507, %605 : vector<8x128xf32>
    %c6_i32 = arith.constant 6 : i32
    %c8_i32_172 = arith.constant 8 : i32
    %607 = arith.muli %arg0, %c8_i32_172 : i32
    %608 = arith.addi %607, %c6_i32 : i32
    %c7_i32_173 = arith.constant 7 : i32
    %609 = arith.subi %c7_i32_173, %608 : i32
    %610 = arith.index_cast %c6_i32 : i32 to index
    %c0_174 = arith.constant 0 : index
    %c0_175 = arith.constant 0 : index
    %611 = vector.load %arg2[%610, %c0_174, %c0_175] : memref<8x8x512xf32, #tpu.memory_space<vmem>>, vector<1x8x512xf32>
    %612 = vector.shape_cast %611 : vector<1x8x512xf32> to vector<8x512xf32>
    %cst_176 = arith.constant dense<0.000000e+00> : vector<8x512xf32>
    %613 = tpu.matmul %580, %5, %cst_176 {dimension_numbers = #tpu.dot_dimension_numbers<[1], [0], [0], [1], [0, 0, 1, 1], [], []>} : vector<8x128xf32>, vector<128x512xf32>, vector<8x512xf32> -> vector<8x512xf32>
    %614 = arith.addf %612, %613 : vector<8x512xf32>
    %c7_i32_177 = arith.constant 7 : i32
    %615 = arith.subi %c7_i32_177, %c6_i32 : i32
    %616 = arith.index_cast %615 : i32 to index
    %c0_178 = arith.constant 0 : index
    %c0_179 = arith.constant 0 : index
    %617 = vector.load %arg3[%616, %c0_178, %c0_179] : memref<8x8x512xf32, #tpu.memory_space<vmem>>, vector<1x8x512xf32>
    %618 = vector.shape_cast %617 : vector<1x8x512xf32> to vector<8x512xf32>
    %cst_180 = arith.constant dense<0.000000e+00> : vector<8x512xf32>
    %619 = tpu.matmul %582, %6, %cst_180 {dimension_numbers = #tpu.dot_dimension_numbers<[1], [0], [0], [1], [0, 0, 1, 1], [], []>} : vector<8x128xf32>, vector<128x512xf32>, vector<8x512xf32> -> vector<8x512xf32>
    %620 = arith.addf %618, %619 : vector<8x512xf32>
    %621 = vector.extract_strided_slice %614 {offsets = [0, 0], sizes = [8, 128], strides = [1, 1]} : vector<8x512xf32> to vector<8x128xf32>
    %622 = arith.negf %621 : vector<8x128xf32>
    %623 = math.exp %622 : vector<8x128xf32>
    %cst_181 = arith.constant 1.000000e+00 : f32
    %624 = vector.broadcast %cst_181 : f32 to vector<8x128xf32>
    %625 = arith.addf %624, %623 : vector<8x128xf32>
    %626 = arith.divf %624, %625 : vector<8x128xf32>
    %627 = vector.extract_strided_slice %614 {offsets = [0, 128], sizes = [8, 128], strides = [1, 1]} : vector<8x512xf32> to vector<8x128xf32>
    %628 = arith.negf %627 : vector<8x128xf32>
    %629 = math.exp %628 : vector<8x128xf32>
    %cst_182 = arith.constant 1.000000e+00 : f32
    %630 = vector.broadcast %cst_182 : f32 to vector<8x128xf32>
    %631 = arith.addf %630, %629 : vector<8x128xf32>
    %632 = arith.divf %630, %631 : vector<8x128xf32>
    %633 = vector.extract_strided_slice %614 {offsets = [0, 256], sizes = [8, 128], strides = [1, 1]} : vector<8x512xf32> to vector<8x128xf32>
    %634 = math.tanh %633 : vector<8x128xf32>
    %635 = vector.extract_strided_slice %614 {offsets = [0, 384], sizes = [8, 128], strides = [1, 1]} : vector<8x512xf32> to vector<8x128xf32>
    %636 = arith.negf %635 : vector<8x128xf32>
    %637 = math.exp %636 : vector<8x128xf32>
    %cst_183 = arith.constant 1.000000e+00 : f32
    %638 = vector.broadcast %cst_183 : f32 to vector<8x128xf32>
    %639 = arith.addf %638, %637 : vector<8x128xf32>
    %640 = arith.divf %638, %639 : vector<8x128xf32>
    %641 = arith.mulf %632, %581 : vector<8x128xf32>
    %642 = arith.mulf %626, %634 : vector<8x128xf32>
    %643 = arith.addf %641, %642 : vector<8x128xf32>
    %644 = math.tanh %643 : vector<8x128xf32>
    %645 = arith.mulf %640, %644 : vector<8x128xf32>
    %646 = vector.extract_strided_slice %620 {offsets = [0, 0], sizes = [8, 128], strides = [1, 1]} : vector<8x512xf32> to vector<8x128xf32>
    %647 = arith.negf %646 : vector<8x128xf32>
    %648 = math.exp %647 : vector<8x128xf32>
    %cst_184 = arith.constant 1.000000e+00 : f32
    %649 = vector.broadcast %cst_184 : f32 to vector<8x128xf32>
    %650 = arith.addf %649, %648 : vector<8x128xf32>
    %651 = arith.divf %649, %650 : vector<8x128xf32>
    %652 = vector.extract_strided_slice %620 {offsets = [0, 128], sizes = [8, 128], strides = [1, 1]} : vector<8x512xf32> to vector<8x128xf32>
    %653 = arith.negf %652 : vector<8x128xf32>
    %654 = math.exp %653 : vector<8x128xf32>
    %cst_185 = arith.constant 1.000000e+00 : f32
    %655 = vector.broadcast %cst_185 : f32 to vector<8x128xf32>
    %656 = arith.addf %655, %654 : vector<8x128xf32>
    %657 = arith.divf %655, %656 : vector<8x128xf32>
    %658 = vector.extract_strided_slice %620 {offsets = [0, 256], sizes = [8, 128], strides = [1, 1]} : vector<8x512xf32> to vector<8x128xf32>
    %659 = math.tanh %658 : vector<8x128xf32>
    %660 = vector.extract_strided_slice %620 {offsets = [0, 384], sizes = [8, 128], strides = [1, 1]} : vector<8x512xf32> to vector<8x128xf32>
    %661 = arith.negf %660 : vector<8x128xf32>
    %662 = math.exp %661 : vector<8x128xf32>
    %cst_186 = arith.constant 1.000000e+00 : f32
    %663 = vector.broadcast %cst_186 : f32 to vector<8x128xf32>
    %664 = arith.addf %663, %662 : vector<8x128xf32>
    %665 = arith.divf %663, %664 : vector<8x128xf32>
    %666 = arith.mulf %657, %583 : vector<8x128xf32>
    %667 = arith.mulf %651, %659 : vector<8x128xf32>
    %668 = arith.addf %666, %667 : vector<8x128xf32>
    %669 = math.tanh %668 : vector<8x128xf32>
    %670 = arith.mulf %665, %669 : vector<8x128xf32>
    %671 = vector.broadcast %608 : i32 to vector<8x1xi32>
    %672 = arith.cmpi slt, %671, %4 : vector<8x1xi32>
    %673 = vector.shape_cast %672 : vector<8x1xi1> to vector<8x1xi1>
    %674 = vector.broadcast %673 : vector<8x1xi1> to vector<8x128xi1>
    %675 = vector.broadcast %609 : i32 to vector<8x1xi32>
    %676 = arith.cmpi slt, %675, %4 : vector<8x1xi32>
    %677 = vector.shape_cast %676 : vector<8x1xi1> to vector<8x1xi1>
    %678 = vector.broadcast %677 : vector<8x1xi1> to vector<8x128xi1>
    %679 = arith.select %674, %645, %580 : vector<8x128xi1>, vector<8x128xf32>
    %680 = arith.select %674, %643, %581 : vector<8x128xi1>, vector<8x128xf32>
    %681 = arith.select %678, %670, %582 : vector<8x128xi1>, vector<8x128xf32>
    %682 = arith.select %678, %668, %583 : vector<8x128xi1>, vector<8x128xf32>
    %cst_187 = arith.constant 0.000000e+00 : f32
    %683 = vector.broadcast %cst_187 : f32 to vector<8x128xf32>
    %684 = arith.select %674, %645, %683 : vector<8x128xi1>, vector<8x128xf32>
    %685 = arith.index_cast %c6_i32 : i32 to index
    %c0_188 = arith.constant 0 : index
    %c0_189 = arith.constant 0 : index
    %686 = vector.load %arg7[%685, %c0_188, %c0_189] : memref<8x8x128xf32, #tpu.memory_space<vmem>>, vector<1x8x128xf32>
    %687 = vector.shape_cast %686 : vector<1x8x128xf32> to vector<8x128xf32>
    %688 = vector.shape_cast %684 : vector<8x128xf32> to vector<1x8x128xf32>
    tpu.vector_store %arg7[%685, %c0_188, %c0_189], %688 {strides = array<i32>} : memref<8x8x128xf32, #tpu.memory_space<vmem>>, vector<1x8x128xf32>,
    %cst_190 = arith.constant 0.000000e+00 : f32
    %689 = vector.broadcast %cst_190 : f32 to vector<8x128xf32>
    %690 = arith.select %678, %670, %689 : vector<8x128xi1>, vector<8x128xf32>
    %c7_i32_191 = arith.constant 7 : i32
    %691 = arith.subi %c7_i32_191, %c6_i32 : i32
    %692 = arith.index_cast %691 : i32 to index
    %c0_192 = arith.constant 0 : index
    %c0_193 = arith.constant 0 : index
    %693 = vector.load %arg8[%692, %c0_192, %c0_193] : memref<8x8x128xf32, #tpu.memory_space<vmem>>, vector<1x8x128xf32>
    %694 = vector.shape_cast %693 : vector<1x8x128xf32> to vector<8x128xf32>
    %695 = vector.shape_cast %690 : vector<8x128xf32> to vector<1x8x128xf32>
    tpu.vector_store %arg8[%692, %c0_192, %c0_193], %695 {strides = array<i32>} : memref<8x8x128xf32, #tpu.memory_space<vmem>>, vector<1x8x128xf32>,
    %696 = arith.cmpi slt, %608, %3 : i32
    %cst_194 = arith.constant 0.000000e+00 : f32
    %cst_195 = arith.constant 0xFF800000 : f32
    %697 = arith.select %696, %cst_194, %cst_195 : f32
    %698 = arith.cmpi slt, %609, %3 : i32
    %cst_196 = arith.constant 0.000000e+00 : f32
    %cst_197 = arith.constant 0xFF800000 : f32
    %699 = arith.select %698, %cst_196, %cst_197 : f32
    %700 = vector.broadcast %697 : f32 to vector<8x128xf32>
    %701 = arith.select %674, %645, %700 : vector<8x128xi1>, vector<8x128xf32>
    %702 = arith.maximumf %603, %701 : vector<8x128xf32>
    %703 = vector.broadcast %699 : f32 to vector<8x128xf32>
    %704 = arith.select %678, %670, %703 : vector<8x128xi1>, vector<8x128xf32>
    %705 = arith.maximumf %606, %704 : vector<8x128xf32>
    %c7_i32_198 = arith.constant 7 : i32
    %c8_i32_199 = arith.constant 8 : i32
    %706 = arith.muli %arg0, %c8_i32_199 : i32
    %707 = arith.addi %706, %c7_i32_198 : i32
    %c7_i32_200 = arith.constant 7 : i32
    %708 = arith.subi %c7_i32_200, %707 : i32
    %709 = arith.index_cast %c7_i32_198 : i32 to index
    %c0_201 = arith.constant 0 : index
    %c0_202 = arith.constant 0 : index
    %710 = vector.load %arg2[%709, %c0_201, %c0_202] : memref<8x8x512xf32, #tpu.memory_space<vmem>>, vector<1x8x512xf32>
    %711 = vector.shape_cast %710 : vector<1x8x512xf32> to vector<8x512xf32>
    %cst_203 = arith.constant dense<0.000000e+00> : vector<8x512xf32>
    %712 = tpu.matmul %679, %5, %cst_203 {dimension_numbers = #tpu.dot_dimension_numbers<[1], [0], [0], [1], [0, 0, 1, 1], [], []>} : vector<8x128xf32>, vector<128x512xf32>, vector<8x512xf32> -> vector<8x512xf32>
    %713 = arith.addf %711, %712 : vector<8x512xf32>
    %c7_i32_204 = arith.constant 7 : i32
    %714 = arith.subi %c7_i32_204, %c7_i32_198 : i32
    %715 = arith.index_cast %714 : i32 to index
    %c0_205 = arith.constant 0 : index
    %c0_206 = arith.constant 0 : index
    %716 = vector.load %arg3[%715, %c0_205, %c0_206] : memref<8x8x512xf32, #tpu.memory_space<vmem>>, vector<1x8x512xf32>
    %717 = vector.shape_cast %716 : vector<1x8x512xf32> to vector<8x512xf32>
    %cst_207 = arith.constant dense<0.000000e+00> : vector<8x512xf32>
    %718 = tpu.matmul %681, %6, %cst_207 {dimension_numbers = #tpu.dot_dimension_numbers<[1], [0], [0], [1], [0, 0, 1, 1], [], []>} : vector<8x128xf32>, vector<128x512xf32>, vector<8x512xf32> -> vector<8x512xf32>
    %719 = arith.addf %717, %718 : vector<8x512xf32>
    %720 = vector.extract_strided_slice %713 {offsets = [0, 0], sizes = [8, 128], strides = [1, 1]} : vector<8x512xf32> to vector<8x128xf32>
    %721 = arith.negf %720 : vector<8x128xf32>
    %722 = math.exp %721 : vector<8x128xf32>
    %cst_208 = arith.constant 1.000000e+00 : f32
    %723 = vector.broadcast %cst_208 : f32 to vector<8x128xf32>
    %724 = arith.addf %723, %722 : vector<8x128xf32>
    %725 = arith.divf %723, %724 : vector<8x128xf32>
    %726 = vector.extract_strided_slice %713 {offsets = [0, 128], sizes = [8, 128], strides = [1, 1]} : vector<8x512xf32> to vector<8x128xf32>
    %727 = arith.negf %726 : vector<8x128xf32>
    %728 = math.exp %727 : vector<8x128xf32>
    %cst_209 = arith.constant 1.000000e+00 : f32
    %729 = vector.broadcast %cst_209 : f32 to vector<8x128xf32>
    %730 = arith.addf %729, %728 : vector<8x128xf32>
    %731 = arith.divf %729, %730 : vector<8x128xf32>
    %732 = vector.extract_strided_slice %713 {offsets = [0, 256], sizes = [8, 128], strides = [1, 1]} : vector<8x512xf32> to vector<8x128xf32>
    %733 = math.tanh %732 : vector<8x128xf32>
    %734 = vector.extract_strided_slice %713 {offsets = [0, 384], sizes = [8, 128], strides = [1, 1]} : vector<8x512xf32> to vector<8x128xf32>
    %735 = arith.negf %734 : vector<8x128xf32>
    %736 = math.exp %735 : vector<8x128xf32>
    %cst_210 = arith.constant 1.000000e+00 : f32
    %737 = vector.broadcast %cst_210 : f32 to vector<8x128xf32>
    %738 = arith.addf %737, %736 : vector<8x128xf32>
    %739 = arith.divf %737, %738 : vector<8x128xf32>
    %740 = arith.mulf %731, %680 : vector<8x128xf32>
    %741 = arith.mulf %725, %733 : vector<8x128xf32>
    %742 = arith.addf %740, %741 : vector<8x128xf32>
    %743 = math.tanh %742 : vector<8x128xf32>
    %744 = arith.mulf %739, %743 : vector<8x128xf32>
    %745 = vector.extract_strided_slice %719 {offsets = [0, 0], sizes = [8, 128], strides = [1, 1]} : vector<8x512xf32> to vector<8x128xf32>
    %746 = arith.negf %745 : vector<8x128xf32>
    %747 = math.exp %746 : vector<8x128xf32>
    %cst_211 = arith.constant 1.000000e+00 : f32
    %748 = vector.broadcast %cst_211 : f32 to vector<8x128xf32>
    %749 = arith.addf %748, %747 : vector<8x128xf32>
    %750 = arith.divf %748, %749 : vector<8x128xf32>
    %751 = vector.extract_strided_slice %719 {offsets = [0, 128], sizes = [8, 128], strides = [1, 1]} : vector<8x512xf32> to vector<8x128xf32>
    %752 = arith.negf %751 : vector<8x128xf32>
    %753 = math.exp %752 : vector<8x128xf32>
    %cst_212 = arith.constant 1.000000e+00 : f32
    %754 = vector.broadcast %cst_212 : f32 to vector<8x128xf32>
    %755 = arith.addf %754, %753 : vector<8x128xf32>
    %756 = arith.divf %754, %755 : vector<8x128xf32>
    %757 = vector.extract_strided_slice %719 {offsets = [0, 256], sizes = [8, 128], strides = [1, 1]} : vector<8x512xf32> to vector<8x128xf32>
    %758 = math.tanh %757 : vector<8x128xf32>
    %759 = vector.extract_strided_slice %719 {offsets = [0, 384], sizes = [8, 128], strides = [1, 1]} : vector<8x512xf32> to vector<8x128xf32>
    %760 = arith.negf %759 : vector<8x128xf32>
    %761 = math.exp %760 : vector<8x128xf32>
    %cst_213 = arith.constant 1.000000e+00 : f32
    %762 = vector.broadcast %cst_213 : f32 to vector<8x128xf32>
    %763 = arith.addf %762, %761 : vector<8x128xf32>
    %764 = arith.divf %762, %763 : vector<8x128xf32>
    %765 = arith.mulf %756, %682 : vector<8x128xf32>
    %766 = arith.mulf %750, %758 : vector<8x128xf32>
    %767 = arith.addf %765, %766 : vector<8x128xf32>
    %768 = math.tanh %767 : vector<8x128xf32>
    %769 = arith.mulf %764, %768 : vector<8x128xf32>
    %770 = vector.broadcast %707 : i32 to vector<8x1xi32>
    %771 = arith.cmpi slt, %770, %4 : vector<8x1xi32>
    %772 = vector.shape_cast %771 : vector<8x1xi1> to vector<8x1xi1>
    %773 = vector.broadcast %772 : vector<8x1xi1> to vector<8x128xi1>
    %774 = vector.broadcast %708 : i32 to vector<8x1xi32>
    %775 = arith.cmpi slt, %774, %4 : vector<8x1xi32>
    %776 = vector.shape_cast %775 : vector<8x1xi1> to vector<8x1xi1>
    %777 = vector.broadcast %776 : vector<8x1xi1> to vector<8x128xi1>
    %778 = arith.select %773, %744, %679 : vector<8x128xi1>, vector<8x128xf32>
    %779 = arith.select %773, %742, %680 : vector<8x128xi1>, vector<8x128xf32>
    %780 = arith.select %777, %769, %681 : vector<8x128xi1>, vector<8x128xf32>
    %781 = arith.select %777, %767, %682 : vector<8x128xi1>, vector<8x128xf32>
    %cst_214 = arith.constant 0.000000e+00 : f32
    %782 = vector.broadcast %cst_214 : f32 to vector<8x128xf32>
    %783 = arith.select %773, %744, %782 : vector<8x128xi1>, vector<8x128xf32>
    %784 = arith.index_cast %c7_i32_198 : i32 to index
    %c0_215 = arith.constant 0 : index
    %c0_216 = arith.constant 0 : index
    %785 = vector.load %arg7[%784, %c0_215, %c0_216] : memref<8x8x128xf32, #tpu.memory_space<vmem>>, vector<1x8x128xf32>
    %786 = vector.shape_cast %785 : vector<1x8x128xf32> to vector<8x128xf32>
    %787 = vector.shape_cast %783 : vector<8x128xf32> to vector<1x8x128xf32>
    tpu.vector_store %arg7[%784, %c0_215, %c0_216], %787 {strides = array<i32>} : memref<8x8x128xf32, #tpu.memory_space<vmem>>, vector<1x8x128xf32>,
    %cst_217 = arith.constant 0.000000e+00 : f32
    %788 = vector.broadcast %cst_217 : f32 to vector<8x128xf32>
    %789 = arith.select %777, %769, %788 : vector<8x128xi1>, vector<8x128xf32>
    %c7_i32_218 = arith.constant 7 : i32
    %790 = arith.subi %c7_i32_218, %c7_i32_198 : i32
    %791 = arith.index_cast %790 : i32 to index
    %c0_219 = arith.constant 0 : index
    %c0_220 = arith.constant 0 : index
    %792 = vector.load %arg8[%791, %c0_219, %c0_220] : memref<8x8x128xf32, #tpu.memory_space<vmem>>, vector<1x8x128xf32>
    %793 = vector.shape_cast %792 : vector<1x8x128xf32> to vector<8x128xf32>
    %794 = vector.shape_cast %789 : vector<8x128xf32> to vector<1x8x128xf32>
    tpu.vector_store %arg8[%791, %c0_219, %c0_220], %794 {strides = array<i32>} : memref<8x8x128xf32, #tpu.memory_space<vmem>>, vector<1x8x128xf32>,
    %795 = arith.cmpi slt, %707, %3 : i32
    %cst_221 = arith.constant 0.000000e+00 : f32
    %cst_222 = arith.constant 0xFF800000 : f32
    %796 = arith.select %795, %cst_221, %cst_222 : f32
    %797 = arith.cmpi slt, %708, %3 : i32
    %cst_223 = arith.constant 0.000000e+00 : f32
    %cst_224 = arith.constant 0xFF800000 : f32
    %798 = arith.select %797, %cst_223, %cst_224 : f32
    %799 = vector.broadcast %796 : f32 to vector<8x128xf32>
    %800 = arith.select %773, %744, %799 : vector<8x128xi1>, vector<8x128xf32>
    %801 = arith.maximumf %702, %800 : vector<8x128xf32>
    %802 = vector.broadcast %798 : f32 to vector<8x128xf32>
    %803 = arith.select %777, %769, %802 : vector<8x128xi1>, vector<8x128xf32>
    %804 = arith.maximumf %705, %803 : vector<8x128xf32>
    %c8_i32_225 = arith.constant 8 : i32
    %c0_226 = arith.constant 0 : index
    %c0_227 = arith.constant 0 : index
    %805 = vector.load %arg10[%c0_226, %c0_227] : memref<8x128xf32, #tpu.memory_space<vmem>>, vector<8x128xf32>
    tpu.vector_store %arg10[%c0_226, %c0_227], %778 {strides = array<i32>} : memref<8x128xf32, #tpu.memory_space<vmem>>, vector<8x128xf32>,
    %c0_228 = arith.constant 0 : index
    %c0_229 = arith.constant 0 : index
    %806 = vector.load %arg11[%c0_228, %c0_229] : memref<8x128xf32, #tpu.memory_space<vmem>>, vector<8x128xf32>
    tpu.vector_store %arg11[%c0_228, %c0_229], %779 {strides = array<i32>} : memref<8x128xf32, #tpu.memory_space<vmem>>, vector<8x128xf32>,
    %c0_230 = arith.constant 0 : index
    %c0_231 = arith.constant 0 : index
    %807 = vector.load %arg12[%c0_230, %c0_231] : memref<8x128xf32, #tpu.memory_space<vmem>>, vector<8x128xf32>
    tpu.vector_store %arg12[%c0_230, %c0_231], %780 {strides = array<i32>} : memref<8x128xf32, #tpu.memory_space<vmem>>, vector<8x128xf32>,
    %c0_232 = arith.constant 0 : index
    %c0_233 = arith.constant 0 : index
    %808 = vector.load %arg13[%c0_232, %c0_233] : memref<8x128xf32, #tpu.memory_space<vmem>>, vector<8x128xf32>
    tpu.vector_store %arg13[%c0_232, %c0_233], %781 {strides = array<i32>} : memref<8x128xf32, #tpu.memory_space<vmem>>, vector<8x128xf32>,
    %c0_234 = arith.constant 0 : index
    %c0_235 = arith.constant 0 : index
    %809 = vector.load %arg9[%c0_234, %c0_235] : memref<8x256xf32, #tpu.memory_space<vmem>>, vector<8x128xf32>
    tpu.vector_store %arg9[%c0_234, %c0_235], %801 {strides = array<i32>} : memref<8x256xf32, #tpu.memory_space<vmem>>, vector<8x128xf32>,
    %c0_236 = arith.constant 0 : index
    %c128_237 = arith.constant 128 : index
    %810 = vector.load %arg9[%c0_236, %c128_237] : memref<8x256xf32, #tpu.memory_space<vmem>>, vector<8x128xf32>
    tpu.vector_store %arg9[%c0_236, %c128_237], %804 {strides = array<i32>} : memref<8x256xf32, #tpu.memory_space<vmem>>, vector<8x128xf32>,
    return
  }
  func.func @transform_0(%arg0: i32, %arg1: memref<1xi32, #tpu.memory_space<smem>>) -> (i32, i32, i32) {
    %c0_i32 = arith.constant 0 : i32
    %c0_i32_0 = arith.constant 0 : i32
    %c0_i32_1 = arith.constant 0 : i32
    return %arg0, %c0_i32, %c0_i32_0 : i32, i32, i32
  }
  func.func @transform_1(%arg0: i32, %arg1: memref<1xi32, #tpu.memory_space<smem>>) -> (i32, i32, i32) {
    %c0_i32 = arith.constant 0 : i32
    %0 = arith.subi %c0_i32, %arg0 : i32
    %c0_i32_0 = arith.constant 0 : i32
    %c0_i32_1 = arith.constant 0 : i32
    %c0_i32_2 = arith.constant 0 : i32
    return %0, %c0_i32_0, %c0_i32_1 : i32, i32, i32
  }
  func.func @transform_2(%arg0: i32, %arg1: memref<1xi32, #tpu.memory_space<smem>>) -> (i32, i32) {
    %c0_i32 = arith.constant 0 : i32
    %c0_i32_0 = arith.constant 0 : i32
    %c0_i32_1 = arith.constant 0 : i32
    return %c0_i32, %c0_i32_0 : i32, i32
  }
  func.func @transform_3(%arg0: i32, %arg1: memref<1xi32, #tpu.memory_space<smem>>) -> (i32, i32) {
    %c0_i32 = arith.constant 0 : i32
    %c0_i32_0 = arith.constant 0 : i32
    %c0_i32_1 = arith.constant 0 : i32
    return %c0_i32, %c0_i32_0 : i32, i32
  }
  func.func @transform_4(%arg0: i32, %arg1: memref<1xi32, #tpu.memory_space<smem>>) -> (i32, i32) {
    %c0_i32 = arith.constant 0 : i32
    %c0_i32_0 = arith.constant 0 : i32
    %c0_i32_1 = arith.constant 0 : i32
    return %c0_i32, %c0_i32_0 : i32, i32
  }
  func.func @transform_5(%arg0: i32, %arg1: memref<1xi32, #tpu.memory_space<smem>>) -> (i32, i32, i32) {
    %c0_i32 = arith.constant 0 : i32
    %c0_i32_0 = arith.constant 0 : i32
    %c0_i32_1 = arith.constant 0 : i32
    return %arg0, %c0_i32, %c0_i32_0 : i32, i32, i32
  }
  func.func @transform_6(%arg0: i32, %arg1: memref<1xi32, #tpu.memory_space<smem>>) -> (i32, i32, i32) {
    %c0_i32 = arith.constant 0 : i32
    %0 = arith.subi %c0_i32, %arg0 : i32
    %c0_i32_0 = arith.constant 0 : i32
    %c0_i32_1 = arith.constant 0 : i32
    %c0_i32_2 = arith.constant 0 : i32
    return %0, %c0_i32_0, %c0_i32_1 : i32, i32, i32
  }
  func.func @transform_7(%arg0: i32, %arg1: memref<1xi32, #tpu.memory_space<smem>>) -> (i32, i32) {
    %c0_i32 = arith.constant 0 : i32
    %c0_i32_0 = arith.constant 0 : i32
    %c0_i32_1 = arith.constant 0 : i32
    return %c0_i32, %c0_i32_0 : i32, i32
  }
}

module attributes {stable_mosaic.version = 11 : i64} {
  func.func @_bilstm_chunk_kernel(%arg0: i32, %arg1: memref<1xi32, #tpu.memory_space<smem>>, %arg2: memref<8x8x512xf32, #tpu.memory_space<vmem>>, %arg3: memref<8x8x512xf32, #tpu.memory_space<vmem>>, %arg4: memref<8x1xi32, #tpu.memory_space<vmem>>, %arg5: memref<128x512xf32, #tpu.memory_space<vmem>>, %arg6: memref<128x512xf32, #tpu.memory_space<vmem>>, %arg7: memref<8x256xf32, #tpu.memory_space<vmem>>, %arg8: memref<8x128xf32, #tpu.memory_space<vmem>>, %arg9: memref<8x128xf32, #tpu.memory_space<vmem>>, %arg10: memref<8x128xf32, #tpu.memory_space<vmem>>, %arg11: memref<8x128xf32, #tpu.memory_space<vmem>>) attributes {dimension_semantics = [#tpu.dimension_semantics<arbitrary>], iteration_bounds = array<i64: 1>, scalar_prefetch = 1 : i64, scratch_operands = 4 : i64, tpu.core_type = #tpu.core_type<tc>, window_params = [{transform_indices = @transform_0, window_bounds = array<i64: 8, 8, 512>}, {transform_indices = @transform_1, window_bounds = array<i64: 8, 8, 512>}, {pipeline_mode = #tpu.pipeline_mode<synchronous>, transform_indices = @transform_2, window_bounds = array<i64: 8, 1>}, {pipeline_mode = #tpu.pipeline_mode<synchronous>, transform_indices = @transform_3, window_bounds = array<i64: 128, 512>}, {pipeline_mode = #tpu.pipeline_mode<synchronous>, transform_indices = @transform_4, window_bounds = array<i64: 128, 512>}, {pipeline_mode = #tpu.pipeline_mode<synchronous>, transform_indices = @transform_5, window_bounds = array<i64: 8, 256>}]} {
    %c0_i32 = arith.constant 0 : i32
    %0 = arith.cmpi eq, %arg0, %c0_i32 : i32
    %1 = arith.extui %0 : i1 to i32
    %c0_i32_0 = arith.constant 0 : i32
    %2 = arith.cmpi ne, %1, %c0_i32_0 : i32
    scf.if %2 {
      %cst_182 = arith.constant 0.000000e+00 : f32
      %707 = vector.broadcast %cst_182 : f32 to vector<8x128xf32>
      %c0_183 = arith.constant 0 : index
      %c0_184 = arith.constant 0 : index
      %708 = vector.load %arg8[%c0_183, %c0_184] : memref<8x128xf32, #tpu.memory_space<vmem>>, vector<8x128xf32>
      tpu.vector_store %arg8[%c0_183, %c0_184], %707 {strides = array<i32>} : memref<8x128xf32, #tpu.memory_space<vmem>>, vector<8x128xf32>,
      %cst_185 = arith.constant 0.000000e+00 : f32
      %709 = vector.broadcast %cst_185 : f32 to vector<8x128xf32>
      %c0_186 = arith.constant 0 : index
      %c0_187 = arith.constant 0 : index
      %710 = vector.load %arg9[%c0_186, %c0_187] : memref<8x128xf32, #tpu.memory_space<vmem>>, vector<8x128xf32>
      tpu.vector_store %arg9[%c0_186, %c0_187], %709 {strides = array<i32>} : memref<8x128xf32, #tpu.memory_space<vmem>>, vector<8x128xf32>,
      %cst_188 = arith.constant 0.000000e+00 : f32
      %711 = vector.broadcast %cst_188 : f32 to vector<8x128xf32>
      %c0_189 = arith.constant 0 : index
      %c0_190 = arith.constant 0 : index
      %712 = vector.load %arg10[%c0_189, %c0_190] : memref<8x128xf32, #tpu.memory_space<vmem>>, vector<8x128xf32>
      tpu.vector_store %arg10[%c0_189, %c0_190], %711 {strides = array<i32>} : memref<8x128xf32, #tpu.memory_space<vmem>>, vector<8x128xf32>,
      %cst_191 = arith.constant 0.000000e+00 : f32
      %713 = vector.broadcast %cst_191 : f32 to vector<8x128xf32>
      %c0_192 = arith.constant 0 : index
      %c0_193 = arith.constant 0 : index
      %714 = vector.load %arg11[%c0_192, %c0_193] : memref<8x128xf32, #tpu.memory_space<vmem>>, vector<8x128xf32>
      tpu.vector_store %arg11[%c0_192, %c0_193], %713 {strides = array<i32>} : memref<8x128xf32, #tpu.memory_space<vmem>>, vector<8x128xf32>,
      %cst_194 = arith.constant 0xFF800000 : f32
      %715 = vector.broadcast %cst_194 : f32 to vector<8x256xf32>
      %c0_195 = arith.constant 0 : index
      %c0_196 = arith.constant 0 : index
      %716 = vector.load %arg7[%c0_195, %c0_196] : memref<8x256xf32, #tpu.memory_space<vmem>>, vector<8x256xf32>
      tpu.vector_store %arg7[%c0_195, %c0_196], %715 {strides = array<i32>} : memref<8x256xf32, #tpu.memory_space<vmem>>, vector<8x256xf32>,
    } else {
    }
    %c0 = arith.constant 0 : index
    %3 = memref.load %arg1[%c0] : memref<1xi32, #tpu.memory_space<smem>>
    %c0_1 = arith.constant 0 : index
    %c0_2 = arith.constant 0 : index
    %4 = vector.load %arg4[%c0_1, %c0_2] : memref<8x1xi32, #tpu.memory_space<vmem>>, vector<8x1xi32>
    %c0_3 = arith.constant 0 : index
    %c0_4 = arith.constant 0 : index
    %5 = vector.load %arg5[%c0_3, %c0_4] : memref<128x512xf32, #tpu.memory_space<vmem>>, vector<128x512xf32>
    %c0_5 = arith.constant 0 : index
    %c0_6 = arith.constant 0 : index
    %6 = vector.load %arg6[%c0_5, %c0_6] : memref<128x512xf32, #tpu.memory_space<vmem>>, vector<128x512xf32>
    %c0_7 = arith.constant 0 : index
    %c0_8 = arith.constant 0 : index
    %7 = vector.load %arg8[%c0_7, %c0_8] : memref<8x128xf32, #tpu.memory_space<vmem>>, vector<8x128xf32>
    %c0_9 = arith.constant 0 : index
    %c0_10 = arith.constant 0 : index
    %8 = vector.load %arg9[%c0_9, %c0_10] : memref<8x128xf32, #tpu.memory_space<vmem>>, vector<8x128xf32>
    %c0_11 = arith.constant 0 : index
    %c0_12 = arith.constant 0 : index
    %9 = vector.load %arg10[%c0_11, %c0_12] : memref<8x128xf32, #tpu.memory_space<vmem>>, vector<8x128xf32>
    %c0_13 = arith.constant 0 : index
    %c0_14 = arith.constant 0 : index
    %10 = vector.load %arg11[%c0_13, %c0_14] : memref<8x128xf32, #tpu.memory_space<vmem>>, vector<8x128xf32>
    %c0_15 = arith.constant 0 : index
    %c0_16 = arith.constant 0 : index
    %11 = vector.load %arg7[%c0_15, %c0_16] : memref<8x256xf32, #tpu.memory_space<vmem>>, vector<8x128xf32>
    %c0_17 = arith.constant 0 : index
    %c128 = arith.constant 128 : index
    %12 = vector.load %arg7[%c0_17, %c128] : memref<8x256xf32, #tpu.memory_space<vmem>>, vector<8x128xf32>
    %c0_i32_18 = arith.constant 0 : i32
    %c8_i32 = arith.constant 8 : i32
    %13 = arith.muli %arg0, %c8_i32 : i32
    %14 = arith.addi %13, %c0_i32_18 : i32
    %c7_i32 = arith.constant 7 : i32
    %15 = arith.subi %c7_i32, %14 : i32
    %16 = arith.index_cast %c0_i32_18 : i32 to index
    %c0_19 = arith.constant 0 : index
    %c0_20 = arith.constant 0 : index
    %17 = vector.load %arg2[%16, %c0_19, %c0_20] : memref<8x8x512xf32, #tpu.memory_space<vmem>>, vector<1x8x512xf32>
    %18 = vector.shape_cast %17 : vector<1x8x512xf32> to vector<8x512xf32>
    %cst = arith.constant dense<0.000000e+00> : vector<8x512xf32>
    %19 = tpu.matmul %7, %5, %cst {dimension_numbers = #tpu.dot_dimension_numbers<[1], [0], [0], [1], [0, 0, 1, 1], [], []>} : vector<8x128xf32>, vector<128x512xf32>, vector<8x512xf32> -> vector<8x512xf32>
    %20 = arith.addf %18, %19 : vector<8x512xf32>
    %c7_i32_21 = arith.constant 7 : i32
    %21 = arith.subi %c7_i32_21, %c0_i32_18 : i32
    %22 = arith.index_cast %21 : i32 to index
    %c0_22 = arith.constant 0 : index
    %c0_23 = arith.constant 0 : index
    %23 = vector.load %arg3[%22, %c0_22, %c0_23] : memref<8x8x512xf32, #tpu.memory_space<vmem>>, vector<1x8x512xf32>
    %24 = vector.shape_cast %23 : vector<1x8x512xf32> to vector<8x512xf32>
    %cst_24 = arith.constant dense<0.000000e+00> : vector<8x512xf32>
    %25 = tpu.matmul %9, %6, %cst_24 {dimension_numbers = #tpu.dot_dimension_numbers<[1], [0], [0], [1], [0, 0, 1, 1], [], []>} : vector<8x128xf32>, vector<128x512xf32>, vector<8x512xf32> -> vector<8x512xf32>
    %26 = arith.addf %24, %25 : vector<8x512xf32>
    %27 = vector.extract_strided_slice %20 {offsets = [0, 0], sizes = [8, 128], strides = [1, 1]} : vector<8x512xf32> to vector<8x128xf32>
    %28 = arith.negf %27 : vector<8x128xf32>
    %29 = math.exp %28 : vector<8x128xf32>
    %cst_25 = arith.constant 1.000000e+00 : f32
    %30 = vector.broadcast %cst_25 : f32 to vector<8x128xf32>
    %31 = arith.addf %30, %29 : vector<8x128xf32>
    %32 = arith.divf %30, %31 : vector<8x128xf32>
    %33 = vector.extract_strided_slice %20 {offsets = [0, 128], sizes = [8, 128], strides = [1, 1]} : vector<8x512xf32> to vector<8x128xf32>
    %34 = arith.negf %33 : vector<8x128xf32>
    %35 = math.exp %34 : vector<8x128xf32>
    %cst_26 = arith.constant 1.000000e+00 : f32
    %36 = vector.broadcast %cst_26 : f32 to vector<8x128xf32>
    %37 = arith.addf %36, %35 : vector<8x128xf32>
    %38 = arith.divf %36, %37 : vector<8x128xf32>
    %39 = vector.extract_strided_slice %20 {offsets = [0, 256], sizes = [8, 128], strides = [1, 1]} : vector<8x512xf32> to vector<8x128xf32>
    %40 = math.tanh %39 : vector<8x128xf32>
    %41 = vector.extract_strided_slice %20 {offsets = [0, 384], sizes = [8, 128], strides = [1, 1]} : vector<8x512xf32> to vector<8x128xf32>
    %42 = arith.negf %41 : vector<8x128xf32>
    %43 = math.exp %42 : vector<8x128xf32>
    %cst_27 = arith.constant 1.000000e+00 : f32
    %44 = vector.broadcast %cst_27 : f32 to vector<8x128xf32>
    %45 = arith.addf %44, %43 : vector<8x128xf32>
    %46 = arith.divf %44, %45 : vector<8x128xf32>
    %47 = arith.mulf %38, %8 : vector<8x128xf32>
    %48 = arith.mulf %32, %40 : vector<8x128xf32>
    %49 = arith.addf %47, %48 : vector<8x128xf32>
    %50 = math.tanh %49 : vector<8x128xf32>
    %51 = arith.mulf %46, %50 : vector<8x128xf32>
    %52 = vector.extract_strided_slice %26 {offsets = [0, 0], sizes = [8, 128], strides = [1, 1]} : vector<8x512xf32> to vector<8x128xf32>
    %53 = arith.negf %52 : vector<8x128xf32>
    %54 = math.exp %53 : vector<8x128xf32>
    %cst_28 = arith.constant 1.000000e+00 : f32
    %55 = vector.broadcast %cst_28 : f32 to vector<8x128xf32>
    %56 = arith.addf %55, %54 : vector<8x128xf32>
    %57 = arith.divf %55, %56 : vector<8x128xf32>
    %58 = vector.extract_strided_slice %26 {offsets = [0, 128], sizes = [8, 128], strides = [1, 1]} : vector<8x512xf32> to vector<8x128xf32>
    %59 = arith.negf %58 : vector<8x128xf32>
    %60 = math.exp %59 : vector<8x128xf32>
    %cst_29 = arith.constant 1.000000e+00 : f32
    %61 = vector.broadcast %cst_29 : f32 to vector<8x128xf32>
    %62 = arith.addf %61, %60 : vector<8x128xf32>
    %63 = arith.divf %61, %62 : vector<8x128xf32>
    %64 = vector.extract_strided_slice %26 {offsets = [0, 256], sizes = [8, 128], strides = [1, 1]} : vector<8x512xf32> to vector<8x128xf32>
    %65 = math.tanh %64 : vector<8x128xf32>
    %66 = vector.extract_strided_slice %26 {offsets = [0, 384], sizes = [8, 128], strides = [1, 1]} : vector<8x512xf32> to vector<8x128xf32>
    %67 = arith.negf %66 : vector<8x128xf32>
    %68 = math.exp %67 : vector<8x128xf32>
    %cst_30 = arith.constant 1.000000e+00 : f32
    %69 = vector.broadcast %cst_30 : f32 to vector<8x128xf32>
    %70 = arith.addf %69, %68 : vector<8x128xf32>
    %71 = arith.divf %69, %70 : vector<8x128xf32>
    %72 = arith.mulf %63, %10 : vector<8x128xf32>
    %73 = arith.mulf %57, %65 : vector<8x128xf32>
    %74 = arith.addf %72, %73 : vector<8x128xf32>
    %75 = math.tanh %74 : vector<8x128xf32>
    %76 = arith.mulf %71, %75 : vector<8x128xf32>
    %77 = vector.broadcast %14 : i32 to vector<8x1xi32>
    %78 = arith.cmpi slt, %77, %4 : vector<8x1xi32>
    %79 = vector.shape_cast %78 : vector<8x1xi1> to vector<8x1xi1>
    %80 = vector.broadcast %79 : vector<8x1xi1> to vector<8x128xi1>
    %81 = vector.broadcast %15 : i32 to vector<8x1xi32>
    %82 = arith.cmpi slt, %81, %4 : vector<8x1xi32>
    %83 = vector.shape_cast %82 : vector<8x1xi1> to vector<8x1xi1>
    %84 = vector.broadcast %83 : vector<8x1xi1> to vector<8x128xi1>
    %85 = arith.select %80, %51, %7 : vector<8x128xi1>, vector<8x128xf32>
    %86 = arith.select %80, %49, %8 : vector<8x128xi1>, vector<8x128xf32>
    %87 = arith.select %84, %76, %9 : vector<8x128xi1>, vector<8x128xf32>
    %88 = arith.select %84, %74, %10 : vector<8x128xi1>, vector<8x128xf32>
    %89 = arith.cmpi slt, %14, %3 : i32
    %cst_31 = arith.constant 0.000000e+00 : f32
    %cst_32 = arith.constant 0xFF800000 : f32
    %90 = arith.select %89, %cst_31, %cst_32 : f32
    %91 = arith.cmpi slt, %15, %3 : i32
    %cst_33 = arith.constant 0.000000e+00 : f32
    %cst_34 = arith.constant 0xFF800000 : f32
    %92 = arith.select %91, %cst_33, %cst_34 : f32
    %93 = vector.broadcast %90 : f32 to vector<8x128xf32>
    %94 = arith.select %80, %51, %93 : vector<8x128xi1>, vector<8x128xf32>
    %95 = arith.maximumf %11, %94 : vector<8x128xf32>
    %96 = vector.broadcast %92 : f32 to vector<8x128xf32>
    %97 = arith.select %84, %76, %96 : vector<8x128xi1>, vector<8x128xf32>
    %98 = arith.maximumf %12, %97 : vector<8x128xf32>
    %c1_i32 = arith.constant 1 : i32
    %c8_i32_35 = arith.constant 8 : i32
    %99 = arith.muli %arg0, %c8_i32_35 : i32
    %100 = arith.addi %99, %c1_i32 : i32
    %c7_i32_36 = arith.constant 7 : i32
    %101 = arith.subi %c7_i32_36, %100 : i32
    %102 = arith.index_cast %c1_i32 : i32 to index
    %c0_37 = arith.constant 0 : index
    %c0_38 = arith.constant 0 : index
    %103 = vector.load %arg2[%102, %c0_37, %c0_38] : memref<8x8x512xf32, #tpu.memory_space<vmem>>, vector<1x8x512xf32>
    %104 = vector.shape_cast %103 : vector<1x8x512xf32> to vector<8x512xf32>
    %cst_39 = arith.constant dense<0.000000e+00> : vector<8x512xf32>
    %105 = tpu.matmul %85, %5, %cst_39 {dimension_numbers = #tpu.dot_dimension_numbers<[1], [0], [0], [1], [0, 0, 1, 1], [], []>} : vector<8x128xf32>, vector<128x512xf32>, vector<8x512xf32> -> vector<8x512xf32>
    %106 = arith.addf %104, %105 : vector<8x512xf32>
    %c7_i32_40 = arith.constant 7 : i32
    %107 = arith.subi %c7_i32_40, %c1_i32 : i32
    %108 = arith.index_cast %107 : i32 to index
    %c0_41 = arith.constant 0 : index
    %c0_42 = arith.constant 0 : index
    %109 = vector.load %arg3[%108, %c0_41, %c0_42] : memref<8x8x512xf32, #tpu.memory_space<vmem>>, vector<1x8x512xf32>
    %110 = vector.shape_cast %109 : vector<1x8x512xf32> to vector<8x512xf32>
    %cst_43 = arith.constant dense<0.000000e+00> : vector<8x512xf32>
    %111 = tpu.matmul %87, %6, %cst_43 {dimension_numbers = #tpu.dot_dimension_numbers<[1], [0], [0], [1], [0, 0, 1, 1], [], []>} : vector<8x128xf32>, vector<128x512xf32>, vector<8x512xf32> -> vector<8x512xf32>
    %112 = arith.addf %110, %111 : vector<8x512xf32>
    %113 = vector.extract_strided_slice %106 {offsets = [0, 0], sizes = [8, 128], strides = [1, 1]} : vector<8x512xf32> to vector<8x128xf32>
    %114 = arith.negf %113 : vector<8x128xf32>
    %115 = math.exp %114 : vector<8x128xf32>
    %cst_44 = arith.constant 1.000000e+00 : f32
    %116 = vector.broadcast %cst_44 : f32 to vector<8x128xf32>
    %117 = arith.addf %116, %115 : vector<8x128xf32>
    %118 = arith.divf %116, %117 : vector<8x128xf32>
    %119 = vector.extract_strided_slice %106 {offsets = [0, 128], sizes = [8, 128], strides = [1, 1]} : vector<8x512xf32> to vector<8x128xf32>
    %120 = arith.negf %119 : vector<8x128xf32>
    %121 = math.exp %120 : vector<8x128xf32>
    %cst_45 = arith.constant 1.000000e+00 : f32
    %122 = vector.broadcast %cst_45 : f32 to vector<8x128xf32>
    %123 = arith.addf %122, %121 : vector<8x128xf32>
    %124 = arith.divf %122, %123 : vector<8x128xf32>
    %125 = vector.extract_strided_slice %106 {offsets = [0, 256], sizes = [8, 128], strides = [1, 1]} : vector<8x512xf32> to vector<8x128xf32>
    %126 = math.tanh %125 : vector<8x128xf32>
    %127 = vector.extract_strided_slice %106 {offsets = [0, 384], sizes = [8, 128], strides = [1, 1]} : vector<8x512xf32> to vector<8x128xf32>
    %128 = arith.negf %127 : vector<8x128xf32>
    %129 = math.exp %128 : vector<8x128xf32>
    %cst_46 = arith.constant 1.000000e+00 : f32
    %130 = vector.broadcast %cst_46 : f32 to vector<8x128xf32>
    %131 = arith.addf %130, %129 : vector<8x128xf32>
    %132 = arith.divf %130, %131 : vector<8x128xf32>
    %133 = arith.mulf %124, %86 : vector<8x128xf32>
    %134 = arith.mulf %118, %126 : vector<8x128xf32>
    %135 = arith.addf %133, %134 : vector<8x128xf32>
    %136 = math.tanh %135 : vector<8x128xf32>
    %137 = arith.mulf %132, %136 : vector<8x128xf32>
    %138 = vector.extract_strided_slice %112 {offsets = [0, 0], sizes = [8, 128], strides = [1, 1]} : vector<8x512xf32> to vector<8x128xf32>
    %139 = arith.negf %138 : vector<8x128xf32>
    %140 = math.exp %139 : vector<8x128xf32>
    %cst_47 = arith.constant 1.000000e+00 : f32
    %141 = vector.broadcast %cst_47 : f32 to vector<8x128xf32>
    %142 = arith.addf %141, %140 : vector<8x128xf32>
    %143 = arith.divf %141, %142 : vector<8x128xf32>
    %144 = vector.extract_strided_slice %112 {offsets = [0, 128], sizes = [8, 128], strides = [1, 1]} : vector<8x512xf32> to vector<8x128xf32>
    %145 = arith.negf %144 : vector<8x128xf32>
    %146 = math.exp %145 : vector<8x128xf32>
    %cst_48 = arith.constant 1.000000e+00 : f32
    %147 = vector.broadcast %cst_48 : f32 to vector<8x128xf32>
    %148 = arith.addf %147, %146 : vector<8x128xf32>
    %149 = arith.divf %147, %148 : vector<8x128xf32>
    %150 = vector.extract_strided_slice %112 {offsets = [0, 256], sizes = [8, 128], strides = [1, 1]} : vector<8x512xf32> to vector<8x128xf32>
    %151 = math.tanh %150 : vector<8x128xf32>
    %152 = vector.extract_strided_slice %112 {offsets = [0, 384], sizes = [8, 128], strides = [1, 1]} : vector<8x512xf32> to vector<8x128xf32>
    %153 = arith.negf %152 : vector<8x128xf32>
    %154 = math.exp %153 : vector<8x128xf32>
    %cst_49 = arith.constant 1.000000e+00 : f32
    %155 = vector.broadcast %cst_49 : f32 to vector<8x128xf32>
    %156 = arith.addf %155, %154 : vector<8x128xf32>
    %157 = arith.divf %155, %156 : vector<8x128xf32>
    %158 = arith.mulf %149, %88 : vector<8x128xf32>
    %159 = arith.mulf %143, %151 : vector<8x128xf32>
    %160 = arith.addf %158, %159 : vector<8x128xf32>
    %161 = math.tanh %160 : vector<8x128xf32>
    %162 = arith.mulf %157, %161 : vector<8x128xf32>
    %163 = vector.broadcast %100 : i32 to vector<8x1xi32>
    %164 = arith.cmpi slt, %163, %4 : vector<8x1xi32>
    %165 = vector.shape_cast %164 : vector<8x1xi1> to vector<8x1xi1>
    %166 = vector.broadcast %165 : vector<8x1xi1> to vector<8x128xi1>
    %167 = vector.broadcast %101 : i32 to vector<8x1xi32>
    %168 = arith.cmpi slt, %167, %4 : vector<8x1xi32>
    %169 = vector.shape_cast %168 : vector<8x1xi1> to vector<8x1xi1>
    %170 = vector.broadcast %169 : vector<8x1xi1> to vector<8x128xi1>
    %171 = arith.select %166, %137, %85 : vector<8x128xi1>, vector<8x128xf32>
    %172 = arith.select %166, %135, %86 : vector<8x128xi1>, vector<8x128xf32>
    %173 = arith.select %170, %162, %87 : vector<8x128xi1>, vector<8x128xf32>
    %174 = arith.select %170, %160, %88 : vector<8x128xi1>, vector<8x128xf32>
    %175 = arith.cmpi slt, %100, %3 : i32
    %cst_50 = arith.constant 0.000000e+00 : f32
    %cst_51 = arith.constant 0xFF800000 : f32
    %176 = arith.select %175, %cst_50, %cst_51 : f32
    %177 = arith.cmpi slt, %101, %3 : i32
    %cst_52 = arith.constant 0.000000e+00 : f32
    %cst_53 = arith.constant 0xFF800000 : f32
    %178 = arith.select %177, %cst_52, %cst_53 : f32
    %179 = vector.broadcast %176 : f32 to vector<8x128xf32>
    %180 = arith.select %166, %137, %179 : vector<8x128xi1>, vector<8x128xf32>
    %181 = arith.maximumf %95, %180 : vector<8x128xf32>
    %182 = vector.broadcast %178 : f32 to vector<8x128xf32>
    %183 = arith.select %170, %162, %182 : vector<8x128xi1>, vector<8x128xf32>
    %184 = arith.maximumf %98, %183 : vector<8x128xf32>
    %c2_i32 = arith.constant 2 : i32
    %c8_i32_54 = arith.constant 8 : i32
    %185 = arith.muli %arg0, %c8_i32_54 : i32
    %186 = arith.addi %185, %c2_i32 : i32
    %c7_i32_55 = arith.constant 7 : i32
    %187 = arith.subi %c7_i32_55, %186 : i32
    %188 = arith.index_cast %c2_i32 : i32 to index
    %c0_56 = arith.constant 0 : index
    %c0_57 = arith.constant 0 : index
    %189 = vector.load %arg2[%188, %c0_56, %c0_57] : memref<8x8x512xf32, #tpu.memory_space<vmem>>, vector<1x8x512xf32>
    %190 = vector.shape_cast %189 : vector<1x8x512xf32> to vector<8x512xf32>
    %cst_58 = arith.constant dense<0.000000e+00> : vector<8x512xf32>
    %191 = tpu.matmul %171, %5, %cst_58 {dimension_numbers = #tpu.dot_dimension_numbers<[1], [0], [0], [1], [0, 0, 1, 1], [], []>} : vector<8x128xf32>, vector<128x512xf32>, vector<8x512xf32> -> vector<8x512xf32>
    %192 = arith.addf %190, %191 : vector<8x512xf32>
    %c7_i32_59 = arith.constant 7 : i32
    %193 = arith.subi %c7_i32_59, %c2_i32 : i32
    %194 = arith.index_cast %193 : i32 to index
    %c0_60 = arith.constant 0 : index
    %c0_61 = arith.constant 0 : index
    %195 = vector.load %arg3[%194, %c0_60, %c0_61] : memref<8x8x512xf32, #tpu.memory_space<vmem>>, vector<1x8x512xf32>
    %196 = vector.shape_cast %195 : vector<1x8x512xf32> to vector<8x512xf32>
    %cst_62 = arith.constant dense<0.000000e+00> : vector<8x512xf32>
    %197 = tpu.matmul %173, %6, %cst_62 {dimension_numbers = #tpu.dot_dimension_numbers<[1], [0], [0], [1], [0, 0, 1, 1], [], []>} : vector<8x128xf32>, vector<128x512xf32>, vector<8x512xf32> -> vector<8x512xf32>
    %198 = arith.addf %196, %197 : vector<8x512xf32>
    %199 = vector.extract_strided_slice %192 {offsets = [0, 0], sizes = [8, 128], strides = [1, 1]} : vector<8x512xf32> to vector<8x128xf32>
    %200 = arith.negf %199 : vector<8x128xf32>
    %201 = math.exp %200 : vector<8x128xf32>
    %cst_63 = arith.constant 1.000000e+00 : f32
    %202 = vector.broadcast %cst_63 : f32 to vector<8x128xf32>
    %203 = arith.addf %202, %201 : vector<8x128xf32>
    %204 = arith.divf %202, %203 : vector<8x128xf32>
    %205 = vector.extract_strided_slice %192 {offsets = [0, 128], sizes = [8, 128], strides = [1, 1]} : vector<8x512xf32> to vector<8x128xf32>
    %206 = arith.negf %205 : vector<8x128xf32>
    %207 = math.exp %206 : vector<8x128xf32>
    %cst_64 = arith.constant 1.000000e+00 : f32
    %208 = vector.broadcast %cst_64 : f32 to vector<8x128xf32>
    %209 = arith.addf %208, %207 : vector<8x128xf32>
    %210 = arith.divf %208, %209 : vector<8x128xf32>
    %211 = vector.extract_strided_slice %192 {offsets = [0, 256], sizes = [8, 128], strides = [1, 1]} : vector<8x512xf32> to vector<8x128xf32>
    %212 = math.tanh %211 : vector<8x128xf32>
    %213 = vector.extract_strided_slice %192 {offsets = [0, 384], sizes = [8, 128], strides = [1, 1]} : vector<8x512xf32> to vector<8x128xf32>
    %214 = arith.negf %213 : vector<8x128xf32>
    %215 = math.exp %214 : vector<8x128xf32>
    %cst_65 = arith.constant 1.000000e+00 : f32
    %216 = vector.broadcast %cst_65 : f32 to vector<8x128xf32>
    %217 = arith.addf %216, %215 : vector<8x128xf32>
    %218 = arith.divf %216, %217 : vector<8x128xf32>
    %219 = arith.mulf %210, %172 : vector<8x128xf32>
    %220 = arith.mulf %204, %212 : vector<8x128xf32>
    %221 = arith.addf %219, %220 : vector<8x128xf32>
    %222 = math.tanh %221 : vector<8x128xf32>
    %223 = arith.mulf %218, %222 : vector<8x128xf32>
    %224 = vector.extract_strided_slice %198 {offsets = [0, 0], sizes = [8, 128], strides = [1, 1]} : vector<8x512xf32> to vector<8x128xf32>
    %225 = arith.negf %224 : vector<8x128xf32>
    %226 = math.exp %225 : vector<8x128xf32>
    %cst_66 = arith.constant 1.000000e+00 : f32
    %227 = vector.broadcast %cst_66 : f32 to vector<8x128xf32>
    %228 = arith.addf %227, %226 : vector<8x128xf32>
    %229 = arith.divf %227, %228 : vector<8x128xf32>
    %230 = vector.extract_strided_slice %198 {offsets = [0, 128], sizes = [8, 128], strides = [1, 1]} : vector<8x512xf32> to vector<8x128xf32>
    %231 = arith.negf %230 : vector<8x128xf32>
    %232 = math.exp %231 : vector<8x128xf32>
    %cst_67 = arith.constant 1.000000e+00 : f32
    %233 = vector.broadcast %cst_67 : f32 to vector<8x128xf32>
    %234 = arith.addf %233, %232 : vector<8x128xf32>
    %235 = arith.divf %233, %234 : vector<8x128xf32>
    %236 = vector.extract_strided_slice %198 {offsets = [0, 256], sizes = [8, 128], strides = [1, 1]} : vector<8x512xf32> to vector<8x128xf32>
    %237 = math.tanh %236 : vector<8x128xf32>
    %238 = vector.extract_strided_slice %198 {offsets = [0, 384], sizes = [8, 128], strides = [1, 1]} : vector<8x512xf32> to vector<8x128xf32>
    %239 = arith.negf %238 : vector<8x128xf32>
    %240 = math.exp %239 : vector<8x128xf32>
    %cst_68 = arith.constant 1.000000e+00 : f32
    %241 = vector.broadcast %cst_68 : f32 to vector<8x128xf32>
    %242 = arith.addf %241, %240 : vector<8x128xf32>
    %243 = arith.divf %241, %242 : vector<8x128xf32>
    %244 = arith.mulf %235, %174 : vector<8x128xf32>
    %245 = arith.mulf %229, %237 : vector<8x128xf32>
    %246 = arith.addf %244, %245 : vector<8x128xf32>
    %247 = math.tanh %246 : vector<8x128xf32>
    %248 = arith.mulf %243, %247 : vector<8x128xf32>
    %249 = vector.broadcast %186 : i32 to vector<8x1xi32>
    %250 = arith.cmpi slt, %249, %4 : vector<8x1xi32>
    %251 = vector.shape_cast %250 : vector<8x1xi1> to vector<8x1xi1>
    %252 = vector.broadcast %251 : vector<8x1xi1> to vector<8x128xi1>
    %253 = vector.broadcast %187 : i32 to vector<8x1xi32>
    %254 = arith.cmpi slt, %253, %4 : vector<8x1xi32>
    %255 = vector.shape_cast %254 : vector<8x1xi1> to vector<8x1xi1>
    %256 = vector.broadcast %255 : vector<8x1xi1> to vector<8x128xi1>
    %257 = arith.select %252, %223, %171 : vector<8x128xi1>, vector<8x128xf32>
    %258 = arith.select %252, %221, %172 : vector<8x128xi1>, vector<8x128xf32>
    %259 = arith.select %256, %248, %173 : vector<8x128xi1>, vector<8x128xf32>
    %260 = arith.select %256, %246, %174 : vector<8x128xi1>, vector<8x128xf32>
    %261 = arith.cmpi slt, %186, %3 : i32
    %cst_69 = arith.constant 0.000000e+00 : f32
    %cst_70 = arith.constant 0xFF800000 : f32
    %262 = arith.select %261, %cst_69, %cst_70 : f32
    %263 = arith.cmpi slt, %187, %3 : i32
    %cst_71 = arith.constant 0.000000e+00 : f32
    %cst_72 = arith.constant 0xFF800000 : f32
    %264 = arith.select %263, %cst_71, %cst_72 : f32
    %265 = vector.broadcast %262 : f32 to vector<8x128xf32>
    %266 = arith.select %252, %223, %265 : vector<8x128xi1>, vector<8x128xf32>
    %267 = arith.maximumf %181, %266 : vector<8x128xf32>
    %268 = vector.broadcast %264 : f32 to vector<8x128xf32>
    %269 = arith.select %256, %248, %268 : vector<8x128xi1>, vector<8x128xf32>
    %270 = arith.maximumf %184, %269 : vector<8x128xf32>
    %c3_i32 = arith.constant 3 : i32
    %c8_i32_73 = arith.constant 8 : i32
    %271 = arith.muli %arg0, %c8_i32_73 : i32
    %272 = arith.addi %271, %c3_i32 : i32
    %c7_i32_74 = arith.constant 7 : i32
    %273 = arith.subi %c7_i32_74, %272 : i32
    %274 = arith.index_cast %c3_i32 : i32 to index
    %c0_75 = arith.constant 0 : index
    %c0_76 = arith.constant 0 : index
    %275 = vector.load %arg2[%274, %c0_75, %c0_76] : memref<8x8x512xf32, #tpu.memory_space<vmem>>, vector<1x8x512xf32>
    %276 = vector.shape_cast %275 : vector<1x8x512xf32> to vector<8x512xf32>
    %cst_77 = arith.constant dense<0.000000e+00> : vector<8x512xf32>
    %277 = tpu.matmul %257, %5, %cst_77 {dimension_numbers = #tpu.dot_dimension_numbers<[1], [0], [0], [1], [0, 0, 1, 1], [], []>} : vector<8x128xf32>, vector<128x512xf32>, vector<8x512xf32> -> vector<8x512xf32>
    %278 = arith.addf %276, %277 : vector<8x512xf32>
    %c7_i32_78 = arith.constant 7 : i32
    %279 = arith.subi %c7_i32_78, %c3_i32 : i32
    %280 = arith.index_cast %279 : i32 to index
    %c0_79 = arith.constant 0 : index
    %c0_80 = arith.constant 0 : index
    %281 = vector.load %arg3[%280, %c0_79, %c0_80] : memref<8x8x512xf32, #tpu.memory_space<vmem>>, vector<1x8x512xf32>
    %282 = vector.shape_cast %281 : vector<1x8x512xf32> to vector<8x512xf32>
    %cst_81 = arith.constant dense<0.000000e+00> : vector<8x512xf32>
    %283 = tpu.matmul %259, %6, %cst_81 {dimension_numbers = #tpu.dot_dimension_numbers<[1], [0], [0], [1], [0, 0, 1, 1], [], []>} : vector<8x128xf32>, vector<128x512xf32>, vector<8x512xf32> -> vector<8x512xf32>
    %284 = arith.addf %282, %283 : vector<8x512xf32>
    %285 = vector.extract_strided_slice %278 {offsets = [0, 0], sizes = [8, 128], strides = [1, 1]} : vector<8x512xf32> to vector<8x128xf32>
    %286 = arith.negf %285 : vector<8x128xf32>
    %287 = math.exp %286 : vector<8x128xf32>
    %cst_82 = arith.constant 1.000000e+00 : f32
    %288 = vector.broadcast %cst_82 : f32 to vector<8x128xf32>
    %289 = arith.addf %288, %287 : vector<8x128xf32>
    %290 = arith.divf %288, %289 : vector<8x128xf32>
    %291 = vector.extract_strided_slice %278 {offsets = [0, 128], sizes = [8, 128], strides = [1, 1]} : vector<8x512xf32> to vector<8x128xf32>
    %292 = arith.negf %291 : vector<8x128xf32>
    %293 = math.exp %292 : vector<8x128xf32>
    %cst_83 = arith.constant 1.000000e+00 : f32
    %294 = vector.broadcast %cst_83 : f32 to vector<8x128xf32>
    %295 = arith.addf %294, %293 : vector<8x128xf32>
    %296 = arith.divf %294, %295 : vector<8x128xf32>
    %297 = vector.extract_strided_slice %278 {offsets = [0, 256], sizes = [8, 128], strides = [1, 1]} : vector<8x512xf32> to vector<8x128xf32>
    %298 = math.tanh %297 : vector<8x128xf32>
    %299 = vector.extract_strided_slice %278 {offsets = [0, 384], sizes = [8, 128], strides = [1, 1]} : vector<8x512xf32> to vector<8x128xf32>
    %300 = arith.negf %299 : vector<8x128xf32>
    %301 = math.exp %300 : vector<8x128xf32>
    %cst_84 = arith.constant 1.000000e+00 : f32
    %302 = vector.broadcast %cst_84 : f32 to vector<8x128xf32>
    %303 = arith.addf %302, %301 : vector<8x128xf32>
    %304 = arith.divf %302, %303 : vector<8x128xf32>
    %305 = arith.mulf %296, %258 : vector<8x128xf32>
    %306 = arith.mulf %290, %298 : vector<8x128xf32>
    %307 = arith.addf %305, %306 : vector<8x128xf32>
    %308 = math.tanh %307 : vector<8x128xf32>
    %309 = arith.mulf %304, %308 : vector<8x128xf32>
    %310 = vector.extract_strided_slice %284 {offsets = [0, 0], sizes = [8, 128], strides = [1, 1]} : vector<8x512xf32> to vector<8x128xf32>
    %311 = arith.negf %310 : vector<8x128xf32>
    %312 = math.exp %311 : vector<8x128xf32>
    %cst_85 = arith.constant 1.000000e+00 : f32
    %313 = vector.broadcast %cst_85 : f32 to vector<8x128xf32>
    %314 = arith.addf %313, %312 : vector<8x128xf32>
    %315 = arith.divf %313, %314 : vector<8x128xf32>
    %316 = vector.extract_strided_slice %284 {offsets = [0, 128], sizes = [8, 128], strides = [1, 1]} : vector<8x512xf32> to vector<8x128xf32>
    %317 = arith.negf %316 : vector<8x128xf32>
    %318 = math.exp %317 : vector<8x128xf32>
    %cst_86 = arith.constant 1.000000e+00 : f32
    %319 = vector.broadcast %cst_86 : f32 to vector<8x128xf32>
    %320 = arith.addf %319, %318 : vector<8x128xf32>
    %321 = arith.divf %319, %320 : vector<8x128xf32>
    %322 = vector.extract_strided_slice %284 {offsets = [0, 256], sizes = [8, 128], strides = [1, 1]} : vector<8x512xf32> to vector<8x128xf32>
    %323 = math.tanh %322 : vector<8x128xf32>
    %324 = vector.extract_strided_slice %284 {offsets = [0, 384], sizes = [8, 128], strides = [1, 1]} : vector<8x512xf32> to vector<8x128xf32>
    %325 = arith.negf %324 : vector<8x128xf32>
    %326 = math.exp %325 : vector<8x128xf32>
    %cst_87 = arith.constant 1.000000e+00 : f32
    %327 = vector.broadcast %cst_87 : f32 to vector<8x128xf32>
    %328 = arith.addf %327, %326 : vector<8x128xf32>
    %329 = arith.divf %327, %328 : vector<8x128xf32>
    %330 = arith.mulf %321, %260 : vector<8x128xf32>
    %331 = arith.mulf %315, %323 : vector<8x128xf32>
    %332 = arith.addf %330, %331 : vector<8x128xf32>
    %333 = math.tanh %332 : vector<8x128xf32>
    %334 = arith.mulf %329, %333 : vector<8x128xf32>
    %335 = vector.broadcast %272 : i32 to vector<8x1xi32>
    %336 = arith.cmpi slt, %335, %4 : vector<8x1xi32>
    %337 = vector.shape_cast %336 : vector<8x1xi1> to vector<8x1xi1>
    %338 = vector.broadcast %337 : vector<8x1xi1> to vector<8x128xi1>
    %339 = vector.broadcast %273 : i32 to vector<8x1xi32>
    %340 = arith.cmpi slt, %339, %4 : vector<8x1xi32>
    %341 = vector.shape_cast %340 : vector<8x1xi1> to vector<8x1xi1>
    %342 = vector.broadcast %341 : vector<8x1xi1> to vector<8x128xi1>
    %343 = arith.select %338, %309, %257 : vector<8x128xi1>, vector<8x128xf32>
    %344 = arith.select %338, %307, %258 : vector<8x128xi1>, vector<8x128xf32>
    %345 = arith.select %342, %334, %259 : vector<8x128xi1>, vector<8x128xf32>
    %346 = arith.select %342, %332, %260 : vector<8x128xi1>, vector<8x128xf32>
    %347 = arith.cmpi slt, %272, %3 : i32
    %cst_88 = arith.constant 0.000000e+00 : f32
    %cst_89 = arith.constant 0xFF800000 : f32
    %348 = arith.select %347, %cst_88, %cst_89 : f32
    %349 = arith.cmpi slt, %273, %3 : i32
    %cst_90 = arith.constant 0.000000e+00 : f32
    %cst_91 = arith.constant 0xFF800000 : f32
    %350 = arith.select %349, %cst_90, %cst_91 : f32
    %351 = vector.broadcast %348 : f32 to vector<8x128xf32>
    %352 = arith.select %338, %309, %351 : vector<8x128xi1>, vector<8x128xf32>
    %353 = arith.maximumf %267, %352 : vector<8x128xf32>
    %354 = vector.broadcast %350 : f32 to vector<8x128xf32>
    %355 = arith.select %342, %334, %354 : vector<8x128xi1>, vector<8x128xf32>
    %356 = arith.maximumf %270, %355 : vector<8x128xf32>
    %c4_i32 = arith.constant 4 : i32
    %c8_i32_92 = arith.constant 8 : i32
    %357 = arith.muli %arg0, %c8_i32_92 : i32
    %358 = arith.addi %357, %c4_i32 : i32
    %c7_i32_93 = arith.constant 7 : i32
    %359 = arith.subi %c7_i32_93, %358 : i32
    %360 = arith.index_cast %c4_i32 : i32 to index
    %c0_94 = arith.constant 0 : index
    %c0_95 = arith.constant 0 : index
    %361 = vector.load %arg2[%360, %c0_94, %c0_95] : memref<8x8x512xf32, #tpu.memory_space<vmem>>, vector<1x8x512xf32>
    %362 = vector.shape_cast %361 : vector<1x8x512xf32> to vector<8x512xf32>
    %cst_96 = arith.constant dense<0.000000e+00> : vector<8x512xf32>
    %363 = tpu.matmul %343, %5, %cst_96 {dimension_numbers = #tpu.dot_dimension_numbers<[1], [0], [0], [1], [0, 0, 1, 1], [], []>} : vector<8x128xf32>, vector<128x512xf32>, vector<8x512xf32> -> vector<8x512xf32>
    %364 = arith.addf %362, %363 : vector<8x512xf32>
    %c7_i32_97 = arith.constant 7 : i32
    %365 = arith.subi %c7_i32_97, %c4_i32 : i32
    %366 = arith.index_cast %365 : i32 to index
    %c0_98 = arith.constant 0 : index
    %c0_99 = arith.constant 0 : index
    %367 = vector.load %arg3[%366, %c0_98, %c0_99] : memref<8x8x512xf32, #tpu.memory_space<vmem>>, vector<1x8x512xf32>
    %368 = vector.shape_cast %367 : vector<1x8x512xf32> to vector<8x512xf32>
    %cst_100 = arith.constant dense<0.000000e+00> : vector<8x512xf32>
    %369 = tpu.matmul %345, %6, %cst_100 {dimension_numbers = #tpu.dot_dimension_numbers<[1], [0], [0], [1], [0, 0, 1, 1], [], []>} : vector<8x128xf32>, vector<128x512xf32>, vector<8x512xf32> -> vector<8x512xf32>
    %370 = arith.addf %368, %369 : vector<8x512xf32>
    %371 = vector.extract_strided_slice %364 {offsets = [0, 0], sizes = [8, 128], strides = [1, 1]} : vector<8x512xf32> to vector<8x128xf32>
    %372 = arith.negf %371 : vector<8x128xf32>
    %373 = math.exp %372 : vector<8x128xf32>
    %cst_101 = arith.constant 1.000000e+00 : f32
    %374 = vector.broadcast %cst_101 : f32 to vector<8x128xf32>
    %375 = arith.addf %374, %373 : vector<8x128xf32>
    %376 = arith.divf %374, %375 : vector<8x128xf32>
    %377 = vector.extract_strided_slice %364 {offsets = [0, 128], sizes = [8, 128], strides = [1, 1]} : vector<8x512xf32> to vector<8x128xf32>
    %378 = arith.negf %377 : vector<8x128xf32>
    %379 = math.exp %378 : vector<8x128xf32>
    %cst_102 = arith.constant 1.000000e+00 : f32
    %380 = vector.broadcast %cst_102 : f32 to vector<8x128xf32>
    %381 = arith.addf %380, %379 : vector<8x128xf32>
    %382 = arith.divf %380, %381 : vector<8x128xf32>
    %383 = vector.extract_strided_slice %364 {offsets = [0, 256], sizes = [8, 128], strides = [1, 1]} : vector<8x512xf32> to vector<8x128xf32>
    %384 = math.tanh %383 : vector<8x128xf32>
    %385 = vector.extract_strided_slice %364 {offsets = [0, 384], sizes = [8, 128], strides = [1, 1]} : vector<8x512xf32> to vector<8x128xf32>
    %386 = arith.negf %385 : vector<8x128xf32>
    %387 = math.exp %386 : vector<8x128xf32>
    %cst_103 = arith.constant 1.000000e+00 : f32
    %388 = vector.broadcast %cst_103 : f32 to vector<8x128xf32>
    %389 = arith.addf %388, %387 : vector<8x128xf32>
    %390 = arith.divf %388, %389 : vector<8x128xf32>
    %391 = arith.mulf %382, %344 : vector<8x128xf32>
    %392 = arith.mulf %376, %384 : vector<8x128xf32>
    %393 = arith.addf %391, %392 : vector<8x128xf32>
    %394 = math.tanh %393 : vector<8x128xf32>
    %395 = arith.mulf %390, %394 : vector<8x128xf32>
    %396 = vector.extract_strided_slice %370 {offsets = [0, 0], sizes = [8, 128], strides = [1, 1]} : vector<8x512xf32> to vector<8x128xf32>
    %397 = arith.negf %396 : vector<8x128xf32>
    %398 = math.exp %397 : vector<8x128xf32>
    %cst_104 = arith.constant 1.000000e+00 : f32
    %399 = vector.broadcast %cst_104 : f32 to vector<8x128xf32>
    %400 = arith.addf %399, %398 : vector<8x128xf32>
    %401 = arith.divf %399, %400 : vector<8x128xf32>
    %402 = vector.extract_strided_slice %370 {offsets = [0, 128], sizes = [8, 128], strides = [1, 1]} : vector<8x512xf32> to vector<8x128xf32>
    %403 = arith.negf %402 : vector<8x128xf32>
    %404 = math.exp %403 : vector<8x128xf32>
    %cst_105 = arith.constant 1.000000e+00 : f32
    %405 = vector.broadcast %cst_105 : f32 to vector<8x128xf32>
    %406 = arith.addf %405, %404 : vector<8x128xf32>
    %407 = arith.divf %405, %406 : vector<8x128xf32>
    %408 = vector.extract_strided_slice %370 {offsets = [0, 256], sizes = [8, 128], strides = [1, 1]} : vector<8x512xf32> to vector<8x128xf32>
    %409 = math.tanh %408 : vector<8x128xf32>
    %410 = vector.extract_strided_slice %370 {offsets = [0, 384], sizes = [8, 128], strides = [1, 1]} : vector<8x512xf32> to vector<8x128xf32>
    %411 = arith.negf %410 : vector<8x128xf32>
    %412 = math.exp %411 : vector<8x128xf32>
    %cst_106 = arith.constant 1.000000e+00 : f32
    %413 = vector.broadcast %cst_106 : f32 to vector<8x128xf32>
    %414 = arith.addf %413, %412 : vector<8x128xf32>
    %415 = arith.divf %413, %414 : vector<8x128xf32>
    %416 = arith.mulf %407, %346 : vector<8x128xf32>
    %417 = arith.mulf %401, %409 : vector<8x128xf32>
    %418 = arith.addf %416, %417 : vector<8x128xf32>
    %419 = math.tanh %418 : vector<8x128xf32>
    %420 = arith.mulf %415, %419 : vector<8x128xf32>
    %421 = vector.broadcast %358 : i32 to vector<8x1xi32>
    %422 = arith.cmpi slt, %421, %4 : vector<8x1xi32>
    %423 = vector.shape_cast %422 : vector<8x1xi1> to vector<8x1xi1>
    %424 = vector.broadcast %423 : vector<8x1xi1> to vector<8x128xi1>
    %425 = vector.broadcast %359 : i32 to vector<8x1xi32>
    %426 = arith.cmpi slt, %425, %4 : vector<8x1xi32>
    %427 = vector.shape_cast %426 : vector<8x1xi1> to vector<8x1xi1>
    %428 = vector.broadcast %427 : vector<8x1xi1> to vector<8x128xi1>
    %429 = arith.select %424, %395, %343 : vector<8x128xi1>, vector<8x128xf32>
    %430 = arith.select %424, %393, %344 : vector<8x128xi1>, vector<8x128xf32>
    %431 = arith.select %428, %420, %345 : vector<8x128xi1>, vector<8x128xf32>
    %432 = arith.select %428, %418, %346 : vector<8x128xi1>, vector<8x128xf32>
    %433 = arith.cmpi slt, %358, %3 : i32
    %cst_107 = arith.constant 0.000000e+00 : f32
    %cst_108 = arith.constant 0xFF800000 : f32
    %434 = arith.select %433, %cst_107, %cst_108 : f32
    %435 = arith.cmpi slt, %359, %3 : i32
    %cst_109 = arith.constant 0.000000e+00 : f32
    %cst_110 = arith.constant 0xFF800000 : f32
    %436 = arith.select %435, %cst_109, %cst_110 : f32
    %437 = vector.broadcast %434 : f32 to vector<8x128xf32>
    %438 = arith.select %424, %395, %437 : vector<8x128xi1>, vector<8x128xf32>
    %439 = arith.maximumf %353, %438 : vector<8x128xf32>
    %440 = vector.broadcast %436 : f32 to vector<8x128xf32>
    %441 = arith.select %428, %420, %440 : vector<8x128xi1>, vector<8x128xf32>
    %442 = arith.maximumf %356, %441 : vector<8x128xf32>
    %c5_i32 = arith.constant 5 : i32
    %c8_i32_111 = arith.constant 8 : i32
    %443 = arith.muli %arg0, %c8_i32_111 : i32
    %444 = arith.addi %443, %c5_i32 : i32
    %c7_i32_112 = arith.constant 7 : i32
    %445 = arith.subi %c7_i32_112, %444 : i32
    %446 = arith.index_cast %c5_i32 : i32 to index
    %c0_113 = arith.constant 0 : index
    %c0_114 = arith.constant 0 : index
    %447 = vector.load %arg2[%446, %c0_113, %c0_114] : memref<8x8x512xf32, #tpu.memory_space<vmem>>, vector<1x8x512xf32>
    %448 = vector.shape_cast %447 : vector<1x8x512xf32> to vector<8x512xf32>
    %cst_115 = arith.constant dense<0.000000e+00> : vector<8x512xf32>
    %449 = tpu.matmul %429, %5, %cst_115 {dimension_numbers = #tpu.dot_dimension_numbers<[1], [0], [0], [1], [0, 0, 1, 1], [], []>} : vector<8x128xf32>, vector<128x512xf32>, vector<8x512xf32> -> vector<8x512xf32>
    %450 = arith.addf %448, %449 : vector<8x512xf32>
    %c7_i32_116 = arith.constant 7 : i32
    %451 = arith.subi %c7_i32_116, %c5_i32 : i32
    %452 = arith.index_cast %451 : i32 to index
    %c0_117 = arith.constant 0 : index
    %c0_118 = arith.constant 0 : index
    %453 = vector.load %arg3[%452, %c0_117, %c0_118] : memref<8x8x512xf32, #tpu.memory_space<vmem>>, vector<1x8x512xf32>
    %454 = vector.shape_cast %453 : vector<1x8x512xf32> to vector<8x512xf32>
    %cst_119 = arith.constant dense<0.000000e+00> : vector<8x512xf32>
    %455 = tpu.matmul %431, %6, %cst_119 {dimension_numbers = #tpu.dot_dimension_numbers<[1], [0], [0], [1], [0, 0, 1, 1], [], []>} : vector<8x128xf32>, vector<128x512xf32>, vector<8x512xf32> -> vector<8x512xf32>
    %456 = arith.addf %454, %455 : vector<8x512xf32>
    %457 = vector.extract_strided_slice %450 {offsets = [0, 0], sizes = [8, 128], strides = [1, 1]} : vector<8x512xf32> to vector<8x128xf32>
    %458 = arith.negf %457 : vector<8x128xf32>
    %459 = math.exp %458 : vector<8x128xf32>
    %cst_120 = arith.constant 1.000000e+00 : f32
    %460 = vector.broadcast %cst_120 : f32 to vector<8x128xf32>
    %461 = arith.addf %460, %459 : vector<8x128xf32>
    %462 = arith.divf %460, %461 : vector<8x128xf32>
    %463 = vector.extract_strided_slice %450 {offsets = [0, 128], sizes = [8, 128], strides = [1, 1]} : vector<8x512xf32> to vector<8x128xf32>
    %464 = arith.negf %463 : vector<8x128xf32>
    %465 = math.exp %464 : vector<8x128xf32>
    %cst_121 = arith.constant 1.000000e+00 : f32
    %466 = vector.broadcast %cst_121 : f32 to vector<8x128xf32>
    %467 = arith.addf %466, %465 : vector<8x128xf32>
    %468 = arith.divf %466, %467 : vector<8x128xf32>
    %469 = vector.extract_strided_slice %450 {offsets = [0, 256], sizes = [8, 128], strides = [1, 1]} : vector<8x512xf32> to vector<8x128xf32>
    %470 = math.tanh %469 : vector<8x128xf32>
    %471 = vector.extract_strided_slice %450 {offsets = [0, 384], sizes = [8, 128], strides = [1, 1]} : vector<8x512xf32> to vector<8x128xf32>
    %472 = arith.negf %471 : vector<8x128xf32>
    %473 = math.exp %472 : vector<8x128xf32>
    %cst_122 = arith.constant 1.000000e+00 : f32
    %474 = vector.broadcast %cst_122 : f32 to vector<8x128xf32>
    %475 = arith.addf %474, %473 : vector<8x128xf32>
    %476 = arith.divf %474, %475 : vector<8x128xf32>
    %477 = arith.mulf %468, %430 : vector<8x128xf32>
    %478 = arith.mulf %462, %470 : vector<8x128xf32>
    %479 = arith.addf %477, %478 : vector<8x128xf32>
    %480 = math.tanh %479 : vector<8x128xf32>
    %481 = arith.mulf %476, %480 : vector<8x128xf32>
    %482 = vector.extract_strided_slice %456 {offsets = [0, 0], sizes = [8, 128], strides = [1, 1]} : vector<8x512xf32> to vector<8x128xf32>
    %483 = arith.negf %482 : vector<8x128xf32>
    %484 = math.exp %483 : vector<8x128xf32>
    %cst_123 = arith.constant 1.000000e+00 : f32
    %485 = vector.broadcast %cst_123 : f32 to vector<8x128xf32>
    %486 = arith.addf %485, %484 : vector<8x128xf32>
    %487 = arith.divf %485, %486 : vector<8x128xf32>
    %488 = vector.extract_strided_slice %456 {offsets = [0, 128], sizes = [8, 128], strides = [1, 1]} : vector<8x512xf32> to vector<8x128xf32>
    %489 = arith.negf %488 : vector<8x128xf32>
    %490 = math.exp %489 : vector<8x128xf32>
    %cst_124 = arith.constant 1.000000e+00 : f32
    %491 = vector.broadcast %cst_124 : f32 to vector<8x128xf32>
    %492 = arith.addf %491, %490 : vector<8x128xf32>
    %493 = arith.divf %491, %492 : vector<8x128xf32>
    %494 = vector.extract_strided_slice %456 {offsets = [0, 256], sizes = [8, 128], strides = [1, 1]} : vector<8x512xf32> to vector<8x128xf32>
    %495 = math.tanh %494 : vector<8x128xf32>
    %496 = vector.extract_strided_slice %456 {offsets = [0, 384], sizes = [8, 128], strides = [1, 1]} : vector<8x512xf32> to vector<8x128xf32>
    %497 = arith.negf %496 : vector<8x128xf32>
    %498 = math.exp %497 : vector<8x128xf32>
    %cst_125 = arith.constant 1.000000e+00 : f32
    %499 = vector.broadcast %cst_125 : f32 to vector<8x128xf32>
    %500 = arith.addf %499, %498 : vector<8x128xf32>
    %501 = arith.divf %499, %500 : vector<8x128xf32>
    %502 = arith.mulf %493, %432 : vector<8x128xf32>
    %503 = arith.mulf %487, %495 : vector<8x128xf32>
    %504 = arith.addf %502, %503 : vector<8x128xf32>
    %505 = math.tanh %504 : vector<8x128xf32>
    %506 = arith.mulf %501, %505 : vector<8x128xf32>
    %507 = vector.broadcast %444 : i32 to vector<8x1xi32>
    %508 = arith.cmpi slt, %507, %4 : vector<8x1xi32>
    %509 = vector.shape_cast %508 : vector<8x1xi1> to vector<8x1xi1>
    %510 = vector.broadcast %509 : vector<8x1xi1> to vector<8x128xi1>
    %511 = vector.broadcast %445 : i32 to vector<8x1xi32>
    %512 = arith.cmpi slt, %511, %4 : vector<8x1xi32>
    %513 = vector.shape_cast %512 : vector<8x1xi1> to vector<8x1xi1>
    %514 = vector.broadcast %513 : vector<8x1xi1> to vector<8x128xi1>
    %515 = arith.select %510, %481, %429 : vector<8x128xi1>, vector<8x128xf32>
    %516 = arith.select %510, %479, %430 : vector<8x128xi1>, vector<8x128xf32>
    %517 = arith.select %514, %506, %431 : vector<8x128xi1>, vector<8x128xf32>
    %518 = arith.select %514, %504, %432 : vector<8x128xi1>, vector<8x128xf32>
    %519 = arith.cmpi slt, %444, %3 : i32
    %cst_126 = arith.constant 0.000000e+00 : f32
    %cst_127 = arith.constant 0xFF800000 : f32
    %520 = arith.select %519, %cst_126, %cst_127 : f32
    %521 = arith.cmpi slt, %445, %3 : i32
    %cst_128 = arith.constant 0.000000e+00 : f32
    %cst_129 = arith.constant 0xFF800000 : f32
    %522 = arith.select %521, %cst_128, %cst_129 : f32
    %523 = vector.broadcast %520 : f32 to vector<8x128xf32>
    %524 = arith.select %510, %481, %523 : vector<8x128xi1>, vector<8x128xf32>
    %525 = arith.maximumf %439, %524 : vector<8x128xf32>
    %526 = vector.broadcast %522 : f32 to vector<8x128xf32>
    %527 = arith.select %514, %506, %526 : vector<8x128xi1>, vector<8x128xf32>
    %528 = arith.maximumf %442, %527 : vector<8x128xf32>
    %c6_i32 = arith.constant 6 : i32
    %c8_i32_130 = arith.constant 8 : i32
    %529 = arith.muli %arg0, %c8_i32_130 : i32
    %530 = arith.addi %529, %c6_i32 : i32
    %c7_i32_131 = arith.constant 7 : i32
    %531 = arith.subi %c7_i32_131, %530 : i32
    %532 = arith.index_cast %c6_i32 : i32 to index
    %c0_132 = arith.constant 0 : index
    %c0_133 = arith.constant 0 : index
    %533 = vector.load %arg2[%532, %c0_132, %c0_133] : memref<8x8x512xf32, #tpu.memory_space<vmem>>, vector<1x8x512xf32>
    %534 = vector.shape_cast %533 : vector<1x8x512xf32> to vector<8x512xf32>
    %cst_134 = arith.constant dense<0.000000e+00> : vector<8x512xf32>
    %535 = tpu.matmul %515, %5, %cst_134 {dimension_numbers = #tpu.dot_dimension_numbers<[1], [0], [0], [1], [0, 0, 1, 1], [], []>} : vector<8x128xf32>, vector<128x512xf32>, vector<8x512xf32> -> vector<8x512xf32>
    %536 = arith.addf %534, %535 : vector<8x512xf32>
    %c7_i32_135 = arith.constant 7 : i32
    %537 = arith.subi %c7_i32_135, %c6_i32 : i32
    %538 = arith.index_cast %537 : i32 to index
    %c0_136 = arith.constant 0 : index
    %c0_137 = arith.constant 0 : index
    %539 = vector.load %arg3[%538, %c0_136, %c0_137] : memref<8x8x512xf32, #tpu.memory_space<vmem>>, vector<1x8x512xf32>
    %540 = vector.shape_cast %539 : vector<1x8x512xf32> to vector<8x512xf32>
    %cst_138 = arith.constant dense<0.000000e+00> : vector<8x512xf32>
    %541 = tpu.matmul %517, %6, %cst_138 {dimension_numbers = #tpu.dot_dimension_numbers<[1], [0], [0], [1], [0, 0, 1, 1], [], []>} : vector<8x128xf32>, vector<128x512xf32>, vector<8x512xf32> -> vector<8x512xf32>
    %542 = arith.addf %540, %541 : vector<8x512xf32>
    %543 = vector.extract_strided_slice %536 {offsets = [0, 0], sizes = [8, 128], strides = [1, 1]} : vector<8x512xf32> to vector<8x128xf32>
    %544 = arith.negf %543 : vector<8x128xf32>
    %545 = math.exp %544 : vector<8x128xf32>
    %cst_139 = arith.constant 1.000000e+00 : f32
    %546 = vector.broadcast %cst_139 : f32 to vector<8x128xf32>
    %547 = arith.addf %546, %545 : vector<8x128xf32>
    %548 = arith.divf %546, %547 : vector<8x128xf32>
    %549 = vector.extract_strided_slice %536 {offsets = [0, 128], sizes = [8, 128], strides = [1, 1]} : vector<8x512xf32> to vector<8x128xf32>
    %550 = arith.negf %549 : vector<8x128xf32>
    %551 = math.exp %550 : vector<8x128xf32>
    %cst_140 = arith.constant 1.000000e+00 : f32
    %552 = vector.broadcast %cst_140 : f32 to vector<8x128xf32>
    %553 = arith.addf %552, %551 : vector<8x128xf32>
    %554 = arith.divf %552, %553 : vector<8x128xf32>
    %555 = vector.extract_strided_slice %536 {offsets = [0, 256], sizes = [8, 128], strides = [1, 1]} : vector<8x512xf32> to vector<8x128xf32>
    %556 = math.tanh %555 : vector<8x128xf32>
    %557 = vector.extract_strided_slice %536 {offsets = [0, 384], sizes = [8, 128], strides = [1, 1]} : vector<8x512xf32> to vector<8x128xf32>
    %558 = arith.negf %557 : vector<8x128xf32>
    %559 = math.exp %558 : vector<8x128xf32>
    %cst_141 = arith.constant 1.000000e+00 : f32
    %560 = vector.broadcast %cst_141 : f32 to vector<8x128xf32>
    %561 = arith.addf %560, %559 : vector<8x128xf32>
    %562 = arith.divf %560, %561 : vector<8x128xf32>
    %563 = arith.mulf %554, %516 : vector<8x128xf32>
    %564 = arith.mulf %548, %556 : vector<8x128xf32>
    %565 = arith.addf %563, %564 : vector<8x128xf32>
    %566 = math.tanh %565 : vector<8x128xf32>
    %567 = arith.mulf %562, %566 : vector<8x128xf32>
    %568 = vector.extract_strided_slice %542 {offsets = [0, 0], sizes = [8, 128], strides = [1, 1]} : vector<8x512xf32> to vector<8x128xf32>
    %569 = arith.negf %568 : vector<8x128xf32>
    %570 = math.exp %569 : vector<8x128xf32>
    %cst_142 = arith.constant 1.000000e+00 : f32
    %571 = vector.broadcast %cst_142 : f32 to vector<8x128xf32>
    %572 = arith.addf %571, %570 : vector<8x128xf32>
    %573 = arith.divf %571, %572 : vector<8x128xf32>
    %574 = vector.extract_strided_slice %542 {offsets = [0, 128], sizes = [8, 128], strides = [1, 1]} : vector<8x512xf32> to vector<8x128xf32>
    %575 = arith.negf %574 : vector<8x128xf32>
    %576 = math.exp %575 : vector<8x128xf32>
    %cst_143 = arith.constant 1.000000e+00 : f32
    %577 = vector.broadcast %cst_143 : f32 to vector<8x128xf32>
    %578 = arith.addf %577, %576 : vector<8x128xf32>
    %579 = arith.divf %577, %578 : vector<8x128xf32>
    %580 = vector.extract_strided_slice %542 {offsets = [0, 256], sizes = [8, 128], strides = [1, 1]} : vector<8x512xf32> to vector<8x128xf32>
    %581 = math.tanh %580 : vector<8x128xf32>
    %582 = vector.extract_strided_slice %542 {offsets = [0, 384], sizes = [8, 128], strides = [1, 1]} : vector<8x512xf32> to vector<8x128xf32>
    %583 = arith.negf %582 : vector<8x128xf32>
    %584 = math.exp %583 : vector<8x128xf32>
    %cst_144 = arith.constant 1.000000e+00 : f32
    %585 = vector.broadcast %cst_144 : f32 to vector<8x128xf32>
    %586 = arith.addf %585, %584 : vector<8x128xf32>
    %587 = arith.divf %585, %586 : vector<8x128xf32>
    %588 = arith.mulf %579, %518 : vector<8x128xf32>
    %589 = arith.mulf %573, %581 : vector<8x128xf32>
    %590 = arith.addf %588, %589 : vector<8x128xf32>
    %591 = math.tanh %590 : vector<8x128xf32>
    %592 = arith.mulf %587, %591 : vector<8x128xf32>
    %593 = vector.broadcast %530 : i32 to vector<8x1xi32>
    %594 = arith.cmpi slt, %593, %4 : vector<8x1xi32>
    %595 = vector.shape_cast %594 : vector<8x1xi1> to vector<8x1xi1>
    %596 = vector.broadcast %595 : vector<8x1xi1> to vector<8x128xi1>
    %597 = vector.broadcast %531 : i32 to vector<8x1xi32>
    %598 = arith.cmpi slt, %597, %4 : vector<8x1xi32>
    %599 = vector.shape_cast %598 : vector<8x1xi1> to vector<8x1xi1>
    %600 = vector.broadcast %599 : vector<8x1xi1> to vector<8x128xi1>
    %601 = arith.select %596, %567, %515 : vector<8x128xi1>, vector<8x128xf32>
    %602 = arith.select %596, %565, %516 : vector<8x128xi1>, vector<8x128xf32>
    %603 = arith.select %600, %592, %517 : vector<8x128xi1>, vector<8x128xf32>
    %604 = arith.select %600, %590, %518 : vector<8x128xi1>, vector<8x128xf32>
    %605 = arith.cmpi slt, %530, %3 : i32
    %cst_145 = arith.constant 0.000000e+00 : f32
    %cst_146 = arith.constant 0xFF800000 : f32
    %606 = arith.select %605, %cst_145, %cst_146 : f32
    %607 = arith.cmpi slt, %531, %3 : i32
    %cst_147 = arith.constant 0.000000e+00 : f32
    %cst_148 = arith.constant 0xFF800000 : f32
    %608 = arith.select %607, %cst_147, %cst_148 : f32
    %609 = vector.broadcast %606 : f32 to vector<8x128xf32>
    %610 = arith.select %596, %567, %609 : vector<8x128xi1>, vector<8x128xf32>
    %611 = arith.maximumf %525, %610 : vector<8x128xf32>
    %612 = vector.broadcast %608 : f32 to vector<8x128xf32>
    %613 = arith.select %600, %592, %612 : vector<8x128xi1>, vector<8x128xf32>
    %614 = arith.maximumf %528, %613 : vector<8x128xf32>
    %c7_i32_149 = arith.constant 7 : i32
    %c8_i32_150 = arith.constant 8 : i32
    %615 = arith.muli %arg0, %c8_i32_150 : i32
    %616 = arith.addi %615, %c7_i32_149 : i32
    %c7_i32_151 = arith.constant 7 : i32
    %617 = arith.subi %c7_i32_151, %616 : i32
    %618 = arith.index_cast %c7_i32_149 : i32 to index
    %c0_152 = arith.constant 0 : index
    %c0_153 = arith.constant 0 : index
    %619 = vector.load %arg2[%618, %c0_152, %c0_153] : memref<8x8x512xf32, #tpu.memory_space<vmem>>, vector<1x8x512xf32>
    %620 = vector.shape_cast %619 : vector<1x8x512xf32> to vector<8x512xf32>
    %cst_154 = arith.constant dense<0.000000e+00> : vector<8x512xf32>
    %621 = tpu.matmul %601, %5, %cst_154 {dimension_numbers = #tpu.dot_dimension_numbers<[1], [0], [0], [1], [0, 0, 1, 1], [], []>} : vector<8x128xf32>, vector<128x512xf32>, vector<8x512xf32> -> vector<8x512xf32>
    %622 = arith.addf %620, %621 : vector<8x512xf32>
    %c7_i32_155 = arith.constant 7 : i32
    %623 = arith.subi %c7_i32_155, %c7_i32_149 : i32
    %624 = arith.index_cast %623 : i32 to index
    %c0_156 = arith.constant 0 : index
    %c0_157 = arith.constant 0 : index
    %625 = vector.load %arg3[%624, %c0_156, %c0_157] : memref<8x8x512xf32, #tpu.memory_space<vmem>>, vector<1x8x512xf32>
    %626 = vector.shape_cast %625 : vector<1x8x512xf32> to vector<8x512xf32>
    %cst_158 = arith.constant dense<0.000000e+00> : vector<8x512xf32>
    %627 = tpu.matmul %603, %6, %cst_158 {dimension_numbers = #tpu.dot_dimension_numbers<[1], [0], [0], [1], [0, 0, 1, 1], [], []>} : vector<8x128xf32>, vector<128x512xf32>, vector<8x512xf32> -> vector<8x512xf32>
    %628 = arith.addf %626, %627 : vector<8x512xf32>
    %629 = vector.extract_strided_slice %622 {offsets = [0, 0], sizes = [8, 128], strides = [1, 1]} : vector<8x512xf32> to vector<8x128xf32>
    %630 = arith.negf %629 : vector<8x128xf32>
    %631 = math.exp %630 : vector<8x128xf32>
    %cst_159 = arith.constant 1.000000e+00 : f32
    %632 = vector.broadcast %cst_159 : f32 to vector<8x128xf32>
    %633 = arith.addf %632, %631 : vector<8x128xf32>
    %634 = arith.divf %632, %633 : vector<8x128xf32>
    %635 = vector.extract_strided_slice %622 {offsets = [0, 128], sizes = [8, 128], strides = [1, 1]} : vector<8x512xf32> to vector<8x128xf32>
    %636 = arith.negf %635 : vector<8x128xf32>
    %637 = math.exp %636 : vector<8x128xf32>
    %cst_160 = arith.constant 1.000000e+00 : f32
    %638 = vector.broadcast %cst_160 : f32 to vector<8x128xf32>
    %639 = arith.addf %638, %637 : vector<8x128xf32>
    %640 = arith.divf %638, %639 : vector<8x128xf32>
    %641 = vector.extract_strided_slice %622 {offsets = [0, 256], sizes = [8, 128], strides = [1, 1]} : vector<8x512xf32> to vector<8x128xf32>
    %642 = math.tanh %641 : vector<8x128xf32>
    %643 = vector.extract_strided_slice %622 {offsets = [0, 384], sizes = [8, 128], strides = [1, 1]} : vector<8x512xf32> to vector<8x128xf32>
    %644 = arith.negf %643 : vector<8x128xf32>
    %645 = math.exp %644 : vector<8x128xf32>
    %cst_161 = arith.constant 1.000000e+00 : f32
    %646 = vector.broadcast %cst_161 : f32 to vector<8x128xf32>
    %647 = arith.addf %646, %645 : vector<8x128xf32>
    %648 = arith.divf %646, %647 : vector<8x128xf32>
    %649 = arith.mulf %640, %602 : vector<8x128xf32>
    %650 = arith.mulf %634, %642 : vector<8x128xf32>
    %651 = arith.addf %649, %650 : vector<8x128xf32>
    %652 = math.tanh %651 : vector<8x128xf32>
    %653 = arith.mulf %648, %652 : vector<8x128xf32>
    %654 = vector.extract_strided_slice %628 {offsets = [0, 0], sizes = [8, 128], strides = [1, 1]} : vector<8x512xf32> to vector<8x128xf32>
    %655 = arith.negf %654 : vector<8x128xf32>
    %656 = math.exp %655 : vector<8x128xf32>
    %cst_162 = arith.constant 1.000000e+00 : f32
    %657 = vector.broadcast %cst_162 : f32 to vector<8x128xf32>
    %658 = arith.addf %657, %656 : vector<8x128xf32>
    %659 = arith.divf %657, %658 : vector<8x128xf32>
    %660 = vector.extract_strided_slice %628 {offsets = [0, 128], sizes = [8, 128], strides = [1, 1]} : vector<8x512xf32> to vector<8x128xf32>
    %661 = arith.negf %660 : vector<8x128xf32>
    %662 = math.exp %661 : vector<8x128xf32>
    %cst_163 = arith.constant 1.000000e+00 : f32
    %663 = vector.broadcast %cst_163 : f32 to vector<8x128xf32>
    %664 = arith.addf %663, %662 : vector<8x128xf32>
    %665 = arith.divf %663, %664 : vector<8x128xf32>
    %666 = vector.extract_strided_slice %628 {offsets = [0, 256], sizes = [8, 128], strides = [1, 1]} : vector<8x512xf32> to vector<8x128xf32>
    %667 = math.tanh %666 : vector<8x128xf32>
    %668 = vector.extract_strided_slice %628 {offsets = [0, 384], sizes = [8, 128], strides = [1, 1]} : vector<8x512xf32> to vector<8x128xf32>
    %669 = arith.negf %668 : vector<8x128xf32>
    %670 = math.exp %669 : vector<8x128xf32>
    %cst_164 = arith.constant 1.000000e+00 : f32
    %671 = vector.broadcast %cst_164 : f32 to vector<8x128xf32>
    %672 = arith.addf %671, %670 : vector<8x128xf32>
    %673 = arith.divf %671, %672 : vector<8x128xf32>
    %674 = arith.mulf %665, %604 : vector<8x128xf32>
    %675 = arith.mulf %659, %667 : vector<8x128xf32>
    %676 = arith.addf %674, %675 : vector<8x128xf32>
    %677 = math.tanh %676 : vector<8x128xf32>
    %678 = arith.mulf %673, %677 : vector<8x128xf32>
    %679 = vector.broadcast %616 : i32 to vector<8x1xi32>
    %680 = arith.cmpi slt, %679, %4 : vector<8x1xi32>
    %681 = vector.shape_cast %680 : vector<8x1xi1> to vector<8x1xi1>
    %682 = vector.broadcast %681 : vector<8x1xi1> to vector<8x128xi1>
    %683 = vector.broadcast %617 : i32 to vector<8x1xi32>
    %684 = arith.cmpi slt, %683, %4 : vector<8x1xi32>
    %685 = vector.shape_cast %684 : vector<8x1xi1> to vector<8x1xi1>
    %686 = vector.broadcast %685 : vector<8x1xi1> to vector<8x128xi1>
    %687 = arith.select %682, %653, %601 : vector<8x128xi1>, vector<8x128xf32>
    %688 = arith.select %682, %651, %602 : vector<8x128xi1>, vector<8x128xf32>
    %689 = arith.select %686, %678, %603 : vector<8x128xi1>, vector<8x128xf32>
    %690 = arith.select %686, %676, %604 : vector<8x128xi1>, vector<8x128xf32>
    %691 = arith.cmpi slt, %616, %3 : i32
    %cst_165 = arith.constant 0.000000e+00 : f32
    %cst_166 = arith.constant 0xFF800000 : f32
    %692 = arith.select %691, %cst_165, %cst_166 : f32
    %693 = arith.cmpi slt, %617, %3 : i32
    %cst_167 = arith.constant 0.000000e+00 : f32
    %cst_168 = arith.constant 0xFF800000 : f32
    %694 = arith.select %693, %cst_167, %cst_168 : f32
    %695 = vector.broadcast %692 : f32 to vector<8x128xf32>
    %696 = arith.select %682, %653, %695 : vector<8x128xi1>, vector<8x128xf32>
    %697 = arith.maximumf %611, %696 : vector<8x128xf32>
    %698 = vector.broadcast %694 : f32 to vector<8x128xf32>
    %699 = arith.select %686, %678, %698 : vector<8x128xi1>, vector<8x128xf32>
    %700 = arith.maximumf %614, %699 : vector<8x128xf32>
    %c8_i32_169 = arith.constant 8 : i32
    %c0_170 = arith.constant 0 : index
    %c0_171 = arith.constant 0 : index
    %701 = vector.load %arg8[%c0_170, %c0_171] : memref<8x128xf32, #tpu.memory_space<vmem>>, vector<8x128xf32>
    tpu.vector_store %arg8[%c0_170, %c0_171], %687 {strides = array<i32>} : memref<8x128xf32, #tpu.memory_space<vmem>>, vector<8x128xf32>,
    %c0_172 = arith.constant 0 : index
    %c0_173 = arith.constant 0 : index
    %702 = vector.load %arg9[%c0_172, %c0_173] : memref<8x128xf32, #tpu.memory_space<vmem>>, vector<8x128xf32>
    tpu.vector_store %arg9[%c0_172, %c0_173], %688 {strides = array<i32>} : memref<8x128xf32, #tpu.memory_space<vmem>>, vector<8x128xf32>,
    %c0_174 = arith.constant 0 : index
    %c0_175 = arith.constant 0 : index
    %703 = vector.load %arg10[%c0_174, %c0_175] : memref<8x128xf32, #tpu.memory_space<vmem>>, vector<8x128xf32>
    tpu.vector_store %arg10[%c0_174, %c0_175], %689 {strides = array<i32>} : memref<8x128xf32, #tpu.memory_space<vmem>>, vector<8x128xf32>,
    %c0_176 = arith.constant 0 : index
    %c0_177 = arith.constant 0 : index
    %704 = vector.load %arg11[%c0_176, %c0_177] : memref<8x128xf32, #tpu.memory_space<vmem>>, vector<8x128xf32>
    tpu.vector_store %arg11[%c0_176, %c0_177], %690 {strides = array<i32>} : memref<8x128xf32, #tpu.memory_space<vmem>>, vector<8x128xf32>,
    %c0_178 = arith.constant 0 : index
    %c0_179 = arith.constant 0 : index
    %705 = vector.load %arg7[%c0_178, %c0_179] : memref<8x256xf32, #tpu.memory_space<vmem>>, vector<8x128xf32>
    tpu.vector_store %arg7[%c0_178, %c0_179], %697 {strides = array<i32>} : memref<8x256xf32, #tpu.memory_space<vmem>>, vector<8x128xf32>,
    %c0_180 = arith.constant 0 : index
    %c128_181 = arith.constant 128 : index
    %706 = vector.load %arg7[%c0_180, %c128_181] : memref<8x256xf32, #tpu.memory_space<vmem>>, vector<8x128xf32>
    tpu.vector_store %arg7[%c0_180, %c128_181], %700 {strides = array<i32>} : memref<8x256xf32, #tpu.memory_space<vmem>>, vector<8x128xf32>,
    return
  }
  func.func @transform_0(%arg0: i32, %arg1: memref<1xi32, #tpu.memory_space<smem>>) -> (i32, i32, i32) {
    %c0_i32 = arith.constant 0 : i32
    %c0_i32_0 = arith.constant 0 : i32
    %c0_i32_1 = arith.constant 0 : i32
    return %arg0, %c0_i32, %c0_i32_0 : i32, i32, i32
  }
  func.func @transform_1(%arg0: i32, %arg1: memref<1xi32, #tpu.memory_space<smem>>) -> (i32, i32, i32) {
    %c0_i32 = arith.constant 0 : i32
    %0 = arith.subi %c0_i32, %arg0 : i32
    %c0_i32_0 = arith.constant 0 : i32
    %c0_i32_1 = arith.constant 0 : i32
    %c0_i32_2 = arith.constant 0 : i32
    return %0, %c0_i32_0, %c0_i32_1 : i32, i32, i32
  }
  func.func @transform_2(%arg0: i32, %arg1: memref<1xi32, #tpu.memory_space<smem>>) -> (i32, i32) {
    %c0_i32 = arith.constant 0 : i32
    %c0_i32_0 = arith.constant 0 : i32
    %c0_i32_1 = arith.constant 0 : i32
    return %c0_i32, %c0_i32_0 : i32, i32
  }
  func.func @transform_3(%arg0: i32, %arg1: memref<1xi32, #tpu.memory_space<smem>>) -> (i32, i32) {
    %c0_i32 = arith.constant 0 : i32
    %c0_i32_0 = arith.constant 0 : i32
    %c0_i32_1 = arith.constant 0 : i32
    return %c0_i32, %c0_i32_0 : i32, i32
  }
  func.func @transform_4(%arg0: i32, %arg1: memref<1xi32, #tpu.memory_space<smem>>) -> (i32, i32) {
    %c0_i32 = arith.constant 0 : i32
    %c0_i32_0 = arith.constant 0 : i32
    %c0_i32_1 = arith.constant 0 : i32
    return %c0_i32, %c0_i32_0 : i32, i32
  }
  func.func @transform_5(%arg0: i32, %arg1: memref<1xi32, #tpu.memory_space<smem>>) -> (i32, i32) {
    %c0_i32 = arith.constant 0 : i32
    %c0_i32_0 = arith.constant 0 : i32
    %c0_i32_1 = arith.constant 0 : i32
    return %c0_i32, %c0_i32_0 : i32, i32
  }
}

</mosaic_0001>

<llo_original>
// kernel: bilstm_maxpool_encoder.3
$region0: #{bilstm_maxpool_encoder.3}
  #allocation0 [shape = 'u32[]', space=smem, size = 0x4, offset = 0x4, fixed_abs, tag = 'smem constant byte address 0x4 - core index']
  #allocation1 [shape = 'u32[144,128]{1,0:T(1,128)}', space=vmem, size = 0x12000, scoped, tag = 'internal scratch']
  #allocation2 [shape = 'f32[8,128]{1,0:T(8,128)}', space=vmem, size = 0x1000, scoped, tag = 'scratch operand']
  #allocation3 [shape = 'f32[8,128]{1,0:T(8,128)}', space=vmem, size = 0x1000, scoped, tag = 'scratch operand']
  #allocation4 [shape = 'f32[8,128]{1,0:T(8,128)}', space=vmem, size = 0x1000, scoped, tag = 'scratch operand']
  #allocation5 [shape = 'f32[8,128]{1,0:T(8,128)}', space=vmem, size = 0x1000, scoped, tag = 'scratch operand']
  #allocation6 [shape = 's32[1]{0}', space=sflag, size = 0x4, scoped, tag = 'scoped memory for bilstm_maxpool_encoder.3']
  #allocation7 [shape = 's32[1]{0:T(128)S(6)}', space=smem, size = 0x200, scoped, tag = 'prefetched SMEM operand 0']
  %s0 = inlined_call_operand.<no memory space> [shape: s32[1], index: 0, kind: input, shape index: {}]
  %s1 = inlined_call_operand.vmem [shape: f32[8,8,512], index: 1, kind: input, shape index: {}]
  %s2 = inlined_call_operand.vmem [shape: f32[8,8,512], index: 2, kind: input, shape index: {}]
  %s3 = inlined_call_operand.vmem [shape: s32[8,1], index: 3, kind: input, shape index: {}]
  %s4 = inlined_call_operand.vmem [shape: f32[128,512], index: 4, kind: input, shape index: {}]
  %s5 = inlined_call_operand.vmem [shape: f32[128,512], index: 5, kind: input, shape index: {}]
  %s6 = inlined_call_operand.vmem [shape: f32[8,256], index: 6, kind: output, shape index: {}]
  %s7 = sld [smem:[#allocation0]]
  $region34: #{bilstm_maxpool_encoder.3} parent=0
    _
  %s9 = ssub.s32 1, %s7
  %s10 = scalar_select 0, %s9, %s7
  %11 = sst [smem:[#allocation7]] %s0
  // Predicated region
  $region2: #{bilstm_maxpool_encoder.3} parent=0 // pred_check
    _
  $region3: #{bilstm_maxpool_encoder.3} parent=0 // pred_check_branch
    %13 = sbr.rel (0) target = $region5
  $region4: #{bilstm_maxpool_encoder.3} parent=0 // pred_region
    _
  $region5: #{bilstm_maxpool_encoder.3} parent=0 // pred_fallthru
    _
  // Predicated region
  $region6: #{bilstm_maxpool_encoder.3} parent=0 // pred_check
    _
  $region7: #{bilstm_maxpool_encoder.3} parent=0 // pred_check_branch
    %15 = sbr.rel (0) target = $region9
  $region8: #{bilstm_maxpool_encoder.3} parent=0 // pred_region
    %s16 = ssub.s32 0, 0
    %s17 = smul.u32 8, %s16
    %p18 = scmp.lt.s32.totalorder %s17, 7
    %s19 = scalar_select %p18, %s17, 7
    %s20 = smul.addr %s19, 4
    %s21 = smul.addr %s20, 8
    %s22 = scalar_lea.vmem %s2, %s21
    %s23 = ssub.s32 0, 0
    %s24 = smul.u32 8, %s23
  $region9: #{bilstm_maxpool_encoder.3} parent=0 // pred_fallthru
    _
  // Predicated region
  $region10: #{bilstm_maxpool_encoder.3} parent=0 // pred_check
    _
  $region11: #{bilstm_maxpool_encoder.3} parent=0 // pred_check_branch
    %26 = sbr.rel (0) target = $region13
  $region12: #{bilstm_maxpool_encoder.3} parent=0 // pred_region
    _
  $region13: #{bilstm_maxpool_encoder.3} parent=0 // pred_fallthru
    _
  // Predicated region
  $region14: #{bilstm_maxpool_encoder.3} parent=0 // pred_check
    _
  $region15: #{bilstm_maxpool_encoder.3} parent=0 // pred_check_branch
    %28 = sbr.rel (0) target = $region17
  $region16: #{bilstm_maxpool_encoder.3} parent=0 // pred_region
    _
  $region17: #{bilstm_maxpool_encoder.3} parent=0 // pred_fallthru
    _
  // Predicated region
  $region18: #{bilstm_maxpool_encoder.3} parent=0 // pred_check
    _
  $region19: #{bilstm_maxpool_encoder.3} parent=0 // pred_check_branch
    %30 = sbr.rel (0) target = $region21
  $region20: #{bilstm_maxpool_encoder.3} parent=0 // pred_region
    _
  $region21: #{bilstm_maxpool_encoder.3} parent=0 // pred_fallthru
    _
  %s31 = ssub.s32 0, 0
  %s32 = smul.u32 8, %s31
  %p33 = scmp.lt.s32.totalorder %s32, 7
  %s34 = scalar_select %p33, %s32, 7
  %s35 = smul.addr %s34, 4
  %s36 = smul.addr %s35, 8
  %s37 = scalar_lea.vmem %s2, %s36
  %s38 = ssub.s32 0, 0
  %s39 = smul.u32 8, %s38
  %p40 = scmp.lt.s32.totalorder %s39, 7
  %s41 = scalar_select %p40, %s39, 7
  %s42 = smul.addr %s41, 4
  %s43 = smul.addr %s42, 8
  %s44 = scalar_lea.vmem %s2, %s43
  %s45 = ssub.s32 0, 0
  %s46 = smul.u32 8, %s45
  %p47 = scmp.eq.s32.totalorder 0, 0
  // Predicated region
  $region22: #{bilstm_maxpool_encoder.3} parent=0 // pred_check
    %p48 = pneg %p47
  $region23: #{bilstm_maxpool_encoder.3} parent=0 // pred_check_branch
    %50 = sbr.rel (%p48) target = $region25
  $region24: #{bilstm_maxpool_encoder.3} parent=0 // pred_region
    %51 = vst [vmem:[#allocation2] sm:$0xff] 0.0
    %52 = vst [vmem:[#allocation3] sm:$0xff] 0.0
    %53 = vst [vmem:[#allocation4] sm:$0xff] 0.0
    %54 = vst [vmem:[#allocation5] sm:$0xff] 0.0
    %55 = vst [vmem:[%s6] sm:$0xff] -inf
    %56 = vst [vmem:[%s6 + $0x8] sm:$0xff] -inf
  $region25: #{bilstm_maxpool_encoder.3} parent=0 // pred_fallthru
    _
  %s57 = sld [smem:[#allocation7]]
  %v58 = vld [vmem:[%s3] sm:$0xff]
  %v59 = vld [vmem:[%s4] sm:$0xff]
  %v60 = vld [vmem:[%s4 + $0x8] sm:$0xff]
  %v61 = vld [vmem:[%s4 + $0x10] sm:$0xff]
  %v62 = vld [vmem:[%s4 + $0x18] sm:$0xff]
  %v63 = vld [vmem:[%s4 + $0x20] sm:$0xff]
  %v64 = vld [vmem:[%s4 + $0x28] sm:$0xff]
  %v65 = vld [vmem:[%s4 + $0x30] sm:$0xff]
  %v66 = vld [vmem:[%s4 + $0x38] sm:$0xff]
  %v67 = vld [vmem:[%s4 + $0x40] sm:$0xff]
  %v68 = vld [vmem:[%s4 + $0x48] sm:$0xff]
  %v69 = vld [vmem:[%s4 + $0x50] sm:$0xff]
  %v70 = vld [vmem:[%s4 + $0x58] sm:$0xff]
  %v71 = vld [vmem:[%s4 + $0x60] sm:$0xff]
  %v72 = vld [vmem:[%s4 + $0x68] sm:$0xff]
  %v73 = vld [vmem:[%s4 + $0x70] sm:$0xff]
  %v74 = vld [vmem:[%s4 + $0x78] sm:$0xff]
  %v75 = vld [vmem:[%s4 + $0x80] sm:$0xff]
  %v76 = vld [vmem:[%s4 + $0x88] sm:$0xff]
  %v77 = vld [vmem:[%s4 + $0x90] sm:$0xff]
  %v78 = vld [vmem:[%s4 + $0x98] sm:$0xff]
  %v79 = vld [vmem:[%s4 + $0xa0] sm:$0xff]
  %v80 = vld [vmem:[%s4 + $0xa8] sm:$0xff]
  %v81 = vld [vmem:[%s4 + $0xb0] sm:$0xff]
  %v82 = vld [vmem:[%s4 + $0xb8] sm:$0xff]
  %v83 = vld [vmem:[%s4 + $0xc0] sm:$0xff]
  %v84 = vld [vmem:[%s4 + $0xc8] sm:$0xff]
  %v85 = vld [vmem:[%s4 + $0xd0] sm:$0xff]
  %v86 = vld [vmem:[%s4 + $0xd8] sm:$0xff]
  %v87 = vld [vmem:[%s4 + $0xe0] sm:$0xff]
  %v88 = vld [vmem:[%s4 + $0xe8] sm:$0xff]
  %v89 = vld [vmem:[%s4 + $0xf0] sm:$0xff]
  %v90 = vld [vmem:[%s4 + $0xf8] sm:$0xff]
  %v91 = vld [vmem:[%s4 + $0x100] sm:$0xff]
  %v92 = vld [vmem:[%s4 + $0x108] sm:$0xff]
  %v93 = vld [vmem:[%s4 + $0x110] sm:$0xff]
  %v94 = vld [vmem:[%s4 + $0x118] sm:$0xff]
  %v95 = vld [vmem:[%s4 + $0x120] sm:$0xff]
  %v96 = vld [vmem:[%s4 + $0x128] sm:$0xff]
  %v97 = vld [vmem:[%s4 + $0x130] sm:$0xff]
  %v98 = vld [vmem:[%s4 + $0x138] sm:$0xff]
  %v99 = vld [vmem:[%s4 + $0x140] sm:$0xff]
  %v100 = vld [vmem:[%s4 + $0x148] sm:$0xff]
  %v101 = vld [vmem:[%s4 + $0x150] sm:$0xff]
  %v102 = vld [vmem:[%s4 + $0x158] sm:$0xff]
  %v103 = vld [vmem:[%s4 + $0x160] sm:$0xff]
  %v104 = vld [vmem:[%s4 + $0x168] sm:$0xff]
  %v105 = vld [vmem:[%s4 + $0x170] sm:$0xff]
  %v106 = vld [vmem:[%s4 + $0x178] sm:$0xff]
  %v107 = vld [vmem:[%s4 + $0x180] sm:$0xff]
  %v108 = vld [vmem:[%s4 + $0x188] sm:$0xff]
  %v109 = vld [vmem:[%s4 + $0x190] sm:$0xff]
  %v110 = vld [vmem:[%s4 + $0x198] sm:$0xff]
  %v111 = vld [vmem:[%s4 + $0x1a0] sm:$0xff]
  %v112 = vld [vmem:[%s4 + $0x1a8] sm:$0xff]
  %v113 = vld [vmem:[%s4 + $0x1b0] sm:$0xff]
  %v114 = vld [vmem:[%s4 + $0x1b8] sm:$0xff]
  %v115 = vld [vmem:[%s4 + $0x1c0] sm:$0xff]
  %v116 = vld [vmem:[%s4 + $0x1c8] sm:$0xff]
  %v117 = vld [vmem:[%s4 + $0x1d0] sm:$0xff]
  %v118 = vld [vmem:[%s4 + $0x1d8] sm:$0xff]
  %v119 = vld [vmem:[%s4 + $0x1e0] sm:$0xff]
  %v120 = vld [vmem:[%s4 + $0x1e8] sm:$0xff]
  %v121 = vld [vmem:[%s4 + $0x1f0] sm:$0xff]
  %v122 = vld [vmem:[%s4 + $0x1f8] sm:$0xff]
  %v123 = vld [vmem:[%s5] sm:$0xff]
  %v124 = vld [vmem:[%s5 + $0x8] sm:$0xff]
  %v125 = vld [vmem:[%s5 + $0x10] sm:$0xff]
  %v126 = vld [vmem:[%s5 + $0x18] sm:$0xff]
  %v127 = vld [vmem:[%s5 + $0x20] sm:$0xff]
  %v128 = vld [vmem:[%s5 + $0x28] sm:$0xff]
  %v129 = vld [vmem:[%s5 + $0x30] sm:$0xff]
  %v130 = vld [vmem:[%s5 + $0x38] sm:$0xff]
  %v131 = vld [vmem:[%s5 + $0x40] sm:$0xff]
  %v132 = vld [vmem:[%s5 + $0x48] sm:$0xff]
  %v133 = vld [vmem:[%s5 + $0x50] sm:$0xff]
  %v134 = vld [vmem:[%s5 + $0x58] sm:$0xff]
  %v135 = vld [vmem:[%s5 + $0x60] sm:$0xff]
  %v136 = vld [vmem:[%s5 + $0x68] sm:$0xff]
  %v137 = vld [vmem:[%s5 + $0x70] sm:$0xff]
  %v138 = vld [vmem:[%s5 + $0x78] sm:$0xff]
  %v139 = vld [vmem:[%s5 + $0x80] sm:$0xff]
  %v140 = vld [vmem:[%s5 + $0x88] sm:$0xff]
  %v141 = vld [vmem:[%s5 + $0x90] sm:$0xff]
  %v142 = vld [vmem:[%s5 + $0x98] sm:$0xff]
  %v143 = vld [vmem:[%s5 + $0xa0] sm:$0xff]
  %v144 = vld [vmem:[%s5 + $0xa8] sm:$0xff]
  %v145 = vld [vmem:[%s5 + $0xb0] sm:$0xff]
  %v146 = vld [vmem:[%s5 + $0xb8] sm:$0xff]
  %v147 = vld [vmem:[%s5 + $0xc0] sm:$0xff]
  %v148 = vld [vmem:[%s5 + $0xc8] sm:$0xff]
  %v149 = vld [vmem:[%s5 + $0xd0] sm:$0xff]
  %v150 = vld [vmem:[%s5 + $0xd8] sm:$0xff]
  %v151 = vld [vmem:[%s5 + $0xe0] sm:$0xff]
  %v152 = vld [vmem:[%s5 + $0xe8] sm:$0xff]
  %v153 = vld [vmem:[%s5 + $0xf0] sm:$0xff]
  %v154 = vld [vmem:[%s5 + $0xf8] sm:$0xff]
  %v155 = vld [vmem:[%s5 + $0x100] sm:$0xff]
  %v156 = vld [vmem:[%s5 + $0x108] sm:$0xff]
  %v157 = vld [vmem:[%s5 + $0x110] sm:$0xff]
  %v158 = vld [vmem:[%s5 + $0x118] sm:$0xff]
  %v159 = vld [vmem:[%s5 + $0x120] sm:$0xff]
  %v160 = vld [vmem:[%s5 + $0x128] sm:$0xff]
  %v161 = vld [vmem:[%s5 + $0x130] sm:$0xff]
  %v162 = vld [vmem:[%s5 + $0x138] sm:$0xff]
  %v163 = vld [vmem:[%s5 + $0x140] sm:$0xff]
  %v164 = vld [vmem:[%s5 + $0x148] sm:$0xff]
  %v165 = vld [vmem:[%s5 + $0x150] sm:$0xff]
  %v166 = vld [vmem:[%s5 + $0x158] sm:$0xff]
  %v167 = vld [vmem:[%s5 + $0x160] sm:$0xff]
  %v168 = vld [vmem:[%s5 + $0x168] sm:$0xff]
  %v169 = vld [vmem:[%s5 + $0x170] sm:$0xff]
  %v170 = vld [vmem:[%s5 + $0x178] sm:$0xff]
  %v171 = vld [vmem:[%s5 + $0x180] sm:$0xff]
  %v172 = vld [vmem:[%s5 + $0x188] sm:$0xff]
  %v173 = vld [vmem:[%s5 + $0x190] sm:$0xff]
  %v174 = vld [vmem:[%s5 + $0x198] sm:$0xff]
  %v175 = vld [vmem:[%s5 + $0x1a0] sm:$0xff]
  %v176 = vld [vmem:[%s5 + $0x1a8] sm:$0xff]
  %v177 = vld [vmem:[%s5 + $0x1b0] sm:$0xff]
  %v178 = vld [vmem:[%s5 + $0x1b8] sm:$0xff]
  %v179 = vld [vmem:[%s5 + $0x1c0] sm:$0xff]
  %v180 = vld [vmem:[%s5 + $0x1c8] sm:$0xff]
  %v181 = vld [vmem:[%s5 + $0x1d0] sm:$0xff]
  %v182 = vld [vmem:[%s5 + $0x1d8] sm:$0xff]
  %v183 = vld [vmem:[%s5 + $0x1e0] sm:$0xff]
  %v184 = vld [vmem:[%s5 + $0x1e8] sm:$0xff]
  %v185 = vld [vmem:[%s5 + $0x1f0] sm:$0xff]
  %v186 = vld [vmem:[%s5 + $0x1f8] sm:$0xff]
  %v187 = vld [vmem:[#allocation2] sm:$0xff]
  %v188 = vld [vmem:[#allocation3] sm:$0xff]
  %v189 = vld [vmem:[#allocation4] sm:$0xff]
  %v190 = vld [vmem:[#allocation5] sm:$0xff]
  %v191 = vld [vmem:[%s6] sm:$0xff]
  %v192 = vld [vmem:[%s6 + $0x8] sm:$0xff]
  %s193 = smul.u32 0, 8
  %s194 = ssub.s32 7, %s193
  %v195 = vld [vmem:[%s1] sm:$0xff]
  %v196 = vld [vmem:[%s1 + $0x8] sm:$0xff]
  %v197 = vld [vmem:[%s1 + $0x10] sm:$0xff]
  %v198 = vld [vmem:[%s1 + $0x18] sm:$0xff]
  %199 = vmatprep.subr.mxu0 %v60
  %200 = vmatpush1.msra.mxu0 %v59
  %201 = vmatprep.subr.mxu0 %v64
  %202 = vmatpush1.msra.mxu0 %v63
  %203 = vmatprep.subr.mxu0 %v68
  %204 = vmatpush1.msra.mxu0 %v67
  %205 = vmatprep.subr.mxu0 %v72
  %206 = vmatpush1.msra.mxu0 %v71
  %207 = vmatprep.subr.mxu0 %v76
  %208 = vmatpush1.msra.mxu0 %v75
  %209 = vmatprep.subr.mxu0 %v80
  %210 = vmatpush1.msra.mxu0 %v79
  %211 = vmatprep.subr.mxu0 %v84
  %212 = vmatpush1.msra.mxu0 %v83
  %213 = vmatprep.subr.mxu0 %v88
  %214 = vmatpush1.msra.mxu0 %v87
  %215 = vmatprep.subr.mxu0 %v92
  %216 = vmatpush1.msra.mxu0 %v91
  %217 = vmatprep.subr.mxu0 %v96
  %218 = vmatpush1.msra.mxu0 %v95
  %219 = vmatprep.subr.mxu0 %v100
  %220 = vmatpush1.msra.mxu0 %v99
  %221 = vmatprep.subr.mxu0 %v104
  %222 = vmatpush1.msra.mxu0 %v103
  %223 = vmatprep.subr.mxu0 %v108
  %224 = vmatpush1.msra.mxu0 %v107
  %225 = vmatprep.subr.mxu0 %v112
  %226 = vmatpush1.msra.mxu0 %v111
  %227 = vmatprep.subr.mxu0 %v116
  %228 = vmatpush1.msra.mxu0 %v115
  %229 = vmatprep.subr.mxu0 %v120
  %230 = vmatpush1.msra.mxu0 %v119
  %231 = vmatprep.subr.mxu0 0.0
  %232 = vmatpush1.msra.mxu0 0.0
  %233 = vmatprep.subr.mxu0 0.0
  %234 = vmatpush1.msra.mxu0 0.0
  %235 = vmatprep.subr.mxu0 0.0
  %236 = vmatpush1.msra.mxu0 0.0
  %237 = vmatprep.subr.mxu0 0.0
  %238 = vmatpush1.msra.mxu0 0.0
  %239 = vmatprep.subr.mxu0 0.0
  %240 = vmatpush1.msra.mxu0 0.0
  %241 = vmatprep.subr.mxu0 0.0
  %242 = vmatpush1.msra.mxu0 0.0
  %243 = vmatprep.subr.mxu0 0.0
  %244 = vmatpush1.msra.mxu0 0.0
  %245 = vmatprep.subr.mxu0 0.0
  %246 = vmatpush1.msra.mxu0 0.0
  %247 = vmatprep.subr.mxu0 0.0
  %248 = vmatpush1.msra.mxu0 0.0
  %249 = vmatprep.subr.mxu0 0.0
  %250 = vmatpush1.msra.mxu0 0.0
  %251 = vmatprep.subr.mxu0 0.0
  %252 = vmatpush1.msra.mxu0 0.0
  %253 = vmatprep.subr.mxu0 0.0
  %254 = vmatpush1.msra.mxu0 0.0
  %255 = vmatprep.subr.mxu0 0.0
  %256 = vmatpush1.msra.mxu0 0.0
  %257 = vmatprep.subr.mxu0 0.0
  %258 = vmatpush1.msra.mxu0 0.0
  %259 = vmatprep.subr.mxu0 0.0
  %260 = vmatpush1.msra.mxu0 0.0
  %261 = vmatprep.subr.mxu0 0.0
  %262 = vmatpush1.msra.mxu0 0.0
  %263 = vmatprep.mubr.f32.mxu0 0.0
  %264 = vmatmul.mubr.f32.gmra.mrb[0].mxu0 %v187
  %v265 = vpop.f32.mrb[0].mxu0
  %v266 = vadd.f32 0.0, %v265
  %v267 = vpop.f32.mrb[0].mxu0
  %v268 = vadd.f32 0.0, %v267
  %269 = vdwg.mxu0
  %270 = vmatprep.subr.mxu0 %v62
  %271 = vmatpush1.msra.mxu0 %v61
  %272 = vmatprep.subr.mxu0 %v66
  %273 = vmatpush1.msra.mxu0 %v65
  %274 = vmatprep.subr.mxu0 %v70
  %275 = vmatpush1.msra.mxu0 %v69
  %276 = vmatprep.subr.mxu0 %v74
  %277 = vmatpush1.msra.mxu0 %v73
  %278 = vmatprep.subr.mxu0 %v78
  %279 = vmatpush1.msra.mxu0 %v77
  %280 = vmatprep.subr.mxu0 %v82
  %281 = vmatpush1.msra.mxu0 %v81
  %282 = vmatprep.subr.mxu0 %v86
  %283 = vmatpush1.msra.mxu0 %v85
  %284 = vmatprep.subr.mxu0 %v90
  %285 = vmatpush1.msra.mxu0 %v89
  %286 = vmatprep.subr.mxu0 %v94
  %287 = vmatpush1.msra.mxu0 %v93
  %288 = vmatprep.subr.mxu0 %v98
  %289 = vmatpush1.msra.mxu0 %v97
  %290 = vmatprep.subr.mxu0 %v102
  %291 = vmatpush1.msra.mxu0 %v101
  %292 = vmatprep.subr.mxu0 %v106
  %293 = vmatpush1.msra.mxu0 %v105
  %294 = vmatprep.subr.mxu0 %v110
  %295 = vmatpush1.msra.mxu0 %v109
  %296 = vmatprep.subr.mxu0 %v114
  %297 = vmatpush1.msra.mxu0 %v113
  %298 = vmatprep.subr.mxu0 %v118
  %299 = vmatpush1.msra.mxu0 %v117
  %300 = vmatprep.subr.mxu0 %v122
  %301 = vmatpush1.msra.mxu0 %v121
  %302 = vmatprep.subr.mxu0 0.0
  %303 = vmatpush1.msra.mxu0 0.0
  %304 = vmatprep.subr.mxu0 0.0
  %305 = vmatpush1.msra.mxu0 0.0
  %306 = vmatprep.subr.mxu0 0.0
  %307 = vmatpush1.msra.mxu0 0.0
  %308 = vmatprep.subr.mxu0 0.0
  %309 = vmatpush1.msra.mxu0 0.0
  %310 = vmatprep.subr.mxu0 0.0
  %311 = vmatpush1.msra.mxu0 0.0
  %312 = vmatprep.subr.mxu0 0.0
  %313 = vmatpush1.msra.mxu0 0.0
  %314 = vmatprep.subr.mxu0 0.0
  %315 = vmatpush1.msra.mxu0 0.0
  %316 = vmatprep.subr.mxu0 0.0
  %317 = vmatpush1.msra.mxu0 0.0
  %318 = vmatprep.subr.mxu0 0.0
  %319 = vmatpush1.msra.mxu0 0.0
  %320 = vmatprep.subr.mxu0 0.0
  %321 = vmatpush1.msra.mxu0 0.0
  %322 = vmatprep.subr.mxu0 0.0
  %323 = vmatpush1.msra.mxu0 0.0
  %324 = vmatprep.subr.mxu0 0.0
  %325 = vmatpush1.msra.mxu0 0.0
  %326 = vmatprep.subr.mxu0 0.0
  %327 = vmatpush1.msra.mxu0 0.0
  %328 = vmatprep.subr.mxu0 0.0
  %329 = vmatpush1.msra.mxu0 0.0
  %330 = vmatprep.subr.mxu0 0.0
  %331 = vmatpush1.msra.mxu0 0.0
  %332 = vmatprep.subr.mxu0 0.0
  %333 = vmatpush1.msra.mxu0 0.0
  %334 = vmatprep.mubr.f32.mxu0 0.0
  %335 = vmatmul.mubr.f32.gmra.mrb[0].mxu0 %v187
  %v336 = vpop.f32.mrb[0].mxu0
  %v337 = vadd.f32 0.0, %v336
  %v338 = vpop.f32.mrb[0].mxu0
  %v339 = vadd.f32 0.0, %v338
  %340 = vdwg.mxu0
  %v341 = vadd.f32 %v195, %v266
  %v342 = vadd.f32 %v196, %v268
  %v343 = vadd.f32 %v197, %v337
  %v344 = vadd.f32 %v198, %v339
  %s345 = scalar_lea.vmem %s44, 224
  %v346 = vld [vmem:[%s345] sm:$0xff]
  %v347 = vld [vmem:[%s345 + $0x8] sm:$0xff]
  %v348 = vld [vmem:[%s345 + $0x10] sm:$0xff]
  %v349 = vld [vmem:[%s345 + $0x18] sm:$0xff]
  %350 = vmatprep.subr.mxu0 %v124
  %351 = vmatpush1.msra.mxu0 %v123
  %352 = vmatprep.subr.mxu0 %v128
  %353 = vmatpush1.msra.mxu0 %v127
  %354 = vmatprep.subr.mxu0 %v132
  %355 = vmatpush1.msra.mxu0 %v131
  %356 = vmatprep.subr.mxu0 %v136
  %357 = vmatpush1.msra.mxu0 %v135
  %358 = vmatprep.subr.mxu0 %v140
  %359 = vmatpush1.msra.mxu0 %v139
  %360 = vmatprep.subr.mxu0 %v144
  %361 = vmatpush1.msra.mxu0 %v143
  %362 = vmatprep.subr.mxu0 %v148
  %363 = vmatpush1.msra.mxu0 %v147
  %364 = vmatprep.subr.mxu0 %v152
  %365 = vmatpush1.msra.mxu0 %v151
  %366 = vmatprep.subr.mxu0 %v156
  %367 = vmatpush1.msra.mxu0 %v155
  %368 = vmatprep.subr.mxu0 %v160
  %369 = vmatpush1.msra.mxu0 %v159
  %370 = vmatprep.subr.mxu0 %v164
  %371 = vmatpush1.msra.mxu0 %v163
  %372 = vmatprep.subr.mxu0 %v168
  %373 = vmatpush1.msra.mxu0 %v167
  %374 = vmatprep.subr.mxu0 %v172
  %375 = vmatpush1.msra.mxu0 %v171
  %376 = vmatprep.subr.mxu0 %v176
  %377 = vmatpush1.msra.mxu0 %v175
  %378 = vmatprep.subr.mxu0 %v180
  %379 = vmatpush1.msra.mxu0 %v179
  %380 = vmatprep.subr.mxu0 %v184
  %381 = vmatpush1.msra.mxu0 %v183
  %382 = vmatprep.subr.mxu0 0.0
  %383 = vmatpush1.msra.mxu0 0.0
  %384 = vmatprep.subr.mxu0 0.0
  %385 = vmatpush1.msra.mxu0 0.0
  %386 = vmatprep.subr.mxu0 0.0
  %387 = vmatpush1.msra.mxu0 0.0
  %388 = vmatprep.subr.mxu0 0.0
  %389 = vmatpush1.msra.mxu0 0.0
  %390 = vmatprep.subr.mxu0 0.0
  %391 = vmatpush1.msra.mxu0 0.0
  %392 = vmatprep.subr.mxu0 0.0
  %393 = vmatpush1.msra.mxu0 0.0
  %394 = vmatprep.subr.mxu0 0.0
  %395 = vmatpush1.msra.mxu0 0.0
  %396 = vmatprep.subr.mxu0 0.0
  %397 = vmatpush1.msra.mxu0 0.0
  %398 = vmatprep.subr.mxu0 0.0
  %399 = vmatpush1.msra.mxu0 0.0
  %400 = vmatprep.subr.mxu0 0.0
  %401 = vmatpush1.msra.mxu0 0.0
  %402 = vmatprep.subr.mxu0 0.0
  %403 = vmatpush1.msra.mxu0 0.0
  %404 = vmatprep.subr.mxu0 0.0
  %405 = vmatpush1.msra.mxu0 0.0
  %406 = vmatprep.subr.mxu0 0.0
  %407 = vmatpush1.msra.mxu0 0.0
  %408 = vmatprep.subr.mxu0 0.0
  %409 = vmatpush1.msra.mxu0 0.0
  %410 = vmatprep.subr.mxu0 0.0
  %411 = vmatpush1.msra.mxu0 0.0
  %412 = vmatprep.subr.mxu0 0.0
  %413 = vmatpush1.msra.mxu0 0.0
  %414 = vmatprep.mubr.f32.mxu0 0.0
  %415 = vmatmul.mubr.f32.gmra.mrb[0].mxu0 %v189
  %v416 = vpop.f32.mrb[0].mxu0
  %v417 = vadd.f32 0.0, %v416
  %v418 = vpop.f32.mrb[0].mxu0
  %v419 = vadd.f32 0.0, %v418
  %420 = vdwg.mxu0
  %421 = vmatprep.subr.mxu0 %v126
  %422 = vmatpush1.msra.mxu0 %v125
  %423 = vmatprep.subr.mxu0 %v130
  %424 = vmatpush1.msra.mxu0 %v129
  %425 = vmatprep.subr.mxu0 %v134
  %426 = vmatpush1.msra.mxu0 %v133
  %427 = vmatprep.subr.mxu0 %v138
  %428 = vmatpush1.msra.mxu0 %v137
  %429 = vmatprep.subr.mxu0 %v142
  %430 = vmatpush1.msra.mxu0 %v141
  %431 = vmatprep.subr.mxu0 %v146
  %432 = vmatpush1.msra.mxu0 %v145
  %433 = vmatprep.subr.mxu0 %v150
  %434 = vmatpush1.msra.mxu0 %v149
  %435 = vmatprep.subr.mxu0 %v154
  %436 = vmatpush1.msra.mxu0 %v153
  %437 = vmatprep.subr.mxu0 %v158
  %438 = vmatpush1.msra.mxu0 %v157
  %439 = vmatprep.subr.mxu0 %v162
  %440 = vmatpush1.msra.mxu0 %v161
  %441 = vmatprep.subr.mxu0 %v166
  %442 = vmatpush1.msra.mxu0 %v165
  %443 = vmatprep.subr.mxu0 %v170
  %444 = vmatpush1.msra.mxu0 %v169
  %445 = vmatprep.subr.mxu0 %v174
  %446 = vmatpush1.msra.mxu0 %v173
  %447 = vmatprep.subr.mxu0 %v178
  %448 = vmatpush1.msra.mxu0 %v177
  %449 = vmatprep.subr.mxu0 %v182
  %450 = vmatpush1.msra.mxu0 %v181
  %451 = vmatprep.subr.mxu0 %v186
  %452 = vmatpush1.msra.mxu0 %v185
  %453 = vmatprep.subr.mxu0 0.0
  %454 = vmatpush1.msra.mxu0 0.0
  %455 = vmatprep.subr.mxu0 0.0
  %456 = vmatpush1.msra.mxu0 0.0
  %457 = vmatprep.subr.mxu0 0.0
  %458 = vmatpush1.msra.mxu0 0.0
  %459 = vmatprep.subr.mxu0 0.0
  %460 = vmatpush1.msra.mxu0 0.0
  %461 = vmatprep.subr.mxu0 0.0
  %462 = vmatpush1.msra.mxu0 0.0
  %463 = vmatprep.subr.mxu0 0.0
  %464 = vmatpush1.msra.mxu0 0.0
  %465 = vmatprep.subr.mxu0 0.0
  %466 = vmatpush1.msra.mxu0 0.0
  %467 = vmatprep.subr.mxu0 0.0
  %468 = vmatpush1.msra.mxu0 0.0
  %469 = vmatprep.subr.mxu0 0.0
  %470 = vmatpush1.msra.mxu0 0.0
  %471 = vmatprep.subr.mxu0 0.0
  %472 = vmatpush1.msra.mxu0 0.0
  %473 = vmatprep.subr.mxu0 0.0
  %474 = vmatpush1.msra.mxu0 0.0
  %475 = vmatprep.subr.mxu0 0.0
  %476 = vmatpush1.msra.mxu0 0.0
  %477 = vmatprep.subr.mxu0 0.0
  %478 = vmatpush1.msra.mxu0 0.0
  %479 = vmatprep.subr.mxu0 0.0
  %480 = vmatpush1.msra.mxu0 0.0
  %481 = vmatprep.subr.mxu0 0.0
  %482 = vmatpush1.msra.mxu0 0.0
  %483 = vmatprep.subr.mxu0 0.0
  %484 = vmatpush1.msra.mxu0 0.0
  %485 = vmatprep.mubr.f32.mxu0 0.0
  %486 = vmatmul.mubr.f32.gmra.mrb[0].mxu0 %v189
  %v487 = vpop.f32.mrb[0].mxu0
  %v488 = vadd.f32 0.0, %v487
  %v489 = vpop.f32.mrb[0].mxu0
  %v490 = vadd.f32 0.0, %v489
  %491 = vdwg.mxu0
  %v492 = vadd.f32 %v346, %v417
  %v493 = vadd.f32 %v347, %v419
  %v494 = vadd.f32 %v348, %v488
  %v495 = vadd.f32 %v349, %v490
  %v496 = vxor.u32 %v341, 2147483648
  %v497 = vmul.f32 %v496, 1.442695
  %v498 = vpow.pop %v497
  %v499 = vadd.f32 %v498, 1.0
  %v500 = vrcp.pop %v499
  %v501 = vmul.f32 1.0, %v500
  %v502 = vxor.u32 %v342, 2147483648
  %v503 = vmul.f32 %v502, 1.442695
  %v504 = vpow.pop %v503
  %v505 = vadd.f32 %v504, 1.0
  %v506 = vrcp.pop %v505
  %v507 = vmul.f32 1.0, %v506
  %v508 = vtanh.pop %v343
  %v509 = vxor.u32 %v344, 2147483648
  %v510 = vmul.f32 %v509, 1.442695
  %v511 = vpow.pop %v510
  %v512 = vadd.f32 %v511, 1.0
  %v513 = vrcp.pop %v512
  %v514 = vmul.f32 1.0, %v513
  %v515 = vmul.f32 %v507, %v188
  %v516 = vmul.f32 %v501, %v508
  %v517 = vadd.f32 %v515, %v516
  %v518 = vtanh.pop %v517
  %v519 = vmul.f32 %v514, %v518
  %v520 = vxor.u32 %v492, 2147483648
  %v521 = vmul.f32 %v520, 1.442695
  %v522 = vpow.pop %v521
  %v523 = vadd.f32 %v522, 1.0
  %v524 = vrcp.pop %v523
  %v525 = vmul.f32 1.0, %v524
  %v526 = vxor.u32 %v493, 2147483648
  %v527 = vmul.f32 %v526, 1.442695
  %v528 = vpow.pop %v527
  %v529 = vadd.f32 %v528, 1.0
  %v530 = vrcp.pop %v529
  %v531 = vmul.f32 1.0, %v530
  %v532 = vtanh.pop %v494
  %v533 = vxor.u32 %v495, 2147483648
  %v534 = vmul.f32 %v533, 1.442695
  %v535 = vpow.pop %v534
  %v536 = vadd.f32 %v535, 1.0
  %v537 = vrcp.pop %v536
  %v538 = vmul.f32 1.0, %v537
  %v539 = vmul.f32 %v531, %v190
  %v540 = vmul.f32 %v525, %v532
  %v541 = vadd.f32 %v539, %v540
  %v542 = vtanh.pop %v541
  %v543 = vmul.f32 %v538, %v542
  %v544 = vstv %s193
  %vm545 = vcmp.lt.s32.totalorder %v544, %v58
  %v546 = vsel %vm545, 1, 0
  %547 = vset.pattern.permute.xlu0 0
  %548 = vperm.xlu0 %547, %v546
  %v549 = vpop.permute.xlu0 %548
  %vm550 = vcmp.eq.s32.totalorder %v549, 1
  %v551 = vstv %s194
  %vm552 = vcmp.lt.s32.totalorder %v551, %v58
  %v553 = vsel %vm552, 1, 0
  %554 = vset.pattern.permute.xlu0 0
  %555 = vperm.xlu0 %554, %v553
  %v556 = vpop.permute.xlu0 %555
  %vm557 = vcmp.eq.s32.totalorder %v556, 1
  %v558 = vsel %vm550, %v519, %v187
  %v559 = vsel %vm550, %v517, %v188
  %v560 = vsel %vm557, %v543, %v189
  %v561 = vsel %vm557, %v541, %v190
  %p562 = scmp.lt.s32.totalorder %s193, %s57
  %s563 = scalar_select %p562, 0.0, -inf
  %p564 = scmp.lt.s32.totalorder %s194, %s57
  %s565 = scalar_select %p564, 0.0, -inf
  %v566 = vstv %s563
  %v567 = vsel %vm550, %v519, %v566
  %v568 = vmax.f32 %v191, %v567
  %v569 = vstv %s565
  %v570 = vsel %vm557, %v543, %v569
  %v571 = vmax.f32 %v192, %v570
  %s572 = sadd.s32 %s193, 1
  %s573 = ssub.s32 6, %s193
  %s574 = scalar_lea.vmem %s1, 32
  %v575 = vld [vmem:[%s574] sm:$0xff]
  %v576 = vld [vmem:[%s574 + $0x8] sm:$0xff]
  %v577 = vld [vmem:[%s574 + $0x10] sm:$0xff]
  %v578 = vld [vmem:[%s574 + $0x18] sm:$0xff]
  %579 = vmatprep.subr.mxu0 %v60
  %580 = vmatpush1.msra.mxu0 %v59
  %581 = vmatprep.subr.mxu0 %v64
  %582 = vmatpush1.msra.mxu0 %v63
  %583 = vmatprep.subr.mxu0 %v68
  %584 = vmatpush1.msra.mxu0 %v67
  %585 = vmatprep.subr.mxu0 %v72
  %586 = vmatpush1.msra.mxu0 %v71
  %587 = vmatprep.subr.mxu0 %v76
  %588 = vmatpush1.msra.mxu0 %v75
  %589 = vmatprep.subr.mxu0 %v80
  %590 = vmatpush1.msra.mxu0 %v79
  %591 = vmatprep.subr.mxu0 %v84
  %592 = vmatpush1.msra.mxu0 %v83
  %593 = vmatprep.subr.mxu0 %v88
  %594 = vmatpush1.msra.mxu0 %v87
  %595 = vmatprep.subr.mxu0 %v92
  %596 = vmatpush1.msra.mxu0 %v91
  %597 = vmatprep.subr.mxu0 %v96
  %598 = vmatpush1.msra.mxu0 %v95
  %599 = vmatprep.subr.mxu0 %v100
  %600 = vmatpush1.msra.mxu0 %v99
  %601 = vmatprep.subr.mxu0 %v104
  %602 = vmatpush1.msra.mxu0 %v103
  %603 = vmatprep.subr.mxu0 %v108
  %604 = vmatpush1.msra.mxu0 %v107
  %605 = vmatprep.subr.mxu0 %v112
  %606 = vmatpush1.msra.mxu0 %v111
  %607 = vmatprep.subr.mxu0 %v116
  %608 = vmatpush1.msra.mxu0 %v115
  %609 = vmatprep.subr.mxu0 %v120
  %610 = vmatpush1.msra.mxu0 %v119
  %611 = vmatprep.subr.mxu0 0.0
  %612 = vmatpush1.msra.mxu0 0.0
  %613 = vmatprep.subr.mxu0 0.0
  %614 = vmatpush1.msra.mxu0 0.0
  %615 = vmatprep.subr.mxu0 0.0
  %616 = vmatpush1.msra.mxu0 0.0
  %617 = vmatprep.subr.mxu0 0.0
  %618 = vmatpush1.msra.mxu0 0.0
  %619 = vmatprep.subr.mxu0 0.0
  %620 = vmatpush1.msra.mxu0 0.0
  %621 = vmatprep.subr.mxu0 0.0
  %622 = vmatpush1.msra.mxu0 0.0
  %623 = vmatprep.subr.mxu0 0.0
  %624 = vmatpush1.msra.mxu0 0.0
  %625 = vmatprep.subr.mxu0 0.0
  %626 = vmatpush1.msra.mxu0 0.0
  %627 = vmatprep.subr.mxu0 0.0
  %628 = vmatpush1.msra.mxu0 0.0
  %629 = vmatprep.subr.mxu0 0.0
  %630 = vmatpush1.msra.mxu0 0.0
  %631 = vmatprep.subr.mxu0 0.0
  %632 = vmatpush1.msra.mxu0 0.0
  %633 = vmatprep.subr.mxu0 0.0
  %634 = vmatpush1.msra.mxu0 0.0
  %635 = vmatprep.subr.mxu0 0.0
  %636 = vmatpush1.msra.mxu0 0.0
  %637 = vmatprep.subr.mxu0 0.0
  %638 = vmatpush1.msra.mxu0 0.0
  %639 = vmatprep.subr.mxu0 0.0
  %640 = vmatpush1.msra.mxu0 0.0
  %641 = vmatprep.subr.mxu0 0.0
  %642 = vmatpush1.msra.mxu0 0.0
  %643 = vmatprep.mubr.f32.mxu0 0.0
  %644 = vmatmul.mubr.f32.gmra.mrb[0].mxu0 %v558
  %v645 = vpop.f32.mrb[0].mxu0
  %v646 = vadd.f32 0.0, %v645
  %v647 = vpop.f32.mrb[0].mxu0
  %v648 = vadd.f32 0.0, %v647
  %649 = vdwg.mxu0
  %650 = vmatprep.subr.mxu0 %v62
  %651 = vmatpush1.msra.mxu0 %v61
  %652 = vmatprep.subr.mxu0 %v66
  %653 = vmatpush1.msra.mxu0 %v65
  %654 = vmatprep.subr.mxu0 %v70
  %655 = vmatpush1.msra.mxu0 %v69
  %656 = vmatprep.subr.mxu0 %v74
  %657 = vmatpush1.msra.mxu0 %v73
  %658 = vmatprep.subr.mxu0 %v78
  %659 = vmatpush1.msra.mxu0 %v77
  %660 = vmatprep.subr.mxu0 %v82
  %661 = vmatpush1.msra.mxu0 %v81
  %662 = vmatprep.subr.mxu0 %v86
  %663 = vmatpush1.msra.mxu0 %v85
  %664 = vmatprep.subr.mxu0 %v90
  %665 = vmatpush1.msra.mxu0 %v89
  %666 = vmatprep.subr.mxu0 %v94
  %667 = vmatpush1.msra.mxu0 %v93
  %668 = vmatprep.subr.mxu0 %v98
  %669 = vmatpush1.msra.mxu0 %v97
  %670 = vmatprep.subr.mxu0 %v102
  %671 = vmatpush1.msra.mxu0 %v101
  %672 = vmatprep.subr.mxu0 %v106
  %673 = vmatpush1.msra.mxu0 %v105
  %674 = vmatprep.subr.mxu0 %v110
  %675 = vmatpush1.msra.mxu0 %v109
  %676 = vmatprep.subr.mxu0 %v114
  %677 = vmatpush1.msra.mxu0 %v113
  %678 = vmatprep.subr.mxu0 %v118
  %679 = vmatpush1.msra.mxu0 %v117
  %680 = vmatprep.subr.mxu0 %v122
  %681 = vmatpush1.msra.mxu0 %v121
  %682 = vmatprep.subr.mxu0 0.0
  %683 = vmatpush1.msra.mxu0 0.0
  %684 = vmatprep.subr.mxu0 0.0
  %685 = vmatpush1.msra.mxu0 0.0
  %686 = vmatprep.subr.mxu0 0.0
  %687 = vmatpush1.msra.mxu0 0.0
  %688 = vmatprep.subr.mxu0 0.0
  %689 = vmatpush1.msra.mxu0 0.0
  %690 = vmatprep.subr.mxu0 0.0
  %691 = vmatpush1.msra.mxu0 0.0
  %692 = vmatprep.subr.mxu0 0.0
  %693 = vmatpush1.msra.mxu0 0.0
  %694 = vmatprep.subr.mxu0 0.0
  %695 = vmatpush1.msra.mxu0 0.0
  %696 = vmatprep.subr.mxu0 0.0
  %697 = vmatpush1.msra.mxu0 0.0
  %698 = vmatprep.subr.mxu0 0.0
  %699 = vmatpush1.msra.mxu0 0.0
  %700 = vmatprep.subr.mxu0 0.0
  %701 = vmatpush1.msra.mxu0 0.0
  %702 = vmatprep.subr.mxu0 0.0
  %703 = vmatpush1.msra.mxu0 0.0
  %704 = vmatprep.subr.mxu0 0.0
  %705 = vmatpush1.msra.mxu0 0.0
  %706 = vmatprep.subr.mxu0 0.0
  %707 = vmatpush1.msra.mxu0 0.0
  %708 = vmatprep.subr.mxu0 0.0
  %709 = vmatpush1.msra.mxu0 0.0
  %710 = vmatprep.subr.mxu0 0.0
  %711 = vmatpush1.msra.mxu0 0.0
  %712 = vmatprep.subr.mxu0 0.0
  %713 = vmatpush1.msra.mxu0 0.0
  %714 = vmatprep.mubr.f32.mxu0 0.0
  %715 = vmatmul.mubr.f32.gmra.mrb[0].mxu0 %v558
  %v716 = vpop.f32.mrb[0].mxu0
  %v717 = vadd.f32 0.0, %v716
  %v718 = vpop.f32.mrb[0].mxu0
  %v719 = vadd.f32 0.0, %v718
  %720 = vdwg.mxu0
  %v721 = vadd.f32 %v575, %v646
  %v722 = vadd.f32 %v576, %v648
  %v723 = vadd.f32 %v577, %v717
  %v724 = vadd.f32 %v578, %v719
  %s725 = scalar_lea.vmem %s44, 192
  %v726 = vld [vmem:[%s725] sm:$0xff]
  %v727 = vld [vmem:[%s725 + $0x8] sm:$0xff]
  %v728 = vld [vmem:[%s725 + $0x10] sm:$0xff]
  %v729 = vld [vmem:[%s725 + $0x18] sm:$0xff]
  %730 = vmatprep.subr.mxu0 %v124
  %731 = vmatpush1.msra.mxu0 %v123
  %732 = vmatprep.subr.mxu0 %v128
  %733 = vmatpush1.msra.mxu0 %v127
  %734 = vmatprep.subr.mxu0 %v132
  %735 = vmatpush1.msra.mxu0 %v131
  %736 = vmatprep.subr.mxu0 %v136
  %737 = vmatpush1.msra.mxu0 %v135
  %738 = vmatprep.subr.mxu0 %v140
  %739 = vmatpush1.msra.mxu0 %v139
  %740 = vmatprep.subr.mxu0 %v144
  %741 = vmatpush1.msra.mxu0 %v143
  %742 = vmatprep.subr.mxu0 %v148
  %743 = vmatpush1.msra.mxu0 %v147
  %744 = vmatprep.subr.mxu0 %v152
  %745 = vmatpush1.msra.mxu0 %v151
  %746 = vmatprep.subr.mxu0 %v156
  %747 = vmatpush1.msra.mxu0 %v155
  %748 = vmatprep.subr.mxu0 %v160
  %749 = vmatpush1.msra.mxu0 %v159
  %750 = vmatprep.subr.mxu0 %v164
  %751 = vmatpush1.msra.mxu0 %v163
  %752 = vmatprep.subr.mxu0 %v168
  %753 = vmatpush1.msra.mxu0 %v167
  %754 = vmatprep.subr.mxu0 %v172
  %755 = vmatpush1.msra.mxu0 %v171
  %756 = vmatprep.subr.mxu0 %v176
  %757 = vmatpush1.msra.mxu0 %v175
  %758 = vmatprep.subr.mxu0 %v180
  %759 = vmatpush1.msra.mxu0 %v179
  %760 = vmatprep.subr.mxu0 %v184
  %761 = vmatpush1.msra.mxu0 %v183
  %762 = vmatprep.subr.mxu0 0.0
  %763 = vmatpush1.msra.mxu0 0.0
  %764 = vmatprep.subr.mxu0 0.0
  %765 = vmatpush1.msra.mxu0 0.0
  %766 = vmatprep.subr.mxu0 0.0
  %767 = vmatpush1.msra.mxu0 0.0
  %768 = vmatprep.subr.mxu0 0.0
  %769 = vmatpush1.msra.mxu0 0.0
  %770 = vmatprep.subr.mxu0 0.0
  %771 = vmatpush1.msra.mxu0 0.0
  %772 = vmatprep.subr.mxu0 0.0
  %773 = vmatpush1.msra.mxu0 0.0
  %774 = vmatprep.subr.mxu0 0.0
  %775 = vmatpush1.msra.mxu0 0.0
  %776 = vmatprep.subr.mxu0 0.0
  %777 = vmatpush1.msra.mxu0 0.0
  %778 = vmatprep.subr.mxu0 0.0
  %779 = vmatpush1.msra.mxu0 0.0
  %780 = vmatprep.subr.mxu0 0.0
  %781 = vmatpush1.msra.mxu0 0.0
  %782 = vmatprep.subr.mxu0 0.0
  %783 = vmatpush1.msra.mxu0 0.0
  %784 = vmatprep.subr.mxu0 0.0
  %785 = vmatpush1.msra.mxu0 0.0
  %786 = vmatprep.subr.mxu0 0.0
  %787 = vmatpush1.msra.mxu0 0.0
  %788 = vmatprep.subr.mxu0 0.0
  %789 = vmatpush1.msra.mxu0 0.0
  %790 = vmatprep.subr.mxu0 0.0
  %791 = vmatpush1.msra.mxu0 0.0
  %792 = vmatprep.subr.mxu0 0.0
  %793 = vmatpush1.msra.mxu0 0.0
  %794 = vmatprep.mubr.f32.mxu0 0.0
  %795 = vmatmul.mubr.f32.gmra.mrb[0].mxu0 %v560
  %v796 = vpop.f32.mrb[0].mxu0
  %v797 = vadd.f32 0.0, %v796
  %v798 = vpop.f32.mrb[0].mxu0
  %v799 = vadd.f32 0.0, %v798
  %800 = vdwg.mxu0
  %801 = vmatprep.subr.mxu0 %v126
  %802 = vmatpush1.msra.mxu0 %v125
  %803 = vmatprep.subr.mxu0 %v130
  %804 = vmatpush1.msra.mxu0 %v129
  %805 = vmatprep.subr.mxu0 %v134
  %806 = vmatpush1.msra.mxu0 %v133
  %807 = vmatprep.subr.mxu0 %v138
  %808 = vmatpush1.msra.mxu0 %v137
  %809 = vmatprep.subr.mxu0 %v142
  %810 = vmatpush1.msra.mxu0 %v141
  %811 = vmatprep.subr.mxu0 %v146
  %812 = vmatpush1.msra.mxu0 %v145
  %813 = vmatprep.subr.mxu0 %v150
  %814 = vmatpush1.msra.mxu0 %v149
  %815 = vmatprep.subr.mxu0 %v154
  %816 = vmatpush1.msra.mxu0 %v153
  %817 = vmatprep.subr.mxu0 %v158
  %818 = vmatpush1.msra.mxu0 %v157
  %819 = vmatprep.subr.mxu0 %v162
  %820 = vmatpush1.msra.mxu0 %v161
  %821 = vmatprep.subr.mxu0 %v166
  %822 = vmatpush1.msra.mxu0 %v165
  %823 = vmatprep.subr.mxu0 %v170
  %824 = vmatpush1.msra.mxu0 %v169
  %825 = vmatprep.subr.mxu0 %v174
  %826 = vmatpush1.msra.mxu0 %v173
  %827 = vmatprep.subr.mxu0 %v178
  %828 = vmatpush1.msra.mxu0 %v177
  %829 = vmatprep.subr.mxu0 %v182
  %830 = vmatpush1.msra.mxu0 %v181
  %831 = vmatprep.subr.mxu0 %v186
  %832 = vmatpush1.msra.mxu0 %v185
  %833 = vmatprep.subr.mxu0 0.0
  %834 = vmatpush1.msra.mxu0 0.0
  %835 = vmatprep.subr.mxu0 0.0
  %836 = vmatpush1.msra.mxu0 0.0
  %837 = vmatprep.subr.mxu0 0.0
  %838 = vmatpush1.msra.mxu0 0.0
  %839 = vmatprep.subr.mxu0 0.0
  %840 = vmatpush1.msra.mxu0 0.0
  %841 = vmatprep.subr.mxu0 0.0
  %842 = vmatpush1.msra.mxu0 0.0
  %843 = vmatprep.subr.mxu0 0.0
  %844 = vmatpush1.msra.mxu0 0.0
  %845 = vmatprep.subr.mxu0 0.0
  %846 = vmatpush1.msra.mxu0 0.0
  %847 = vmatprep.subr.mxu0 0.0
  %848 = vmatpush1.msra.mxu0 0.0
  %849 = vmatprep.subr.mxu0 0.0
  %850 = vmatpush1.msra.mxu0 0.0
  %851 = vmatprep.subr.mxu0 0.0
  %852 = vmatpush1.msra.mxu0 0.0
  %853 = vmatprep.subr.mxu0 0.0
  %854 = vmatpush1.msra.mxu0 0.0
  %855 = vmatprep.subr.mxu0 0.0
  %856 = vmatpush1.msra.mxu0 0.0
  %857 = vmatprep.subr.mxu0 0.0
  %858 = vmatpush1.msra.mxu0 0.0
  %859 = vmatprep.subr.mxu0 0.0
  %860 = vmatpush1.msra.mxu0 0.0
  %861 = vmatprep.subr.mxu0 0.0
  %862 = vmatpush1.msra.mxu0 0.0
  %863 = vmatprep.subr.mxu0 0.0
  %864 = vmatpush1.msra.mxu0 0.0
  %865 = vmatprep.mubr.f32.mxu0 0.0
  %866 = vmatmul.mubr.f32.gmra.mrb[0].mxu0 %v560
  %v867 = vpop.f32.mrb[0].mxu0
  %v868 = vadd.f32 0.0, %v867
  %v869 = vpop.f32.mrb[0].mxu0
  %v870 = vadd.f32 0.0, %v869
  %871 = vdwg.mxu0
  %v872 = vadd.f32 %v726, %v797
  %v873 = vadd.f32 %v727, %v799
  %v874 = vadd.f32 %v728, %v868
  %v875 = vadd.f32 %v729, %v870
  %v876 = vxor.u32 %v721, 2147483648
  %v877 = vmul.f32 %v876, 1.442695
  %v878 = vpow.pop %v877
  %v879 = vadd.f32 %v878, 1.0
  %v880 = vrcp.pop %v879
  %v881 = vmul.f32 1.0, %v880
  %v882 = vxor.u32 %v722, 2147483648
  %v883 = vmul.f32 %v882, 1.442695
  %v884 = vpow.pop %v883
  %v885 = vadd.f32 %v884, 1.0
  %v886 = vrcp.pop %v885
  %v887 = vmul.f32 1.0, %v886
  %v888 = vtanh.pop %v723
  %v889 = vxor.u32 %v724, 2147483648
  %v890 = vmul.f32 %v889, 1.442695
  %v891 = vpow.pop %v890
  %v892 = vadd.f32 %v891, 1.0
  %v893 = vrcp.pop %v892
  %v894 = vmul.f32 1.0, %v893
  %v895 = vmul.f32 %v887, %v559
  %v896 = vmul.f32 %v881, %v888
  %v897 = vadd.f32 %v895, %v896
  %v898 = vtanh.pop %v897
  %v899 = vmul.f32 %v894, %v898
  %v900 = vxor.u32 %v872, 2147483648
  %v901 = vmul.f32 %v900, 1.442695
  %v902 = vpow.pop %v901
  %v903 = vadd.f32 %v902, 1.0
  %v904 = vrcp.pop %v903
  %v905 = vmul.f32 1.0, %v904
  %v906 = vxor.u32 %v873, 2147483648
  %v907 = vmul.f32 %v906, 1.442695
  %v908 = vpow.pop %v907
  %v909 = vadd.f32 %v908, 1.0
  %v910 = vrcp.pop %v909
  %v911 = vmul.f32 1.0, %v910
  %v912 = vtanh.pop %v874
  %v913 = vxor.u32 %v875, 2147483648
  %v914 = vmul.f32 %v913, 1.442695
  %v915 = vpow.pop %v914
  %v916 = vadd.f32 %v915, 1.0
  %v917 = vrcp.pop %v916
  %v918 = vmul.f32 1.0, %v917
  %v919 = vmul.f32 %v911, %v561
  %v920 = vmul.f32 %v905, %v912
  %v921 = vadd.f32 %v919, %v920
  %v922 = vtanh.pop %v921
  %v923 = vmul.f32 %v918, %v922
  %v924 = vstv %s572
  %vm925 = vcmp.lt.s32.totalorder %v924, %v58
  %v926 = vsel %vm925, 1, 0
  %927 = vset.pattern.permute.xlu0 0
  %928 = vperm.xlu0 %927, %v926
  %v929 = vpop.permute.xlu0 %928
  %vm930 = vcmp.eq.s32.totalorder %v929, 1
  %v931 = vstv %s573
  %vm932 = vcmp.lt.s32.totalorder %v931, %v58
  %v933 = vsel %vm932, 1, 0
  %934 = vset.pattern.permute.xlu0 0
  %935 = vperm.xlu0 %934, %v933
  %v936 = vpop.permute.xlu0 %935
  %vm937 = vcmp.eq.s32.totalorder %v936, 1
  %v938 = vsel %vm930, %v899, %v558
  %v939 = vsel %vm930, %v897, %v559
  %v940 = vsel %vm937, %v923, %v560
  %v941 = vsel %vm937, %v921, %v561
  %p942 = scmp.lt.s32.totalorder %s572, %s57
  %s943 = scalar_select %p942, 0.0, -inf
  %p944 = scmp.lt.s32.totalorder %s573, %s57
  %s945 = scalar_select %p944, 0.0, -inf
  %v946 = vstv %s943
  %v947 = vsel %vm930, %v899, %v946
  %v948 = vmax.f32 %v568, %v947
  %v949 = vstv %s945
  %v950 = vsel %vm937, %v923, %v949
  %v951 = vmax.f32 %v571, %v950
  %s952 = sadd.s32 %s193, 2
  %s953 = ssub.s32 5, %s193
  %s954 = scalar_lea.vmem %s1, 64
  %v955 = vld [vmem:[%s954] sm:$0xff]
  %v956 = vld [vmem:[%s954 + $0x8] sm:$0xff]
  %v957 = vld [vmem:[%s954 + $0x10] sm:$0xff]
  %v958 = vld [vmem:[%s954 + $0x18] sm:$0xff]
  %959 = vmatprep.subr.mxu0 %v60
  %960 = vmatpush1.msra.mxu0 %v59
  %961 = vmatprep.subr.mxu0 %v64
  %962 = vmatpush1.msra.mxu0 %v63
  %963 = vmatprep.subr.mxu0 %v68
  %964 = vmatpush1.msra.mxu0 %v67
  %965 = vmatprep.subr.mxu0 %v72
  %966 = vmatpush1.msra.mxu0 %v71
  %967 = vmatprep.subr.mxu0 %v76
  %968 = vmatpush1.msra.mxu0 %v75
  %969 = vmatprep.subr.mxu0 %v80
  %970 = vmatpush1.msra.mxu0 %v79
  %971 = vmatprep.subr.mxu0 %v84
  %972 = vmatpush1.msra.mxu0 %v83
  %973 = vmatprep.subr.mxu0 %v88
  %974 = vmatpush1.msra.mxu0 %v87
  %975 = vmatprep.subr.mxu0 %v92
  %976 = vmatpush1.msra.mxu0 %v91
  %977 = vmatprep.subr.mxu0 %v96
  %978 = vmatpush1.msra.mxu0 %v95
  %979 = vmatprep.subr.mxu0 %v100
  %980 = vmatpush1.msra.mxu0 %v99
  %981 = vmatprep.subr.mxu0 %v104
  %982 = vmatpush1.msra.mxu0 %v103
  %983 = vmatprep.subr.mxu0 %v108
  %984 = vmatpush1.msra.mxu0 %v107
  %985 = vmatprep.subr.mxu0 %v112
  %986 = vmatpush1.msra.mxu0 %v111
  %987 = vmatprep.subr.mxu0 %v116
  %988 = vmatpush1.msra.mxu0 %v115
  %989 = vmatprep.subr.mxu0 %v120
  %990 = vmatpush1.msra.mxu0 %v119
  %991 = vmatprep.subr.mxu0 0.0
  %992 = vmatpush1.msra.mxu0 0.0
  %993 = vmatprep.subr.mxu0 0.0
  %994 = vmatpush1.msra.mxu0 0.0
  %995 = vmatprep.subr.mxu0 0.0
  %996 = vmatpush1.msra.mxu0 0.0
  %997 = vmatprep.subr.mxu0 0.0
  %998 = vmatpush1.msra.mxu0 0.0
  %999 = vmatprep.subr.mxu0 0.0
  %1000 = vmatpush1.msra.mxu0 0.0
  %1001 = vmatprep.subr.mxu0 0.0
  %1002 = vmatpush1.msra.mxu0 0.0
  %1003 = vmatprep.subr.mxu0 0.0
  %1004 = vmatpush1.msra.mxu0 0.0
  %1005 = vmatprep.subr.mxu0 0.0
  %1006 = vmatpush1.msra.mxu0 0.0
  %1007 = vmatprep.subr.mxu0 0.0
  %1008 = vmatpush1.msra.mxu0 0.0
  %1009 = vmatprep.subr.mxu0 0.0
  %1010 = vmatpush1.msra.mxu0 0.0
  %1011 = vmatprep.subr.mxu0 0.0
  %1012 = vmatpush1.msra.mxu0 0.0
  %1013 = vmatprep.subr.mxu0 0.0
  %1014 = vmatpush1.msra.mxu0 0.0
  %1015 = vmatprep.subr.mxu0 0.0
  %1016 = vmatpush1.msra.mxu0 0.0
  %1017 = vmatprep.subr.mxu0 0.0
  %1018 = vmatpush1.msra.mxu0 0.0
  %1019 = vmatprep.subr.mxu0 0.0
  %1020 = vmatpush1.msra.mxu0 0.0
  %1021 = vmatprep.subr.mxu0 0.0
  %1022 = vmatpush1.msra.mxu0 0.0
  %1023 = vmatprep.mubr.f32.mxu0 0.0
  %1024 = vmatmul.mubr.f32.gmra.mrb[0].mxu0 %v938
  %v1025 = vpop.f32.mrb[0].mxu0
  %v1026 = vadd.f32 0.0, %v1025
  %v1027 = vpop.f32.mrb[0].mxu0
  %v1028 = vadd.f32 0.0, %v1027
  %1029 = vdwg.mxu0
  %1030 = vmatprep.subr.mxu0 %v62
  %1031 = vmatpush1.msra.mxu0 %v61
  %1032 = vmatprep.subr.mxu0 %v66
  %1033 = vmatpush1.msra.mxu0 %v65
  %1034 = vmatprep.subr.mxu0 %v70
  %1035 = vmatpush1.msra.mxu0 %v69
  %1036 = vmatprep.subr.mxu0 %v74
  %1037 = vmatpush1.msra.mxu0 %v73
  %1038 = vmatprep.subr.mxu0 %v78
  %1039 = vmatpush1.msra.mxu0 %v77
  %1040 = vmatprep.subr.mxu0 %v82
  %1041 = vmatpush1.msra.mxu0 %v81
  %1042 = vmatprep.subr.mxu0 %v86
  %1043 = vmatpush1.msra.mxu0 %v85
  %1044 = vmatprep.subr.mxu0 %v90
  %1045 = vmatpush1.msra.mxu0 %v89
  %1046 = vmatprep.subr.mxu0 %v94
  %1047 = vmatpush1.msra.mxu0 %v93
  %1048 = vmatprep.subr.mxu0 %v98
  %1049 = vmatpush1.msra.mxu0 %v97
  %1050 = vmatprep.subr.mxu0 %v102
  %1051 = vmatpush1.msra.mxu0 %v101
  %1052 = vmatprep.subr.mxu0 %v106
  %1053 = vmatpush1.msra.mxu0 %v105
  %1054 = vmatprep.subr.mxu0 %v110
  %1055 = vmatpush1.msra.mxu0 %v109
  %1056 = vmatprep.subr.mxu0 %v114
  %1057 = vmatpush1.msra.mxu0 %v113
  %1058 = vmatprep.subr.mxu0 %v118
  %1059 = vmatpush1.msra.mxu0 %v117
  %1060 = vmatprep.subr.mxu0 %v122
  %1061 = vmatpush1.msra.mxu0 %v121
  %1062 = vmatprep.subr.mxu0 0.0
  %1063 = vmatpush1.msra.mxu0 0.0
  %1064 = vmatprep.subr.mxu0 0.0
  %1065 = vmatpush1.msra.mxu0 0.0
  %1066 = vmatprep.subr.mxu0 0.0
  %1067 = vmatpush1.msra.mxu0 0.0
  %1068 = vmatprep.subr.mxu0 0.0
  %1069 = vmatpush1.msra.mxu0 0.0
  %1070 = vmatprep.subr.mxu0 0.0
  %1071 = vmatpush1.msra.mxu0 0.0
  %1072 = vmatprep.subr.mxu0 0.0
  %1073 = vmatpush1.msra.mxu0 0.0
  %1074 = vmatprep.subr.mxu0 0.0
  %1075 = vmatpush1.msra.mxu0 0.0
  %1076 = vmatprep.subr.mxu0 0.0
  %1077 = vmatpush1.msra.mxu0 0.0
  %1078 = vmatprep.subr.mxu0 0.0
  %1079 = vmatpush1.msra.mxu0 0.0
  %1080 = vmatprep.subr.mxu0 0.0
  %1081 = vmatpush1.msra.mxu0 0.0
  %1082 = vmatprep.subr.mxu0 0.0
  %1083 = vmatpush1.msra.mxu0 0.0
  %1084 = vmatprep.subr.mxu0 0.0
  %1085 = vmatpush1.msra.mxu0 0.0
  %1086 = vmatprep.subr.mxu0 0.0
  %1087 = vmatpush1.msra.mxu0 0.0
  %1088 = vmatprep.subr.mxu0 0.0
  %1089 = vmatpush1.msra.mxu0 0.0
  %1090 = vmatprep.subr.mxu0 0.0
  %1091 = vmatpush1.msra.mxu0 0.0
  %1092 = vmatprep.subr.mxu0 0.0
  %1093 = vmatpush1.msra.mxu0 0.0
  %1094 = vmatprep.mubr.f32.mxu0 0.0
  %1095 = vmatmul.mubr.f32.gmra.mrb[0].mxu0 %v938
  %v1096 = vpop.f32.mrb[0].mxu0
  %v1097 = vadd.f32 0.0, %v1096
  %v1098 = vpop.f32.mrb[0].mxu0
  %v1099 = vadd.f32 0.0, %v1098
  %1100 = vdwg.mxu0
  %v1101 = vadd.f32 %v955, %v1026
  %v1102 = vadd.f32 %v956, %v1028
  %v1103 = vadd.f32 %v957, %v1097
  %v1104 = vadd.f32 %v958, %v1099
  %s1105 = scalar_lea.vmem %s44, 160
  %v1106 = vld [vmem:[%s1105] sm:$0xff]
  %v1107 = vld [vmem:[%s1105 + $0x8] sm:$0xff]
  %v1108 = vld [vmem:[%s1105 + $0x10] sm:$0xff]
  %v1109 = vld [vmem:[%s1105 + $0x18] sm:$0xff]
  %1110 = vmatprep.subr.mxu0 %v124
  %1111 = vmatpush1.msra.mxu0 %v123
  %1112 = vmatprep.subr.mxu0 %v128
  %1113 = vmatpush1.msra.mxu0 %v127
  %1114 = vmatprep.subr.mxu0 %v132
  %1115 = vmatpush1.msra.mxu0 %v131
  %1116 = vmatprep.subr.mxu0 %v136
  %1117 = vmatpush1.msra.mxu0 %v135
  %1118 = vmatprep.subr.mxu0 %v140
  %1119 = vmatpush1.msra.mxu0 %v139
  %1120 = vmatprep.subr.mxu0 %v144
  %1121 = vmatpush1.msra.mxu0 %v143
  %1122 = vmatprep.subr.mxu0 %v148
  %1123 = vmatpush1.msra.mxu0 %v147
  %1124 = vmatprep.subr.mxu0 %v152
  %1125 = vmatpush1.msra.mxu0 %v151
  %1126 = vmatprep.subr.mxu0 %v156
  %1127 = vmatpush1.msra.mxu0 %v155
  %1128 = vmatprep.subr.mxu0 %v160
  %1129 = vmatpush1.msra.mxu0 %v159
  %1130 = vmatprep.subr.mxu0 %v164
  %1131 = vmatpush1.msra.mxu0 %v163
  %1132 = vmatprep.subr.mxu0 %v168
  %1133 = vmatpush1.msra.mxu0 %v167
  %1134 = vmatprep.subr.mxu0 %v172
  %1135 = vmatpush1.msra.mxu0 %v171
  %1136 = vmatprep.subr.mxu0 %v176
  %1137 = vmatpush1.msra.mxu0 %v175
  %1138 = vmatprep.subr.mxu0 %v180
  %1139 = vmatpush1.msra.mxu0 %v179
  %1140 = vmatprep.subr.mxu0 %v184
  %1141 = vmatpush1.msra.mxu0 %v183
  %1142 = vmatprep.subr.mxu0 0.0
  %1143 = vmatpush1.msra.mxu0 0.0
  %1144 = vmatprep.subr.mxu0 0.0
  %1145 = vmatpush1.msra.mxu0 0.0
  %1146 = vmatprep.subr.mxu0 0.0
  %1147 = vmatpush1.msra.mxu0 0.0
  %1148 = vmatprep.subr.mxu0 0.0
  %1149 = vmatpush1.msra.mxu0 0.0
  %1150 = vmatprep.subr.mxu0 0.0
  %1151 = vmatpush1.msra.mxu0 0.0
  %1152 = vmatprep.subr.mxu0 0.0
  %1153 = vmatpush1.msra.mxu0 0.0
  %1154 = vmatprep.subr.mxu0 0.0
  %1155 = vmatpush1.msra.mxu0 0.0
  %1156 = vmatprep.subr.mxu0 0.0
  %1157 = vmatpush1.msra.mxu0 0.0
  %1158 = vmatprep.subr.mxu0 0.0
  %1159 = vmatpush1.msra.mxu0 0.0
  %1160 = vmatprep.subr.mxu0 0.0
  %1161 = vmatpush1.msra.mxu0 0.0
  %1162 = vmatprep.subr.mxu0 0.0
  %1163 = vmatpush1.msra.mxu0 0.0
  %1164 = vmatprep.subr.mxu0 0.0
  %1165 = vmatpush1.msra.mxu0 0.0
  %1166 = vmatprep.subr.mxu0 0.0
  %1167 = vmatpush1.msra.mxu0 0.0
  %1168 = vmatprep.subr.mxu0 0.0
  %1169 = vmatpush1.msra.mxu0 0.0
  %1170 = vmatprep.subr.mxu0 0.0
  %1171 = vmatpush1.msra.mxu0 0.0
  %1172 = vmatprep.subr.mxu0 0.0
  %1173 = vmatpush1.msra.mxu0 0.0
  %1174 = vmatprep.mubr.f32.mxu0 0.0
  %1175 = vmatmul.mubr.f32.gmra.mrb[0].mxu0 %v940
  %v1176 = vpop.f32.mrb[0].mxu0
  %v1177 = vadd.f32 0.0, %v1176
  %v1178 = vpop.f32.mrb[0].mxu0
  %v1179 = vadd.f32 0.0, %v1178
  %1180 = vdwg.mxu0
  %1181 = vmatprep.subr.mxu0 %v126
  %1182 = vmatpush1.msra.mxu0 %v125
  %1183 = vmatprep.subr.mxu0 %v130
  %1184 = vmatpush1.msra.mxu0 %v129
  %1185 = vmatprep.subr.mxu0 %v134
  %1186 = vmatpush1.msra.mxu0 %v133
  %1187 = vmatprep.subr.mxu0 %v138
  %1188 = vmatpush1.msra.mxu0 %v137
  %1189 = vmatprep.subr.mxu0 %v142
  %1190 = vmatpush1.msra.mxu0 %v141
  %1191 = vmatprep.subr.mxu0 %v146
  %1192 = vmatpush1.msra.mxu0 %v145
  %1193 = vmatprep.subr.mxu0 %v150
  %1194 = vmatpush1.msra.mxu0 %v149
  %1195 = vmatprep.subr.mxu0 %v154
  %1196 = vmatpush1.msra.mxu0 %v153
  %1197 = vmatprep.subr.mxu0 %v158
  %1198 = vmatpush1.msra.mxu0 %v157
  %1199 = vmatprep.subr.mxu0 %v162
  %1200 = vmatpush1.msra.mxu0 %v161
  %1201 = vmatprep.subr.mxu0 %v166
  %1202 = vmatpush1.msra.mxu0 %v165
  %1203 = vmatprep.subr.mxu0 %v170
  %1204 = vmatpush1.msra.mxu0 %v169
  %1205 = vmatprep.subr.mxu0 %v174
  %1206 = vmatpush1.msra.mxu0 %v173
  %1207 = vmatprep.subr.mxu0 %v178
  %1208 = vmatpush1.msra.mxu0 %v177
  %1209 = vmatprep.subr.mxu0 %v182
  %1210 = vmatpush1.msra.mxu0 %v181
  %1211 = vmatprep.subr.mxu0 %v186
  %1212 = vmatpush1.msra.mxu0 %v185
  %1213 = vmatprep.subr.mxu0 0.0
  %1214 = vmatpush1.msra.mxu0 0.0
  %1215 = vmatprep.subr.mxu0 0.0
  %1216 = vmatpush1.msra.mxu0 0.0
  %1217 = vmatprep.subr.mxu0 0.0
  %1218 = vmatpush1.msra.mxu0 0.0
  %1219 = vmatprep.subr.mxu0 0.0
  %1220 = vmatpush1.msra.mxu0 0.0
  %1221 = vmatprep.subr.mxu0 0.0
  %1222 = vmatpush1.msra.mxu0 0.0
  %1223 = vmatprep.subr.mxu0 0.0
  %1224 = vmatpush1.msra.mxu0 0.0
  %1225 = vmatprep.subr.mxu0 0.0
  %1226 = vmatpush1.msra.mxu0 0.0
  %1227 = vmatprep.subr.mxu0 0.0
  %1228 = vmatpush1.msra.mxu0 0.0
  %1229 = vmatprep.subr.mxu0 0.0
  %1230 = vmatpush1.msra.mxu0 0.0
  %1231 = vmatprep.subr.mxu0 0.0
  %1232 = vmatpush1.msra.mxu0 0.0
  %1233 = vmatprep.subr.mxu0 0.0
  %1234 = vmatpush1.msra.mxu0 0.0
  %1235 = vmatprep.subr.mxu0 0.0
  %1236 = vmatpush1.msra.mxu0 0.0
  %1237 = vmatprep.subr.mxu0 0.0
  %1238 = vmatpush1.msra.mxu0 0.0
  %1239 = vmatprep.subr.mxu0 0.0
  %1240 = vmatpush1.msra.mxu0 0.0
  %1241 = vmatprep.subr.mxu0 0.0
  %1242 = vmatpush1.msra.mxu0 0.0
  %1243 = vmatprep.subr.mxu0 0.0
  %1244 = vmatpush1.msra.mxu0 0.0
  %1245 = vmatprep.mubr.f32.mxu0 0.0
  %1246 = vmatmul.mubr.f32.gmra.mrb[0].mxu0 %v940
  %v1247 = vpop.f32.mrb[0].mxu0
  %v1248 = vadd.f32 0.0, %v1247
  %v1249 = vpop.f32.mrb[0].mxu0
  %v1250 = vadd.f32 0.0, %v1249
  %1251 = vdwg.mxu0
  %v1252 = vadd.f32 %v1106, %v1177
  %v1253 = vadd.f32 %v1107, %v1179
  %v1254 = vadd.f32 %v1108, %v1248
  %v1255 = vadd.f32 %v1109, %v1250
  %v1256 = vxor.u32 %v1101, 2147483648
  %v1257 = vmul.f32 %v1256, 1.442695
  %v1258 = vpow.pop %v1257
  %v1259 = vadd.f32 %v1258, 1.0
  %v1260 = vrcp.pop %v1259
  %v1261 = vmul.f32 1.0, %v1260
  %v1262 = vxor.u32 %v1102, 2147483648
  %v1263 = vmul.f32 %v1262, 1.442695
  %v1264 = vpow.pop %v1263
  %v1265 = vadd.f32 %v1264, 1.0
  %v1266 = vrcp.pop %v1265
  %v1267 = vmul.f32 1.0, %v1266
  %v1268 = vtanh.pop %v1103
  %v1269 = vxor.u32 %v1104, 2147483648
  %v1270 = vmul.f32 %v1269, 1.442695
  %v1271 = vpow.pop %v1270
  %v1272 = vadd.f32 %v1271, 1.0
  %v1273 = vrcp.pop %v1272
  %v1274 = vmul.f32 1.0, %v1273
  %v1275 = vmul.f32 %v1267, %v939
  %v1276 = vmul.f32 %v1261, %v1268
  %v1277 = vadd.f32 %v1275, %v1276
  %v1278 = vtanh.pop %v1277
  %v1279 = vmul.f32 %v1274, %v1278
  %v1280 = vxor.u32 %v1252, 2147483648
  %v1281 = vmul.f32 %v1280, 1.442695
  %v1282 = vpow.pop %v1281
  %v1283 = vadd.f32 %v1282, 1.0
  %v1284 = vrcp.pop %v1283
  %v1285 = vmul.f32 1.0, %v1284
  %v1286 = vxor.u32 %v1253, 2147483648
  %v1287 = vmul.f32 %v1286, 1.442695
  %v1288 = vpow.pop %v1287
  %v1289 = vadd.f32 %v1288, 1.0
  %v1290 = vrcp.pop %v1289
  %v1291 = vmul.f32 1.0, %v1290
  %v1292 = vtanh.pop %v1254
  %v1293 = vxor.u32 %v1255, 2147483648
  %v1294 = vmul.f32 %v1293, 1.442695
  %v1295 = vpow.pop %v1294
  %v1296 = vadd.f32 %v1295, 1.0
  %v1297 = vrcp.pop %v1296
  %v1298 = vmul.f32 1.0, %v1297
  %v1299 = vmul.f32 %v1291, %v941
  %v1300 = vmul.f32 %v1285, %v1292
  %v1301 = vadd.f32 %v1299, %v1300
  %v1302 = vtanh.pop %v1301
  %v1303 = vmul.f32 %v1298, %v1302
  %v1304 = vstv %s952
  %vm1305 = vcmp.lt.s32.totalorder %v1304, %v58
  %v1306 = vsel %vm1305, 1, 0
  %1307 = vset.pattern.permute.xlu0 0
  %1308 = vperm.xlu0 %1307, %v1306
  %v1309 = vpop.permute.xlu0 %1308
  %vm1310 = vcmp.eq.s32.totalorder %v1309, 1
  %v1311 = vstv %s953
  %vm1312 = vcmp.lt.s32.totalorder %v1311, %v58
  %v1313 = vsel %vm1312, 1, 0
  %1314 = vset.pattern.permute.xlu0 0
  %1315 = vperm.xlu0 %1314, %v1313
  %v1316 = vpop.permute.xlu0 %1315
  %vm1317 = vcmp.eq.s32.totalorder %v1316, 1
  %v1318 = vsel %vm1310, %v1279, %v938
  %v1319 = vsel %vm1310, %v1277, %v939
  %v1320 = vsel %vm1317, %v1303, %v940
  %v1321 = vsel %vm1317, %v1301, %v941
  %p1322 = scmp.lt.s32.totalorder %s952, %s57
  %s1323 = scalar_select %p1322, 0.0, -inf
  %p1324 = scmp.lt.s32.totalorder %s953, %s57
  %s1325 = scalar_select %p1324, 0.0, -inf
  %v1326 = vstv %s1323
  %v1327 = vsel %vm1310, %v1279, %v1326
  %v1328 = vmax.f32 %v948, %v1327
  %v1329 = vstv %s1325
  %v1330 = vsel %vm1317, %v1303, %v1329
  %v1331 = vmax.f32 %v951, %v1330
  %s1332 = sadd.s32 %s193, 3
  %s1333 = ssub.s32 4, %s193
  %s1334 = scalar_lea.vmem %s1, 96
  %v1335 = vld [vmem:[%s1334] sm:$0xff]
  %v1336 = vld [vmem:[%s1334 + $0x8] sm:$0xff]
  %v1337 = vld [vmem:[%s1334 + $0x10] sm:$0xff]
  %v1338 = vld [vmem:[%s1334 + $0x18] sm:$0xff]
  %1339 = vmatprep.subr.mxu0 %v60
  %1340 = vmatpush1.msra.mxu0 %v59
  %1341 = vmatprep.subr.mxu0 %v64
  %1342 = vmatpush1.msra.mxu0 %v63
  %1343 = vmatprep.subr.mxu0 %v68
  %1344 = vmatpush1.msra.mxu0 %v67
  %1345 = vmatprep.subr.mxu0 %v72
  %1346 = vmatpush1.msra.mxu0 %v71
  %1347 = vmatprep.subr.mxu0 %v76
  %1348 = vmatpush1.msra.mxu0 %v75
  %1349 = vmatprep.subr.mxu0 %v80
  %1350 = vmatpush1.msra.mxu0 %v79
  %1351 = vmatprep.subr.mxu0 %v84
  %1352 = vmatpush1.msra.mxu0 %v83
  %1353 = vmatprep.subr.mxu0 %v88
  %1354 = vmatpush1.msra.mxu0 %v87
  %1355 = vmatprep.subr.mxu0 %v92
  %1356 = vmatpush1.msra.mxu0 %v91
  %1357 = vmatprep.subr.mxu0 %v96
  %1358 = vmatpush1.msra.mxu0 %v95
  %1359 = vmatprep.subr.mxu0 %v100
  %1360 = vmatpush1.msra.mxu0 %v99
  %1361 = vmatprep.subr.mxu0 %v104
  %1362 = vmatpush1.msra.mxu0 %v103
  %1363 = vmatprep.subr.mxu0 %v108
  %1364 = vmatpush1.msra.mxu0 %v107
  %1365 = vmatprep.subr.mxu0 %v112
  %1366 = vmatpush1.msra.mxu0 %v111
  %1367 = vmatprep.subr.mxu0 %v116
  %1368 = vmatpush1.msra.mxu0 %v115
  %1369 = vmatprep.subr.mxu0 %v120
  %1370 = vmatpush1.msra.mxu0 %v119
  %1371 = vmatprep.subr.mxu0 0.0
  %1372 = vmatpush1.msra.mxu0 0.0
  %1373 = vmatprep.subr.mxu0 0.0
  %1374 = vmatpush1.msra.mxu0 0.0
  %1375 = vmatprep.subr.mxu0 0.0
  %1376 = vmatpush1.msra.mxu0 0.0
  %1377 = vmatprep.subr.mxu0 0.0
  %1378 = vmatpush1.msra.mxu0 0.0
  %1379 = vmatprep.subr.mxu0 0.0
  %1380 = vmatpush1.msra.mxu0 0.0
  %1381 = vmatprep.subr.mxu0 0.0
  %1382 = vmatpush1.msra.mxu0 0.0
  %1383 = vmatprep.subr.mxu0 0.0
  %1384 = vmatpush1.msra.mxu0 0.0
  %1385 = vmatprep.subr.mxu0 0.0
  %1386 = vmatpush1.msra.mxu0 0.0
  %1387 = vmatprep.subr.mxu0 0.0
  %1388 = vmatpush1.msra.mxu0 0.0
  %1389 = vmatprep.subr.mxu0 0.0
  %1390 = vmatpush1.msra.mxu0 0.0
  %1391 = vmatprep.subr.mxu0 0.0
  %1392 = vmatpush1.msra.mxu0 0.0
  %1393 = vmatprep.subr.mxu0 0.0
  %1394 = vmatpush1.msra.mxu0 0.0
  %1395 = vmatprep.subr.mxu0 0.0
  %1396 = vmatpush1.msra.mxu0 0.0
  %1397 = vmatprep.subr.mxu0 0.0
  %1398 = vmatpush1.msra.mxu0 0.0
  %1399 = vmatprep.subr.mxu0 0.0
  %1400 = vmatpush1.msra.mxu0 0.0
  %1401 = vmatprep.subr.mxu0 0.0
  %1402 = vmatpush1.msra.mxu0 0.0
  %1403 = vmatprep.mubr.f32.mxu0 0.0
  %1404 = vmatmul.mubr.f32.gmra.mrb[0].mxu0 %v1318
  %v1405 = vpop.f32.mrb[0].mxu0
  %v1406 = vadd.f32 0.0, %v1405
  %v1407 = vpop.f32.mrb[0].mxu0
  %v1408 = vadd.f32 0.0, %v1407
  %1409 = vdwg.mxu0
  %1410 = vmatprep.subr.mxu0 %v62
  %1411 = vmatpush1.msra.mxu0 %v61
  %1412 = vmatprep.subr.mxu0 %v66
  %1413 = vmatpush1.msra.mxu0 %v65
  %1414 = vmatprep.subr.mxu0 %v70
  %1415 = vmatpush1.msra.mxu0 %v69
  %1416 = vmatprep.subr.mxu0 %v74
  %1417 = vmatpush1.msra.mxu0 %v73
  %1418 = vmatprep.subr.mxu0 %v78
  %1419 = vmatpush1.msra.mxu0 %v77
  %1420 = vmatprep.subr.mxu0 %v82
  %1421 = vmatpush1.msra.mxu0 %v81
  %1422 = vmatprep.subr.mxu0 %v86
  %1423 = vmatpush1.msra.mxu0 %v85
  %1424 = vmatprep.subr.mxu0 %v90
  %1425 = vmatpush1.msra.mxu0 %v89
  %1426 = vmatprep.subr.mxu0 %v94
  %1427 = vmatpush1.msra.mxu0 %v93
  %1428 = vmatprep.subr.mxu0 %v98
  %1429 = vmatpush1.msra.mxu0 %v97
  %1430 = vmatprep.subr.mxu0 %v102
  %1431 = vmatpush1.msra.mxu0 %v101
  %1432 = vmatprep.subr.mxu0 %v106
  %1433 = vmatpush1.msra.mxu0 %v105
  %1434 = vmatprep.subr.mxu0 %v110
  %1435 = vmatpush1.msra.mxu0 %v109
  %1436 = vmatprep.subr.mxu0 %v114
  %1437 = vmatpush1.msra.mxu0 %v113
  %1438 = vmatprep.subr.mxu0 %v118
  %1439 = vmatpush1.msra.mxu0 %v117
  %1440 = vmatprep.subr.mxu0 %v122
  %1441 = vmatpush1.msra.mxu0 %v121
  %1442 = vmatprep.subr.mxu0 0.0
  %1443 = vmatpush1.msra.mxu0 0.0
  %1444 = vmatprep.subr.mxu0 0.0
  %1445 = vmatpush1.msra.mxu0 0.0
  %1446 = vmatprep.subr.mxu0 0.0
  %1447 = vmatpush1.msra.mxu0 0.0
  %1448 = vmatprep.subr.mxu0 0.0
  %1449 = vmatpush1.msra.mxu0 0.0
  %1450 = vmatprep.subr.mxu0 0.0
  %1451 = vmatpush1.msra.mxu0 0.0
  %1452 = vmatprep.subr.mxu0 0.0
  %1453 = vmatpush1.msra.mxu0 0.0
  %1454 = vmatprep.subr.mxu0 0.0
  %1455 = vmatpush1.msra.mxu0 0.0
  %1456 = vmatprep.subr.mxu0 0.0
  %1457 = vmatpush1.msra.mxu0 0.0
  %1458 = vmatprep.subr.mxu0 0.0
  %1459 = vmatpush1.msra.mxu0 0.0
  %1460 = vmatprep.subr.mxu0 0.0
  %1461 = vmatpush1.msra.mxu0 0.0
  %1462 = vmatprep.subr.mxu0 0.0
  %1463 = vmatpush1.msra.mxu0 0.0
  %1464 = vmatprep.subr.mxu0 0.0
  %1465 = vmatpush1.msra.mxu0 0.0
  %1466 = vmatprep.subr.mxu0 0.0
  %1467 = vmatpush1.msra.mxu0 0.0
  %1468 = vmatprep.subr.mxu0 0.0
  %1469 = vmatpush1.msra.mxu0 0.0
  %1470 = vmatprep.subr.mxu0 0.0
  %1471 = vmatpush1.msra.mxu0 0.0
  %1472 = vmatprep.subr.mxu0 0.0
  %1473 = vmatpush1.msra.mxu0 0.0
  %1474 = vmatprep.mubr.f32.mxu0 0.0
  %1475 = vmatmul.mubr.f32.gmra.mrb[0].mxu0 %v1318
  %v1476 = vpop.f32.mrb[0].mxu0
  %v1477 = vadd.f32 0.0, %v1476
  %v1478 = vpop.f32.mrb[0].mxu0
  %v1479 = vadd.f32 0.0, %v1478
  %1480 = vdwg.mxu0
  %v1481 = vadd.f32 %v1335, %v1406
  %v1482 = vadd.f32 %v1336, %v1408
  %v1483 = vadd.f32 %v1337, %v1477
  %v1484 = vadd.f32 %v1338, %v1479
  %s1485 = scalar_lea.vmem %s44, 128
  %v1486 = vld [vmem:[%s1485] sm:$0xff]
  %v1487 = vld [vmem:[%s1485 + $0x8] sm:$0xff]
  %v1488 = vld [vmem:[%s1485 + $0x10] sm:$0xff]
  %v1489 = vld [vmem:[%s1485 + $0x18] sm:$0xff]
  %1490 = vmatprep.subr.mxu0 %v124
  %1491 = vmatpush1.msra.mxu0 %v123
  %1492 = vmatprep.subr.mxu0 %v128
  %1493 = vmatpush1.msra.mxu0 %v127
  %1494 = vmatprep.subr.mxu0 %v132
  %1495 = vmatpush1.msra.mxu0 %v131
  %1496 = vmatprep.subr.mxu0 %v136
  %1497 = vmatpush1.msra.mxu0 %v135
  %1498 = vmatprep.subr.mxu0 %v140
  %1499 = vmatpush1.msra.mxu0 %v139
  %1500 = vmatprep.subr.mxu0 %v144
  %1501 = vmatpush1.msra.mxu0 %v143
  %1502 = vmatprep.subr.mxu0 %v148
  %1503 = vmatpush1.msra.mxu0 %v147
  %1504 = vmatprep.subr.mxu0 %v152
  %1505 = vmatpush1.msra.mxu0 %v151
  %1506 = vmatprep.subr.mxu0 %v156
  %1507 = vmatpush1.msra.mxu0 %v155
  %1508 = vmatprep.subr.mxu0 %v160
  %1509 = vmatpush1.msra.mxu0 %v159
  %1510 = vmatprep.subr.mxu0 %v164
  %1511 = vmatpush1.msra.mxu0 %v163
  %1512 = vmatprep.subr.mxu0 %v168
  %1513 = vmatpush1.msra.mxu0 %v167
  %1514 = vmatprep.subr.mxu0 %v172
  %1515 = vmatpush1.msra.mxu0 %v171
  %1516 = vmatprep.subr.mxu0 %v176
  %1517 = vmatpush1.msra.mxu0 %v175
  %1518 = vmatprep.subr.mxu0 %v180
  %1519 = vmatpush1.msra.mxu0 %v179
  %1520 = vmatprep.subr.mxu0 %v184
  %1521 = vmatpush1.msra.mxu0 %v183
  %1522 = vmatprep.subr.mxu0 0.0
  %1523 = vmatpush1.msra.mxu0 0.0
  %1524 = vmatprep.subr.mxu0 0.0
  %1525 = vmatpush1.msra.mxu0 0.0
  %1526 = vmatprep.subr.mxu0 0.0
  %1527 = vmatpush1.msra.mxu0 0.0
  %1528 = vmatprep.subr.mxu0 0.0
  %1529 = vmatpush1.msra.mxu0 0.0
  %1530 = vmatprep.subr.mxu0 0.0
  %1531 = vmatpush1.msra.mxu0 0.0
  %1532 = vmatprep.subr.mxu0 0.0
  %1533 = vmatpush1.msra.mxu0 0.0
  %1534 = vmatprep.subr.mxu0 0.0
  %1535 = vmatpush1.msra.mxu0 0.0
  %1536 = vmatprep.subr.mxu0 0.0
  %1537 = vmatpush1.msra.mxu0 0.0
  %1538 = vmatprep.subr.mxu0 0.0
  %1539 = vmatpush1.msra.mxu0 0.0
  %1540 = vmatprep.subr.mxu0 0.0
  %1541 = vmatpush1.msra.mxu0 0.0
  %1542 = vmatprep.subr.mxu0 0.0
  %1543 = vmatpush1.msra.mxu0 0.0
  %1544 = vmatprep.subr.mxu0 0.0
  %1545 = vmatpush1.msra.mxu0 0.0
  %1546 = vmatprep.subr.mxu0 0.0
  %1547 = vmatpush1.msra.mxu0 0.0
  %1548 = vmatprep.subr.mxu0 0.0
  %1549 = vmatpush1.msra.mxu0 0.0
  %1550 = vmatprep.subr.mxu0 0.0
  %1551 = vmatpush1.msra.mxu0 0.0
  %1552 = vmatprep.subr.mxu0 0.0
  %1553 = vmatpush1.msra.mxu0 0.0
  %1554 = vmatprep.mubr.f32.mxu0 0.0
  %1555 = vmatmul.mubr.f32.gmra.mrb[0].mxu0 %v1320
  %v1556 = vpop.f32.mrb[0].mxu0
  %v1557 = vadd.f32 0.0, %v1556
  %v1558 = vpop.f32.mrb[0].mxu0
  %v1559 = vadd.f32 0.0, %v1558
  %1560 = vdwg.mxu0
  %1561 = vmatprep.subr.mxu0 %v126
  %1562 = vmatpush1.msra.mxu0 %v125
  %1563 = vmatprep.subr.mxu0 %v130
  %1564 = vmatpush1.msra.mxu0 %v129
  %1565 = vmatprep.subr.mxu0 %v134
  %1566 = vmatpush1.msra.mxu0 %v133
  %1567 = vmatprep.subr.mxu0 %v138
  %1568 = vmatpush1.msra.mxu0 %v137
  %1569 = vmatprep.subr.mxu0 %v142
  %1570 = vmatpush1.msra.mxu0 %v141
  %1571 = vmatprep.subr.mxu0 %v146
  %1572 = vmatpush1.msra.mxu0 %v145
  %1573 = vmatprep.subr.mxu0 %v150
  %1574 = vmatpush1.msra.mxu0 %v149
  %1575 = vmatprep.subr.mxu0 %v154
  %1576 = vmatpush1.msra.mxu0 %v153
  %1577 = vmatprep.subr.mxu0 %v158
  %1578 = vmatpush1.msra.mxu0 %v157
  %1579 = vmatprep.subr.mxu0 %v162
  %1580 = vmatpush1.msra.mxu0 %v161
  %1581 = vmatprep.subr.mxu0 %v166
  %1582 = vmatpush1.msra.mxu0 %v165
  %1583 = vmatprep.subr.mxu0 %v170
  %1584 = vmatpush1.msra.mxu0 %v169
  %1585 = vmatprep.subr.mxu0 %v174
  %1586 = vmatpush1.msra.mxu0 %v173
  %1587 = vmatprep.subr.mxu0 %v178
  %1588 = vmatpush1.msra.mxu0 %v177
  %1589 = vmatprep.subr.mxu0 %v182
  %1590 = vmatpush1.msra.mxu0 %v181
  %1591 = vmatprep.subr.mxu0 %v186
  %1592 = vmatpush1.msra.mxu0 %v185
  %1593 = vmatprep.subr.mxu0 0.0
  %1594 = vmatpush1.msra.mxu0 0.0
  %1595 = vmatprep.subr.mxu0 0.0
  %1596 = vmatpush1.msra.mxu0 0.0
  %1597 = vmatprep.subr.mxu0 0.0
  %1598 = vmatpush1.msra.mxu0 0.0
  %1599 = vmatprep.subr.mxu0 0.0
  %1600 = vmatpush1.msra.mxu0 0.0
  %1601 = vmatprep.subr.mxu0 0.0
  %1602 = vmatpush1.msra.mxu0 0.0
  %1603 = vmatprep.subr.mxu0 0.0
  %1604 = vmatpush1.msra.mxu0 0.0
  %1605 = vmatprep.subr.mxu0 0.0
  %1606 = vmatpush1.msra.mxu0 0.0
  %1607 = vmatprep.subr.mxu0 0.0
  %1608 = vmatpush1.msra.mxu0 0.0
  %1609 = vmatprep.subr.mxu0 0.0
  %1610 = vmatpush1.msra.mxu0 0.0
  %1611 = vmatprep.subr.mxu0 0.0
  %1612 = vmatpush1.msra.mxu0 0.0
  %1613 = vmatprep.subr.mxu0 0.0
  %1614 = vmatpush1.msra.mxu0 0.0
  %1615 = vmatprep.subr.mxu0 0.0
  %1616 = vmatpush1.msra.mxu0 0.0
  %1617 = vmatprep.subr.mxu0 0.0
  %1618 = vmatpush1.msra.mxu0 0.0
  %1619 = vmatprep.subr.mxu0 0.0
  %1620 = vmatpush1.msra.mxu0 0.0
  %1621 = vmatprep.subr.mxu0 0.0
  %1622 = vmatpush1.msra.mxu0 0.0
  %1623 = vmatprep.subr.mxu0 0.0
  %1624 = vmatpush1.msra.mxu0 0.0
  %1625 = vmatprep.mubr.f32.mxu0 0.0
  %1626 = vmatmul.mubr.f32.gmra.mrb[0].mxu0 %v1320
  %v1627 = vpop.f32.mrb[0].mxu0
  %v1628 = vadd.f32 0.0, %v1627
  %v1629 = vpop.f32.mrb[0].mxu0
  %v1630 = vadd.f32 0.0, %v1629
  %1631 = vdwg.mxu0
  %v1632 = vadd.f32 %v1486, %v1557
  %v1633 = vadd.f32 %v1487, %v1559
  %v1634 = vadd.f32 %v1488, %v1628
  %v1635 = vadd.f32 %v1489, %v1630
  %v1636 = vxor.u32 %v1481, 2147483648
  %v1637 = vmul.f32 %v1636, 1.442695
  %v1638 = vpow.pop %v1637
  %v1639 = vadd.f32 %v1638, 1.0
  %v1640 = vrcp.pop %v1639
  %v1641 = vmul.f32 1.0, %v1640
  %v1642 = vxor.u32 %v1482, 2147483648
  %v1643 = vmul.f32 %v1642, 1.442695
  %v1644 = vpow.pop %v1643
  %v1645 = vadd.f32 %v1644, 1.0
  %v1646 = vrcp.pop %v1645
  %v1647 = vmul.f32 1.0, %v1646
  %v1648 = vtanh.pop %v1483
  %v1649 = vxor.u32 %v1484, 2147483648
  %v1650 = vmul.f32 %v1649, 1.442695
  %v1651 = vpow.pop %v1650
  %v1652 = vadd.f32 %v1651, 1.0
  %v1653 = vrcp.pop %v1652
  %v1654 = vmul.f32 1.0, %v1653
  %v1655 = vmul.f32 %v1647, %v1319
  %v1656 = vmul.f32 %v1641, %v1648
  %v1657 = vadd.f32 %v1655, %v1656
  %v1658 = vtanh.pop %v1657
  %v1659 = vmul.f32 %v1654, %v1658
  %v1660 = vxor.u32 %v1632, 2147483648
  %v1661 = vmul.f32 %v1660, 1.442695
  %v1662 = vpow.pop %v1661
  %v1663 = vadd.f32 %v1662, 1.0
  %v1664 = vrcp.pop %v1663
  %v1665 = vmul.f32 1.0, %v1664
  %v1666 = vxor.u32 %v1633, 2147483648
  %v1667 = vmul.f32 %v1666, 1.442695
  %v1668 = vpow.pop %v1667
  %v1669 = vadd.f32 %v1668, 1.0
  %v1670 = vrcp.pop %v1669
  %v1671 = vmul.f32 1.0, %v1670
  %v1672 = vtanh.pop %v1634
  %v1673 = vxor.u32 %v1635, 2147483648
  %v1674 = vmul.f32 %v1673, 1.442695
  %v1675 = vpow.pop %v1674
  %v1676 = vadd.f32 %v1675, 1.0
  %v1677 = vrcp.pop %v1676
  %v1678 = vmul.f32 1.0, %v1677
  %v1679 = vmul.f32 %v1671, %v1321
  %v1680 = vmul.f32 %v1665, %v1672
  %v1681 = vadd.f32 %v1679, %v1680
  %v1682 = vtanh.pop %v1681
  %v1683 = vmul.f32 %v1678, %v1682
  %v1684 = vstv %s1332
  %vm1685 = vcmp.lt.s32.totalorder %v1684, %v58
  %v1686 = vsel %vm1685, 1, 0
  %1687 = vset.pattern.permute.xlu0 0
  %1688 = vperm.xlu0 %1687, %v1686
  %v1689 = vpop.permute.xlu0 %1688
  %vm1690 = vcmp.eq.s32.totalorder %v1689, 1
  %v1691 = vstv %s1333
  %vm1692 = vcmp.lt.s32.totalorder %v1691, %v58
  %v1693 = vsel %vm1692, 1, 0
  %1694 = vset.pattern.permute.xlu0 0
  %1695 = vperm.xlu0 %1694, %v1693
  %v1696 = vpop.permute.xlu0 %1695
  %vm1697 = vcmp.eq.s32.totalorder %v1696, 1
  %v1698 = vsel %vm1690, %v1659, %v1318
  %v1699 = vsel %vm1690, %v1657, %v1319
  %v1700 = vsel %vm1697, %v1683, %v1320
  %v1701 = vsel %vm1697, %v1681, %v1321
  %p1702 = scmp.lt.s32.totalorder %s1332, %s57
  %s1703 = scalar_select %p1702, 0.0, -inf
  %p1704 = scmp.lt.s32.totalorder %s1333, %s57
  %s1705 = scalar_select %p1704, 0.0, -inf
  %v1706 = vstv %s1703
  %v1707 = vsel %vm1690, %v1659, %v1706
  %v1708 = vmax.f32 %v1328, %v1707
  %v1709 = vstv %s1705
  %v1710 = vsel %vm1697, %v1683, %v1709
  %v1711 = vmax.f32 %v1331, %v1710
  %s1712 = sadd.s32 %s193, 4
  %s1713 = ssub.s32 3, %s193
  %s1714 = scalar_lea.vmem %s1, 128
  %v1715 = vld [vmem:[%s1714] sm:$0xff]
  %v1716 = vld [vmem:[%s1714 + $0x8] sm:$0xff]
  %v1717 = vld [vmem:[%s1714 + $0x10] sm:$0xff]
  %v1718 = vld [vmem:[%s1714 + $0x18] sm:$0xff]
  %1719 = vmatprep.subr.mxu0 %v60
  %1720 = vmatpush1.msra.mxu0 %v59
  %1721 = vmatprep.subr.mxu0 %v64
  %1722 = vmatpush1.msra.mxu0 %v63
  %1723 = vmatprep.subr.mxu0 %v68
  %1724 = vmatpush1.msra.mxu0 %v67
  %1725 = vmatprep.subr.mxu0 %v72
  %1726 = vmatpush1.msra.mxu0 %v71
  %1727 = vmatprep.subr.mxu0 %v76
  %1728 = vmatpush1.msra.mxu0 %v75
  %1729 = vmatprep.subr.mxu0 %v80
  %1730 = vmatpush1.msra.mxu0 %v79
  %1731 = vmatprep.subr.mxu0 %v84
  %1732 = vmatpush1.msra.mxu0 %v83
  %1733 = vmatprep.subr.mxu0 %v88
  %1734 = vmatpush1.msra.mxu0 %v87
  %1735 = vmatprep.subr.mxu0 %v92
  %1736 = vmatpush1.msra.mxu0 %v91
  %1737 = vmatprep.subr.mxu0 %v96
  %1738 = vmatpush1.msra.mxu0 %v95
  %1739 = vmatprep.subr.mxu0 %v100
  %1740 = vmatpush1.msra.mxu0 %v99
  %1741 = vmatprep.subr.mxu0 %v104
  %1742 = vmatpush1.msra.mxu0 %v103
  %1743 = vmatprep.subr.mxu0 %v108
  %1744 = vmatpush1.msra.mxu0 %v107
  %1745 = vmatprep.subr.mxu0 %v112
  %1746 = vmatpush1.msra.mxu0 %v111
  %1747 = vmatprep.subr.mxu0 %v116
  %1748 = vmatpush1.msra.mxu0 %v115
  %1749 = vmatprep.subr.mxu0 %v120
  %1750 = vmatpush1.msra.mxu0 %v119
  %1751 = vmatprep.subr.mxu0 0.0
  %1752 = vmatpush1.msra.mxu0 0.0
  %1753 = vmatprep.subr.mxu0 0.0
  %1754 = vmatpush1.msra.mxu0 0.0
  %1755 = vmatprep.subr.mxu0 0.0
  %1756 = vmatpush1.msra.mxu0 0.0
  %1757 = vmatprep.subr.mxu0 0.0
  %1758 = vmatpush1.msra.mxu0 0.0
  %1759 = vmatprep.subr.mxu0 0.0
  %1760 = vmatpush1.msra.mxu0 0.0
  %1761 = vmatprep.subr.mxu0 0.0
  %1762 = vmatpush1.msra.mxu0 0.0
  %1763 = vmatprep.subr.mxu0 0.0
  %1764 = vmatpush1.msra.mxu0 0.0
  %1765 = vmatprep.subr.mxu0 0.0
  %1766 = vmatpush1.msra.mxu0 0.0
  %1767 = vmatprep.subr.mxu0 0.0
  %1768 = vmatpush1.msra.mxu0 0.0
  %1769 = vmatprep.subr.mxu0 0.0
  %1770 = vmatpush1.msra.mxu0 0.0
  %1771 = vmatprep.subr.mxu0 0.0
  %1772 = vmatpush1.msra.mxu0 0.0
  %1773 = vmatprep.subr.mxu0 0.0
  %1774 = vmatpush1.msra.mxu0 0.0
  %1775 = vmatprep.subr.mxu0 0.0
  %1776 = vmatpush1.msra.mxu0 0.0
  %1777 = vmatprep.subr.mxu0 0.0
  %1778 = vmatpush1.msra.mxu0 0.0
  %1779 = vmatprep.subr.mxu0 0.0
  %1780 = vmatpush1.msra.mxu0 0.0
  %1781 = vmatprep.subr.mxu0 0.0
  %1782 = vmatpush1.msra.mxu0 0.0
  %1783 = vmatprep.mubr.f32.mxu0 0.0
  %1784 = vmatmul.mubr.f32.gmra.mrb[0].mxu0 %v1698
  %v1785 = vpop.f32.mrb[0].mxu0
  %v1786 = vadd.f32 0.0, %v1785
  %v1787 = vpop.f32.mrb[0].mxu0
  %v1788 = vadd.f32 0.0, %v1787
  %1789 = vdwg.mxu0
  %1790 = vmatprep.subr.mxu0 %v62
  %1791 = vmatpush1.msra.mxu0 %v61
  %1792 = vmatprep.subr.mxu0 %v66
  %1793 = vmatpush1.msra.mxu0 %v65
  %1794 = vmatprep.subr.mxu0 %v70
  %1795 = vmatpush1.msra.mxu0 %v69
  %1796 = vmatprep.subr.mxu0 %v74
  %1797 = vmatpush1.msra.mxu0 %v73
  %1798 = vmatprep.subr.mxu0 %v78
  %1799 = vmatpush1.msra.mxu0 %v77
  %1800 = vmatprep.subr.mxu0 %v82
  %1801 = vmatpush1.msra.mxu0 %v81
  %1802 = vmatprep.subr.mxu0 %v86
  %1803 = vmatpush1.msra.mxu0 %v85
  %1804 = vmatprep.subr.mxu0 %v90
  %1805 = vmatpush1.msra.mxu0 %v89
  %1806 = vmatprep.subr.mxu0 %v94
  %1807 = vmatpush1.msra.mxu0 %v93
  %1808 = vmatprep.subr.mxu0 %v98
  %1809 = vmatpush1.msra.mxu0 %v97
  %1810 = vmatprep.subr.mxu0 %v102
  %1811 = vmatpush1.msra.mxu0 %v101
  %1812 = vmatprep.subr.mxu0 %v106
  %1813 = vmatpush1.msra.mxu0 %v105
  %1814 = vmatprep.subr.mxu0 %v110
  %1815 = vmatpush1.msra.mxu0 %v109
  %1816 = vmatprep.subr.mxu0 %v114
  %1817 = vmatpush1.msra.mxu0 %v113
  %1818 = vmatprep.subr.mxu0 %v118
  %1819 = vmatpush1.msra.mxu0 %v117
  %1820 = vmatprep.subr.mxu0 %v122
  %1821 = vmatpush1.msra.mxu0 %v121
  %1822 = vmatprep.subr.mxu0 0.0
  %1823 = vmatpush1.msra.mxu0 0.0
  %1824 = vmatprep.subr.mxu0 0.0
  %1825 = vmatpush1.msra.mxu0 0.0
  %1826 = vmatprep.subr.mxu0 0.0
  %1827 = vmatpush1.msra.mxu0 0.0
  %1828 = vmatprep.subr.mxu0 0.0
  %1829 = vmatpush1.msra.mxu0 0.0
  %1830 = vmatprep.subr.mxu0 0.0
  %1831 = vmatpush1.msra.mxu0 0.0
  %1832 = vmatprep.subr.mxu0 0.0
  %1833 = vmatpush1.msra.mxu0 0.0
  %1834 = vmatprep.subr.mxu0 0.0
  %1835 = vmatpush1.msra.mxu0 0.0
  %1836 = vmatprep.subr.mxu0 0.0
  %1837 = vmatpush1.msra.mxu0 0.0
  %1838 = vmatprep.subr.mxu0 0.0
  %1839 = vmatpush1.msra.mxu0 0.0
  %1840 = vmatprep.subr.mxu0 0.0
  %1841 = vmatpush1.msra.mxu0 0.0
  %1842 = vmatprep.subr.mxu0 0.0
  %1843 = vmatpush1.msra.mxu0 0.0
  %1844 = vmatprep.subr.mxu0 0.0
  %1845 = vmatpush1.msra.mxu0 0.0
  %1846 = vmatprep.subr.mxu0 0.0
  %1847 = vmatpush1.msra.mxu0 0.0
  %1848 = vmatprep.subr.mxu0 0.0
  %1849 = vmatpush1.msra.mxu0 0.0
  %1850 = vmatprep.subr.mxu0 0.0
  %1851 = vmatpush1.msra.mxu0 0.0
  %1852 = vmatprep.subr.mxu0 0.0
  %1853 = vmatpush1.msra.mxu0 0.0
  %1854 = vmatprep.mubr.f32.mxu0 0.0
  %1855 = vmatmul.mubr.f32.gmra.mrb[0].mxu0 %v1698
  %v1856 = vpop.f32.mrb[0].mxu0
  %v1857 = vadd.f32 0.0, %v1856
  %v1858 = vpop.f32.mrb[0].mxu0
  %v1859 = vadd.f32 0.0, %v1858
  %1860 = vdwg.mxu0
  %v1861 = vadd.f32 %v1715, %v1786
  %v1862 = vadd.f32 %v1716, %v1788
  %v1863 = vadd.f32 %v1717, %v1857
  %v1864 = vadd.f32 %v1718, %v1859
  %s1865 = scalar_lea.vmem %s44, 96
  %v1866 = vld [vmem:[%s1865] sm:$0xff]
  %v1867 = vld [vmem:[%s1865 + $0x8] sm:$0xff]
  %v1868 = vld [vmem:[%s1865 + $0x10] sm:$0xff]
  %v1869 = vld [vmem:[%s1865 + $0x18] sm:$0xff]
  %1870 = vmatprep.subr.mxu0 %v124
  %1871 = vmatpush1.msra.mxu0 %v123
  %1872 = vmatprep.subr.mxu0 %v128
  %1873 = vmatpush1.msra.mxu0 %v127
  %1874 = vmatprep.subr.mxu0 %v132
  %1875 = vmatpush1.msra.mxu0 %v131
  %1876 = vmatprep.subr.mxu0 %v136
  %1877 = vmatpush1.msra.mxu0 %v135
  %1878 = vmatprep.subr.mxu0 %v140
  %1879 = vmatpush1.msra.mxu0 %v139
  %1880 = vmatprep.subr.mxu0 %v144
  %1881 = vmatpush1.msra.mxu0 %v143
  %1882 = vmatprep.subr.mxu0 %v148
  %1883 = vmatpush1.msra.mxu0 %v147
  %1884 = vmatprep.subr.mxu0 %v152
  %1885 = vmatpush1.msra.mxu0 %v151
  %1886 = vmatprep.subr.mxu0 %v156
  %1887 = vmatpush1.msra.mxu0 %v155
  %1888 = vmatprep.subr.mxu0 %v160
  %1889 = vmatpush1.msra.mxu0 %v159
  %1890 = vmatprep.subr.mxu0 %v164
  %1891 = vmatpush1.msra.mxu0 %v163
  %1892 = vmatprep.subr.mxu0 %v168
  %1893 = vmatpush1.msra.mxu0 %v167
  %1894 = vmatprep.subr.mxu0 %v172
  %1895 = vmatpush1.msra.mxu0 %v171
  %1896 = vmatprep.subr.mxu0 %v176
  %1897 = vmatpush1.msra.mxu0 %v175
  %1898 = vmatprep.subr.mxu0 %v180
  %1899 = vmatpush1.msra.mxu0 %v179
  %1900 = vmatprep.subr.mxu0 %v184
  %1901 = vmatpush1.msra.mxu0 %v183
  %1902 = vmatprep.subr.mxu0 0.0
  %1903 = vmatpush1.msra.mxu0 0.0
  %1904 = vmatprep.subr.mxu0 0.0
  %1905 = vmatpush1.msra.mxu0 0.0
  %1906 = vmatprep.subr.mxu0 0.0
  %1907 = vmatpush1.msra.mxu0 0.0
  %1908 = vmatprep.subr.mxu0 0.0
  %1909 = vmatpush1.msra.mxu0 0.0
  %1910 = vmatprep.subr.mxu0 0.0
  %1911 = vmatpush1.msra.mxu0 0.0
  %1912 = vmatprep.subr.mxu0 0.0
  %1913 = vmatpush1.msra.mxu0 0.0
  %1914 = vmatprep.subr.mxu0 0.0
  %1915 = vmatpush1.msra.mxu0 0.0
  %1916 = vmatprep.subr.mxu0 0.0
  %1917 = vmatpush1.msra.mxu0 0.0
  %1918 = vmatprep.subr.mxu0 0.0
  %1919 = vmatpush1.msra.mxu0 0.0
  %1920 = vmatprep.subr.mxu0 0.0
  %1921 = vmatpush1.msra.mxu0 0.0
  %1922 = vmatprep.subr.mxu0 0.0
  %1923 = vmatpush1.msra.mxu0 0.0
  %1924 = vmatprep.subr.mxu0 0.0
  %1925 = vmatpush1.msra.mxu0 0.0
  %1926 = vmatprep.subr.mxu0 0.0
  %1927 = vmatpush1.msra.mxu0 0.0
  %1928 = vmatprep.subr.mxu0 0.0
  %1929 = vmatpush1.msra.mxu0 0.0
  %1930 = vmatprep.subr.mxu0 0.0
  %1931 = vmatpush1.msra.mxu0 0.0
  %1932 = vmatprep.subr.mxu0 0.0
  %1933 = vmatpush1.msra.mxu0 0.0
  %1934 = vmatprep.mubr.f32.mxu0 0.0
  %1935 = vmatmul.mubr.f32.gmra.mrb[0].mxu0 %v1700
  %v1936 = vpop.f32.mrb[0].mxu0
  %v1937 = vadd.f32 0.0, %v1936
  %v1938 = vpop.f32.mrb[0].mxu0
  %v1939 = vadd.f32 0.0, %v1938
  %1940 = vdwg.mxu0
  %1941 = vmatprep.subr.mxu0 %v126
  %1942 = vmatpush1.msra.mxu0 %v125
  %1943 = vmatprep.subr.mxu0 %v130
  %1944 = vmatpush1.msra.mxu0 %v129
  %1945 = vmatprep.subr.mxu0 %v134
  %1946 = vmatpush1.msra.mxu0 %v133
  %1947 = vmatprep.subr.mxu0 %v138
  %1948 = vmatpush1.msra.mxu0 %v137
  %1949 = vmatprep.subr.mxu0 %v142
  %1950 = vmatpush1.msra.mxu0 %v141
  %1951 = vmatprep.subr.mxu0 %v146
  %1952 = vmatpush1.msra.mxu0 %v145
  %1953 = vmatprep.subr.mxu0 %v150
  %1954 = vmatpush1.msra.mxu0 %v149
  %1955 = vmatprep.subr.mxu0 %v154
  %1956 = vmatpush1.msra.mxu0 %v153
  %1957 = vmatprep.subr.mxu0 %v158
  %1958 = vmatpush1.msra.mxu0 %v157
  %1959 = vmatprep.subr.mxu0 %v162
  %1960 = vmatpush1.msra.mxu0 %v161
  %1961 = vmatprep.subr.mxu0 %v166
  %1962 = vmatpush1.msra.mxu0 %v165
  %1963 = vmatprep.subr.mxu0 %v170
  %1964 = vmatpush1.msra.mxu0 %v169
  %1965 = vmatprep.subr.mxu0 %v174
  %1966 = vmatpush1.msra.mxu0 %v173
  %1967 = vmatprep.subr.mxu0 %v178
  %1968 = vmatpush1.msra.mxu0 %v177
  %1969 = vmatprep.subr.mxu0 %v182
  %1970 = vmatpush1.msra.mxu0 %v181
  %1971 = vmatprep.subr.mxu0 %v186
  %1972 = vmatpush1.msra.mxu0 %v185
  %1973 = vmatprep.subr.mxu0 0.0
  %1974 = vmatpush1.msra.mxu0 0.0
  %1975 = vmatprep.subr.mxu0 0.0
  %1976 = vmatpush1.msra.mxu0 0.0
  %1977 = vmatprep.subr.mxu0 0.0
  %1978 = vmatpush1.msra.mxu0 0.0
  %1979 = vmatprep.subr.mxu0 0.0
  %1980 = vmatpush1.msra.mxu0 0.0
  %1981 = vmatprep.subr.mxu0 0.0
  %1982 = vmatpush1.msra.mxu0 0.0
  %1983 = vmatprep.subr.mxu0 0.0
  %1984 = vmatpush1.msra.mxu0 0.0
  %1985 = vmatprep.subr.mxu0 0.0
  %1986 = vmatpush1.msra.mxu0 0.0
  %1987 = vmatprep.subr.mxu0 0.0
  %1988 = vmatpush1.msra.mxu0 0.0
  %1989 = vmatprep.subr.mxu0 0.0
  %1990 = vmatpush1.msra.mxu0 0.0
  %1991 = vmatprep.subr.mxu0 0.0
  %1992 = vmatpush1.msra.mxu0 0.0
  %1993 = vmatprep.subr.mxu0 0.0
  %1994 = vmatpush1.msra.mxu0 0.0
  %1995 = vmatprep.subr.mxu0 0.0
  %1996 = vmatpush1.msra.mxu0 0.0
  %1997 = vmatprep.subr.mxu0 0.0
  %1998 = vmatpush1.msra.mxu0 0.0
  %1999 = vmatprep.subr.mxu0 0.0
  %2000 = vmatpush1.msra.mxu0 0.0
  %2001 = vmatprep.subr.mxu0 0.0
  %2002 = vmatpush1.msra.mxu0 0.0
  %2003 = vmatprep.subr.mxu0 0.0
  %2004 = vmatpush1.msra.mxu0 0.0
  %2005 = vmatprep.mubr.f32.mxu0 0.0
  %2006 = vmatmul.mubr.f32.gmra.mrb[0].mxu0 %v1700
  %v2007 = vpop.f32.mrb[0].mxu0
  %v2008 = vadd.f32 0.0, %v2007
  %v2009 = vpop.f32.mrb[0].mxu0
  %v2010 = vadd.f32 0.0, %v2009
  %2011 = vdwg.mxu0
  %v2012 = vadd.f32 %v1866, %v1937
  %v2013 = vadd.f32 %v1867, %v1939
  %v2014 = vadd.f32 %v1868, %v2008
  %v2015 = vadd.f32 %v1869, %v2010
  %v2016 = vxor.u32 %v1861, 2147483648
  %v2017 = vmul.f32 %v2016, 1.442695
  %v2018 = vpow.pop %v2017
  %v2019 = vadd.f32 %v2018, 1.0
  %v2020 = vrcp.pop %v2019
  %v2021 = vmul.f32 1.0, %v2020
  %v2022 = vxor.u32 %v1862, 2147483648
  %v2023 = vmul.f32 %v2022, 1.442695
  %v2024 = vpow.pop %v2023
  %v2025 = vadd.f32 %v2024, 1.0
  %v2026 = vrcp.pop %v2025
  %v2027 = vmul.f32 1.0, %v2026
  %v2028 = vtanh.pop %v1863
  %v2029 = vxor.u32 %v1864, 2147483648
  %v2030 = vmul.f32 %v2029, 1.442695
  %v2031 = vpow.pop %v2030
  %v2032 = vadd.f32 %v2031, 1.0
  %v2033 = vrcp.pop %v2032
  %v2034 = vmul.f32 1.0, %v2033
  %v2035 = vmul.f32 %v2027, %v1699
  %v2036 = vmul.f32 %v2021, %v2028
  %v2037 = vadd.f32 %v2035, %v2036
  %v2038 = vtanh.pop %v2037
  %v2039 = vmul.f32 %v2034, %v2038
  %v2040 = vxor.u32 %v2012, 2147483648
  %v2041 = vmul.f32 %v2040, 1.442695
  %v2042 = vpow.pop %v2041
  %v2043 = vadd.f32 %v2042, 1.0
  %v2044 = vrcp.pop %v2043
  %v2045 = vmul.f32 1.0, %v2044
  %v2046 = vxor.u32 %v2013, 2147483648
  %v2047 = vmul.f32 %v2046, 1.442695
  %v2048 = vpow.pop %v2047
  %v2049 = vadd.f32 %v2048, 1.0
  %v2050 = vrcp.pop %v2049
  %v2051 = vmul.f32 1.0, %v2050
  %v2052 = vtanh.pop %v2014
  %v2053 = vxor.u32 %v2015, 2147483648
  %v2054 = vmul.f32 %v2053, 1.442695
  %v2055 = vpow.pop %v2054
  %v2056 = vadd.f32 %v2055, 1.0
  %v2057 = vrcp.pop %v2056
  %v2058 = vmul.f32 1.0, %v2057
  %v2059 = vmul.f32 %v2051, %v1701
  %v2060 = vmul.f32 %v2045, %v2052
  %v2061 = vadd.f32 %v2059, %v2060
  %v2062 = vtanh.pop %v2061
  %v2063 = vmul.f32 %v2058, %v2062
  %v2064 = vstv %s1712
  %vm2065 = vcmp.lt.s32.totalorder %v2064, %v58
  %v2066 = vsel %vm2065, 1, 0
  %2067 = vset.pattern.permute.xlu0 0
  %2068 = vperm.xlu0 %2067, %v2066
  %v2069 = vpop.permute.xlu0 %2068
  %vm2070 = vcmp.eq.s32.totalorder %v2069, 1
  %v2071 = vstv %s1713
  %vm2072 = vcmp.lt.s32.totalorder %v2071, %v58
  %v2073 = vsel %vm2072, 1, 0
  %2074 = vset.pattern.permute.xlu0 0
  %2075 = vperm.xlu0 %2074, %v2073
  %v2076 = vpop.permute.xlu0 %2075
  %vm2077 = vcmp.eq.s32.totalorder %v2076, 1
  %v2078 = vsel %vm2070, %v2039, %v1698
  %v2079 = vsel %vm2070, %v2037, %v1699
  %v2080 = vsel %vm2077, %v2063, %v1700
  %v2081 = vsel %vm2077, %v2061, %v1701
  %p2082 = scmp.lt.s32.totalorder %s1712, %s57
  %s2083 = scalar_select %p2082, 0.0, -inf
  %p2084 = scmp.lt.s32.totalorder %s1713, %s57
  %s2085 = scalar_select %p2084, 0.0, -inf
  %v2086 = vstv %s2083
  %v2087 = vsel %vm2070, %v2039, %v2086
  %v2088 = vmax.f32 %v1708, %v2087
  %v2089 = vstv %s2085
  %v2090 = vsel %vm2077, %v2063, %v2089
  %v2091 = vmax.f32 %v1711, %v2090
  %s2092 = sadd.s32 %s193, 5
  %s2093 = ssub.s32 2, %s193
  %s2094 = scalar_lea.vmem %s1, 160
  %v2095 = vld [vmem:[%s2094] sm:$0xff]
  %v2096 = vld [vmem:[%s2094 + $0x8] sm:$0xff]
  %v2097 = vld [vmem:[%s2094 + $0x10] sm:$0xff]
  %v2098 = vld [vmem:[%s2094 + $0x18] sm:$0xff]
  %2099 = vmatprep.subr.mxu0 %v60
  %2100 = vmatpush1.msra.mxu0 %v59
  %2101 = vmatprep.subr.mxu0 %v64
  %2102 = vmatpush1.msra.mxu0 %v63
  %2103 = vmatprep.subr.mxu0 %v68
  %2104 = vmatpush1.msra.mxu0 %v67
  %2105 = vmatprep.subr.mxu0 %v72
  %2106 = vmatpush1.msra.mxu0 %v71
  %2107 = vmatprep.subr.mxu0 %v76
  %2108 = vmatpush1.msra.mxu0 %v75
  %2109 = vmatprep.subr.mxu0 %v80
  %2110 = vmatpush1.msra.mxu0 %v79
  %2111 = vmatprep.subr.mxu0 %v84
  %2112 = vmatpush1.msra.mxu0 %v83
  %2113 = vmatprep.subr.mxu0 %v88
  %2114 = vmatpush1.msra.mxu0 %v87
  %2115 = vmatprep.subr.mxu0 %v92
  %2116 = vmatpush1.msra.mxu0 %v91
  %2117 = vmatprep.subr.mxu0 %v96
  %2118 = vmatpush1.msra.mxu0 %v95
  %2119 = vmatprep.subr.mxu0 %v100
  %2120 = vmatpush1.msra.mxu0 %v99
  %2121 = vmatprep.subr.mxu0 %v104
  %2122 = vmatpush1.msra.mxu0 %v103
  %2123 = vmatprep.subr.mxu0 %v108
  %2124 = vmatpush1.msra.mxu0 %v107
  %2125 = vmatprep.subr.mxu0 %v112
  %2126 = vmatpush1.msra.mxu0 %v111
  %2127 = vmatprep.subr.mxu0 %v116
  %2128 = vmatpush1.msra.mxu0 %v115
  %2129 = vmatprep.subr.mxu0 %v120
  %2130 = vmatpush1.msra.mxu0 %v119
  %2131 = vmatprep.subr.mxu0 0.0
  %2132 = vmatpush1.msra.mxu0 0.0
  %2133 = vmatprep.subr.mxu0 0.0
  %2134 = vmatpush1.msra.mxu0 0.0
  %2135 = vmatprep.subr.mxu0 0.0
  %2136 = vmatpush1.msra.mxu0 0.0
  %2137 = vmatprep.subr.mxu0 0.0
  %2138 = vmatpush1.msra.mxu0 0.0
  %2139 = vmatprep.subr.mxu0 0.0
  %2140 = vmatpush1.msra.mxu0 0.0
  %2141 = vmatprep.subr.mxu0 0.0
  %2142 = vmatpush1.msra.mxu0 0.0
  %2143 = vmatprep.subr.mxu0 0.0
  %2144 = vmatpush1.msra.mxu0 0.0
  %2145 = vmatprep.subr.mxu0 0.0
  %2146 = vmatpush1.msra.mxu0 0.0
  %2147 = vmatprep.subr.mxu0 0.0
  %2148 = vmatpush1.msra.mxu0 0.0
  %2149 = vmatprep.subr.mxu0 0.0
  %2150 = vmatpush1.msra.mxu0 0.0
  %2151 = vmatprep.subr.mxu0 0.0
  %2152 = vmatpush1.msra.mxu0 0.0
  %2153 = vmatprep.subr.mxu0 0.0
  %2154 = vmatpush1.msra.mxu0 0.0
  %2155 = vmatprep.subr.mxu0 0.0
  %2156 = vmatpush1.msra.mxu0 0.0
  %2157 = vmatprep.subr.mxu0 0.0
  %2158 = vmatpush1.msra.mxu0 0.0
  %2159 = vmatprep.subr.mxu0 0.0
  %2160 = vmatpush1.msra.mxu0 0.0
  %2161 = vmatprep.subr.mxu0 0.0
  %2162 = vmatpush1.msra.mxu0 0.0
  %2163 = vmatprep.mubr.f32.mxu0 0.0
  %2164 = vmatmul.mubr.f32.gmra.mrb[0].mxu0 %v2078
  %v2165 = vpop.f32.mrb[0].mxu0
  %v2166 = vadd.f32 0.0, %v2165
  %v2167 = vpop.f32.mrb[0].mxu0
  %v2168 = vadd.f32 0.0, %v2167
  %2169 = vdwg.mxu0
  %2170 = vmatprep.subr.mxu0 %v62
  %2171 = vmatpush1.msra.mxu0 %v61
  %2172 = vmatprep.subr.mxu0 %v66
  %2173 = vmatpush1.msra.mxu0 %v65
  %2174 = vmatprep.subr.mxu0 %v70
  %2175 = vmatpush1.msra.mxu0 %v69
  %2176 = vmatprep.subr.mxu0 %v74
  %2177 = vmatpush1.msra.mxu0 %v73
  %2178 = vmatprep.subr.mxu0 %v78
  %2179 = vmatpush1.msra.mxu0 %v77
  %2180 = vmatprep.subr.mxu0 %v82
  %2181 = vmatpush1.msra.mxu0 %v81
  %2182 = vmatprep.subr.mxu0 %v86
  %2183 = vmatpush1.msra.mxu0 %v85
  %2184 = vmatprep.subr.mxu0 %v90
  %2185 = vmatpush1.msra.mxu0 %v89
  %2186 = vmatprep.subr.mxu0 %v94
  %2187 = vmatpush1.msra.mxu0 %v93
  %2188 = vmatprep.subr.mxu0 %v98
  %2189 = vmatpush1.msra.mxu0 %v97
  %2190 = vmatprep.subr.mxu0 %v102
  %2191 = vmatpush1.msra.mxu0 %v101
  %2192 = vmatprep.subr.mxu0 %v106
  %2193 = vmatpush1.msra.mxu0 %v105
  %2194 = vmatprep.subr.mxu0 %v110
  %2195 = vmatpush1.msra.mxu0 %v109
  %2196 = vmatprep.subr.mxu0 %v114
  %2197 = vmatpush1.msra.mxu0 %v113
  %2198 = vmatprep.subr.mxu0 %v118
  %2199 = vmatpush1.msra.mxu0 %v117
  %2200 = vmatprep.subr.mxu0 %v122
  %2201 = vmatpush1.msra.mxu0 %v121
  %2202 = vmatprep.subr.mxu0 0.0
  %2203 = vmatpush1.msra.mxu0 0.0
  %2204 = vmatprep.subr.mxu0 0.0
  %2205 = vmatpush1.msra.mxu0 0.0
  %2206 = vmatprep.subr.mxu0 0.0
  %2207 = vmatpush1.msra.mxu0 0.0
  %2208 = vmatprep.subr.mxu0 0.0
  %2209 = vmatpush1.msra.mxu0 0.0
  %2210 = vmatprep.subr.mxu0 0.0
  %2211 = vmatpush1.msra.mxu0 0.0
  %2212 = vmatprep.subr.mxu0 0.0
  %2213 = vmatpush1.msra.mxu0 0.0
  %2214 = vmatprep.subr.mxu0 0.0
  %2215 = vmatpush1.msra.mxu0 0.0
  %2216 = vmatprep.subr.mxu0 0.0
  %2217 = vmatpush1.msra.mxu0 0.0
  %2218 = vmatprep.subr.mxu0 0.0
  %2219 = vmatpush1.msra.mxu0 0.0
  %2220 = vmatprep.subr.mxu0 0.0
  %2221 = vmatpush1.msra.mxu0 0.0
  %2222 = vmatprep.subr.mxu0 0.0
  %2223 = vmatpush1.msra.mxu0 0.0
  %2224 = vmatprep.subr.mxu0 0.0
  %2225 = vmatpush1.msra.mxu0 0.0
  %2226 = vmatprep.subr.mxu0 0.0
  %2227 = vmatpush1.msra.mxu0 0.0
  %2228 = vmatprep.subr.mxu0 0.0
  %2229 = vmatpush1.msra.mxu0 0.0
  %2230 = vmatprep.subr.mxu0 0.0
  %2231 = vmatpush1.msra.mxu0 0.0
  %2232 = vmatprep.subr.mxu0 0.0
  %2233 = vmatpush1.msra.mxu0 0.0
  %2234 = vmatprep.mubr.f32.mxu0 0.0
  %2235 = vmatmul.mubr.f32.gmra.mrb[0].mxu0 %v2078
  %v2236 = vpop.f32.mrb[0].mxu0
  %v2237 = vadd.f32 0.0, %v2236
  %v2238 = vpop.f32.mrb[0].mxu0
  %v2239 = vadd.f32 0.0, %v2238
  %2240 = vdwg.mxu0
  %v2241 = vadd.f32 %v2095, %v2166
  %v2242 = vadd.f32 %v2096, %v2168
  %v2243 = vadd.f32 %v2097, %v2237
  %v2244 = vadd.f32 %v2098, %v2239
  %s2245 = scalar_lea.vmem %s44, 64
  %v2246 = vld [vmem:[%s2245] sm:$0xff]
  %v2247 = vld [vmem:[%s2245 + $0x8] sm:$0xff]
  %v2248 = vld [vmem:[%s2245 + $0x10] sm:$0xff]
  %v2249 = vld [vmem:[%s2245 + $0x18] sm:$0xff]
  %2250 = vmatprep.subr.mxu0 %v124
  %2251 = vmatpush1.msra.mxu0 %v123
  %2252 = vmatprep.subr.mxu0 %v128
  %2253 = vmatpush1.msra.mxu0 %v127
  %2254 = vmatprep.subr.mxu0 %v132
  %2255 = vmatpush1.msra.mxu0 %v131
  %2256 = vmatprep.subr.mxu0 %v136
  %2257 = vmatpush1.msra.mxu0 %v135
  %2258 = vmatprep.subr.mxu0 %v140
  %2259 = vmatpush1.msra.mxu0 %v139
  %2260 = vmatprep.subr.mxu0 %v144
  %2261 = vmatpush1.msra.mxu0 %v143
  %2262 = vmatprep.subr.mxu0 %v148
  %2263 = vmatpush1.msra.mxu0 %v147
  %2264 = vmatprep.subr.mxu0 %v152
  %2265 = vmatpush1.msra.mxu0 %v151
  %2266 = vmatprep.subr.mxu0 %v156
  %2267 = vmatpush1.msra.mxu0 %v155
  %2268 = vmatprep.subr.mxu0 %v160
  %2269 = vmatpush1.msra.mxu0 %v159
  %2270 = vmatprep.subr.mxu0 %v164
  %2271 = vmatpush1.msra.mxu0 %v163
  %2272 = vmatprep.subr.mxu0 %v168
  %2273 = vmatpush1.msra.mxu0 %v167
  %2274 = vmatprep.subr.mxu0 %v172
  %2275 = vmatpush1.msra.mxu0 %v171
  %2276 = vmatprep.subr.mxu0 %v176
  %2277 = vmatpush1.msra.mxu0 %v175
  %2278 = vmatprep.subr.mxu0 %v180
  %2279 = vmatpush1.msra.mxu0 %v179
  %2280 = vmatprep.subr.mxu0 %v184
  %2281 = vmatpush1.msra.mxu0 %v183
  %2282 = vmatprep.subr.mxu0 0.0
  %2283 = vmatpush1.msra.mxu0 0.0
  %2284 = vmatprep.subr.mxu0 0.0
  %2285 = vmatpush1.msra.mxu0 0.0
  %2286 = vmatprep.subr.mxu0 0.0
  %2287 = vmatpush1.msra.mxu0 0.0
  %2288 = vmatprep.subr.mxu0 0.0
  %2289 = vmatpush1.msra.mxu0 0.0
  %2290 = vmatprep.subr.mxu0 0.0
  %2291 = vmatpush1.msra.mxu0 0.0
  %2292 = vmatprep.subr.mxu0 0.0
  %2293 = vmatpush1.msra.mxu0 0.0
  %2294 = vmatprep.subr.mxu0 0.0
  %2295 = vmatpush1.msra.mxu0 0.0
  %2296 = vmatprep.subr.mxu0 0.0
  %2297 = vmatpush1.msra.mxu0 0.0
  %2298 = vmatprep.subr.mxu0 0.0
  %2299 = vmatpush1.msra.mxu0 0.0
  %2300 = vmatprep.subr.mxu0 0.0
  %2301 = vmatpush1.msra.mxu0 0.0
  %2302 = vmatprep.subr.mxu0 0.0
  %2303 = vmatpush1.msra.mxu0 0.0
  %2304 = vmatprep.subr.mxu0 0.0
  %2305 = vmatpush1.msra.mxu0 0.0
  %2306 = vmatprep.subr.mxu0 0.0
  %2307 = vmatpush1.msra.mxu0 0.0
  %2308 = vmatprep.subr.mxu0 0.0
  %2309 = vmatpush1.msra.mxu0 0.0
  %2310 = vmatprep.subr.mxu0 0.0
  %2311 = vmatpush1.msra.mxu0 0.0
  %2312 = vmatprep.subr.mxu0 0.0
  %2313 = vmatpush1.msra.mxu0 0.0
  %2314 = vmatprep.mubr.f32.mxu0 0.0
  %2315 = vmatmul.mubr.f32.gmra.mrb[0].mxu0 %v2080
  %v2316 = vpop.f32.mrb[0].mxu0
  %v2317 = vadd.f32 0.0, %v2316
  %v2318 = vpop.f32.mrb[0].mxu0
  %v2319 = vadd.f32 0.0, %v2318
  %2320 = vdwg.mxu0
  %2321 = vmatprep.subr.mxu0 %v126
  %2322 = vmatpush1.msra.mxu0 %v125
  %2323 = vmatprep.subr.mxu0 %v130
  %2324 = vmatpush1.msra.mxu0 %v129
  %2325 = vmatprep.subr.mxu0 %v134
  %2326 = vmatpush1.msra.mxu0 %v133
  %2327 = vmatprep.subr.mxu0 %v138
  %2328 = vmatpush1.msra.mxu0 %v137
  %2329 = vmatprep.subr.mxu0 %v142
  %2330 = vmatpush1.msra.mxu0 %v141
  %2331 = vmatprep.subr.mxu0 %v146
  %2332 = vmatpush1.msra.mxu0 %v145
  %2333 = vmatprep.subr.mxu0 %v150
  %2334 = vmatpush1.msra.mxu0 %v149
  %2335 = vmatprep.subr.mxu0 %v154
  %2336 = vmatpush1.msra.mxu0 %v153
  %2337 = vmatprep.subr.mxu0 %v158
  %2338 = vmatpush1.msra.mxu0 %v157
  %2339 = vmatprep.subr.mxu0 %v162
  %2340 = vmatpush1.msra.mxu0 %v161
  %2341 = vmatprep.subr.mxu0 %v166
  %2342 = vmatpush1.msra.mxu0 %v165
  %2343 = vmatprep.subr.mxu0 %v170
  %2344 = vmatpush1.msra.mxu0 %v169
  %2345 = vmatprep.subr.mxu0 %v174
  %2346 = vmatpush1.msra.mxu0 %v173
  %2347 = vmatprep.subr.mxu0 %v178
  %2348 = vmatpush1.msra.mxu0 %v177
  %2349 = vmatprep.subr.mxu0 %v182
  %2350 = vmatpush1.msra.mxu0 %v181
  %2351 = vmatprep.subr.mxu0 %v186
  %2352 = vmatpush1.msra.mxu0 %v185
  %2353 = vmatprep.subr.mxu0 0.0
  %2354 = vmatpush1.msra.mxu0 0.0
  %2355 = vmatprep.subr.mxu0 0.0
  %2356 = vmatpush1.msra.mxu0 0.0
  %2357 = vmatprep.subr.mxu0 0.0
  %2358 = vmatpush1.msra.mxu0 0.0
  %2359 = vmatprep.subr.mxu0 0.0
  %2360 = vmatpush1.msra.mxu0 0.0
  %2361 = vmatprep.subr.mxu0 0.0
  %2362 = vmatpush1.msra.mxu0 0.0
  %2363 = vmatprep.subr.mxu0 0.0
  %2364 = vmatpush1.msra.mxu0 0.0
  %2365 = vmatprep.subr.mxu0 0.0
  %2366 = vmatpush1.msra.mxu0 0.0
  %2367 = vmatprep.subr.mxu0 0.0
  %2368 = vmatpush1.msra.mxu0 0.0
  %2369 = vmatprep.subr.mxu0 0.0
  %2370 = vmatpush1.msra.mxu0 0.0
  %2371 = vmatprep.subr.mxu0 0.0
  %2372 = vmatpush1.msra.mxu0 0.0
  %2373 = vmatprep.subr.mxu0 0.0
  %2374 = vmatpush1.msra.mxu0 0.0
  %2375 = vmatprep.subr.mxu0 0.0
  %2376 = vmatpush1.msra.mxu0 0.0
  %2377 = vmatprep.subr.mxu0 0.0
  %2378 = vmatpush1.msra.mxu0 0.0
  %2379 = vmatprep.subr.mxu0 0.0
  %2380 = vmatpush1.msra.mxu0 0.0
  %2381 = vmatprep.subr.mxu0 0.0
  %2382 = vmatpush1.msra.mxu0 0.0
  %2383 = vmatprep.subr.mxu0 0.0
  %2384 = vmatpush1.msra.mxu0 0.0
  %2385 = vmatprep.mubr.f32.mxu0 0.0
  %2386 = vmatmul.mubr.f32.gmra.mrb[0].mxu0 %v2080
  %v2387 = vpop.f32.mrb[0].mxu0
  %v2388 = vadd.f32 0.0, %v2387
  %v2389 = vpop.f32.mrb[0].mxu0
  %v2390 = vadd.f32 0.0, %v2389
  %2391 = vdwg.mxu0
  %v2392 = vadd.f32 %v2246, %v2317
  %v2393 = vadd.f32 %v2247, %v2319
  %v2394 = vadd.f32 %v2248, %v2388
  %v2395 = vadd.f32 %v2249, %v2390
  %v2396 = vxor.u32 %v2241, 2147483648
  %v2397 = vmul.f32 %v2396, 1.442695
  %v2398 = vpow.pop %v2397
  %v2399 = vadd.f32 %v2398, 1.0
  %v2400 = vrcp.pop %v2399
  %v2401 = vmul.f32 1.0, %v2400
  %v2402 = vxor.u32 %v2242, 2147483648
  %v2403 = vmul.f32 %v2402, 1.442695
  %v2404 = vpow.pop %v2403
  %v2405 = vadd.f32 %v2404, 1.0
  %v2406 = vrcp.pop %v2405
  %v2407 = vmul.f32 1.0, %v2406
  %v2408 = vtanh.pop %v2243
  %v2409 = vxor.u32 %v2244, 2147483648
  %v2410 = vmul.f32 %v2409, 1.442695
  %v2411 = vpow.pop %v2410
  %v2412 = vadd.f32 %v2411, 1.0
  %v2413 = vrcp.pop %v2412
  %v2414 = vmul.f32 1.0, %v2413
  %v2415 = vmul.f32 %v2407, %v2079
  %v2416 = vmul.f32 %v2401, %v2408
  %v2417 = vadd.f32 %v2415, %v2416
  %v2418 = vtanh.pop %v2417
  %v2419 = vmul.f32 %v2414, %v2418
  %v2420 = vxor.u32 %v2392, 2147483648
  %v2421 = vmul.f32 %v2420, 1.442695
  %v2422 = vpow.pop %v2421
  %v2423 = vadd.f32 %v2422, 1.0
  %v2424 = vrcp.pop %v2423
  %v2425 = vmul.f32 1.0, %v2424
  %v2426 = vxor.u32 %v2393, 2147483648
  %v2427 = vmul.f32 %v2426, 1.442695
  %v2428 = vpow.pop %v2427
  %v2429 = vadd.f32 %v2428, 1.0
  %v2430 = vrcp.pop %v2429
  %v2431 = vmul.f32 1.0, %v2430
  %v2432 = vtanh.pop %v2394
  %v2433 = vxor.u32 %v2395, 2147483648
  %v2434 = vmul.f32 %v2433, 1.442695
  %v2435 = vpow.pop %v2434
  %v2436 = vadd.f32 %v2435, 1.0
  %v2437 = vrcp.pop %v2436
  %v2438 = vmul.f32 1.0, %v2437
  %v2439 = vmul.f32 %v2431, %v2081
  %v2440 = vmul.f32 %v2425, %v2432
  %v2441 = vadd.f32 %v2439, %v2440
  %v2442 = vtanh.pop %v2441
  %v2443 = vmul.f32 %v2438, %v2442
  %v2444 = vstv %s2092
  %vm2445 = vcmp.lt.s32.totalorder %v2444, %v58
  %v2446 = vsel %vm2445, 1, 0
  %2447 = vset.pattern.permute.xlu0 0
  %2448 = vperm.xlu0 %2447, %v2446
  %v2449 = vpop.permute.xlu0 %2448
  %vm2450 = vcmp.eq.s32.totalorder %v2449, 1
  %v2451 = vstv %s2093
  %vm2452 = vcmp.lt.s32.totalorder %v2451, %v58
  %v2453 = vsel %vm2452, 1, 0
  %2454 = vset.pattern.permute.xlu0 0
  %2455 = vperm.xlu0 %2454, %v2453
  %v2456 = vpop.permute.xlu0 %2455
  %vm2457 = vcmp.eq.s32.totalorder %v2456, 1
  %v2458 = vsel %vm2450, %v2419, %v2078
  %v2459 = vsel %vm2450, %v2417, %v2079
  %v2460 = vsel %vm2457, %v2443, %v2080
  %v2461 = vsel %vm2457, %v2441, %v2081
  %p2462 = scmp.lt.s32.totalorder %s2092, %s57
  %s2463 = scalar_select %p2462, 0.0, -inf
  %p2464 = scmp.lt.s32.totalorder %s2093, %s57
  %s2465 = scalar_select %p2464, 0.0, -inf
  %v2466 = vstv %s2463
  %v2467 = vsel %vm2450, %v2419, %v2466
  %v2468 = vmax.f32 %v2088, %v2467
  %v2469 = vstv %s2465
  %v2470 = vsel %vm2457, %v2443, %v2469
  %v2471 = vmax.f32 %v2091, %v2470
  %s2472 = sadd.s32 %s193, 6
  %s2473 = ssub.s32 1, %s193
  %s2474 = scalar_lea.vmem %s1, 192
  %v2475 = vld [vmem:[%s2474] sm:$0xff]
  %v2476 = vld [vmem:[%s2474 + $0x8] sm:$0xff]
  %v2477 = vld [vmem:[%s2474 + $0x10] sm:$0xff]
  %v2478 = vld [vmem:[%s2474 + $0x18] sm:$0xff]
  %2479 = vmatprep.subr.mxu0 %v60
  %2480 = vmatpush1.msra.mxu0 %v59
  %2481 = vmatprep.subr.mxu0 %v64
  %2482 = vmatpush1.msra.mxu0 %v63
  %2483 = vmatprep.subr.mxu0 %v68
  %2484 = vmatpush1.msra.mxu0 %v67
  %2485 = vmatprep.subr.mxu0 %v72
  %2486 = vmatpush1.msra.mxu0 %v71
  %2487 = vmatprep.subr.mxu0 %v76
  %2488 = vmatpush1.msra.mxu0 %v75
  %2489 = vmatprep.subr.mxu0 %v80
  %2490 = vmatpush1.msra.mxu0 %v79
  %2491 = vmatprep.subr.mxu0 %v84
  %2492 = vmatpush1.msra.mxu0 %v83
  %2493 = vmatprep.subr.mxu0 %v88
  %2494 = vmatpush1.msra.mxu0 %v87
  %2495 = vmatprep.subr.mxu0 %v92
  %2496 = vmatpush1.msra.mxu0 %v91
  %2497 = vmatprep.subr.mxu0 %v96
  %2498 = vmatpush1.msra.mxu0 %v95
  %2499 = vmatprep.subr.mxu0 %v100
  %2500 = vmatpush1.msra.mxu0 %v99
  %2501 = vmatprep.subr.mxu0 %v104
  %2502 = vmatpush1.msra.mxu0 %v103
  %2503 = vmatprep.subr.mxu0 %v108
  %2504 = vmatpush1.msra.mxu0 %v107
  %2505 = vmatprep.subr.mxu0 %v112
  %2506 = vmatpush1.msra.mxu0 %v111
  %2507 = vmatprep.subr.mxu0 %v116
  %2508 = vmatpush1.msra.mxu0 %v115
  %2509 = vmatprep.subr.mxu0 %v120
  %2510 = vmatpush1.msra.mxu0 %v119
  %2511 = vmatprep.subr.mxu0 0.0
  %2512 = vmatpush1.msra.mxu0 0.0
  %2513 = vmatprep.subr.mxu0 0.0
  %2514 = vmatpush1.msra.mxu0 0.0
  %2515 = vmatprep.subr.mxu0 0.0
  %2516 = vmatpush1.msra.mxu0 0.0
  %2517 = vmatprep.subr.mxu0 0.0
  %2518 = vmatpush1.msra.mxu0 0.0
  %2519 = vmatprep.subr.mxu0 0.0
  %2520 = vmatpush1.msra.mxu0 0.0
  %2521 = vmatprep.subr.mxu0 0.0
  %2522 = vmatpush1.msra.mxu0 0.0
  %2523 = vmatprep.subr.mxu0 0.0
  %2524 = vmatpush1.msra.mxu0 0.0
  %2525 = vmatprep.subr.mxu0 0.0
  %2526 = vmatpush1.msra.mxu0 0.0
  %2527 = vmatprep.subr.mxu0 0.0
  %2528 = vmatpush1.msra.mxu0 0.0
  %2529 = vmatprep.subr.mxu0 0.0
  %2530 = vmatpush1.msra.mxu0 0.0
  %2531 = vmatprep.subr.mxu0 0.0
  %2532 = vmatpush1.msra.mxu0 0.0
  %2533 = vmatprep.subr.mxu0 0.0
  %2534 = vmatpush1.msra.mxu0 0.0
  %2535 = vmatprep.subr.mxu0 0.0
  %2536 = vmatpush1.msra.mxu0 0.0
  %2537 = vmatprep.subr.mxu0 0.0
  %2538 = vmatpush1.msra.mxu0 0.0
  %2539 = vmatprep.subr.mxu0 0.0
  %2540 = vmatpush1.msra.mxu0 0.0
  %2541 = vmatprep.subr.mxu0 0.0
  %2542 = vmatpush1.msra.mxu0 0.0
  %2543 = vmatprep.mubr.f32.mxu0 0.0
  %2544 = vmatmul.mubr.f32.gmra.mrb[0].mxu0 %v2458
  %v2545 = vpop.f32.mrb[0].mxu0
  %v2546 = vadd.f32 0.0, %v2545
  %v2547 = vpop.f32.mrb[0].mxu0
  %v2548 = vadd.f32 0.0, %v2547
  %2549 = vdwg.mxu0
  %2550 = vmatprep.subr.mxu0 %v62
  %2551 = vmatpush1.msra.mxu0 %v61
  %2552 = vmatprep.subr.mxu0 %v66
  %2553 = vmatpush1.msra.mxu0 %v65
  %2554 = vmatprep.subr.mxu0 %v70
  %2555 = vmatpush1.msra.mxu0 %v69
  %2556 = vmatprep.subr.mxu0 %v74
  %2557 = vmatpush1.msra.mxu0 %v73
  %2558 = vmatprep.subr.mxu0 %v78
  %2559 = vmatpush1.msra.mxu0 %v77
  %2560 = vmatprep.subr.mxu0 %v82
  %2561 = vmatpush1.msra.mxu0 %v81
  %2562 = vmatprep.subr.mxu0 %v86
  %2563 = vmatpush1.msra.mxu0 %v85
  %2564 = vmatprep.subr.mxu0 %v90
  %2565 = vmatpush1.msra.mxu0 %v89
  %2566 = vmatprep.subr.mxu0 %v94
  %2567 = vmatpush1.msra.mxu0 %v93
  %2568 = vmatprep.subr.mxu0 %v98
  %2569 = vmatpush1.msra.mxu0 %v97
  %2570 = vmatprep.subr.mxu0 %v102
  %2571 = vmatpush1.msra.mxu0 %v101
  %2572 = vmatprep.subr.mxu0 %v106
  %2573 = vmatpush1.msra.mxu0 %v105
  %2574 = vmatprep.subr.mxu0 %v110
  %2575 = vmatpush1.msra.mxu0 %v109
  %2576 = vmatprep.subr.mxu0 %v114
  %2577 = vmatpush1.msra.mxu0 %v113
  %2578 = vmatprep.subr.mxu0 %v118
  %2579 = vmatpush1.msra.mxu0 %v117
  %2580 = vmatprep.subr.mxu0 %v122
  %2581 = vmatpush1.msra.mxu0 %v121
  %2582 = vmatprep.subr.mxu0 0.0
  %2583 = vmatpush1.msra.mxu0 0.0
  %2584 = vmatprep.subr.mxu0 0.0
  %2585 = vmatpush1.msra.mxu0 0.0
  %2586 = vmatprep.subr.mxu0 0.0
  %2587 = vmatpush1.msra.mxu0 0.0
  %2588 = vmatprep.subr.mxu0 0.0
  %2589 = vmatpush1.msra.mxu0 0.0
  %2590 = vmatprep.subr.mxu0 0.0
  %2591 = vmatpush1.msra.mxu0 0.0
  %2592 = vmatprep.subr.mxu0 0.0
  %2593 = vmatpush1.msra.mxu0 0.0
  %2594 = vmatprep.subr.mxu0 0.0
  %2595 = vmatpush1.msra.mxu0 0.0
  %2596 = vmatprep.subr.mxu0 0.0
  %2597 = vmatpush1.msra.mxu0 0.0
  %2598 = vmatprep.subr.mxu0 0.0
  %2599 = vmatpush1.msra.mxu0 0.0
  %2600 = vmatprep.subr.mxu0 0.0
  %2601 = vmatpush1.msra.mxu0 0.0
  %2602 = vmatprep.subr.mxu0 0.0
  %2603 = vmatpush1.msra.mxu0 0.0
  %2604 = vmatprep.subr.mxu0 0.0
  %2605 = vmatpush1.msra.mxu0 0.0
  %2606 = vmatprep.subr.mxu0 0.0
  %2607 = vmatpush1.msra.mxu0 0.0
  %2608 = vmatprep.subr.mxu0 0.0
  %2609 = vmatpush1.msra.mxu0 0.0
  %2610 = vmatprep.subr.mxu0 0.0
  %2611 = vmatpush1.msra.mxu0 0.0
  %2612 = vmatprep.subr.mxu0 0.0
  %2613 = vmatpush1.msra.mxu0 0.0
  %2614 = vmatprep.mubr.f32.mxu0 0.0
  %2615 = vmatmul.mubr.f32.gmra.mrb[0].mxu0 %v2458
  %v2616 = vpop.f32.mrb[0].mxu0
  %v2617 = vadd.f32 0.0, %v2616
  %v2618 = vpop.f32.mrb[0].mxu0
  %v2619 = vadd.f32 0.0, %v2618
  %2620 = vdwg.mxu0
  %v2621 = vadd.f32 %v2475, %v2546
  %v2622 = vadd.f32 %v2476, %v2548
  %v2623 = vadd.f32 %v2477, %v2617
  %v2624 = vadd.f32 %v2478, %v2619
  %s2625 = scalar_lea.vmem %s44, 32
  %v2626 = vld [vmem:[%s2625] sm:$0xff]
  %v2627 = vld [vmem:[%s2625 + $0x8] sm:$0xff]
  %v2628 = vld [vmem:[%s2625 + $0x10] sm:$0xff]
  %v2629 = vld [vmem:[%s2625 + $0x18] sm:$0xff]
  %2630 = vmatprep.subr.mxu0 %v124
  %2631 = vmatpush1.msra.mxu0 %v123
  %2632 = vmatprep.subr.mxu0 %v128
  %2633 = vmatpush1.msra.mxu0 %v127
  %2634 = vmatprep.subr.mxu0 %v132
  %2635 = vmatpush1.msra.mxu0 %v131
  %2636 = vmatprep.subr.mxu0 %v136
  %2637 = vmatpush1.msra.mxu0 %v135
  %2638 = vmatprep.subr.mxu0 %v140
  %2639 = vmatpush1.msra.mxu0 %v139
  %2640 = vmatprep.subr.mxu0 %v144
  %2641 = vmatpush1.msra.mxu0 %v143
  %2642 = vmatprep.subr.mxu0 %v148
  %2643 = vmatpush1.msra.mxu0 %v147
  %2644 = vmatprep.subr.mxu0 %v152
  %2645 = vmatpush1.msra.mxu0 %v151
  %2646 = vmatprep.subr.mxu0 %v156
  %2647 = vmatpush1.msra.mxu0 %v155
  %2648 = vmatprep.subr.mxu0 %v160
  %2649 = vmatpush1.msra.mxu0 %v159
  %2650 = vmatprep.subr.mxu0 %v164
  %2651 = vmatpush1.msra.mxu0 %v163
  %2652 = vmatprep.subr.mxu0 %v168
  %2653 = vmatpush1.msra.mxu0 %v167
  %2654 = vmatprep.subr.mxu0 %v172
  %2655 = vmatpush1.msra.mxu0 %v171
  %2656 = vmatprep.subr.mxu0 %v176
  %2657 = vmatpush1.msra.mxu0 %v175
  %2658 = vmatprep.subr.mxu0 %v180
  %2659 = vmatpush1.msra.mxu0 %v179
  %2660 = vmatprep.subr.mxu0 %v184
  %2661 = vmatpush1.msra.mxu0 %v183
  %2662 = vmatprep.subr.mxu0 0.0
  %2663 = vmatpush1.msra.mxu0 0.0
  %2664 = vmatprep.subr.mxu0 0.0
  %2665 = vmatpush1.msra.mxu0 0.0
  %2666 = vmatprep.subr.mxu0 0.0
  %2667 = vmatpush1.msra.mxu0 0.0
  %2668 = vmatprep.subr.mxu0 0.0
  %2669 = vmatpush1.msra.mxu0 0.0
  %2670 = vmatprep.subr.mxu0 0.0
  %2671 = vmatpush1.msra.mxu0 0.0
  %2672 = vmatprep.subr.mxu0 0.0
  %2673 = vmatpush1.msra.mxu0 0.0
  %2674 = vmatprep.subr.mxu0 0.0
  %2675 = vmatpush1.msra.mxu0 0.0
  %2676 = vmatprep.subr.mxu0 0.0
  %2677 = vmatpush1.msra.mxu0 0.0
  %2678 = vmatprep.subr.mxu0 0.0
  %2679 = vmatpush1.msra.mxu0 0.0
  %2680 = vmatprep.subr.mxu0 0.0
  %2681 = vmatpush1.msra.mxu0 0.0
  %2682 = vmatprep.subr.mxu0 0.0
  %2683 = vmatpush1.msra.mxu0 0.0
  %2684 = vmatprep.subr.mxu0 0.0
  %2685 = vmatpush1.msra.mxu0 0.0
  %2686 = vmatprep.subr.mxu0 0.0
  %2687 = vmatpush1.msra.mxu0 0.0
  %2688 = vmatprep.subr.mxu0 0.0
  %2689 = vmatpush1.msra.mxu0 0.0
  %2690 = vmatprep.subr.mxu0 0.0
  %2691 = vmatpush1.msra.mxu0 0.0
  %2692 = vmatprep.subr.mxu0 0.0
  %2693 = vmatpush1.msra.mxu0 0.0
  %2694 = vmatprep.mubr.f32.mxu0 0.0
  %2695 = vmatmul.mubr.f32.gmra.mrb[0].mxu0 %v2460
  %v2696 = vpop.f32.mrb[0].mxu0
  %v2697 = vadd.f32 0.0, %v2696
  %v2698 = vpop.f32.mrb[0].mxu0
  %v2699 = vadd.f32 0.0, %v2698
  %2700 = vdwg.mxu0
  %2701 = vmatprep.subr.mxu0 %v126
  %2702 = vmatpush1.msra.mxu0 %v125
  %2703 = vmatprep.subr.mxu0 %v130
  %2704 = vmatpush1.msra.mxu0 %v129
  %2705 = vmatprep.subr.mxu0 %v134
  %2706 = vmatpush1.msra.mxu0 %v133
  %2707 = vmatprep.subr.mxu0 %v138
  %2708 = vmatpush1.msra.mxu0 %v137
  %2709 = vmatprep.subr.mxu0 %v142
  %2710 = vmatpush1.msra.mxu0 %v141
  %2711 = vmatprep.subr.mxu0 %v146
  %2712 = vmatpush1.msra.mxu0 %v145
  %2713 = vmatprep.subr.mxu0 %v150
  %2714 = vmatpush1.msra.mxu0 %v149
  %2715 = vmatprep.subr.mxu0 %v154
  %2716 = vmatpush1.msra.mxu0 %v153
  %2717 = vmatprep.subr.mxu0 %v158
  %2718 = vmatpush1.msra.mxu0 %v157
  %2719 = vmatprep.subr.mxu0 %v162
  %2720 = vmatpush1.msra.mxu0 %v161
  %2721 = vmatprep.subr.mxu0 %v166
  %2722 = vmatpush1.msra.mxu0 %v165
  %2723 = vmatprep.subr.mxu0 %v170
  %2724 = vmatpush1.msra.mxu0 %v169
  %2725 = vmatprep.subr.mxu0 %v174
  %2726 = vmatpush1.msra.mxu0 %v173
  %2727 = vmatprep.subr.mxu0 %v178
  %2728 = vmatpush1.msra.mxu0 %v177
  %2729 = vmatprep.subr.mxu0 %v182
  %2730 = vmatpush1.msra.mxu0 %v181
  %2731 = vmatprep.subr.mxu0 %v186
  %2732 = vmatpush1.msra.mxu0 %v185
  %2733 = vmatprep.subr.mxu0 0.0
  %2734 = vmatpush1.msra.mxu0 0.0
  %2735 = vmatprep.subr.mxu0 0.0
  %2736 = vmatpush1.msra.mxu0 0.0
  %2737 = vmatprep.subr.mxu0 0.0
  %2738 = vmatpush1.msra.mxu0 0.0
  %2739 = vmatprep.subr.mxu0 0.0
  %2740 = vmatpush1.msra.mxu0 0.0
  %2741 = vmatprep.subr.mxu0 0.0
  %2742 = vmatpush1.msra.mxu0 0.0
  %2743 = vmatprep.subr.mxu0 0.0
  %2744 = vmatpush1.msra.mxu0 0.0
  %2745 = vmatprep.subr.mxu0 0.0
  %2746 = vmatpush1.msra.mxu0 0.0
  %2747 = vmatprep.subr.mxu0 0.0
  %2748 = vmatpush1.msra.mxu0 0.0
  %2749 = vmatprep.subr.mxu0 0.0
  %2750 = vmatpush1.msra.mxu0 0.0
  %2751 = vmatprep.subr.mxu0 0.0
  %2752 = vmatpush1.msra.mxu0 0.0
  %2753 = vmatprep.subr.mxu0 0.0
  %2754 = vmatpush1.msra.mxu0 0.0
  %2755 = vmatprep.subr.mxu0 0.0
  %2756 = vmatpush1.msra.mxu0 0.0
  %2757 = vmatprep.subr.mxu0 0.0
  %2758 = vmatpush1.msra.mxu0 0.0
  %2759 = vmatprep.subr.mxu0 0.0
  %2760 = vmatpush1.msra.mxu0 0.0
  %2761 = vmatprep.subr.mxu0 0.0
  %2762 = vmatpush1.msra.mxu0 0.0
  %2763 = vmatprep.subr.mxu0 0.0
  %2764 = vmatpush1.msra.mxu0 0.0
  %2765 = vmatprep.mubr.f32.mxu0 0.0
  %2766 = vmatmul.mubr.f32.gmra.mrb[0].mxu0 %v2460
  %v2767 = vpop.f32.mrb[0].mxu0
  %v2768 = vadd.f32 0.0, %v2767
  %v2769 = vpop.f32.mrb[0].mxu0
  %v2770 = vadd.f32 0.0, %v2769
  %2771 = vdwg.mxu0
  %v2772 = vadd.f32 %v2626, %v2697
  %v2773 = vadd.f32 %v2627, %v2699
  %v2774 = vadd.f32 %v2628, %v2768
  %v2775 = vadd.f32 %v2629, %v2770
  %v2776 = vxor.u32 %v2621, 2147483648
  %v2777 = vmul.f32 %v2776, 1.442695
  %v2778 = vpow.pop %v2777
  %v2779 = vadd.f32 %v2778, 1.0
  %v2780 = vrcp.pop %v2779
  %v2781 = vmul.f32 1.0, %v2780
  %v2782 = vxor.u32 %v2622, 2147483648
  %v2783 = vmul.f32 %v2782, 1.442695
  %v2784 = vpow.pop %v2783
  %v2785 = vadd.f32 %v2784, 1.0
  %v2786 = vrcp.pop %v2785
  %v2787 = vmul.f32 1.0, %v2786
  %v2788 = vtanh.pop %v2623
  %v2789 = vxor.u32 %v2624, 2147483648
  %v2790 = vmul.f32 %v2789, 1.442695
  %v2791 = vpow.pop %v2790
  %v2792 = vadd.f32 %v2791, 1.0
  %v2793 = vrcp.pop %v2792
  %v2794 = vmul.f32 1.0, %v2793
  %v2795 = vmul.f32 %v2787, %v2459
  %v2796 = vmul.f32 %v2781, %v2788
  %v2797 = vadd.f32 %v2795, %v2796
  %v2798 = vtanh.pop %v2797
  %v2799 = vmul.f32 %v2794, %v2798
  %v2800 = vxor.u32 %v2772, 2147483648
  %v2801 = vmul.f32 %v2800, 1.442695
  %v2802 = vpow.pop %v2801
  %v2803 = vadd.f32 %v2802, 1.0
  %v2804 = vrcp.pop %v2803
  %v2805 = vmul.f32 1.0, %v2804
  %v2806 = vxor.u32 %v2773, 2147483648
  %v2807 = vmul.f32 %v2806, 1.442695
  %v2808 = vpow.pop %v2807
  %v2809 = vadd.f32 %v2808, 1.0
  %v2810 = vrcp.pop %v2809
  %v2811 = vmul.f32 1.0, %v2810
  %v2812 = vtanh.pop %v2774
  %v2813 = vxor.u32 %v2775, 2147483648
  %v2814 = vmul.f32 %v2813, 1.442695
  %v2815 = vpow.pop %v2814
  %v2816 = vadd.f32 %v2815, 1.0
  %v2817 = vrcp.pop %v2816
  %v2818 = vmul.f32 1.0, %v2817
  %v2819 = vmul.f32 %v2811, %v2461
  %v2820 = vmul.f32 %v2805, %v2812
  %v2821 = vadd.f32 %v2819, %v2820
  %v2822 = vtanh.pop %v2821
  %v2823 = vmul.f32 %v2818, %v2822
  %v2824 = vstv %s2472
  %vm2825 = vcmp.lt.s32.totalorder %v2824, %v58
  %v2826 = vsel %vm2825, 1, 0
  %2827 = vset.pattern.permute.xlu0 0
  %2828 = vperm.xlu0 %2827, %v2826
  %v2829 = vpop.permute.xlu0 %2828
  %vm2830 = vcmp.eq.s32.totalorder %v2829, 1
  %v2831 = vstv %s2473
  %vm2832 = vcmp.lt.s32.totalorder %v2831, %v58
  %v2833 = vsel %vm2832, 1, 0
  %2834 = vset.pattern.permute.xlu0 0
  %2835 = vperm.xlu0 %2834, %v2833
  %v2836 = vpop.permute.xlu0 %2835
  %vm2837 = vcmp.eq.s32.totalorder %v2836, 1
  %v2838 = vsel %vm2830, %v2799, %v2458
  %v2839 = vsel %vm2830, %v2797, %v2459
  %v2840 = vsel %vm2837, %v2823, %v2460
  %v2841 = vsel %vm2837, %v2821, %v2461
  %p2842 = scmp.lt.s32.totalorder %s2472, %s57
  %s2843 = scalar_select %p2842, 0.0, -inf
  %p2844 = scmp.lt.s32.totalorder %s2473, %s57
  %s2845 = scalar_select %p2844, 0.0, -inf
  %v2846 = vstv %s2843
  %v2847 = vsel %vm2830, %v2799, %v2846
  %v2848 = vmax.f32 %v2468, %v2847
  %v2849 = vstv %s2845
  %v2850 = vsel %vm2837, %v2823, %v2849
  %v2851 = vmax.f32 %v2471, %v2850
  %s2852 = sadd.s32 %s193, 7
  %s2853 = ssub.s32 0, %s193
  %s2854 = scalar_lea.vmem %s1, 224
  %v2855 = vld [vmem:[%s2854] sm:$0xff]
  %v2856 = vld [vmem:[%s2854 + $0x8] sm:$0xff]
  %v2857 = vld [vmem:[%s2854 + $0x10] sm:$0xff]
  %v2858 = vld [vmem:[%s2854 + $0x18] sm:$0xff]
  %2859 = vmatprep.subr.mxu0 %v60
  %2860 = vmatpush1.msra.mxu0 %v59
  %2861 = vmatprep.subr.mxu0 %v64
  %2862 = vmatpush1.msra.mxu0 %v63
  %2863 = vmatprep.subr.mxu0 %v68
  %2864 = vmatpush1.msra.mxu0 %v67
  %2865 = vmatprep.subr.mxu0 %v72
  %2866 = vmatpush1.msra.mxu0 %v71
  %2867 = vmatprep.subr.mxu0 %v76
  %2868 = vmatpush1.msra.mxu0 %v75
  %2869 = vmatprep.subr.mxu0 %v80
  %2870 = vmatpush1.msra.mxu0 %v79
  %2871 = vmatprep.subr.mxu0 %v84
  %2872 = vmatpush1.msra.mxu0 %v83
  %2873 = vmatprep.subr.mxu0 %v88
  %2874 = vmatpush1.msra.mxu0 %v87
  %2875 = vmatprep.subr.mxu0 %v92
  %2876 = vmatpush1.msra.mxu0 %v91
  %2877 = vmatprep.subr.mxu0 %v96
  %2878 = vmatpush1.msra.mxu0 %v95
  %2879 = vmatprep.subr.mxu0 %v100
  %2880 = vmatpush1.msra.mxu0 %v99
  %2881 = vmatprep.subr.mxu0 %v104
  %2882 = vmatpush1.msra.mxu0 %v103
  %2883 = vmatprep.subr.mxu0 %v108
  %2884 = vmatpush1.msra.mxu0 %v107
  %2885 = vmatprep.subr.mxu0 %v112
  %2886 = vmatpush1.msra.mxu0 %v111
  %2887 = vmatprep.subr.mxu0 %v116
  %2888 = vmatpush1.msra.mxu0 %v115
  %2889 = vmatprep.subr.mxu0 %v120
  %2890 = vmatpush1.msra.mxu0 %v119
  %2891 = vmatprep.subr.mxu0 0.0
  %2892 = vmatpush1.msra.mxu0 0.0
  %2893 = vmatprep.subr.mxu0 0.0
  %2894 = vmatpush1.msra.mxu0 0.0
  %2895 = vmatprep.subr.mxu0 0.0
  %2896 = vmatpush1.msra.mxu0 0.0
  %2897 = vmatprep.subr.mxu0 0.0
  %2898 = vmatpush1.msra.mxu0 0.0
  %2899 = vmatprep.subr.mxu0 0.0
  %2900 = vmatpush1.msra.mxu0 0.0
  %2901 = vmatprep.subr.mxu0 0.0
  %2902 = vmatpush1.msra.mxu0 0.0
  %2903 = vmatprep.subr.mxu0 0.0
  %2904 = vmatpush1.msra.mxu0 0.0
  %2905 = vmatprep.subr.mxu0 0.0
  %2906 = vmatpush1.msra.mxu0 0.0
  %2907 = vmatprep.subr.mxu0 0.0
  %2908 = vmatpush1.msra.mxu0 0.0
  %2909 = vmatprep.subr.mxu0 0.0
  %2910 = vmatpush1.msra.mxu0 0.0
  %2911 = vmatprep.subr.mxu0 0.0
  %2912 = vmatpush1.msra.mxu0 0.0
  %2913 = vmatprep.subr.mxu0 0.0
  %2914 = vmatpush1.msra.mxu0 0.0
  %2915 = vmatprep.subr.mxu0 0.0
  %2916 = vmatpush1.msra.mxu0 0.0
  %2917 = vmatprep.subr.mxu0 0.0
  %2918 = vmatpush1.msra.mxu0 0.0
  %2919 = vmatprep.subr.mxu0 0.0
  %2920 = vmatpush1.msra.mxu0 0.0
  %2921 = vmatprep.subr.mxu0 0.0
  %2922 = vmatpush1.msra.mxu0 0.0
  %2923 = vmatprep.mubr.f32.mxu0 0.0
  %2924 = vmatmul.mubr.f32.gmra.mrb[0].mxu0 %v2838
  %v2925 = vpop.f32.mrb[0].mxu0
  %v2926 = vadd.f32 0.0, %v2925
  %v2927 = vpop.f32.mrb[0].mxu0
  %v2928 = vadd.f32 0.0, %v2927
  %2929 = vdwg.mxu0
  %2930 = vmatprep.subr.mxu0 %v62
  %2931 = vmatpush1.msra.mxu0 %v61
  %2932 = vmatprep.subr.mxu0 %v66
  %2933 = vmatpush1.msra.mxu0 %v65
  %2934 = vmatprep.subr.mxu0 %v70
  %2935 = vmatpush1.msra.mxu0 %v69
  %2936 = vmatprep.subr.mxu0 %v74
  %2937 = vmatpush1.msra.mxu0 %v73
  %2938 = vmatprep.subr.mxu0 %v78
  %2939 = vmatpush1.msra.mxu0 %v77
  %2940 = vmatprep.subr.mxu0 %v82
  %2941 = vmatpush1.msra.mxu0 %v81
  %2942 = vmatprep.subr.mxu0 %v86
  %2943 = vmatpush1.msra.mxu0 %v85
  %2944 = vmatprep.subr.mxu0 %v90
  %2945 = vmatpush1.msra.mxu0 %v89
  %2946 = vmatprep.subr.mxu0 %v94
  %2947 = vmatpush1.msra.mxu0 %v93
  %2948 = vmatprep.subr.mxu0 %v98
  %2949 = vmatpush1.msra.mxu0 %v97
  %2950 = vmatprep.subr.mxu0 %v102
  %2951 = vmatpush1.msra.mxu0 %v101
  %2952 = vmatprep.subr.mxu0 %v106
  %2953 = vmatpush1.msra.mxu0 %v105
  %2954 = vmatprep.subr.mxu0 %v110
  %2955 = vmatpush1.msra.mxu0 %v109
  %2956 = vmatprep.subr.mxu0 %v114
  %2957 = vmatpush1.msra.mxu0 %v113
  %2958 = vmatprep.subr.mxu0 %v118
  %2959 = vmatpush1.msra.mxu0 %v117
  %2960 = vmatprep.subr.mxu0 %v122
  %2961 = vmatpush1.msra.mxu0 %v121
  %2962 = vmatprep.subr.mxu0 0.0
  %2963 = vmatpush1.msra.mxu0 0.0
  %2964 = vmatprep.subr.mxu0 0.0
  %2965 = vmatpush1.msra.mxu0 0.0
  %2966 = vmatprep.subr.mxu0 0.0
  %2967 = vmatpush1.msra.mxu0 0.0
  %2968 = vmatprep.subr.mxu0 0.0
  %2969 = vmatpush1.msra.mxu0 0.0
  %2970 = vmatprep.subr.mxu0 0.0
  %2971 = vmatpush1.msra.mxu0 0.0
  %2972 = vmatprep.subr.mxu0 0.0
  %2973 = vmatpush1.msra.mxu0 0.0
  %2974 = vmatprep.subr.mxu0 0.0
  %2975 = vmatpush1.msra.mxu0 0.0
  %2976 = vmatprep.subr.mxu0 0.0
  %2977 = vmatpush1.msra.mxu0 0.0
  %2978 = vmatprep.subr.mxu0 0.0
  %2979 = vmatpush1.msra.mxu0 0.0
  %2980 = vmatprep.subr.mxu0 0.0
  %2981 = vmatpush1.msra.mxu0 0.0
  %2982 = vmatprep.subr.mxu0 0.0
  %2983 = vmatpush1.msra.mxu0 0.0
  %2984 = vmatprep.subr.mxu0 0.0
  %2985 = vmatpush1.msra.mxu0 0.0
  %2986 = vmatprep.subr.mxu0 0.0
  %2987 = vmatpush1.msra.mxu0 0.0
  %2988 = vmatprep.subr.mxu0 0.0
  %2989 = vmatpush1.msra.mxu0 0.0
  %2990 = vmatprep.subr.mxu0 0.0
  %2991 = vmatpush1.msra.mxu0 0.0
  %2992 = vmatprep.subr.mxu0 0.0
  %2993 = vmatpush1.msra.mxu0 0.0
  %2994 = vmatprep.mubr.f32.mxu0 0.0
  %2995 = vmatmul.mubr.f32.gmra.mrb[0].mxu0 %v2838
  %v2996 = vpop.f32.mrb[0].mxu0
  %v2997 = vadd.f32 0.0, %v2996
  %v2998 = vpop.f32.mrb[0].mxu0
  %v2999 = vadd.f32 0.0, %v2998
  %3000 = vdwg.mxu0
  %v3001 = vadd.f32 %v2855, %v2926
  %v3002 = vadd.f32 %v2856, %v2928
  %v3003 = vadd.f32 %v2857, %v2997
  %v3004 = vadd.f32 %v2858, %v2999
  %v3005 = vld [vmem:[%s44] sm:$0xff]
  %v3006 = vld [vmem:[%s44 + $0x8] sm:$0xff]
  %v3007 = vld [vmem:[%s44 + $0x10] sm:$0xff]
  %v3008 = vld [vmem:[%s44 + $0x18] sm:$0xff]
  %3009 = vmatprep.subr.mxu0 %v124
  %3010 = vmatpush1.msra.mxu0 %v123
  %3011 = vmatprep.subr.mxu0 %v128
  %3012 = vmatpush1.msra.mxu0 %v127
  %3013 = vmatprep.subr.mxu0 %v132
  %3014 = vmatpush1.msra.mxu0 %v131
  %3015 = vmatprep.subr.mxu0 %v136
  %3016 = vmatpush1.msra.mxu0 %v135
  %3017 = vmatprep.subr.mxu0 %v140
  %3018 = vmatpush1.msra.mxu0 %v139
  %3019 = vmatprep.subr.mxu0 %v144
  %3020 = vmatpush1.msra.mxu0 %v143
  %3021 = vmatprep.subr.mxu0 %v148
  %3022 = vmatpush1.msra.mxu0 %v147
  %3023 = vmatprep.subr.mxu0 %v152
  %3024 = vmatpush1.msra.mxu0 %v151
  %3025 = vmatprep.subr.mxu0 %v156
  %3026 = vmatpush1.msra.mxu0 %v155
  %3027 = vmatprep.subr.mxu0 %v160
  %3028 = vmatpush1.msra.mxu0 %v159
  %3029 = vmatprep.subr.mxu0 %v164
  %3030 = vmatpush1.msra.mxu0 %v163
  %3031 = vmatprep.subr.mxu0 %v168
  %3032 = vmatpush1.msra.mxu0 %v167
  %3033 = vmatprep.subr.mxu0 %v172
  %3034 = vmatpush1.msra.mxu0 %v171
  %3035 = vmatprep.subr.mxu0 %v176
  %3036 = vmatpush1.msra.mxu0 %v175
  %3037 = vmatprep.subr.mxu0 %v180
  %3038 = vmatpush1.msra.mxu0 %v179
  %3039 = vmatprep.subr.mxu0 %v184
  %3040 = vmatpush1.msra.mxu0 %v183
  %3041 = vmatprep.subr.mxu0 0.0
  %3042 = vmatpush1.msra.mxu0 0.0
  %3043 = vmatprep.subr.mxu0 0.0
  %3044 = vmatpush1.msra.mxu0 0.0
  %3045 = vmatprep.subr.mxu0 0.0
  %3046 = vmatpush1.msra.mxu0 0.0
  %3047 = vmatprep.subr.mxu0 0.0
  %3048 = vmatpush1.msra.mxu0 0.0
  %3049 = vmatprep.subr.mxu0 0.0
  %3050 = vmatpush1.msra.mxu0 0.0
  %3051 = vmatprep.subr.mxu0 0.0
  %3052 = vmatpush1.msra.mxu0 0.0
  %3053 = vmatprep.subr.mxu0 0.0
  %3054 = vmatpush1.msra.mxu0 0.0
  %3055 = vmatprep.subr.mxu0 0.0
  %3056 = vmatpush1.msra.mxu0 0.0
  %3057 = vmatprep.subr.mxu0 0.0
  %3058 = vmatpush1.msra.mxu0 0.0
  %3059 = vmatprep.subr.mxu0 0.0
  %3060 = vmatpush1.msra.mxu0 0.0
  %3061 = vmatprep.subr.mxu0 0.0
  %3062 = vmatpush1.msra.mxu0 0.0
  %3063 = vmatprep.subr.mxu0 0.0
  %3064 = vmatpush1.msra.mxu0 0.0
  %3065 = vmatprep.subr.mxu0 0.0
  %3066 = vmatpush1.msra.mxu0 0.0
  %3067 = vmatprep.subr.mxu0 0.0
  %3068 = vmatpush1.msra.mxu0 0.0
  %3069 = vmatprep.subr.mxu0 0.0
  %3070 = vmatpush1.msra.mxu0 0.0
  %3071 = vmatprep.subr.mxu0 0.0
  %3072 = vmatpush1.msra.mxu0 0.0
  %3073 = vmatprep.mubr.f32.mxu0 0.0
  %3074 = vmatmul.mubr.f32.gmra.mrb[0].mxu0 %v2840
  %v3075 = vpop.f32.mrb[0].mxu0
  %v3076 = vadd.f32 0.0, %v3075
  %v3077 = vpop.f32.mrb[0].mxu0
  %v3078 = vadd.f32 0.0, %v3077
  %3079 = vdwg.mxu0
  %3080 = vmatprep.subr.mxu0 %v126
  %3081 = vmatpush1.msra.mxu0 %v125
  %3082 = vmatprep.subr.mxu0 %v130
  %3083 = vmatpush1.msra.mxu0 %v129
  %3084 = vmatprep.subr.mxu0 %v134
  %3085 = vmatpush1.msra.mxu0 %v133
  %3086 = vmatprep.subr.mxu0 %v138
  %3087 = vmatpush1.msra.mxu0 %v137
  %3088 = vmatprep.subr.mxu0 %v142
  %3089 = vmatpush1.msra.mxu0 %v141
  %3090 = vmatprep.subr.mxu0 %v146
  %3091 = vmatpush1.msra.mxu0 %v145
  %3092 = vmatprep.subr.mxu0 %v150
  %3093 = vmatpush1.msra.mxu0 %v149
  %3094 = vmatprep.subr.mxu0 %v154
  %3095 = vmatpush1.msra.mxu0 %v153
  %3096 = vmatprep.subr.mxu0 %v158
  %3097 = vmatpush1.msra.mxu0 %v157
  %3098 = vmatprep.subr.mxu0 %v162
  %3099 = vmatpush1.msra.mxu0 %v161
  %3100 = vmatprep.subr.mxu0 %v166
  %3101 = vmatpush1.msra.mxu0 %v165
  %3102 = vmatprep.subr.mxu0 %v170
  %3103 = vmatpush1.msra.mxu0 %v169
  %3104 = vmatprep.subr.mxu0 %v174
  %3105 = vmatpush1.msra.mxu0 %v173
  %3106 = vmatprep.subr.mxu0 %v178
  %3107 = vmatpush1.msra.mxu0 %v177
  %3108 = vmatprep.subr.mxu0 %v182
  %3109 = vmatpush1.msra.mxu0 %v181
  %3110 = vmatprep.subr.mxu0 %v186
  %3111 = vmatpush1.msra.mxu0 %v185
  %3112 = vmatprep.subr.mxu0 0.0
  %3113 = vmatpush1.msra.mxu0 0.0
  %3114 = vmatprep.subr.mxu0 0.0
  %3115 = vmatpush1.msra.mxu0 0.0
  %3116 = vmatprep.subr.mxu0 0.0
  %3117 = vmatpush1.msra.mxu0 0.0
  %3118 = vmatprep.subr.mxu0 0.0
  %3119 = vmatpush1.msra.mxu0 0.0
  %3120 = vmatprep.subr.mxu0 0.0
  %3121 = vmatpush1.msra.mxu0 0.0
  %3122 = vmatprep.subr.mxu0 0.0
  %3123 = vmatpush1.msra.mxu0 0.0
  %3124 = vmatprep.subr.mxu0 0.0
  %3125 = vmatpush1.msra.mxu0 0.0
  %3126 = vmatprep.subr.mxu0 0.0
  %3127 = vmatpush1.msra.mxu0 0.0
  %3128 = vmatprep.subr.mxu0 0.0
  %3129 = vmatpush1.msra.mxu0 0.0
  %3130 = vmatprep.subr.mxu0 0.0
  %3131 = vmatpush1.msra.mxu0 0.0
  %3132 = vmatprep.subr.mxu0 0.0
  %3133 = vmatpush1.msra.mxu0 0.0
  %3134 = vmatprep.subr.mxu0 0.0
  %3135 = vmatpush1.msra.mxu0 0.0
  %3136 = vmatprep.subr.mxu0 0.0
  %3137 = vmatpush1.msra.mxu0 0.0
  %3138 = vmatprep.subr.mxu0 0.0
  %3139 = vmatpush1.msra.mxu0 0.0
  %3140 = vmatprep.subr.mxu0 0.0
  %3141 = vmatpush1.msra.mxu0 0.0
  %3142 = vmatprep.subr.mxu0 0.0
  %3143 = vmatpush1.msra.mxu0 0.0
  %3144 = vmatprep.mubr.f32.mxu0 0.0
  %3145 = vmatmul.mubr.f32.gmra.mrb[0].mxu0 %v2840
  %v3146 = vpop.f32.mrb[0].mxu0
  %v3147 = vadd.f32 0.0, %v3146
  %v3148 = vpop.f32.mrb[0].mxu0
  %v3149 = vadd.f32 0.0, %v3148
  %3150 = vdwg.mxu0
  %v3151 = vadd.f32 %v3005, %v3076
  %v3152 = vadd.f32 %v3006, %v3078
  %v3153 = vadd.f32 %v3007, %v3147
  %v3154 = vadd.f32 %v3008, %v3149
  %v3155 = vxor.u32 %v3001, 2147483648
  %v3156 = vmul.f32 %v3155, 1.442695
  %v3157 = vpow.pop %v3156
  %v3158 = vadd.f32 %v3157, 1.0
  %v3159 = vrcp.pop %v3158
  %v3160 = vmul.f32 1.0, %v3159
  %v3161 = vxor.u32 %v3002, 2147483648
  %v3162 = vmul.f32 %v3161, 1.442695
  %v3163 = vpow.pop %v3162
  %v3164 = vadd.f32 %v3163, 1.0
  %v3165 = vrcp.pop %v3164
  %v3166 = vmul.f32 1.0, %v3165
  %v3167 = vtanh.pop %v3003
  %v3168 = vxor.u32 %v3004, 2147483648
  %v3169 = vmul.f32 %v3168, 1.442695
  %v3170 = vpow.pop %v3169
  %v3171 = vadd.f32 %v3170, 1.0
  %v3172 = vrcp.pop %v3171
  %v3173 = vmul.f32 1.0, %v3172
  %v3174 = vmul.f32 %v3166, %v2839
  %v3175 = vmul.f32 %v3160, %v3167
  %v3176 = vadd.f32 %v3174, %v3175
  %v3177 = vtanh.pop %v3176
  %v3178 = vmul.f32 %v3173, %v3177
  %v3179 = vxor.u32 %v3151, 2147483648
  %v3180 = vmul.f32 %v3179, 1.442695
  %v3181 = vpow.pop %v3180
  %v3182 = vadd.f32 %v3181, 1.0
  %v3183 = vrcp.pop %v3182
  %v3184 = vmul.f32 1.0, %v3183
  %v3185 = vxor.u32 %v3152, 2147483648
  %v3186 = vmul.f32 %v3185, 1.442695
  %v3187 = vpow.pop %v3186
  %v3188 = vadd.f32 %v3187, 1.0
  %v3189 = vrcp.pop %v3188
  %v3190 = vmul.f32 1.0, %v3189
  %v3191 = vtanh.pop %v3153
  %v3192 = vxor.u32 %v3154, 2147483648
  %v3193 = vmul.f32 %v3192, 1.442695
  %v3194 = vpow.pop %v3193
  %v3195 = vadd.f32 %v3194, 1.0
  %v3196 = vrcp.pop %v3195
  %v3197 = vmul.f32 1.0, %v3196
  %v3198 = vmul.f32 %v3190, %v2841
  %v3199 = vmul.f32 %v3184, %v3191
  %v3200 = vadd.f32 %v3198, %v3199
  %v3201 = vtanh.pop %v3200
  %v3202 = vmul.f32 %v3197, %v3201
  %v3203 = vstv %s2852
  %vm3204 = vcmp.lt.s32.totalorder %v3203, %v58
  %v3205 = vsel %vm3204, 1, 0
  %3206 = vset.pattern.permute.xlu0 0
  %3207 = vperm.xlu0 %3206, %v3205
  %v3208 = vpop.permute.xlu0 %3207
  %vm3209 = vcmp.eq.s32.totalorder %v3208, 1
  %v3210 = vstv %s2853
  %vm3211 = vcmp.lt.s32.totalorder %v3210, %v58
  %v3212 = vsel %vm3211, 1, 0
  %3213 = vset.pattern.permute.xlu0 0
  %3214 = vperm.xlu0 %3213, %v3212
  %v3215 = vpop.permute.xlu0 %3214
  %vm3216 = vcmp.eq.s32.totalorder %v3215, 1
  %v3217 = vsel %vm3209, %v3178, %v2838
  %v3218 = vsel %vm3209, %v3176, %v2839
  %v3219 = vsel %vm3216, %v3202, %v2840
  %v3220 = vsel %vm3216, %v3200, %v2841
  %p3221 = scmp.lt.s32.totalorder %s2852, %s57
  %s3222 = scalar_select %p3221, 0.0, -inf
  %p3223 = scmp.lt.s32.totalorder %s2853, %s57
  %s3224 = scalar_select %p3223, 0.0, -inf
  %v3225 = vstv %s3222
  %v3226 = vsel %vm3209, %v3178, %v3225
  %v3227 = vmax.f32 %v2848, %v3226
  %v3228 = vstv %s3224
  %v3229 = vsel %vm3216, %v3202, %v3228
  %v3230 = vmax.f32 %v2851, %v3229
  %3231 = vst [vmem:[#allocation2] sm:$0xff] %v3217
  %3232 = vst [vmem:[#allocation3] sm:$0xff] %v3218
  %3233 = vst [vmem:[#allocation4] sm:$0xff] %v3219
  %3234 = vst [vmem:[#allocation5] sm:$0xff] %v3220
  %3235 = vst [vmem:[%s6] sm:$0xff] %v3227
  %3236 = vst [vmem:[%s6 + $0x8] sm:$0xff] %v3230
  // Predicated region
  $region26: #{bilstm_maxpool_encoder.3} parent=0 // pred_check
    _
  $region27: #{bilstm_maxpool_encoder.3} parent=0 // pred_check_branch
    %3238 = sbr.rel (0) target = $region29
  $region28: #{bilstm_maxpool_encoder.3} parent=0 // pred_region
    _
  $region29: #{bilstm_maxpool_encoder.3} parent=0 // pred_fallthru
    _
  // Predicated region
  $region30: #{bilstm_maxpool_encoder.3} parent=0 // pred_check
    _
  $region31: #{bilstm_maxpool_encoder.3} parent=0 // pred_check_branch
    %3240 = sbr.rel (0) target = $region33
  $region32: #{bilstm_maxpool_encoder.3} parent=0 // pred_region
    _
  $region33: #{bilstm_maxpool_encoder.3} parent=0 // pred_fallthru
    _

// kernel: bilstm_maxpool_encoder.2
$region0: #{bilstm_maxpool_encoder.2}
  #allocation0 [shape = 'u32[]', space=smem, size = 0x4, offset = 0x4, fixed_abs, tag = 'smem constant byte address 0x4 - core index']
  #allocation1 [shape = 'u32[144,128]{1,0:T(1,128)}', space=vmem, size = 0x12000, scoped, tag = 'internal scratch']
  #allocation2 [shape = 'f32[8,128]{1,0:T(8,128)}', space=vmem, size = 0x1000, scoped, tag = 'scratch operand']
  #allocation3 [shape = 'f32[8,128]{1,0:T(8,128)}', space=vmem, size = 0x1000, scoped, tag = 'scratch operand']
  #allocation4 [shape = 'f32[8,128]{1,0:T(8,128)}', space=vmem, size = 0x1000, scoped, tag = 'scratch operand']
  #allocation5 [shape = 'f32[8,128]{1,0:T(8,128)}', space=vmem, size = 0x1000, scoped, tag = 'scratch operand']
  #allocation6 [shape = 's32[1]{0}', space=sflag, size = 0x4, scoped, tag = 'scoped memory for bilstm_maxpool_encoder.2']
  #allocation7 [shape = 's32[1]{0:T(128)S(6)}', space=smem, size = 0x200, scoped, tag = 'prefetched SMEM operand 0']
  %s0 = inlined_call_operand.<no memory space> [shape: s32[1], index: 0, kind: input, shape index: {}]
  %s1 = inlined_call_operand.vmem [shape: f32[8,8,512], index: 1, kind: input, shape index: {}]
  %s2 = inlined_call_operand.vmem [shape: f32[8,8,512], index: 2, kind: input, shape index: {}]
  %s3 = inlined_call_operand.vmem [shape: s32[8,1], index: 3, kind: input, shape index: {}]
  %s4 = inlined_call_operand.vmem [shape: f32[128,512], index: 4, kind: input, shape index: {}]
  %s5 = inlined_call_operand.hbm [shape: f32[128,512], index: 5, kind: input, shape index: {}]
  %s6 = inlined_call_operand.vmem [shape: f32[8,8,128], index: 6, kind: output, shape index: {0}]
  %s7 = inlined_call_operand.vmem [shape: f32[8,8,128], index: 7, kind: output, shape index: {1}]
  %s8 = inlined_call_operand.hbm [shape: f32[8,256], index: 8, kind: output, shape index: {2}]
  %9 = xla_tuple %s6, %s7, %s8
  %s10 = sld [smem:[#allocation0]]
  $region54: #{bilstm_maxpool_encoder.2} parent=0
    _
  %s12 = ssub.s32 1, %s10
  %s13 = scalar_select 0, %s12, %s10
  %14 = sst [smem:[#allocation7]] %s0
  $region1: #{bilstm_maxpool_encoder.2} parent=0
    #allocation8 [shape = 'u8[262144]{0}', space=vmem, size = 0x40000, scoped, tag = 'input window, operand 5, single buffered']
    #allocation9 [shape = 's32[1]{0}', space=sflag, size = 0x4, scoped, tag = 'scoped memory for bilstm_maxpool_encoder.2']
    #allocation10 [shape = 's32[1]{0}', space=sflag, size = 0x4, scoped, tag = 'scoped memory for bilstm_maxpool_encoder.2']
    #allocation11 [shape = 'u8[8192]{0}', space=vmem, size = 0x2000, scoped, tag = 'output window, operand 2, single buffered']
    %15 = vsyncpa [#allocation9], 0
    %16 = vsyncpa [#allocation10], 0
    // Predicated region
    $region2: #{bilstm_maxpool_encoder.2} parent=1 // pred_check
      _
    $region3: #{bilstm_maxpool_encoder.2} parent=1 // pred_check_branch
      %18 = sbr.rel (0) target = $region5
    $region4: #{bilstm_maxpool_encoder.2} parent=1 // pred_region
      _
    $region5: #{bilstm_maxpool_encoder.2} parent=1 // pred_fallthru
      _
    // Predicated region
    $region6: #{bilstm_maxpool_encoder.2} parent=1 // pred_check
      _
    $region7: #{bilstm_maxpool_encoder.2} parent=1 // pred_check_branch
      %20 = sbr.rel (0) target = $region9
    $region8: #{bilstm_maxpool_encoder.2} parent=1 // pred_region
      %s21 = ssub.s32 0, 0
      %s22 = smul.u32 8, %s21
      %p23 = scmp.lt.s32.totalorder %s22, 7
      %s24 = scalar_select %p23, %s22, 7
      %s25 = smul.addr %s24, 4
      %s26 = smul.addr %s25, 8
      %s27 = scalar_lea.vmem %s2, %s26
      %s28 = ssub.s32 0, 0
      %s29 = smul.u32 8, %s28
    $region9: #{bilstm_maxpool_encoder.2} parent=1 // pred_fallthru
      _
    // Predicated region
    $region10: #{bilstm_maxpool_encoder.2} parent=1 // pred_check
      _
    $region11: #{bilstm_maxpool_encoder.2} parent=1 // pred_check_branch
      %31 = sbr.rel (0) target = $region13
    $region12: #{bilstm_maxpool_encoder.2} parent=1 // pred_region
      _
    $region13: #{bilstm_maxpool_encoder.2} parent=1 // pred_fallthru
      _
    // Predicated region
    $region14: #{bilstm_maxpool_encoder.2} parent=1 // pred_check
      _
    $region15: #{bilstm_maxpool_encoder.2} parent=1 // pred_check_branch
      %33 = sbr.rel (0) target = $region17
    $region16: #{bilstm_maxpool_encoder.2} parent=1 // pred_region
      _
    $region17: #{bilstm_maxpool_encoder.2} parent=1 // pred_fallthru
      _
    // Predicated region
    $region18: #{bilstm_maxpool_encoder.2} parent=1 // pred_check
      _
    $region19: #{bilstm_maxpool_encoder.2} parent=1 // pred_check_branch
      %35 = sbr.rel (0) target = $region21
    $region20: #{bilstm_maxpool_encoder.2} parent=1 // pred_region
      %s37 = ssub.s32 8192, 8192
      %38 = vsyncadd [#allocation9], %s37
      %s39 = sshll.u32 [#allocation8], 4
      %s40 = int_to_ptr.vmem [resolvable:$true] %s39
      %45 = dma.hbm_to_vmem [thread:$0]  %s5, 8192, %s40, [#allocation9], 512, 512, 32
    $region21: #{bilstm_maxpool_encoder.2} parent=1 // pred_fallthru
      _
    // Predicated region
    $region22: #{bilstm_maxpool_encoder.2} parent=1 // pred_check
      _
    $region23: #{bilstm_maxpool_encoder.2} parent=1 // pred_check_branch
      %47 = sbr.rel (0) target = $region25
    $region24: #{bilstm_maxpool_encoder.2} parent=1 // pred_region
      %48 = dma.done [#allocation9], 8192
    $region25: #{bilstm_maxpool_encoder.2} parent=1 // pred_fallthru
      _
    %s49 = ssub.s32 0, 0
    %s50 = smul.u32 8, %s49
    %p51 = scmp.lt.s32.totalorder %s50, 7
    %s52 = scalar_select %p51, %s50, 7
    %s53 = smul.addr %s52, 4
    %s54 = smul.addr %s53, 8
    %s55 = scalar_lea.vmem %s2, %s54
    %s56 = ssub.s32 0, 0
    %s57 = smul.u32 8, %s56
    %p58 = scmp.lt.s32.totalorder %s57, 7
    %s59 = scalar_select %p58, %s57, 7
    %s60 = smul.addr %s59, 8
    %s61 = scalar_lea.vmem %s7, %s60
    %s62 = ssub.s32 0, 0
    %s63 = smul.u32 8, %s62
    %p64 = scmp.lt.s32.totalorder %s63, 7
    %s65 = scalar_select %p64, %s63, 7
    %s66 = smul.addr %s65, 4
    %s67 = smul.addr %s66, 8
    %s68 = scalar_lea.vmem %s2, %s67
    %s69 = ssub.s32 0, 0
    %s70 = smul.u32 8, %s69
    %s71 = ssub.s32 0, 0
    %s72 = smul.u32 8, %s71
    %p73 = scmp.lt.s32.totalorder %s72, 7
    %s74 = scalar_select %p73, %s72, 7
    %s75 = smul.addr %s74, 8
    %s76 = scalar_lea.vmem %s7, %s75
    %s77 = ssub.s32 0, 0
    %s78 = smul.u32 8, %s77
    %p79 = scmp.eq.s32.totalorder 0, 0
    // Predicated region
    $region26: #{bilstm_maxpool_encoder.2} parent=1 // pred_check
      %p80 = pneg %p79
    $region27: #{bilstm_maxpool_encoder.2} parent=1 // pred_check_branch
      %82 = sbr.rel (%p80) target = $region29
    $region28: #{bilstm_maxpool_encoder.2} parent=1 // pred_region
      %83 = vst [vmem:[#allocation2] sm:$0xff] 0.0
      %84 = vst [vmem:[#allocation3] sm:$0xff] 0.0
      %85 = vst [vmem:[#allocation4] sm:$0xff] 0.0
      %86 = vst [vmem:[#allocation5] sm:$0xff] 0.0
      %87 = vst [vmem:[#allocation11] sm:$0xff] -inf
      %88 = vst [vmem:[#allocation11 + $0x8] sm:$0xff] -inf
    $region29: #{bilstm_maxpool_encoder.2} parent=1 // pred_fallthru
      _
    %s89 = sld [smem:[#allocation7]]
    %v90 = vld [vmem:[%s3] sm:$0xff]
    %v91 = vld [vmem:[%s4] sm:$0xff]
    %v92 = vld [vmem:[%s4 + $0x8] sm:$0xff]
    %v93 = vld [vmem:[%s4 + $0x10] sm:$0xff]
    %v94 = vld [vmem:[%s4 + $0x18] sm:$0xff]
    %v95 = vld [vmem:[%s4 + $0x20] sm:$0xff]
    %v96 = vld [vmem:[%s4 + $0x28] sm:$0xff]
    %v97 = vld [vmem:[%s4 + $0x30] sm:$0xff]
    %v98 = vld [vmem:[%s4 + $0x38] sm:$0xff]
    %v99 = vld [vmem:[%s4 + $0x40] sm:$0xff]
    %v100 = vld [vmem:[%s4 + $0x48] sm:$0xff]
    %v101 = vld [vmem:[%s4 + $0x50] sm:$0xff]
    %v102 = vld [vmem:[%s4 + $0x58] sm:$0xff]
    %v103 = vld [vmem:[%s4 + $0x60] sm:$0xff]
    %v104 = vld [vmem:[%s4 + $0x68] sm:$0xff]
    %v105 = vld [vmem:[%s4 + $0x70] sm:$0xff]
    %v106 = vld [vmem:[%s4 + $0x78] sm:$0xff]
    %v107 = vld [vmem:[%s4 + $0x80] sm:$0xff]
    %v108 = vld [vmem:[%s4 + $0x88] sm:$0xff]
    %v109 = vld [vmem:[%s4 + $0x90] sm:$0xff]
    %v110 = vld [vmem:[%s4 + $0x98] sm:$0xff]
    %v111 = vld [vmem:[%s4 + $0xa0] sm:$0xff]
    %v112 = vld [vmem:[%s4 + $0xa8] sm:$0xff]
    %v113 = vld [vmem:[%s4 + $0xb0] sm:$0xff]
    %v114 = vld [vmem:[%s4 + $0xb8] sm:$0xff]
    %v115 = vld [vmem:[%s4 + $0xc0] sm:$0xff]
    %v116 = vld [vmem:[%s4 + $0xc8] sm:$0xff]
    %v117 = vld [vmem:[%s4 + $0xd0] sm:$0xff]
    %v118 = vld [vmem:[%s4 + $0xd8] sm:$0xff]
    %v119 = vld [vmem:[%s4 + $0xe0] sm:$0xff]
    %v120 = vld [vmem:[%s4 + $0xe8] sm:$0xff]
    %v121 = vld [vmem:[%s4 + $0xf0] sm:$0xff]
    %v122 = vld [vmem:[%s4 + $0xf8] sm:$0xff]
    %v123 = vld [vmem:[%s4 + $0x100] sm:$0xff]
    %v124 = vld [vmem:[%s4 + $0x108] sm:$0xff]
    %v125 = vld [vmem:[%s4 + $0x110] sm:$0xff]
    %v126 = vld [vmem:[%s4 + $0x118] sm:$0xff]
    %v127 = vld [vmem:[%s4 + $0x120] sm:$0xff]
    %v128 = vld [vmem:[%s4 + $0x128] sm:$0xff]
    %v129 = vld [vmem:[%s4 + $0x130] sm:$0xff]
    %v130 = vld [vmem:[%s4 + $0x138] sm:$0xff]
    %v131 = vld [vmem:[%s4 + $0x140] sm:$0xff]
    %v132 = vld [vmem:[%s4 + $0x148] sm:$0xff]
    %v133 = vld [vmem:[%s4 + $0x150] sm:$0xff]
    %v134 = vld [vmem:[%s4 + $0x158] sm:$0xff]
    %v135 = vld [vmem:[%s4 + $0x160] sm:$0xff]
    %v136 = vld [vmem:[%s4 + $0x168] sm:$0xff]
    %v137 = vld [vmem:[%s4 + $0x170] sm:$0xff]
    %v138 = vld [vmem:[%s4 + $0x178] sm:$0xff]
    %v139 = vld [vmem:[%s4 + $0x180] sm:$0xff]
    %v140 = vld [vmem:[%s4 + $0x188] sm:$0xff]
    %v141 = vld [vmem:[%s4 + $0x190] sm:$0xff]
    %v142 = vld [vmem:[%s4 + $0x198] sm:$0xff]
    %v143 = vld [vmem:[%s4 + $0x1a0] sm:$0xff]
    %v144 = vld [vmem:[%s4 + $0x1a8] sm:$0xff]
    %v145 = vld [vmem:[%s4 + $0x1b0] sm:$0xff]
    %v146 = vld [vmem:[%s4 + $0x1b8] sm:$0xff]
    %v147 = vld [vmem:[%s4 + $0x1c0] sm:$0xff]
    %v148 = vld [vmem:[%s4 + $0x1c8] sm:$0xff]
    %v149 = vld [vmem:[%s4 + $0x1d0] sm:$0xff]
    %v150 = vld [vmem:[%s4 + $0x1d8] sm:$0xff]
    %v151 = vld [vmem:[%s4 + $0x1e0] sm:$0xff]
    %v152 = vld [vmem:[%s4 + $0x1e8] sm:$0xff]
    %v153 = vld [vmem:[%s4 + $0x1f0] sm:$0xff]
    %v154 = vld [vmem:[%s4 + $0x1f8] sm:$0xff]
    %v155 = vld [vmem:[#allocation8] sm:$0xff]
    %v156 = vld [vmem:[#allocation8 + $0x8] sm:$0xff]
    %v157 = vld [vmem:[#allocation8 + $0x10] sm:$0xff]
    %v158 = vld [vmem:[#allocation8 + $0x18] sm:$0xff]
    %v159 = vld [vmem:[#allocation8 + $0x20] sm:$0xff]
    %v160 = vld [vmem:[#allocation8 + $0x28] sm:$0xff]
    %v161 = vld [vmem:[#allocation8 + $0x30] sm:$0xff]
    %v162 = vld [vmem:[#allocation8 + $0x38] sm:$0xff]
    %v163 = vld [vmem:[#allocation8 + $0x40] sm:$0xff]
    %v164 = vld [vmem:[#allocation8 + $0x48] sm:$0xff]
    %v165 = vld [vmem:[#allocation8 + $0x50] sm:$0xff]
    %v166 = vld [vmem:[#allocation8 + $0x58] sm:$0xff]
    %v167 = vld [vmem:[#allocation8 + $0x60] sm:$0xff]
    %v168 = vld [vmem:[#allocation8 + $0x68] sm:$0xff]
    %v169 = vld [vmem:[#allocation8 + $0x70] sm:$0xff]
    %v170 = vld [vmem:[#allocation8 + $0x78] sm:$0xff]
    %v171 = vld [vmem:[#allocation8 + $0x80] sm:$0xff]
    %v172 = vld [vmem:[#allocation8 + $0x88] sm:$0xff]
    %v173 = vld [vmem:[#allocation8 + $0x90] sm:$0xff]
    %v174 = vld [vmem:[#allocation8 + $0x98] sm:$0xff]
    %v175 = vld [vmem:[#allocation8 + $0xa0] sm:$0xff]
    %v176 = vld [vmem:[#allocation8 + $0xa8] sm:$0xff]
    %v177 = vld [vmem:[#allocation8 + $0xb0] sm:$0xff]
    %v178 = vld [vmem:[#allocation8 + $0xb8] sm:$0xff]
    %v179 = vld [vmem:[#allocation8 + $0xc0] sm:$0xff]
    %v180 = vld [vmem:[#allocation8 + $0xc8] sm:$0xff]
    %v181 = vld [vmem:[#allocation8 + $0xd0] sm:$0xff]
    %v182 = vld [vmem:[#allocation8 + $0xd8] sm:$0xff]
    %v183 = vld [vmem:[#allocation8 + $0xe0] sm:$0xff]
    %v184 = vld [vmem:[#allocation8 + $0xe8] sm:$0xff]
    %v185 = vld [vmem:[#allocation8 + $0xf0] sm:$0xff]
    %v186 = vld [vmem:[#allocation8 + $0xf8] sm:$0xff]
    %v187 = vld [vmem:[#allocation8 + $0x100] sm:$0xff]
    %v188 = vld [vmem:[#allocation8 + $0x108] sm:$0xff]
    %v189 = vld [vmem:[#allocation8 + $0x110] sm:$0xff]
    %v190 = vld [vmem:[#allocation8 + $0x118] sm:$0xff]
    %v191 = vld [vmem:[#allocation8 + $0x120] sm:$0xff]
    %v192 = vld [vmem:[#allocation8 + $0x128] sm:$0xff]
    %v193 = vld [vmem:[#allocation8 + $0x130] sm:$0xff]
    %v194 = vld [vmem:[#allocation8 + $0x138] sm:$0xff]
    %v195 = vld [vmem:[#allocation8 + $0x140] sm:$0xff]
    %v196 = vld [vmem:[#allocation8 + $0x148] sm:$0xff]
    %v197 = vld [vmem:[#allocation8 + $0x150] sm:$0xff]
    %v198 = vld [vmem:[#allocation8 + $0x158] sm:$0xff]
    %v199 = vld [vmem:[#allocation8 + $0x160] sm:$0xff]
    %v200 = vld [vmem:[#allocation8 + $0x168] sm:$0xff]
    %v201 = vld [vmem:[#allocation8 + $0x170] sm:$0xff]
    %v202 = vld [vmem:[#allocation8 + $0x178] sm:$0xff]
    %v203 = vld [vmem:[#allocation8 + $0x180] sm:$0xff]
    %v204 = vld [vmem:[#allocation8 + $0x188] sm:$0xff]
    %v205 = vld [vmem:[#allocation8 + $0x190] sm:$0xff]
    %v206 = vld [vmem:[#allocation8 + $0x198] sm:$0xff]
    %v207 = vld [vmem:[#allocation8 + $0x1a0] sm:$0xff]
    %v208 = vld [vmem:[#allocation8 + $0x1a8] sm:$0xff]
    %v209 = vld [vmem:[#allocation8 + $0x1b0] sm:$0xff]
    %v210 = vld [vmem:[#allocation8 + $0x1b8] sm:$0xff]
    %v211 = vld [vmem:[#allocation8 + $0x1c0] sm:$0xff]
    %v212 = vld [vmem:[#allocation8 + $0x1c8] sm:$0xff]
    %v213 = vld [vmem:[#allocation8 + $0x1d0] sm:$0xff]
    %v214 = vld [vmem:[#allocation8 + $0x1d8] sm:$0xff]
    %v215 = vld [vmem:[#allocation8 + $0x1e0] sm:$0xff]
    %v216 = vld [vmem:[#allocation8 + $0x1e8] sm:$0xff]
    %v217 = vld [vmem:[#allocation8 + $0x1f0] sm:$0xff]
    %v218 = vld [vmem:[#allocation8 + $0x1f8] sm:$0xff]
    %v219 = vld [vmem:[#allocation2] sm:$0xff]
    %v220 = vld [vmem:[#allocation3] sm:$0xff]
    %v221 = vld [vmem:[#allocation4] sm:$0xff]
    %v222 = vld [vmem:[#allocation5] sm:$0xff]
    %v223 = vld [vmem:[#allocation11] sm:$0xff]
    %v224 = vld [vmem:[#allocation11 + $0x8] sm:$0xff]
    %s225 = smul.u32 0, 8
    %s226 = ssub.s32 7, %s225
    %v227 = vld [vmem:[%s1] sm:$0xff]
    %v228 = vld [vmem:[%s1 + $0x8] sm:$0xff]
    %v229 = vld [vmem:[%s1 + $0x10] sm:$0xff]
    %v230 = vld [vmem:[%s1 + $0x18] sm:$0xff]
    %231 = vmatprep.subr.mxu0 %v92
    %232 = vmatpush1.msra.mxu0 %v91
    %233 = vmatprep.subr.mxu0 %v96
    %234 = vmatpush1.msra.mxu0 %v95
    %235 = vmatprep.subr.mxu0 %v100
    %236 = vmatpush1.msra.mxu0 %v99
    %237 = vmatprep.subr.mxu0 %v104
    %238 = vmatpush1.msra.mxu0 %v103
    %239 = vmatprep.subr.mxu0 %v108
    %240 = vmatpush1.msra.mxu0 %v107
    %241 = vmatprep.subr.mxu0 %v112
    %242 = vmatpush1.msra.mxu0 %v111
    %243 = vmatprep.subr.mxu0 %v116
    %244 = vmatpush1.msra.mxu0 %v115
    %245 = vmatprep.subr.mxu0 %v120
    %246 = vmatpush1.msra.mxu0 %v119
    %247 = vmatprep.subr.mxu0 %v124
    %248 = vmatpush1.msra.mxu0 %v123
    %249 = vmatprep.subr.mxu0 %v128
    %250 = vmatpush1.msra.mxu0 %v127
    %251 = vmatprep.subr.mxu0 %v132
    %252 = vmatpush1.msra.mxu0 %v131
    %253 = vmatprep.subr.mxu0 %v136
    %254 = vmatpush1.msra.mxu0 %v135
    %255 = vmatprep.subr.mxu0 %v140
    %256 = vmatpush1.msra.mxu0 %v139
    %257 = vmatprep.subr.mxu0 %v144
    %258 = vmatpush1.msra.mxu0 %v143
    %259 = vmatprep.subr.mxu0 %v148
    %260 = vmatpush1.msra.mxu0 %v147
    %261 = vmatprep.subr.mxu0 %v152
    %262 = vmatpush1.msra.mxu0 %v151
    %263 = vmatprep.subr.mxu0 0.0
    %264 = vmatpush1.msra.mxu0 0.0
    %265 = vmatprep.subr.mxu0 0.0
    %266 = vmatpush1.msra.mxu0 0.0
    %267 = vmatprep.subr.mxu0 0.0
    %268 = vmatpush1.msra.mxu0 0.0
    %269 = vmatprep.subr.mxu0 0.0
    %270 = vmatpush1.msra.mxu0 0.0
    %271 = vmatprep.subr.mxu0 0.0
    %272 = vmatpush1.msra.mxu0 0.0
    %273 = vmatprep.subr.mxu0 0.0
    %274 = vmatpush1.msra.mxu0 0.0
    %275 = vmatprep.subr.mxu0 0.0
    %276 = vmatpush1.msra.mxu0 0.0
    %277 = vmatprep.subr.mxu0 0.0
    %278 = vmatpush1.msra.mxu0 0.0
    %279 = vmatprep.subr.mxu0 0.0
    %280 = vmatpush1.msra.mxu0 0.0
    %281 = vmatprep.subr.mxu0 0.0
    %282 = vmatpush1.msra.mxu0 0.0
    %283 = vmatprep.subr.mxu0 0.0
    %284 = vmatpush1.msra.mxu0 0.0
    %285 = vmatprep.subr.mxu0 0.0
    %286 = vmatpush1.msra.mxu0 0.0
    %287 = vmatprep.subr.mxu0 0.0
    %288 = vmatpush1.msra.mxu0 0.0
    %289 = vmatprep.subr.mxu0 0.0
    %290 = vmatpush1.msra.mxu0 0.0
    %291 = vmatprep.subr.mxu0 0.0
    %292 = vmatpush1.msra.mxu0 0.0
    %293 = vmatprep.subr.mxu0 0.0
    %294 = vmatpush1.msra.mxu0 0.0
    %295 = vmatprep.mubr.f32.mxu0 0.0
    %296 = vmatmul.mubr.f32.gmra.mrb[0].mxu0 %v219
    %v297 = vpop.f32.mrb[0].mxu0
    %v298 = vadd.f32 0.0, %v297
    %v299 = vpop.f32.mrb[0].mxu0
    %v300 = vadd.f32 0.0, %v299
    %301 = vdwg.mxu0
    %302 = vmatprep.subr.mxu0 %v94
    %303 = vmatpush1.msra.mxu0 %v93
    %304 = vmatprep.subr.mxu0 %v98
    %305 = vmatpush1.msra.mxu0 %v97
    %306 = vmatprep.subr.mxu0 %v102
    %307 = vmatpush1.msra.mxu0 %v101
    %308 = vmatprep.subr.mxu0 %v106
    %309 = vmatpush1.msra.mxu0 %v105
    %310 = vmatprep.subr.mxu0 %v110
    %311 = vmatpush1.msra.mxu0 %v109
    %312 = vmatprep.subr.mxu0 %v114
    %313 = vmatpush1.msra.mxu0 %v113
    %314 = vmatprep.subr.mxu0 %v118
    %315 = vmatpush1.msra.mxu0 %v117
    %316 = vmatprep.subr.mxu0 %v122
    %317 = vmatpush1.msra.mxu0 %v121
    %318 = vmatprep.subr.mxu0 %v126
    %319 = vmatpush1.msra.mxu0 %v125
    %320 = vmatprep.subr.mxu0 %v130
    %321 = vmatpush1.msra.mxu0 %v129
    %322 = vmatprep.subr.mxu0 %v134
    %323 = vmatpush1.msra.mxu0 %v133
    %324 = vmatprep.subr.mxu0 %v138
    %325 = vmatpush1.msra.mxu0 %v137
    %326 = vmatprep.subr.mxu0 %v142
    %327 = vmatpush1.msra.mxu0 %v141
    %328 = vmatprep.subr.mxu0 %v146
    %329 = vmatpush1.msra.mxu0 %v145
    %330 = vmatprep.subr.mxu0 %v150
    %331 = vmatpush1.msra.mxu0 %v149
    %332 = vmatprep.subr.mxu0 %v154
    %333 = vmatpush1.msra.mxu0 %v153
    %334 = vmatprep.subr.mxu0 0.0
    %335 = vmatpush1.msra.mxu0 0.0
    %336 = vmatprep.subr.mxu0 0.0
    %337 = vmatpush1.msra.mxu0 0.0
    %338 = vmatprep.subr.mxu0 0.0
    %339 = vmatpush1.msra.mxu0 0.0
    %340 = vmatprep.subr.mxu0 0.0
    %341 = vmatpush1.msra.mxu0 0.0
    %342 = vmatprep.subr.mxu0 0.0
    %343 = vmatpush1.msra.mxu0 0.0
    %344 = vmatprep.subr.mxu0 0.0
    %345 = vmatpush1.msra.mxu0 0.0
    %346 = vmatprep.subr.mxu0 0.0
    %347 = vmatpush1.msra.mxu0 0.0
    %348 = vmatprep.subr.mxu0 0.0
    %349 = vmatpush1.msra.mxu0 0.0
    %350 = vmatprep.subr.mxu0 0.0
    %351 = vmatpush1.msra.mxu0 0.0
    %352 = vmatprep.subr.mxu0 0.0
    %353 = vmatpush1.msra.mxu0 0.0
    %354 = vmatprep.subr.mxu0 0.0
    %355 = vmatpush1.msra.mxu0 0.0
    %356 = vmatprep.subr.mxu0 0.0
    %357 = vmatpush1.msra.mxu0 0.0
    %358 = vmatprep.subr.mxu0 0.0
    %359 = vmatpush1.msra.mxu0 0.0
    %360 = vmatprep.subr.mxu0 0.0
    %361 = vmatpush1.msra.mxu0 0.0
    %362 = vmatprep.subr.mxu0 0.0
    %363 = vmatpush1.msra.mxu0 0.0
    %364 = vmatprep.subr.mxu0 0.0
    %365 = vmatpush1.msra.mxu0 0.0
    %366 = vmatprep.mubr.f32.mxu0 0.0
    %367 = vmatmul.mubr.f32.gmra.mrb[0].mxu0 %v219
    %v368 = vpop.f32.mrb[0].mxu0
    %v369 = vadd.f32 0.0, %v368
    %v370 = vpop.f32.mrb[0].mxu0
    %v371 = vadd.f32 0.0, %v370
    %372 = vdwg.mxu0
    %v373 = vadd.f32 %v227, %v298
    %v374 = vadd.f32 %v228, %v300
    %v375 = vadd.f32 %v229, %v369
    %v376 = vadd.f32 %v230, %v371
    %s377 = scalar_lea.vmem %s68, 224
    %v378 = vld [vmem:[%s377] sm:$0xff]
    %v379 = vld [vmem:[%s377 + $0x8] sm:$0xff]
    %v380 = vld [vmem:[%s377 + $0x10] sm:$0xff]
    %v381 = vld [vmem:[%s377 + $0x18] sm:$0xff]
    %382 = vmatprep.subr.mxu0 %v156
    %383 = vmatpush1.msra.mxu0 %v155
    %384 = vmatprep.subr.mxu0 %v160
    %385 = vmatpush1.msra.mxu0 %v159
    %386 = vmatprep.subr.mxu0 %v164
    %387 = vmatpush1.msra.mxu0 %v163
    %388 = vmatprep.subr.mxu0 %v168
    %389 = vmatpush1.msra.mxu0 %v167
    %390 = vmatprep.subr.mxu0 %v172
    %391 = vmatpush1.msra.mxu0 %v171
    %392 = vmatprep.subr.mxu0 %v176
    %393 = vmatpush1.msra.mxu0 %v175
    %394 = vmatprep.subr.mxu0 %v180
    %395 = vmatpush1.msra.mxu0 %v179
    %396 = vmatprep.subr.mxu0 %v184
    %397 = vmatpush1.msra.mxu0 %v183
    %398 = vmatprep.subr.mxu0 %v188
    %399 = vmatpush1.msra.mxu0 %v187
    %400 = vmatprep.subr.mxu0 %v192
    %401 = vmatpush1.msra.mxu0 %v191
    %402 = vmatprep.subr.mxu0 %v196
    %403 = vmatpush1.msra.mxu0 %v195
    %404 = vmatprep.subr.mxu0 %v200
    %405 = vmatpush1.msra.mxu0 %v199
    %406 = vmatprep.subr.mxu0 %v204
    %407 = vmatpush1.msra.mxu0 %v203
    %408 = vmatprep.subr.mxu0 %v208
    %409 = vmatpush1.msra.mxu0 %v207
    %410 = vmatprep.subr.mxu0 %v212
    %411 = vmatpush1.msra.mxu0 %v211
    %412 = vmatprep.subr.mxu0 %v216
    %413 = vmatpush1.msra.mxu0 %v215
    %414 = vmatprep.subr.mxu0 0.0
    %415 = vmatpush1.msra.mxu0 0.0
    %416 = vmatprep.subr.mxu0 0.0
    %417 = vmatpush1.msra.mxu0 0.0
    %418 = vmatprep.subr.mxu0 0.0
    %419 = vmatpush1.msra.mxu0 0.0
    %420 = vmatprep.subr.mxu0 0.0
    %421 = vmatpush1.msra.mxu0 0.0
    %422 = vmatprep.subr.mxu0 0.0
    %423 = vmatpush1.msra.mxu0 0.0
    %424 = vmatprep.subr.mxu0 0.0
    %425 = vmatpush1.msra.mxu0 0.0
    %426 = vmatprep.subr.mxu0 0.0
    %427 = vmatpush1.msra.mxu0 0.0
    %428 = vmatprep.subr.mxu0 0.0
    %429 = vmatpush1.msra.mxu0 0.0
    %430 = vmatprep.subr.mxu0 0.0
    %431 = vmatpush1.msra.mxu0 0.0
    %432 = vmatprep.subr.mxu0 0.0
    %433 = vmatpush1.msra.mxu0 0.0
    %434 = vmatprep.subr.mxu0 0.0
    %435 = vmatpush1.msra.mxu0 0.0
    %436 = vmatprep.subr.mxu0 0.0
    %437 = vmatpush1.msra.mxu0 0.0
    %438 = vmatprep.subr.mxu0 0.0
    %439 = vmatpush1.msra.mxu0 0.0
    %440 = vmatprep.subr.mxu0 0.0
    %441 = vmatpush1.msra.mxu0 0.0
    %442 = vmatprep.subr.mxu0 0.0
    %443 = vmatpush1.msra.mxu0 0.0
    %444 = vmatprep.subr.mxu0 0.0
    %445 = vmatpush1.msra.mxu0 0.0
    %446 = vmatprep.mubr.f32.mxu0 0.0
    %447 = vmatmul.mubr.f32.gmra.mrb[0].mxu0 %v221
    %v448 = vpop.f32.mrb[0].mxu0
    %v449 = vadd.f32 0.0, %v448
    %v450 = vpop.f32.mrb[0].mxu0
    %v451 = vadd.f32 0.0, %v450
    %452 = vdwg.mxu0
    %453 = vmatprep.subr.mxu0 %v158
    %454 = vmatpush1.msra.mxu0 %v157
    %455 = vmatprep.subr.mxu0 %v162
    %456 = vmatpush1.msra.mxu0 %v161
    %457 = vmatprep.subr.mxu0 %v166
    %458 = vmatpush1.msra.mxu0 %v165
    %459 = vmatprep.subr.mxu0 %v170
    %460 = vmatpush1.msra.mxu0 %v169
    %461 = vmatprep.subr.mxu0 %v174
    %462 = vmatpush1.msra.mxu0 %v173
    %463 = vmatprep.subr.mxu0 %v178
    %464 = vmatpush1.msra.mxu0 %v177
    %465 = vmatprep.subr.mxu0 %v182
    %466 = vmatpush1.msra.mxu0 %v181
    %467 = vmatprep.subr.mxu0 %v186
    %468 = vmatpush1.msra.mxu0 %v185
    %469 = vmatprep.subr.mxu0 %v190
    %470 = vmatpush1.msra.mxu0 %v189
    %471 = vmatprep.subr.mxu0 %v194
    %472 = vmatpush1.msra.mxu0 %v193
    %473 = vmatprep.subr.mxu0 %v198
    %474 = vmatpush1.msra.mxu0 %v197
    %475 = vmatprep.subr.mxu0 %v202
    %476 = vmatpush1.msra.mxu0 %v201
    %477 = vmatprep.subr.mxu0 %v206
    %478 = vmatpush1.msra.mxu0 %v205
    %479 = vmatprep.subr.mxu0 %v210
    %480 = vmatpush1.msra.mxu0 %v209
    %481 = vmatprep.subr.mxu0 %v214
    %482 = vmatpush1.msra.mxu0 %v213
    %483 = vmatprep.subr.mxu0 %v218
    %484 = vmatpush1.msra.mxu0 %v217
    %485 = vmatprep.subr.mxu0 0.0
    %486 = vmatpush1.msra.mxu0 0.0
    %487 = vmatprep.subr.mxu0 0.0
    %488 = vmatpush1.msra.mxu0 0.0
    %489 = vmatprep.subr.mxu0 0.0
    %490 = vmatpush1.msra.mxu0 0.0
    %491 = vmatprep.subr.mxu0 0.0
    %492 = vmatpush1.msra.mxu0 0.0
    %493 = vmatprep.subr.mxu0 0.0
    %494 = vmatpush1.msra.mxu0 0.0
    %495 = vmatprep.subr.mxu0 0.0
    %496 = vmatpush1.msra.mxu0 0.0
    %497 = vmatprep.subr.mxu0 0.0
    %498 = vmatpush1.msra.mxu0 0.0
    %499 = vmatprep.subr.mxu0 0.0
    %500 = vmatpush1.msra.mxu0 0.0
    %501 = vmatprep.subr.mxu0 0.0
    %502 = vmatpush1.msra.mxu0 0.0
    %503 = vmatprep.subr.mxu0 0.0
    %504 = vmatpush1.msra.mxu0 0.0
    %505 = vmatprep.subr.mxu0 0.0
    %506 = vmatpush1.msra.mxu0 0.0
    %507 = vmatprep.subr.mxu0 0.0
    %508 = vmatpush1.msra.mxu0 0.0
    %509 = vmatprep.subr.mxu0 0.0
    %510 = vmatpush1.msra.mxu0 0.0
    %511 = vmatprep.subr.mxu0 0.0
    %512 = vmatpush1.msra.mxu0 0.0
    %513 = vmatprep.subr.mxu0 0.0
    %514 = vmatpush1.msra.mxu0 0.0
    %515 = vmatprep.subr.mxu0 0.0
    %516 = vmatpush1.msra.mxu0 0.0
    %517 = vmatprep.mubr.f32.mxu0 0.0
    %518 = vmatmul.mubr.f32.gmra.mrb[0].mxu0 %v221
    %v519 = vpop.f32.mrb[0].mxu0
    %v520 = vadd.f32 0.0, %v519
    %v521 = vpop.f32.mrb[0].mxu0
    %v522 = vadd.f32 0.0, %v521
    %523 = vdwg.mxu0
    %v524 = vadd.f32 %v378, %v449
    %v525 = vadd.f32 %v379, %v451
    %v526 = vadd.f32 %v380, %v520
    %v527 = vadd.f32 %v381, %v522
    %v528 = vxor.u32 %v373, 2147483648
    %v529 = vmul.f32 %v528, 1.442695
    %v530 = vpow.pop %v529
    %v531 = vadd.f32 %v530, 1.0
    %v532 = vrcp.pop %v531
    %v533 = vmul.f32 1.0, %v532
    %v534 = vxor.u32 %v374, 2147483648
    %v535 = vmul.f32 %v534, 1.442695
    %v536 = vpow.pop %v535
    %v537 = vadd.f32 %v536, 1.0
    %v538 = vrcp.pop %v537
    %v539 = vmul.f32 1.0, %v538
    %v540 = vtanh.pop %v375
    %v541 = vxor.u32 %v376, 2147483648
    %v542 = vmul.f32 %v541, 1.442695
    %v543 = vpow.pop %v542
    %v544 = vadd.f32 %v543, 1.0
    %v545 = vrcp.pop %v544
    %v546 = vmul.f32 1.0, %v545
    %v547 = vmul.f32 %v539, %v220
    %v548 = vmul.f32 %v533, %v540
    %v549 = vadd.f32 %v547, %v548
    %v550 = vtanh.pop %v549
    %v551 = vmul.f32 %v546, %v550
    %v552 = vxor.u32 %v524, 2147483648
    %v553 = vmul.f32 %v552, 1.442695
    %v554 = vpow.pop %v553
    %v555 = vadd.f32 %v554, 1.0
    %v556 = vrcp.pop %v555
    %v557 = vmul.f32 1.0, %v556
    %v558 = vxor.u32 %v525, 2147483648
    %v559 = vmul.f32 %v558, 1.442695
    %v560 = vpow.pop %v559
    %v561 = vadd.f32 %v560, 1.0
    %v562 = vrcp.pop %v561
    %v563 = vmul.f32 1.0, %v562
    %v564 = vtanh.pop %v526
    %v565 = vxor.u32 %v527, 2147483648
    %v566 = vmul.f32 %v565, 1.442695
    %v567 = vpow.pop %v566
    %v568 = vadd.f32 %v567, 1.0
    %v569 = vrcp.pop %v568
    %v570 = vmul.f32 1.0, %v569
    %v571 = vmul.f32 %v563, %v222
    %v572 = vmul.f32 %v557, %v564
    %v573 = vadd.f32 %v571, %v572
    %v574 = vtanh.pop %v573
    %v575 = vmul.f32 %v570, %v574
    %v576 = vstv %s225
    %vm577 = vcmp.lt.s32.totalorder %v576, %v90
    %v578 = vsel %vm577, 1, 0
    %579 = vset.pattern.permute.xlu0 0
    %580 = vperm.xlu0 %579, %v578
    %v581 = vpop.permute.xlu0 %580
    %vm582 = vcmp.eq.s32.totalorder %v581, 1
    %v583 = vstv %s226
    %vm584 = vcmp.lt.s32.totalorder %v583, %v90
    %v585 = vsel %vm584, 1, 0
    %586 = vset.pattern.permute.xlu0 0
    %587 = vperm.xlu0 %586, %v585
    %v588 = vpop.permute.xlu0 %587
    %vm589 = vcmp.eq.s32.totalorder %v588, 1
    %v590 = vsel %vm582, %v551, %v219
    %v591 = vsel %vm582, %v549, %v220
    %v592 = vsel %vm589, %v575, %v221
    %v593 = vsel %vm589, %v573, %v222
    %v594 = vsel %vm582, %v551, 0.0
    %595 = vst [vmem:[%s6] sm:$0xff] %v594
    %v596 = vsel %vm589, %v575, 0.0
    %s597 = scalar_lea.vmem %s76, 56
    %598 = vst [vmem:[%s597] sm:$0xff] %v596
    %p599 = scmp.lt.s32.totalorder %s225, %s89
    %s600 = scalar_select %p599, 0.0, -inf
    %p601 = scmp.lt.s32.totalorder %s226, %s89
    %s602 = scalar_select %p601, 0.0, -inf
    %v603 = vstv %s600
    %v604 = vsel %vm582, %v551, %v603
    %v605 = vmax.f32 %v223, %v604
    %v606 = vstv %s602
    %v607 = vsel %vm589, %v575, %v606
    %v608 = vmax.f32 %v224, %v607
    %s609 = sadd.s32 %s225, 1
    %s610 = ssub.s32 6, %s225
    %s611 = scalar_lea.vmem %s1, 32
    %v612 = vld [vmem:[%s611] sm:$0xff]
    %v613 = vld [vmem:[%s611 + $0x8] sm:$0xff]
    %v614 = vld [vmem:[%s611 + $0x10] sm:$0xff]
    %v615 = vld [vmem:[%s611 + $0x18] sm:$0xff]
    %616 = vmatprep.subr.mxu0 %v92
    %617 = vmatpush1.msra.mxu0 %v91
    %618 = vmatprep.subr.mxu0 %v96
    %619 = vmatpush1.msra.mxu0 %v95
    %620 = vmatprep.subr.mxu0 %v100
    %621 = vmatpush1.msra.mxu0 %v99
    %622 = vmatprep.subr.mxu0 %v104
    %623 = vmatpush1.msra.mxu0 %v103
    %624 = vmatprep.subr.mxu0 %v108
    %625 = vmatpush1.msra.mxu0 %v107
    %626 = vmatprep.subr.mxu0 %v112
    %627 = vmatpush1.msra.mxu0 %v111
    %628 = vmatprep.subr.mxu0 %v116
    %629 = vmatpush1.msra.mxu0 %v115
    %630 = vmatprep.subr.mxu0 %v120
    %631 = vmatpush1.msra.mxu0 %v119
    %632 = vmatprep.subr.mxu0 %v124
    %633 = vmatpush1.msra.mxu0 %v123
    %634 = vmatprep.subr.mxu0 %v128
    %635 = vmatpush1.msra.mxu0 %v127
    %636 = vmatprep.subr.mxu0 %v132
    %637 = vmatpush1.msra.mxu0 %v131
    %638 = vmatprep.subr.mxu0 %v136
    %639 = vmatpush1.msra.mxu0 %v135
    %640 = vmatprep.subr.mxu0 %v140
    %641 = vmatpush1.msra.mxu0 %v139
    %642 = vmatprep.subr.mxu0 %v144
    %643 = vmatpush1.msra.mxu0 %v143
    %644 = vmatprep.subr.mxu0 %v148
    %645 = vmatpush1.msra.mxu0 %v147
    %646 = vmatprep.subr.mxu0 %v152
    %647 = vmatpush1.msra.mxu0 %v151
    %648 = vmatprep.subr.mxu0 0.0
    %649 = vmatpush1.msra.mxu0 0.0
    %650 = vmatprep.subr.mxu0 0.0
    %651 = vmatpush1.msra.mxu0 0.0
    %652 = vmatprep.subr.mxu0 0.0
    %653 = vmatpush1.msra.mxu0 0.0
    %654 = vmatprep.subr.mxu0 0.0
    %655 = vmatpush1.msra.mxu0 0.0
    %656 = vmatprep.subr.mxu0 0.0
    %657 = vmatpush1.msra.mxu0 0.0
    %658 = vmatprep.subr.mxu0 0.0
    %659 = vmatpush1.msra.mxu0 0.0
    %660 = vmatprep.subr.mxu0 0.0
    %661 = vmatpush1.msra.mxu0 0.0
    %662 = vmatprep.subr.mxu0 0.0
    %663 = vmatpush1.msra.mxu0 0.0
    %664 = vmatprep.subr.mxu0 0.0
    %665 = vmatpush1.msra.mxu0 0.0
    %666 = vmatprep.subr.mxu0 0.0
    %667 = vmatpush1.msra.mxu0 0.0
    %668 = vmatprep.subr.mxu0 0.0
    %669 = vmatpush1.msra.mxu0 0.0
    %670 = vmatprep.subr.mxu0 0.0
    %671 = vmatpush1.msra.mxu0 0.0
    %672 = vmatprep.subr.mxu0 0.0
    %673 = vmatpush1.msra.mxu0 0.0
    %674 = vmatprep.subr.mxu0 0.0
    %675 = vmatpush1.msra.mxu0 0.0
    %676 = vmatprep.subr.mxu0 0.0
    %677 = vmatpush1.msra.mxu0 0.0
    %678 = vmatprep.subr.mxu0 0.0
    %679 = vmatpush1.msra.mxu0 0.0
    %680 = vmatprep.mubr.f32.mxu0 0.0
    %681 = vmatmul.mubr.f32.gmra.mrb[0].mxu0 %v590
    %v682 = vpop.f32.mrb[0].mxu0
    %v683 = vadd.f32 0.0, %v682
    %v684 = vpop.f32.mrb[0].mxu0
    %v685 = vadd.f32 0.0, %v684
    %686 = vdwg.mxu0
    %687 = vmatprep.subr.mxu0 %v94
    %688 = vmatpush1.msra.mxu0 %v93
    %689 = vmatprep.subr.mxu0 %v98
    %690 = vmatpush1.msra.mxu0 %v97
    %691 = vmatprep.subr.mxu0 %v102
    %692 = vmatpush1.msra.mxu0 %v101
    %693 = vmatprep.subr.mxu0 %v106
    %694 = vmatpush1.msra.mxu0 %v105
    %695 = vmatprep.subr.mxu0 %v110
    %696 = vmatpush1.msra.mxu0 %v109
    %697 = vmatprep.subr.mxu0 %v114
    %698 = vmatpush1.msra.mxu0 %v113
    %699 = vmatprep.subr.mxu0 %v118
    %700 = vmatpush1.msra.mxu0 %v117
    %701 = vmatprep.subr.mxu0 %v122
    %702 = vmatpush1.msra.mxu0 %v121
    %703 = vmatprep.subr.mxu0 %v126
    %704 = vmatpush1.msra.mxu0 %v125
    %705 = vmatprep.subr.mxu0 %v130
    %706 = vmatpush1.msra.mxu0 %v129
    %707 = vmatprep.subr.mxu0 %v134
    %708 = vmatpush1.msra.mxu0 %v133
    %709 = vmatprep.subr.mxu0 %v138
    %710 = vmatpush1.msra.mxu0 %v137
    %711 = vmatprep.subr.mxu0 %v142
    %712 = vmatpush1.msra.mxu0 %v141
    %713 = vmatprep.subr.mxu0 %v146
    %714 = vmatpush1.msra.mxu0 %v145
    %715 = vmatprep.subr.mxu0 %v150
    %716 = vmatpush1.msra.mxu0 %v149
    %717 = vmatprep.subr.mxu0 %v154
    %718 = vmatpush1.msra.mxu0 %v153
    %719 = vmatprep.subr.mxu0 0.0
    %720 = vmatpush1.msra.mxu0 0.0
    %721 = vmatprep.subr.mxu0 0.0
    %722 = vmatpush1.msra.mxu0 0.0
    %723 = vmatprep.subr.mxu0 0.0
    %724 = vmatpush1.msra.mxu0 0.0
    %725 = vmatprep.subr.mxu0 0.0
    %726 = vmatpush1.msra.mxu0 0.0
    %727 = vmatprep.subr.mxu0 0.0
    %728 = vmatpush1.msra.mxu0 0.0
    %729 = vmatprep.subr.mxu0 0.0
    %730 = vmatpush1.msra.mxu0 0.0
    %731 = vmatprep.subr.mxu0 0.0
    %732 = vmatpush1.msra.mxu0 0.0
    %733 = vmatprep.subr.mxu0 0.0
    %734 = vmatpush1.msra.mxu0 0.0
    %735 = vmatprep.subr.mxu0 0.0
    %736 = vmatpush1.msra.mxu0 0.0
    %737 = vmatprep.subr.mxu0 0.0
    %738 = vmatpush1.msra.mxu0 0.0
    %739 = vmatprep.subr.mxu0 0.0
    %740 = vmatpush1.msra.mxu0 0.0
    %741 = vmatprep.subr.mxu0 0.0
    %742 = vmatpush1.msra.mxu0 0.0
    %743 = vmatprep.subr.mxu0 0.0
    %744 = vmatpush1.msra.mxu0 0.0
    %745 = vmatprep.subr.mxu0 0.0
    %746 = vmatpush1.msra.mxu0 0.0
    %747 = vmatprep.subr.mxu0 0.0
    %748 = vmatpush1.msra.mxu0 0.0
    %749 = vmatprep.subr.mxu0 0.0
    %750 = vmatpush1.msra.mxu0 0.0
    %751 = vmatprep.mubr.f32.mxu0 0.0
    %752 = vmatmul.mubr.f32.gmra.mrb[0].mxu0 %v590
    %v753 = vpop.f32.mrb[0].mxu0
    %v754 = vadd.f32 0.0, %v753
    %v755 = vpop.f32.mrb[0].mxu0
    %v756 = vadd.f32 0.0, %v755
    %757 = vdwg.mxu0
    %v758 = vadd.f32 %v612, %v683
    %v759 = vadd.f32 %v613, %v685
    %v760 = vadd.f32 %v614, %v754
    %v761 = vadd.f32 %v615, %v756
    %s762 = scalar_lea.vmem %s68, 192
    %v763 = vld [vmem:[%s762] sm:$0xff]
    %v764 = vld [vmem:[%s762 + $0x8] sm:$0xff]
    %v765 = vld [vmem:[%s762 + $0x10] sm:$0xff]
    %v766 = vld [vmem:[%s762 + $0x18] sm:$0xff]
    %767 = vmatprep.subr.mxu0 %v156
    %768 = vmatpush1.msra.mxu0 %v155
    %769 = vmatprep.subr.mxu0 %v160
    %770 = vmatpush1.msra.mxu0 %v159
    %771 = vmatprep.subr.mxu0 %v164
    %772 = vmatpush1.msra.mxu0 %v163
    %773 = vmatprep.subr.mxu0 %v168
    %774 = vmatpush1.msra.mxu0 %v167
    %775 = vmatprep.subr.mxu0 %v172
    %776 = vmatpush1.msra.mxu0 %v171
    %777 = vmatprep.subr.mxu0 %v176
    %778 = vmatpush1.msra.mxu0 %v175
    %779 = vmatprep.subr.mxu0 %v180
    %780 = vmatpush1.msra.mxu0 %v179
    %781 = vmatprep.subr.mxu0 %v184
    %782 = vmatpush1.msra.mxu0 %v183
    %783 = vmatprep.subr.mxu0 %v188
    %784 = vmatpush1.msra.mxu0 %v187
    %785 = vmatprep.subr.mxu0 %v192
    %786 = vmatpush1.msra.mxu0 %v191
    %787 = vmatprep.subr.mxu0 %v196
    %788 = vmatpush1.msra.mxu0 %v195
    %789 = vmatprep.subr.mxu0 %v200
    %790 = vmatpush1.msra.mxu0 %v199
    %791 = vmatprep.subr.mxu0 %v204
    %792 = vmatpush1.msra.mxu0 %v203
    %793 = vmatprep.subr.mxu0 %v208
    %794 = vmatpush1.msra.mxu0 %v207
    %795 = vmatprep.subr.mxu0 %v212
    %796 = vmatpush1.msra.mxu0 %v211
    %797 = vmatprep.subr.mxu0 %v216
    %798 = vmatpush1.msra.mxu0 %v215
    %799 = vmatprep.subr.mxu0 0.0
    %800 = vmatpush1.msra.mxu0 0.0
    %801 = vmatprep.subr.mxu0 0.0
    %802 = vmatpush1.msra.mxu0 0.0
    %803 = vmatprep.subr.mxu0 0.0
    %804 = vmatpush1.msra.mxu0 0.0
    %805 = vmatprep.subr.mxu0 0.0
    %806 = vmatpush1.msra.mxu0 0.0
    %807 = vmatprep.subr.mxu0 0.0
    %808 = vmatpush1.msra.mxu0 0.0
    %809 = vmatprep.subr.mxu0 0.0
    %810 = vmatpush1.msra.mxu0 0.0
    %811 = vmatprep.subr.mxu0 0.0
    %812 = vmatpush1.msra.mxu0 0.0
    %813 = vmatprep.subr.mxu0 0.0
    %814 = vmatpush1.msra.mxu0 0.0
    %815 = vmatprep.subr.mxu0 0.0
    %816 = vmatpush1.msra.mxu0 0.0
    %817 = vmatprep.subr.mxu0 0.0
    %818 = vmatpush1.msra.mxu0 0.0
    %819 = vmatprep.subr.mxu0 0.0
    %820 = vmatpush1.msra.mxu0 0.0
    %821 = vmatprep.subr.mxu0 0.0
    %822 = vmatpush1.msra.mxu0 0.0
    %823 = vmatprep.subr.mxu0 0.0
    %824 = vmatpush1.msra.mxu0 0.0
    %825 = vmatprep.subr.mxu0 0.0
    %826 = vmatpush1.msra.mxu0 0.0
    %827 = vmatprep.subr.mxu0 0.0
    %828 = vmatpush1.msra.mxu0 0.0
    %829 = vmatprep.subr.mxu0 0.0
    %830 = vmatpush1.msra.mxu0 0.0
    %831 = vmatprep.mubr.f32.mxu0 0.0
    %832 = vmatmul.mubr.f32.gmra.mrb[0].mxu0 %v592
    %v833 = vpop.f32.mrb[0].mxu0
    %v834 = vadd.f32 0.0, %v833
    %v835 = vpop.f32.mrb[0].mxu0
    %v836 = vadd.f32 0.0, %v835
    %837 = vdwg.mxu0
    %838 = vmatprep.subr.mxu0 %v158
    %839 = vmatpush1.msra.mxu0 %v157
    %840 = vmatprep.subr.mxu0 %v162
    %841 = vmatpush1.msra.mxu0 %v161
    %842 = vmatprep.subr.mxu0 %v166
    %843 = vmatpush1.msra.mxu0 %v165
    %844 = vmatprep.subr.mxu0 %v170
    %845 = vmatpush1.msra.mxu0 %v169
    %846 = vmatprep.subr.mxu0 %v174
    %847 = vmatpush1.msra.mxu0 %v173
    %848 = vmatprep.subr.mxu0 %v178
    %849 = vmatpush1.msra.mxu0 %v177
    %850 = vmatprep.subr.mxu0 %v182
    %851 = vmatpush1.msra.mxu0 %v181
    %852 = vmatprep.subr.mxu0 %v186
    %853 = vmatpush1.msra.mxu0 %v185
    %854 = vmatprep.subr.mxu0 %v190
    %855 = vmatpush1.msra.mxu0 %v189
    %856 = vmatprep.subr.mxu0 %v194
    %857 = vmatpush1.msra.mxu0 %v193
    %858 = vmatprep.subr.mxu0 %v198
    %859 = vmatpush1.msra.mxu0 %v197
    %860 = vmatprep.subr.mxu0 %v202
    %861 = vmatpush1.msra.mxu0 %v201
    %862 = vmatprep.subr.mxu0 %v206
    %863 = vmatpush1.msra.mxu0 %v205
    %864 = vmatprep.subr.mxu0 %v210
    %865 = vmatpush1.msra.mxu0 %v209
    %866 = vmatprep.subr.mxu0 %v214
    %867 = vmatpush1.msra.mxu0 %v213
    %868 = vmatprep.subr.mxu0 %v218
    %869 = vmatpush1.msra.mxu0 %v217
    %870 = vmatprep.subr.mxu0 0.0
    %871 = vmatpush1.msra.mxu0 0.0
    %872 = vmatprep.subr.mxu0 0.0
    %873 = vmatpush1.msra.mxu0 0.0
    %874 = vmatprep.subr.mxu0 0.0
    %875 = vmatpush1.msra.mxu0 0.0
    %876 = vmatprep.subr.mxu0 0.0
    %877 = vmatpush1.msra.mxu0 0.0
    %878 = vmatprep.subr.mxu0 0.0
    %879 = vmatpush1.msra.mxu0 0.0
    %880 = vmatprep.subr.mxu0 0.0
    %881 = vmatpush1.msra.mxu0 0.0
    %882 = vmatprep.subr.mxu0 0.0
    %883 = vmatpush1.msra.mxu0 0.0
    %884 = vmatprep.subr.mxu0 0.0
    %885 = vmatpush1.msra.mxu0 0.0
    %886 = vmatprep.subr.mxu0 0.0
    %887 = vmatpush1.msra.mxu0 0.0
    %888 = vmatprep.subr.mxu0 0.0
    %889 = vmatpush1.msra.mxu0 0.0
    %890 = vmatprep.subr.mxu0 0.0
    %891 = vmatpush1.msra.mxu0 0.0
    %892 = vmatprep.subr.mxu0 0.0
    %893 = vmatpush1.msra.mxu0 0.0
    %894 = vmatprep.subr.mxu0 0.0
    %895 = vmatpush1.msra.mxu0 0.0
    %896 = vmatprep.subr.mxu0 0.0
    %897 = vmatpush1.msra.mxu0 0.0
    %898 = vmatprep.subr.mxu0 0.0
    %899 = vmatpush1.msra.mxu0 0.0
    %900 = vmatprep.subr.mxu0 0.0
    %901 = vmatpush1.msra.mxu0 0.0
    %902 = vmatprep.mubr.f32.mxu0 0.0
    %903 = vmatmul.mubr.f32.gmra.mrb[0].mxu0 %v592
    %v904 = vpop.f32.mrb[0].mxu0
    %v905 = vadd.f32 0.0, %v904
    %v906 = vpop.f32.mrb[0].mxu0
    %v907 = vadd.f32 0.0, %v906
    %908 = vdwg.mxu0
    %v909 = vadd.f32 %v763, %v834
    %v910 = vadd.f32 %v764, %v836
    %v911 = vadd.f32 %v765, %v905
    %v912 = vadd.f32 %v766, %v907
    %v913 = vxor.u32 %v758, 2147483648
    %v914 = vmul.f32 %v913, 1.442695
    %v915 = vpow.pop %v914
    %v916 = vadd.f32 %v915, 1.0
    %v917 = vrcp.pop %v916
    %v918 = vmul.f32 1.0, %v917
    %v919 = vxor.u32 %v759, 2147483648
    %v920 = vmul.f32 %v919, 1.442695
    %v921 = vpow.pop %v920
    %v922 = vadd.f32 %v921, 1.0
    %v923 = vrcp.pop %v922
    %v924 = vmul.f32 1.0, %v923
    %v925 = vtanh.pop %v760
    %v926 = vxor.u32 %v761, 2147483648
    %v927 = vmul.f32 %v926, 1.442695
    %v928 = vpow.pop %v927
    %v929 = vadd.f32 %v928, 1.0
    %v930 = vrcp.pop %v929
    %v931 = vmul.f32 1.0, %v930
    %v932 = vmul.f32 %v924, %v591
    %v933 = vmul.f32 %v918, %v925
    %v934 = vadd.f32 %v932, %v933
    %v935 = vtanh.pop %v934
    %v936 = vmul.f32 %v931, %v935
    %v937 = vxor.u32 %v909, 2147483648
    %v938 = vmul.f32 %v937, 1.442695
    %v939 = vpow.pop %v938
    %v940 = vadd.f32 %v939, 1.0
    %v941 = vrcp.pop %v940
    %v942 = vmul.f32 1.0, %v941
    %v943 = vxor.u32 %v910, 2147483648
    %v944 = vmul.f32 %v943, 1.442695
    %v945 = vpow.pop %v944
    %v946 = vadd.f32 %v945, 1.0
    %v947 = vrcp.pop %v946
    %v948 = vmul.f32 1.0, %v947
    %v949 = vtanh.pop %v911
    %v950 = vxor.u32 %v912, 2147483648
    %v951 = vmul.f32 %v950, 1.442695
    %v952 = vpow.pop %v951
    %v953 = vadd.f32 %v952, 1.0
    %v954 = vrcp.pop %v953
    %v955 = vmul.f32 1.0, %v954
    %v956 = vmul.f32 %v948, %v593
    %v957 = vmul.f32 %v942, %v949
    %v958 = vadd.f32 %v956, %v957
    %v959 = vtanh.pop %v958
    %v960 = vmul.f32 %v955, %v959
    %v961 = vstv %s609
    %vm962 = vcmp.lt.s32.totalorder %v961, %v90
    %v963 = vsel %vm962, 1, 0
    %964 = vset.pattern.permute.xlu0 0
    %965 = vperm.xlu0 %964, %v963
    %v966 = vpop.permute.xlu0 %965
    %vm967 = vcmp.eq.s32.totalorder %v966, 1
    %v968 = vstv %s610
    %vm969 = vcmp.lt.s32.totalorder %v968, %v90
    %v970 = vsel %vm969, 1, 0
    %971 = vset.pattern.permute.xlu0 0
    %972 = vperm.xlu0 %971, %v970
    %v973 = vpop.permute.xlu0 %972
    %vm974 = vcmp.eq.s32.totalorder %v973, 1
    %v975 = vsel %vm967, %v936, %v590
    %v976 = vsel %vm967, %v934, %v591
    %v977 = vsel %vm974, %v960, %v592
    %v978 = vsel %vm974, %v958, %v593
    %v979 = vsel %vm967, %v936, 0.0
    %s980 = scalar_lea.vmem %s6, 8
    %981 = vst [vmem:[%s980] sm:$0xff] %v979
    %v982 = vsel %vm974, %v960, 0.0
    %s983 = scalar_lea.vmem %s76, 48
    %984 = vst [vmem:[%s983] sm:$0xff] %v982
    %p985 = scmp.lt.s32.totalorder %s609, %s89
    %s986 = scalar_select %p985, 0.0, -inf
    %p987 = scmp.lt.s32.totalorder %s610, %s89
    %s988 = scalar_select %p987, 0.0, -inf
    %v989 = vstv %s986
    %v990 = vsel %vm967, %v936, %v989
    %v991 = vmax.f32 %v605, %v990
    %v992 = vstv %s988
    %v993 = vsel %vm974, %v960, %v992
    %v994 = vmax.f32 %v608, %v993
    %s995 = sadd.s32 %s225, 2
    %s996 = ssub.s32 5, %s225
    %s997 = scalar_lea.vmem %s1, 64
    %v998 = vld [vmem:[%s997] sm:$0xff]
    %v999 = vld [vmem:[%s997 + $0x8] sm:$0xff]
    %v1000 = vld [vmem:[%s997 + $0x10] sm:$0xff]
    %v1001 = vld [vmem:[%s997 + $0x18] sm:$0xff]
    %1002 = vmatprep.subr.mxu0 %v92
    %1003 = vmatpush1.msra.mxu0 %v91
    %1004 = vmatprep.subr.mxu0 %v96
    %1005 = vmatpush1.msra.mxu0 %v95
    %1006 = vmatprep.subr.mxu0 %v100
    %1007 = vmatpush1.msra.mxu0 %v99
    %1008 = vmatprep.subr.mxu0 %v104
    %1009 = vmatpush1.msra.mxu0 %v103
    %1010 = vmatprep.subr.mxu0 %v108
    %1011 = vmatpush1.msra.mxu0 %v107
    %1012 = vmatprep.subr.mxu0 %v112
    %1013 = vmatpush1.msra.mxu0 %v111
    %1014 = vmatprep.subr.mxu0 %v116
    %1015 = vmatpush1.msra.mxu0 %v115
    %1016 = vmatprep.subr.mxu0 %v120
    %1017 = vmatpush1.msra.mxu0 %v119
    %1018 = vmatprep.subr.mxu0 %v124
    %1019 = vmatpush1.msra.mxu0 %v123
    %1020 = vmatprep.subr.mxu0 %v128
    %1021 = vmatpush1.msra.mxu0 %v127
    %1022 = vmatprep.subr.mxu0 %v132
    %1023 = vmatpush1.msra.mxu0 %v131
    %1024 = vmatprep.subr.mxu0 %v136
    %1025 = vmatpush1.msra.mxu0 %v135
    %1026 = vmatprep.subr.mxu0 %v140
    %1027 = vmatpush1.msra.mxu0 %v139
    %1028 = vmatprep.subr.mxu0 %v144
    %1029 = vmatpush1.msra.mxu0 %v143
    %1030 = vmatprep.subr.mxu0 %v148
    %1031 = vmatpush1.msra.mxu0 %v147
    %1032 = vmatprep.subr.mxu0 %v152
    %1033 = vmatpush1.msra.mxu0 %v151
    %1034 = vmatprep.subr.mxu0 0.0
    %1035 = vmatpush1.msra.mxu0 0.0
    %1036 = vmatprep.subr.mxu0 0.0
    %1037 = vmatpush1.msra.mxu0 0.0
    %1038 = vmatprep.subr.mxu0 0.0
    %1039 = vmatpush1.msra.mxu0 0.0
    %1040 = vmatprep.subr.mxu0 0.0
    %1041 = vmatpush1.msra.mxu0 0.0
    %1042 = vmatprep.subr.mxu0 0.0
    %1043 = vmatpush1.msra.mxu0 0.0
    %1044 = vmatprep.subr.mxu0 0.0
    %1045 = vmatpush1.msra.mxu0 0.0
    %1046 = vmatprep.subr.mxu0 0.0
    %1047 = vmatpush1.msra.mxu0 0.0
    %1048 = vmatprep.subr.mxu0 0.0
    %1049 = vmatpush1.msra.mxu0 0.0
    %1050 = vmatprep.subr.mxu0 0.0
    %1051 = vmatpush1.msra.mxu0 0.0
    %1052 = vmatprep.subr.mxu0 0.0
    %1053 = vmatpush1.msra.mxu0 0.0
    %1054 = vmatprep.subr.mxu0 0.0
    %1055 = vmatpush1.msra.mxu0 0.0
    %1056 = vmatprep.subr.mxu0 0.0
    %1057 = vmatpush1.msra.mxu0 0.0
    %1058 = vmatprep.subr.mxu0 0.0
    %1059 = vmatpush1.msra.mxu0 0.0
    %1060 = vmatprep.subr.mxu0 0.0
    %1061 = vmatpush1.msra.mxu0 0.0
    %1062 = vmatprep.subr.mxu0 0.0
    %1063 = vmatpush1.msra.mxu0 0.0
    %1064 = vmatprep.subr.mxu0 0.0
    %1065 = vmatpush1.msra.mxu0 0.0
    %1066 = vmatprep.mubr.f32.mxu0 0.0
    %1067 = vmatmul.mubr.f32.gmra.mrb[0].mxu0 %v975
    %v1068 = vpop.f32.mrb[0].mxu0
    %v1069 = vadd.f32 0.0, %v1068
    %v1070 = vpop.f32.mrb[0].mxu0
    %v1071 = vadd.f32 0.0, %v1070
    %1072 = vdwg.mxu0
    %1073 = vmatprep.subr.mxu0 %v94
    %1074 = vmatpush1.msra.mxu0 %v93
    %1075 = vmatprep.subr.mxu0 %v98
    %1076 = vmatpush1.msra.mxu0 %v97
    %1077 = vmatprep.subr.mxu0 %v102
    %1078 = vmatpush1.msra.mxu0 %v101
    %1079 = vmatprep.subr.mxu0 %v106
    %1080 = vmatpush1.msra.mxu0 %v105
    %1081 = vmatprep.subr.mxu0 %v110
    %1082 = vmatpush1.msra.mxu0 %v109
    %1083 = vmatprep.subr.mxu0 %v114
    %1084 = vmatpush1.msra.mxu0 %v113
    %1085 = vmatprep.subr.mxu0 %v118
    %1086 = vmatpush1.msra.mxu0 %v117
    %1087 = vmatprep.subr.mxu0 %v122
    %1088 = vmatpush1.msra.mxu0 %v121
    %1089 = vmatprep.subr.mxu0 %v126
    %1090 = vmatpush1.msra.mxu0 %v125
    %1091 = vmatprep.subr.mxu0 %v130
    %1092 = vmatpush1.msra.mxu0 %v129
    %1093 = vmatprep.subr.mxu0 %v134
    %1094 = vmatpush1.msra.mxu0 %v133
    %1095 = vmatprep.subr.mxu0 %v138
    %1096 = vmatpush1.msra.mxu0 %v137
    %1097 = vmatprep.subr.mxu0 %v142
    %1098 = vmatpush1.msra.mxu0 %v141
    %1099 = vmatprep.subr.mxu0 %v146
    %1100 = vmatpush1.msra.mxu0 %v145
    %1101 = vmatprep.subr.mxu0 %v150
    %1102 = vmatpush1.msra.mxu0 %v149
    %1103 = vmatprep.subr.mxu0 %v154
    %1104 = vmatpush1.msra.mxu0 %v153
    %1105 = vmatprep.subr.mxu0 0.0
    %1106 = vmatpush1.msra.mxu0 0.0
    %1107 = vmatprep.subr.mxu0 0.0
    %1108 = vmatpush1.msra.mxu0 0.0
    %1109 = vmatprep.subr.mxu0 0.0
    %1110 = vmatpush1.msra.mxu0 0.0
    %1111 = vmatprep.subr.mxu0 0.0
    %1112 = vmatpush1.msra.mxu0 0.0
    %1113 = vmatprep.subr.mxu0 0.0
    %1114 = vmatpush1.msra.mxu0 0.0
    %1115 = vmatprep.subr.mxu0 0.0
    %1116 = vmatpush1.msra.mxu0 0.0
    %1117 = vmatprep.subr.mxu0 0.0
    %1118 = vmatpush1.msra.mxu0 0.0
    %1119 = vmatprep.subr.mxu0 0.0
    %1120 = vmatpush1.msra.mxu0 0.0
    %1121 = vmatprep.subr.mxu0 0.0
    %1122 = vmatpush1.msra.mxu0 0.0
    %1123 = vmatprep.subr.mxu0 0.0
    %1124 = vmatpush1.msra.mxu0 0.0
    %1125 = vmatprep.subr.mxu0 0.0
    %1126 = vmatpush1.msra.mxu0 0.0
    %1127 = vmatprep.subr.mxu0 0.0
    %1128 = vmatpush1.msra.mxu0 0.0
    %1129 = vmatprep.subr.mxu0 0.0
    %1130 = vmatpush1.msra.mxu0 0.0
    %1131 = vmatprep.subr.mxu0 0.0
    %1132 = vmatpush1.msra.mxu0 0.0
    %1133 = vmatprep.subr.mxu0 0.0
    %1134 = vmatpush1.msra.mxu0 0.0
    %1135 = vmatprep.subr.mxu0 0.0
    %1136 = vmatpush1.msra.mxu0 0.0
    %1137 = vmatprep.mubr.f32.mxu0 0.0
    %1138 = vmatmul.mubr.f32.gmra.mrb[0].mxu0 %v975
    %v1139 = vpop.f32.mrb[0].mxu0
    %v1140 = vadd.f32 0.0, %v1139
    %v1141 = vpop.f32.mrb[0].mxu0
    %v1142 = vadd.f32 0.0, %v1141
    %1143 = vdwg.mxu0
    %v1144 = vadd.f32 %v998, %v1069
    %v1145 = vadd.f32 %v999, %v1071
    %v1146 = vadd.f32 %v1000, %v1140
    %v1147 = vadd.f32 %v1001, %v1142
    %s1148 = scalar_lea.vmem %s68, 160
    %v1149 = vld [vmem:[%s1148] sm:$0xff]
    %v1150 = vld [vmem:[%s1148 + $0x8] sm:$0xff]
    %v1151 = vld [vmem:[%s1148 + $0x10] sm:$0xff]
    %v1152 = vld [vmem:[%s1148 + $0x18] sm:$0xff]
    %1153 = vmatprep.subr.mxu0 %v156
    %1154 = vmatpush1.msra.mxu0 %v155
    %1155 = vmatprep.subr.mxu0 %v160
    %1156 = vmatpush1.msra.mxu0 %v159
    %1157 = vmatprep.subr.mxu0 %v164
    %1158 = vmatpush1.msra.mxu0 %v163
    %1159 = vmatprep.subr.mxu0 %v168
    %1160 = vmatpush1.msra.mxu0 %v167
    %1161 = vmatprep.subr.mxu0 %v172
    %1162 = vmatpush1.msra.mxu0 %v171
    %1163 = vmatprep.subr.mxu0 %v176
    %1164 = vmatpush1.msra.mxu0 %v175
    %1165 = vmatprep.subr.mxu0 %v180
    %1166 = vmatpush1.msra.mxu0 %v179
    %1167 = vmatprep.subr.mxu0 %v184
    %1168 = vmatpush1.msra.mxu0 %v183
    %1169 = vmatprep.subr.mxu0 %v188
    %1170 = vmatpush1.msra.mxu0 %v187
    %1171 = vmatprep.subr.mxu0 %v192
    %1172 = vmatpush1.msra.mxu0 %v191
    %1173 = vmatprep.subr.mxu0 %v196
    %1174 = vmatpush1.msra.mxu0 %v195
    %1175 = vmatprep.subr.mxu0 %v200
    %1176 = vmatpush1.msra.mxu0 %v199
    %1177 = vmatprep.subr.mxu0 %v204
    %1178 = vmatpush1.msra.mxu0 %v203
    %1179 = vmatprep.subr.mxu0 %v208
    %1180 = vmatpush1.msra.mxu0 %v207
    %1181 = vmatprep.subr.mxu0 %v212
    %1182 = vmatpush1.msra.mxu0 %v211
    %1183 = vmatprep.subr.mxu0 %v216
    %1184 = vmatpush1.msra.mxu0 %v215
    %1185 = vmatprep.subr.mxu0 0.0
    %1186 = vmatpush1.msra.mxu0 0.0
    %1187 = vmatprep.subr.mxu0 0.0
    %1188 = vmatpush1.msra.mxu0 0.0
    %1189 = vmatprep.subr.mxu0 0.0
    %1190 = vmatpush1.msra.mxu0 0.0
    %1191 = vmatprep.subr.mxu0 0.0
    %1192 = vmatpush1.msra.mxu0 0.0
    %1193 = vmatprep.subr.mxu0 0.0
    %1194 = vmatpush1.msra.mxu0 0.0
    %1195 = vmatprep.subr.mxu0 0.0
    %1196 = vmatpush1.msra.mxu0 0.0
    %1197 = vmatprep.subr.mxu0 0.0
    %1198 = vmatpush1.msra.mxu0 0.0
    %1199 = vmatprep.subr.mxu0 0.0
    %1200 = vmatpush1.msra.mxu0 0.0
    %1201 = vmatprep.subr.mxu0 0.0
    %1202 = vmatpush1.msra.mxu0 0.0
    %1203 = vmatprep.subr.mxu0 0.0
    %1204 = vmatpush1.msra.mxu0 0.0
    %1205 = vmatprep.subr.mxu0 0.0
    %1206 = vmatpush1.msra.mxu0 0.0
    %1207 = vmatprep.subr.mxu0 0.0
    %1208 = vmatpush1.msra.mxu0 0.0
    %1209 = vmatprep.subr.mxu0 0.0
    %1210 = vmatpush1.msra.mxu0 0.0
    %1211 = vmatprep.subr.mxu0 0.0
    %1212 = vmatpush1.msra.mxu0 0.0
    %1213 = vmatprep.subr.mxu0 0.0
    %1214 = vmatpush1.msra.mxu0 0.0
    %1215 = vmatprep.subr.mxu0 0.0
    %1216 = vmatpush1.msra.mxu0 0.0
    %1217 = vmatprep.mubr.f32.mxu0 0.0
    %1218 = vmatmul.mubr.f32.gmra.mrb[0].mxu0 %v977
    %v1219 = vpop.f32.mrb[0].mxu0
    %v1220 = vadd.f32 0.0, %v1219
    %v1221 = vpop.f32.mrb[0].mxu0
    %v1222 = vadd.f32 0.0, %v1221
    %1223 = vdwg.mxu0
    %1224 = vmatprep.subr.mxu0 %v158
    %1225 = vmatpush1.msra.mxu0 %v157
    %1226 = vmatprep.subr.mxu0 %v162
    %1227 = vmatpush1.msra.mxu0 %v161
    %1228 = vmatprep.subr.mxu0 %v166
    %1229 = vmatpush1.msra.mxu0 %v165
    %1230 = vmatprep.subr.mxu0 %v170
    %1231 = vmatpush1.msra.mxu0 %v169
    %1232 = vmatprep.subr.mxu0 %v174
    %1233 = vmatpush1.msra.mxu0 %v173
    %1234 = vmatprep.subr.mxu0 %v178
    %1235 = vmatpush1.msra.mxu0 %v177
    %1236 = vmatprep.subr.mxu0 %v182
    %1237 = vmatpush1.msra.mxu0 %v181
    %1238 = vmatprep.subr.mxu0 %v186
    %1239 = vmatpush1.msra.mxu0 %v185
    %1240 = vmatprep.subr.mxu0 %v190
    %1241 = vmatpush1.msra.mxu0 %v189
    %1242 = vmatprep.subr.mxu0 %v194
    %1243 = vmatpush1.msra.mxu0 %v193
    %1244 = vmatprep.subr.mxu0 %v198
    %1245 = vmatpush1.msra.mxu0 %v197
    %1246 = vmatprep.subr.mxu0 %v202
    %1247 = vmatpush1.msra.mxu0 %v201
    %1248 = vmatprep.subr.mxu0 %v206
    %1249 = vmatpush1.msra.mxu0 %v205
    %1250 = vmatprep.subr.mxu0 %v210
    %1251 = vmatpush1.msra.mxu0 %v209
    %1252 = vmatprep.subr.mxu0 %v214
    %1253 = vmatpush1.msra.mxu0 %v213
    %1254 = vmatprep.subr.mxu0 %v218
    %1255 = vmatpush1.msra.mxu0 %v217
    %1256 = vmatprep.subr.mxu0 0.0
    %1257 = vmatpush1.msra.mxu0 0.0
    %1258 = vmatprep.subr.mxu0 0.0
    %1259 = vmatpush1.msra.mxu0 0.0
    %1260 = vmatprep.subr.mxu0 0.0
    %1261 = vmatpush1.msra.mxu0 0.0
    %1262 = vmatprep.subr.mxu0 0.0
    %1263 = vmatpush1.msra.mxu0 0.0
    %1264 = vmatprep.subr.mxu0 0.0
    %1265 = vmatpush1.msra.mxu0 0.0
    %1266 = vmatprep.subr.mxu0 0.0
    %1267 = vmatpush1.msra.mxu0 0.0
    %1268 = vmatprep.subr.mxu0 0.0
    %1269 = vmatpush1.msra.mxu0 0.0
    %1270 = vmatprep.subr.mxu0 0.0
    %1271 = vmatpush1.msra.mxu0 0.0
    %1272 = vmatprep.subr.mxu0 0.0
    %1273 = vmatpush1.msra.mxu0 0.0
    %1274 = vmatprep.subr.mxu0 0.0
    %1275 = vmatpush1.msra.mxu0 0.0
    %1276 = vmatprep.subr.mxu0 0.0
    %1277 = vmatpush1.msra.mxu0 0.0
    %1278 = vmatprep.subr.mxu0 0.0
    %1279 = vmatpush1.msra.mxu0 0.0
    %1280 = vmatprep.subr.mxu0 0.0
    %1281 = vmatpush1.msra.mxu0 0.0
    %1282 = vmatprep.subr.mxu0 0.0
    %1283 = vmatpush1.msra.mxu0 0.0
    %1284 = vmatprep.subr.mxu0 0.0
    %1285 = vmatpush1.msra.mxu0 0.0
    %1286 = vmatprep.subr.mxu0 0.0
    %1287 = vmatpush1.msra.mxu0 0.0
    %1288 = vmatprep.mubr.f32.mxu0 0.0
    %1289 = vmatmul.mubr.f32.gmra.mrb[0].mxu0 %v977
    %v1290 = vpop.f32.mrb[0].mxu0
    %v1291 = vadd.f32 0.0, %v1290
    %v1292 = vpop.f32.mrb[0].mxu0
    %v1293 = vadd.f32 0.0, %v1292
    %1294 = vdwg.mxu0
    %v1295 = vadd.f32 %v1149, %v1220
    %v1296 = vadd.f32 %v1150, %v1222
    %v1297 = vadd.f32 %v1151, %v1291
    %v1298 = vadd.f32 %v1152, %v1293
    %v1299 = vxor.u32 %v1144, 2147483648
    %v1300 = vmul.f32 %v1299, 1.442695
    %v1301 = vpow.pop %v1300
    %v1302 = vadd.f32 %v1301, 1.0
    %v1303 = vrcp.pop %v1302
    %v1304 = vmul.f32 1.0, %v1303
    %v1305 = vxor.u32 %v1145, 2147483648
    %v1306 = vmul.f32 %v1305, 1.442695
    %v1307 = vpow.pop %v1306
    %v1308 = vadd.f32 %v1307, 1.0
    %v1309 = vrcp.pop %v1308
    %v1310 = vmul.f32 1.0, %v1309
    %v1311 = vtanh.pop %v1146
    %v1312 = vxor.u32 %v1147, 2147483648
    %v1313 = vmul.f32 %v1312, 1.442695
    %v1314 = vpow.pop %v1313
    %v1315 = vadd.f32 %v1314, 1.0
    %v1316 = vrcp.pop %v1315
    %v1317 = vmul.f32 1.0, %v1316
    %v1318 = vmul.f32 %v1310, %v976
    %v1319 = vmul.f32 %v1304, %v1311
    %v1320 = vadd.f32 %v1318, %v1319
    %v1321 = vtanh.pop %v1320
    %v1322 = vmul.f32 %v1317, %v1321
    %v1323 = vxor.u32 %v1295, 2147483648
    %v1324 = vmul.f32 %v1323, 1.442695
    %v1325 = vpow.pop %v1324
    %v1326 = vadd.f32 %v1325, 1.0
    %v1327 = vrcp.pop %v1326
    %v1328 = vmul.f32 1.0, %v1327
    %v1329 = vxor.u32 %v1296, 2147483648
    %v1330 = vmul.f32 %v1329, 1.442695
    %v1331 = vpow.pop %v1330
    %v1332 = vadd.f32 %v1331, 1.0
    %v1333 = vrcp.pop %v1332
    %v1334 = vmul.f32 1.0, %v1333
    %v1335 = vtanh.pop %v1297
    %v1336 = vxor.u32 %v1298, 2147483648
    %v1337 = vmul.f32 %v1336, 1.442695
    %v1338 = vpow.pop %v1337
    %v1339 = vadd.f32 %v1338, 1.0
    %v1340 = vrcp.pop %v1339
    %v1341 = vmul.f32 1.0, %v1340
    %v1342 = vmul.f32 %v1334, %v978
    %v1343 = vmul.f32 %v1328, %v1335
    %v1344 = vadd.f32 %v1342, %v1343
    %v1345 = vtanh.pop %v1344
    %v1346 = vmul.f32 %v1341, %v1345
    %v1347 = vstv %s995
    %vm1348 = vcmp.lt.s32.totalorder %v1347, %v90
    %v1349 = vsel %vm1348, 1, 0
    %1350 = vset.pattern.permute.xlu0 0
    %1351 = vperm.xlu0 %1350, %v1349
    %v1352 = vpop.permute.xlu0 %1351
    %vm1353 = vcmp.eq.s32.totalorder %v1352, 1
    %v1354 = vstv %s996
    %vm1355 = vcmp.lt.s32.totalorder %v1354, %v90
    %v1356 = vsel %vm1355, 1, 0
    %1357 = vset.pattern.permute.xlu0 0
    %1358 = vperm.xlu0 %1357, %v1356
    %v1359 = vpop.permute.xlu0 %1358
    %vm1360 = vcmp.eq.s32.totalorder %v1359, 1
    %v1361 = vsel %vm1353, %v1322, %v975
    %v1362 = vsel %vm1353, %v1320, %v976
    %v1363 = vsel %vm1360, %v1346, %v977
    %v1364 = vsel %vm1360, %v1344, %v978
    %v1365 = vsel %vm1353, %v1322, 0.0
    %s1366 = scalar_lea.vmem %s6, 16
    %1367 = vst [vmem:[%s1366] sm:$0xff] %v1365
    %v1368 = vsel %vm1360, %v1346, 0.0
    %s1369 = scalar_lea.vmem %s76, 40
    %1370 = vst [vmem:[%s1369] sm:$0xff] %v1368
    %p1371 = scmp.lt.s32.totalorder %s995, %s89
    %s1372 = scalar_select %p1371, 0.0, -inf
    %p1373 = scmp.lt.s32.totalorder %s996, %s89
    %s1374 = scalar_select %p1373, 0.0, -inf
    %v1375 = vstv %s1372
    %v1376 = vsel %vm1353, %v1322, %v1375
    %v1377 = vmax.f32 %v991, %v1376
    %v1378 = vstv %s1374
    %v1379 = vsel %vm1360, %v1346, %v1378
    %v1380 = vmax.f32 %v994, %v1379
    %s1381 = sadd.s32 %s225, 3
    %s1382 = ssub.s32 4, %s225
    %s1383 = scalar_lea.vmem %s1, 96
    %v1384 = vld [vmem:[%s1383] sm:$0xff]
    %v1385 = vld [vmem:[%s1383 + $0x8] sm:$0xff]
    %v1386 = vld [vmem:[%s1383 + $0x10] sm:$0xff]
    %v1387 = vld [vmem:[%s1383 + $0x18] sm:$0xff]
    %1388 = vmatprep.subr.mxu0 %v92
    %1389 = vmatpush1.msra.mxu0 %v91
    %1390 = vmatprep.subr.mxu0 %v96
    %1391 = vmatpush1.msra.mxu0 %v95
    %1392 = vmatprep.subr.mxu0 %v100
    %1393 = vmatpush1.msra.mxu0 %v99
    %1394 = vmatprep.subr.mxu0 %v104
    %1395 = vmatpush1.msra.mxu0 %v103
    %1396 = vmatprep.subr.mxu0 %v108
    %1397 = vmatpush1.msra.mxu0 %v107
    %1398 = vmatprep.subr.mxu0 %v112
    %1399 = vmatpush1.msra.mxu0 %v111
    %1400 = vmatprep.subr.mxu0 %v116
    %1401 = vmatpush1.msra.mxu0 %v115
    %1402 = vmatprep.subr.mxu0 %v120
    %1403 = vmatpush1.msra.mxu0 %v119
    %1404 = vmatprep.subr.mxu0 %v124
    %1405 = vmatpush1.msra.mxu0 %v123
    %1406 = vmatprep.subr.mxu0 %v128
    %1407 = vmatpush1.msra.mxu0 %v127
    %1408 = vmatprep.subr.mxu0 %v132
    %1409 = vmatpush1.msra.mxu0 %v131
    %1410 = vmatprep.subr.mxu0 %v136
    %1411 = vmatpush1.msra.mxu0 %v135
    %1412 = vmatprep.subr.mxu0 %v140
    %1413 = vmatpush1.msra.mxu0 %v139
    %1414 = vmatprep.subr.mxu0 %v144
    %1415 = vmatpush1.msra.mxu0 %v143
    %1416 = vmatprep.subr.mxu0 %v148
    %1417 = vmatpush1.msra.mxu0 %v147
    %1418 = vmatprep.subr.mxu0 %v152
    %1419 = vmatpush1.msra.mxu0 %v151
    %1420 = vmatprep.subr.mxu0 0.0
    %1421 = vmatpush1.msra.mxu0 0.0
    %1422 = vmatprep.subr.mxu0 0.0
    %1423 = vmatpush1.msra.mxu0 0.0
    %1424 = vmatprep.subr.mxu0 0.0
    %1425 = vmatpush1.msra.mxu0 0.0
    %1426 = vmatprep.subr.mxu0 0.0
    %1427 = vmatpush1.msra.mxu0 0.0
    %1428 = vmatprep.subr.mxu0 0.0
    %1429 = vmatpush1.msra.mxu0 0.0
    %1430 = vmatprep.subr.mxu0 0.0
    %1431 = vmatpush1.msra.mxu0 0.0
    %1432 = vmatprep.subr.mxu0 0.0
    %1433 = vmatpush1.msra.mxu0 0.0
    %1434 = vmatprep.subr.mxu0 0.0
    %1435 = vmatpush1.msra.mxu0 0.0
    %1436 = vmatprep.subr.mxu0 0.0
    %1437 = vmatpush1.msra.mxu0 0.0
    %1438 = vmatprep.subr.mxu0 0.0
    %1439 = vmatpush1.msra.mxu0 0.0
    %1440 = vmatprep.subr.mxu0 0.0
    %1441 = vmatpush1.msra.mxu0 0.0
    %1442 = vmatprep.subr.mxu0 0.0
    %1443 = vmatpush1.msra.mxu0 0.0
    %1444 = vmatprep.subr.mxu0 0.0
    %1445 = vmatpush1.msra.mxu0 0.0
    %1446 = vmatprep.subr.mxu0 0.0
    %1447 = vmatpush1.msra.mxu0 0.0
    %1448 = vmatprep.subr.mxu0 0.0
    %1449 = vmatpush1.msra.mxu0 0.0
    %1450 = vmatprep.subr.mxu0 0.0
    %1451 = vmatpush1.msra.mxu0 0.0
    %1452 = vmatprep.mubr.f32.mxu0 0.0
    %1453 = vmatmul.mubr.f32.gmra.mrb[0].mxu0 %v1361
    %v1454 = vpop.f32.mrb[0].mxu0
    %v1455 = vadd.f32 0.0, %v1454
    %v1456 = vpop.f32.mrb[0].mxu0
    %v1457 = vadd.f32 0.0, %v1456
    %1458 = vdwg.mxu0
    %1459 = vmatprep.subr.mxu0 %v94
    %1460 = vmatpush1.msra.mxu0 %v93
    %1461 = vmatprep.subr.mxu0 %v98
    %1462 = vmatpush1.msra.mxu0 %v97
    %1463 = vmatprep.subr.mxu0 %v102
    %1464 = vmatpush1.msra.mxu0 %v101
    %1465 = vmatprep.subr.mxu0 %v106
    %1466 = vmatpush1.msra.mxu0 %v105
    %1467 = vmatprep.subr.mxu0 %v110
    %1468 = vmatpush1.msra.mxu0 %v109
    %1469 = vmatprep.subr.mxu0 %v114
    %1470 = vmatpush1.msra.mxu0 %v113
    %1471 = vmatprep.subr.mxu0 %v118
    %1472 = vmatpush1.msra.mxu0 %v117
    %1473 = vmatprep.subr.mxu0 %v122
    %1474 = vmatpush1.msra.mxu0 %v121
    %1475 = vmatprep.subr.mxu0 %v126
    %1476 = vmatpush1.msra.mxu0 %v125
    %1477 = vmatprep.subr.mxu0 %v130
    %1478 = vmatpush1.msra.mxu0 %v129
    %1479 = vmatprep.subr.mxu0 %v134
    %1480 = vmatpush1.msra.mxu0 %v133
    %1481 = vmatprep.subr.mxu0 %v138
    %1482 = vmatpush1.msra.mxu0 %v137
    %1483 = vmatprep.subr.mxu0 %v142
    %1484 = vmatpush1.msra.mxu0 %v141
    %1485 = vmatprep.subr.mxu0 %v146
    %1486 = vmatpush1.msra.mxu0 %v145
    %1487 = vmatprep.subr.mxu0 %v150
    %1488 = vmatpush1.msra.mxu0 %v149
    %1489 = vmatprep.subr.mxu0 %v154
    %1490 = vmatpush1.msra.mxu0 %v153
    %1491 = vmatprep.subr.mxu0 0.0
    %1492 = vmatpush1.msra.mxu0 0.0
    %1493 = vmatprep.subr.mxu0 0.0
    %1494 = vmatpush1.msra.mxu0 0.0
    %1495 = vmatprep.subr.mxu0 0.0
    %1496 = vmatpush1.msra.mxu0 0.0
    %1497 = vmatprep.subr.mxu0 0.0
    %1498 = vmatpush1.msra.mxu0 0.0
    %1499 = vmatprep.subr.mxu0 0.0
    %1500 = vmatpush1.msra.mxu0 0.0
    %1501 = vmatprep.subr.mxu0 0.0
    %1502 = vmatpush1.msra.mxu0 0.0
    %1503 = vmatprep.subr.mxu0 0.0
    %1504 = vmatpush1.msra.mxu0 0.0
    %1505 = vmatprep.subr.mxu0 0.0
    %1506 = vmatpush1.msra.mxu0 0.0
    %1507 = vmatprep.subr.mxu0 0.0
    %1508 = vmatpush1.msra.mxu0 0.0
    %1509 = vmatprep.subr.mxu0 0.0
    %1510 = vmatpush1.msra.mxu0 0.0
    %1511 = vmatprep.subr.mxu0 0.0
    %1512 = vmatpush1.msra.mxu0 0.0
    %1513 = vmatprep.subr.mxu0 0.0
    %1514 = vmatpush1.msra.mxu0 0.0
    %1515 = vmatprep.subr.mxu0 0.0
    %1516 = vmatpush1.msra.mxu0 0.0
    %1517 = vmatprep.subr.mxu0 0.0
    %1518 = vmatpush1.msra.mxu0 0.0
    %1519 = vmatprep.subr.mxu0 0.0
    %1520 = vmatpush1.msra.mxu0 0.0
    %1521 = vmatprep.subr.mxu0 0.0
    %1522 = vmatpush1.msra.mxu0 0.0
    %1523 = vmatprep.mubr.f32.mxu0 0.0
    %1524 = vmatmul.mubr.f32.gmra.mrb[0].mxu0 %v1361
    %v1525 = vpop.f32.mrb[0].mxu0
    %v1526 = vadd.f32 0.0, %v1525
    %v1527 = vpop.f32.mrb[0].mxu0
    %v1528 = vadd.f32 0.0, %v1527
    %1529 = vdwg.mxu0
    %v1530 = vadd.f32 %v1384, %v1455
    %v1531 = vadd.f32 %v1385, %v1457
    %v1532 = vadd.f32 %v1386, %v1526
    %v1533 = vadd.f32 %v1387, %v1528
    %s1534 = scalar_lea.vmem %s68, 128
    %v1535 = vld [vmem:[%s1534] sm:$0xff]
    %v1536 = vld [vmem:[%s1534 + $0x8] sm:$0xff]
    %v1537 = vld [vmem:[%s1534 + $0x10] sm:$0xff]
    %v1538 = vld [vmem:[%s1534 + $0x18] sm:$0xff]
    %1539 = vmatprep.subr.mxu0 %v156
    %1540 = vmatpush1.msra.mxu0 %v155
    %1541 = vmatprep.subr.mxu0 %v160
    %1542 = vmatpush1.msra.mxu0 %v159
    %1543 = vmatprep.subr.mxu0 %v164
    %1544 = vmatpush1.msra.mxu0 %v163
    %1545 = vmatprep.subr.mxu0 %v168
    %1546 = vmatpush1.msra.mxu0 %v167
    %1547 = vmatprep.subr.mxu0 %v172
    %1548 = vmatpush1.msra.mxu0 %v171
    %1549 = vmatprep.subr.mxu0 %v176
    %1550 = vmatpush1.msra.mxu0 %v175
    %1551 = vmatprep.subr.mxu0 %v180
    %1552 = vmatpush1.msra.mxu0 %v179
    %1553 = vmatprep.subr.mxu0 %v184
    %1554 = vmatpush1.msra.mxu0 %v183
    %1555 = vmatprep.subr.mxu0 %v188
    %1556 = vmatpush1.msra.mxu0 %v187
    %1557 = vmatprep.subr.mxu0 %v192
    %1558 = vmatpush1.msra.mxu0 %v191
    %1559 = vmatprep.subr.mxu0 %v196
    %1560 = vmatpush1.msra.mxu0 %v195
    %1561 = vmatprep.subr.mxu0 %v200
    %1562 = vmatpush1.msra.mxu0 %v199
    %1563 = vmatprep.subr.mxu0 %v204
    %1564 = vmatpush1.msra.mxu0 %v203
    %1565 = vmatprep.subr.mxu0 %v208
    %1566 = vmatpush1.msra.mxu0 %v207
    %1567 = vmatprep.subr.mxu0 %v212
    %1568 = vmatpush1.msra.mxu0 %v211
    %1569 = vmatprep.subr.mxu0 %v216
    %1570 = vmatpush1.msra.mxu0 %v215
    %1571 = vmatprep.subr.mxu0 0.0
    %1572 = vmatpush1.msra.mxu0 0.0
    %1573 = vmatprep.subr.mxu0 0.0
    %1574 = vmatpush1.msra.mxu0 0.0
    %1575 = vmatprep.subr.mxu0 0.0
    %1576 = vmatpush1.msra.mxu0 0.0
    %1577 = vmatprep.subr.mxu0 0.0
    %1578 = vmatpush1.msra.mxu0 0.0
    %1579 = vmatprep.subr.mxu0 0.0
    %1580 = vmatpush1.msra.mxu0 0.0
    %1581 = vmatprep.subr.mxu0 0.0
    %1582 = vmatpush1.msra.mxu0 0.0
    %1583 = vmatprep.subr.mxu0 0.0
    %1584 = vmatpush1.msra.mxu0 0.0
    %1585 = vmatprep.subr.mxu0 0.0
    %1586 = vmatpush1.msra.mxu0 0.0
    %1587 = vmatprep.subr.mxu0 0.0
    %1588 = vmatpush1.msra.mxu0 0.0
    %1589 = vmatprep.subr.mxu0 0.0
    %1590 = vmatpush1.msra.mxu0 0.0
    %1591 = vmatprep.subr.mxu0 0.0
    %1592 = vmatpush1.msra.mxu0 0.0
    %1593 = vmatprep.subr.mxu0 0.0
    %1594 = vmatpush1.msra.mxu0 0.0
    %1595 = vmatprep.subr.mxu0 0.0
    %1596 = vmatpush1.msra.mxu0 0.0
    %1597 = vmatprep.subr.mxu0 0.0
    %1598 = vmatpush1.msra.mxu0 0.0
    %1599 = vmatprep.subr.mxu0 0.0
    %1600 = vmatpush1.msra.mxu0 0.0
    %1601 = vmatprep.subr.mxu0 0.0
    %1602 = vmatpush1.msra.mxu0 0.0
    %1603 = vmatprep.mubr.f32.mxu0 0.0
    %1604 = vmatmul.mubr.f32.gmra.mrb[0].mxu0 %v1363
    %v1605 = vpop.f32.mrb[0].mxu0
    %v1606 = vadd.f32 0.0, %v1605
    %v1607 = vpop.f32.mrb[0].mxu0
    %v1608 = vadd.f32 0.0, %v1607
    %1609 = vdwg.mxu0
    %1610 = vmatprep.subr.mxu0 %v158
    %1611 = vmatpush1.msra.mxu0 %v157
    %1612 = vmatprep.subr.mxu0 %v162
    %1613 = vmatpush1.msra.mxu0 %v161
    %1614 = vmatprep.subr.mxu0 %v166
    %1615 = vmatpush1.msra.mxu0 %v165
    %1616 = vmatprep.subr.mxu0 %v170
    %1617 = vmatpush1.msra.mxu0 %v169
    %1618 = vmatprep.subr.mxu0 %v174
    %1619 = vmatpush1.msra.mxu0 %v173
    %1620 = vmatprep.subr.mxu0 %v178
    %1621 = vmatpush1.msra.mxu0 %v177
    %1622 = vmatprep.subr.mxu0 %v182
    %1623 = vmatpush1.msra.mxu0 %v181
    %1624 = vmatprep.subr.mxu0 %v186
    %1625 = vmatpush1.msra.mxu0 %v185
    %1626 = vmatprep.subr.mxu0 %v190
    %1627 = vmatpush1.msra.mxu0 %v189
    %1628 = vmatprep.subr.mxu0 %v194
    %1629 = vmatpush1.msra.mxu0 %v193
    %1630 = vmatprep.subr.mxu0 %v198
    %1631 = vmatpush1.msra.mxu0 %v197
    %1632 = vmatprep.subr.mxu0 %v202
    %1633 = vmatpush1.msra.mxu0 %v201
    %1634 = vmatprep.subr.mxu0 %v206
    %1635 = vmatpush1.msra.mxu0 %v205
    %1636 = vmatprep.subr.mxu0 %v210
    %1637 = vmatpush1.msra.mxu0 %v209
    %1638 = vmatprep.subr.mxu0 %v214
    %1639 = vmatpush1.msra.mxu0 %v213
    %1640 = vmatprep.subr.mxu0 %v218
    %1641 = vmatpush1.msra.mxu0 %v217
    %1642 = vmatprep.subr.mxu0 0.0
    %1643 = vmatpush1.msra.mxu0 0.0
    %1644 = vmatprep.subr.mxu0 0.0
    %1645 = vmatpush1.msra.mxu0 0.0
    %1646 = vmatprep.subr.mxu0 0.0
    %1647 = vmatpush1.msra.mxu0 0.0
    %1648 = vmatprep.subr.mxu0 0.0
    %1649 = vmatpush1.msra.mxu0 0.0
    %1650 = vmatprep.subr.mxu0 0.0
    %1651 = vmatpush1.msra.mxu0 0.0
    %1652 = vmatprep.subr.mxu0 0.0
    %1653 = vmatpush1.msra.mxu0 0.0
    %1654 = vmatprep.subr.mxu0 0.0
    %1655 = vmatpush1.msra.mxu0 0.0
    %1656 = vmatprep.subr.mxu0 0.0
    %1657 = vmatpush1.msra.mxu0 0.0
    %1658 = vmatprep.subr.mxu0 0.0
    %1659 = vmatpush1.msra.mxu0 0.0
    %1660 = vmatprep.subr.mxu0 0.0
    %1661 = vmatpush1.msra.mxu0 0.0
    %1662 = vmatprep.subr.mxu0 0.0
    %1663 = vmatpush1.msra.mxu0 0.0
    %1664 = vmatprep.subr.mxu0 0.0
    %1665 = vmatpush1.msra.mxu0 0.0
    %1666 = vmatprep.subr.mxu0 0.0
    %1667 = vmatpush1.msra.mxu0 0.0
    %1668 = vmatprep.subr.mxu0 0.0
    %1669 = vmatpush1.msra.mxu0 0.0
    %1670 = vmatprep.subr.mxu0 0.0
    %1671 = vmatpush1.msra.mxu0 0.0
    %1672 = vmatprep.subr.mxu0 0.0
    %1673 = vmatpush1.msra.mxu0 0.0
    %1674 = vmatprep.mubr.f32.mxu0 0.0
    %1675 = vmatmul.mubr.f32.gmra.mrb[0].mxu0 %v1363
    %v1676 = vpop.f32.mrb[0].mxu0
    %v1677 = vadd.f32 0.0, %v1676
    %v1678 = vpop.f32.mrb[0].mxu0
    %v1679 = vadd.f32 0.0, %v1678
    %1680 = vdwg.mxu0
    %v1681 = vadd.f32 %v1535, %v1606
    %v1682 = vadd.f32 %v1536, %v1608
    %v1683 = vadd.f32 %v1537, %v1677
    %v1684 = vadd.f32 %v1538, %v1679
    %v1685 = vxor.u32 %v1530, 2147483648
    %v1686 = vmul.f32 %v1685, 1.442695
    %v1687 = vpow.pop %v1686
    %v1688 = vadd.f32 %v1687, 1.0
    %v1689 = vrcp.pop %v1688
    %v1690 = vmul.f32 1.0, %v1689
    %v1691 = vxor.u32 %v1531, 2147483648
    %v1692 = vmul.f32 %v1691, 1.442695
    %v1693 = vpow.pop %v1692
    %v1694 = vadd.f32 %v1693, 1.0
    %v1695 = vrcp.pop %v1694
    %v1696 = vmul.f32 1.0, %v1695
    %v1697 = vtanh.pop %v1532
    %v1698 = vxor.u32 %v1533, 2147483648
    %v1699 = vmul.f32 %v1698, 1.442695
    %v1700 = vpow.pop %v1699
    %v1701 = vadd.f32 %v1700, 1.0
    %v1702 = vrcp.pop %v1701
    %v1703 = vmul.f32 1.0, %v1702
    %v1704 = vmul.f32 %v1696, %v1362
    %v1705 = vmul.f32 %v1690, %v1697
    %v1706 = vadd.f32 %v1704, %v1705
    %v1707 = vtanh.pop %v1706
    %v1708 = vmul.f32 %v1703, %v1707
    %v1709 = vxor.u32 %v1681, 2147483648
    %v1710 = vmul.f32 %v1709, 1.442695
    %v1711 = vpow.pop %v1710
    %v1712 = vadd.f32 %v1711, 1.0
    %v1713 = vrcp.pop %v1712
    %v1714 = vmul.f32 1.0, %v1713
    %v1715 = vxor.u32 %v1682, 2147483648
    %v1716 = vmul.f32 %v1715, 1.442695
    %v1717 = vpow.pop %v1716
    %v1718 = vadd.f32 %v1717, 1.0
    %v1719 = vrcp.pop %v1718
    %v1720 = vmul.f32 1.0, %v1719
    %v1721 = vtanh.pop %v1683
    %v1722 = vxor.u32 %v1684, 2147483648
    %v1723 = vmul.f32 %v1722, 1.442695
    %v1724 = vpow.pop %v1723
    %v1725 = vadd.f32 %v1724, 1.0
    %v1726 = vrcp.pop %v1725
    %v1727 = vmul.f32 1.0, %v1726
    %v1728 = vmul.f32 %v1720, %v1364
    %v1729 = vmul.f32 %v1714, %v1721
    %v1730 = vadd.f32 %v1728, %v1729
    %v1731 = vtanh.pop %v1730
    %v1732 = vmul.f32 %v1727, %v1731
    %v1733 = vstv %s1381
    %vm1734 = vcmp.lt.s32.totalorder %v1733, %v90
    %v1735 = vsel %vm1734, 1, 0
    %1736 = vset.pattern.permute.xlu0 0
    %1737 = vperm.xlu0 %1736, %v1735
    %v1738 = vpop.permute.xlu0 %1737
    %vm1739 = vcmp.eq.s32.totalorder %v1738, 1
    %v1740 = vstv %s1382
    %vm1741 = vcmp.lt.s32.totalorder %v1740, %v90
    %v1742 = vsel %vm1741, 1, 0
    %1743 = vset.pattern.permute.xlu0 0
    %1744 = vperm.xlu0 %1743, %v1742
    %v1745 = vpop.permute.xlu0 %1744
    %vm1746 = vcmp.eq.s32.totalorder %v1745, 1
    %v1747 = vsel %vm1739, %v1708, %v1361
    %v1748 = vsel %vm1739, %v1706, %v1362
    %v1749 = vsel %vm1746, %v1732, %v1363
    %v1750 = vsel %vm1746, %v1730, %v1364
    %v1751 = vsel %vm1739, %v1708, 0.0
    %s1752 = scalar_lea.vmem %s6, 24
    %1753 = vst [vmem:[%s1752] sm:$0xff] %v1751
    %v1754 = vsel %vm1746, %v1732, 0.0
    %s1755 = scalar_lea.vmem %s76, 32
    %1756 = vst [vmem:[%s1755] sm:$0xff] %v1754
    %p1757 = scmp.lt.s32.totalorder %s1381, %s89
    %s1758 = scalar_select %p1757, 0.0, -inf
    %p1759 = scmp.lt.s32.totalorder %s1382, %s89
    %s1760 = scalar_select %p1759, 0.0, -inf
    %v1761 = vstv %s1758
    %v1762 = vsel %vm1739, %v1708, %v1761
    %v1763 = vmax.f32 %v1377, %v1762
    %v1764 = vstv %s1760
    %v1765 = vsel %vm1746, %v1732, %v1764
    %v1766 = vmax.f32 %v1380, %v1765
    %s1767 = sadd.s32 %s225, 4
    %s1768 = ssub.s32 3, %s225
    %s1769 = scalar_lea.vmem %s1, 128
    %v1770 = vld [vmem:[%s1769] sm:$0xff]
    %v1771 = vld [vmem:[%s1769 + $0x8] sm:$0xff]
    %v1772 = vld [vmem:[%s1769 + $0x10] sm:$0xff]
    %v1773 = vld [vmem:[%s1769 + $0x18] sm:$0xff]
    %1774 = vmatprep.subr.mxu0 %v92
    %1775 = vmatpush1.msra.mxu0 %v91
    %1776 = vmatprep.subr.mxu0 %v96
    %1777 = vmatpush1.msra.mxu0 %v95
    %1778 = vmatprep.subr.mxu0 %v100
    %1779 = vmatpush1.msra.mxu0 %v99
    %1780 = vmatprep.subr.mxu0 %v104
    %1781 = vmatpush1.msra.mxu0 %v103
    %1782 = vmatprep.subr.mxu0 %v108
    %1783 = vmatpush1.msra.mxu0 %v107
    %1784 = vmatprep.subr.mxu0 %v112
    %1785 = vmatpush1.msra.mxu0 %v111
    %1786 = vmatprep.subr.mxu0 %v116
    %1787 = vmatpush1.msra.mxu0 %v115
    %1788 = vmatprep.subr.mxu0 %v120
    %1789 = vmatpush1.msra.mxu0 %v119
    %1790 = vmatprep.subr.mxu0 %v124
    %1791 = vmatpush1.msra.mxu0 %v123
    %1792 = vmatprep.subr.mxu0 %v128
    %1793 = vmatpush1.msra.mxu0 %v127
    %1794 = vmatprep.subr.mxu0 %v132
    %1795 = vmatpush1.msra.mxu0 %v131
    %1796 = vmatprep.subr.mxu0 %v136
    %1797 = vmatpush1.msra.mxu0 %v135
    %1798 = vmatprep.subr.mxu0 %v140
    %1799 = vmatpush1.msra.mxu0 %v139
    %1800 = vmatprep.subr.mxu0 %v144
    %1801 = vmatpush1.msra.mxu0 %v143
    %1802 = vmatprep.subr.mxu0 %v148
    %1803 = vmatpush1.msra.mxu0 %v147
    %1804 = vmatprep.subr.mxu0 %v152
    %1805 = vmatpush1.msra.mxu0 %v151
    %1806 = vmatprep.subr.mxu0 0.0
    %1807 = vmatpush1.msra.mxu0 0.0
    %1808 = vmatprep.subr.mxu0 0.0
    %1809 = vmatpush1.msra.mxu0 0.0
    %1810 = vmatprep.subr.mxu0 0.0
    %1811 = vmatpush1.msra.mxu0 0.0
    %1812 = vmatprep.subr.mxu0 0.0
    %1813 = vmatpush1.msra.mxu0 0.0
    %1814 = vmatprep.subr.mxu0 0.0
    %1815 = vmatpush1.msra.mxu0 0.0
    %1816 = vmatprep.subr.mxu0 0.0
    %1817 = vmatpush1.msra.mxu0 0.0
    %1818 = vmatprep.subr.mxu0 0.0
    %1819 = vmatpush1.msra.mxu0 0.0
    %1820 = vmatprep.subr.mxu0 0.0
    %1821 = vmatpush1.msra.mxu0 0.0
    %1822 = vmatprep.subr.mxu0 0.0
    %1823 = vmatpush1.msra.mxu0 0.0
    %1824 = vmatprep.subr.mxu0 0.0
    %1825 = vmatpush1.msra.mxu0 0.0
    %1826 = vmatprep.subr.mxu0 0.0
    %1827 = vmatpush1.msra.mxu0 0.0
    %1828 = vmatprep.subr.mxu0 0.0
    %1829 = vmatpush1.msra.mxu0 0.0
    %1830 = vmatprep.subr.mxu0 0.0
    %1831 = vmatpush1.msra.mxu0 0.0
    %1832 = vmatprep.subr.mxu0 0.0
    %1833 = vmatpush1.msra.mxu0 0.0
    %1834 = vmatprep.subr.mxu0 0.0
    %1835 = vmatpush1.msra.mxu0 0.0
    %1836 = vmatprep.subr.mxu0 0.0
    %1837 = vmatpush1.msra.mxu0 0.0
    %1838 = vmatprep.mubr.f32.mxu0 0.0
    %1839 = vmatmul.mubr.f32.gmra.mrb[0].mxu0 %v1747
    %v1840 = vpop.f32.mrb[0].mxu0
    %v1841 = vadd.f32 0.0, %v1840
    %v1842 = vpop.f32.mrb[0].mxu0
    %v1843 = vadd.f32 0.0, %v1842
    %1844 = vdwg.mxu0
    %1845 = vmatprep.subr.mxu0 %v94
    %1846 = vmatpush1.msra.mxu0 %v93
    %1847 = vmatprep.subr.mxu0 %v98
    %1848 = vmatpush1.msra.mxu0 %v97
    %1849 = vmatprep.subr.mxu0 %v102
    %1850 = vmatpush1.msra.mxu0 %v101
    %1851 = vmatprep.subr.mxu0 %v106
    %1852 = vmatpush1.msra.mxu0 %v105
    %1853 = vmatprep.subr.mxu0 %v110
    %1854 = vmatpush1.msra.mxu0 %v109
    %1855 = vmatprep.subr.mxu0 %v114
    %1856 = vmatpush1.msra.mxu0 %v113
    %1857 = vmatprep.subr.mxu0 %v118
    %1858 = vmatpush1.msra.mxu0 %v117
    %1859 = vmatprep.subr.mxu0 %v122
    %1860 = vmatpush1.msra.mxu0 %v121
    %1861 = vmatprep.subr.mxu0 %v126
    %1862 = vmatpush1.msra.mxu0 %v125
    %1863 = vmatprep.subr.mxu0 %v130
    %1864 = vmatpush1.msra.mxu0 %v129
    %1865 = vmatprep.subr.mxu0 %v134
    %1866 = vmatpush1.msra.mxu0 %v133
    %1867 = vmatprep.subr.mxu0 %v138
    %1868 = vmatpush1.msra.mxu0 %v137
    %1869 = vmatprep.subr.mxu0 %v142
    %1870 = vmatpush1.msra.mxu0 %v141
    %1871 = vmatprep.subr.mxu0 %v146
    %1872 = vmatpush1.msra.mxu0 %v145
    %1873 = vmatprep.subr.mxu0 %v150
    %1874 = vmatpush1.msra.mxu0 %v149
    %1875 = vmatprep.subr.mxu0 %v154
    %1876 = vmatpush1.msra.mxu0 %v153
    %1877 = vmatprep.subr.mxu0 0.0
    %1878 = vmatpush1.msra.mxu0 0.0
    %1879 = vmatprep.subr.mxu0 0.0
    %1880 = vmatpush1.msra.mxu0 0.0
    %1881 = vmatprep.subr.mxu0 0.0
    %1882 = vmatpush1.msra.mxu0 0.0
    %1883 = vmatprep.subr.mxu0 0.0
    %1884 = vmatpush1.msra.mxu0 0.0
    %1885 = vmatprep.subr.mxu0 0.0
    %1886 = vmatpush1.msra.mxu0 0.0
    %1887 = vmatprep.subr.mxu0 0.0
    %1888 = vmatpush1.msra.mxu0 0.0
    %1889 = vmatprep.subr.mxu0 0.0
    %1890 = vmatpush1.msra.mxu0 0.0
    %1891 = vmatprep.subr.mxu0 0.0
    %1892 = vmatpush1.msra.mxu0 0.0
    %1893 = vmatprep.subr.mxu0 0.0
    %1894 = vmatpush1.msra.mxu0 0.0
    %1895 = vmatprep.subr.mxu0 0.0
    %1896 = vmatpush1.msra.mxu0 0.0
    %1897 = vmatprep.subr.mxu0 0.0
    %1898 = vmatpush1.msra.mxu0 0.0
    %1899 = vmatprep.subr.mxu0 0.0
    %1900 = vmatpush1.msra.mxu0 0.0
    %1901 = vmatprep.subr.mxu0 0.0
    %1902 = vmatpush1.msra.mxu0 0.0
    %1903 = vmatprep.subr.mxu0 0.0
    %1904 = vmatpush1.msra.mxu0 0.0
    %1905 = vmatprep.subr.mxu0 0.0
    %1906 = vmatpush1.msra.mxu0 0.0
    %1907 = vmatprep.subr.mxu0 0.0
    %1908 = vmatpush1.msra.mxu0 0.0
    %1909 = vmatprep.mubr.f32.mxu0 0.0
    %1910 = vmatmul.mubr.f32.gmra.mrb[0].mxu0 %v1747
    %v1911 = vpop.f32.mrb[0].mxu0
    %v1912 = vadd.f32 0.0, %v1911
    %v1913 = vpop.f32.mrb[0].mxu0
    %v1914 = vadd.f32 0.0, %v1913
    %1915 = vdwg.mxu0
    %v1916 = vadd.f32 %v1770, %v1841
    %v1917 = vadd.f32 %v1771, %v1843
    %v1918 = vadd.f32 %v1772, %v1912
    %v1919 = vadd.f32 %v1773, %v1914
    %s1920 = scalar_lea.vmem %s68, 96
    %v1921 = vld [vmem:[%s1920] sm:$0xff]
    %v1922 = vld [vmem:[%s1920 + $0x8] sm:$0xff]
    %v1923 = vld [vmem:[%s1920 + $0x10] sm:$0xff]
    %v1924 = vld [vmem:[%s1920 + $0x18] sm:$0xff]
    %1925 = vmatprep.subr.mxu0 %v156
    %1926 = vmatpush1.msra.mxu0 %v155
    %1927 = vmatprep.subr.mxu0 %v160
    %1928 = vmatpush1.msra.mxu0 %v159
    %1929 = vmatprep.subr.mxu0 %v164
    %1930 = vmatpush1.msra.mxu0 %v163
    %1931 = vmatprep.subr.mxu0 %v168
    %1932 = vmatpush1.msra.mxu0 %v167
    %1933 = vmatprep.subr.mxu0 %v172
    %1934 = vmatpush1.msra.mxu0 %v171
    %1935 = vmatprep.subr.mxu0 %v176
    %1936 = vmatpush1.msra.mxu0 %v175
    %1937 = vmatprep.subr.mxu0 %v180
    %1938 = vmatpush1.msra.mxu0 %v179
    %1939 = vmatprep.subr.mxu0 %v184
    %1940 = vmatpush1.msra.mxu0 %v183
    %1941 = vmatprep.subr.mxu0 %v188
    %1942 = vmatpush1.msra.mxu0 %v187
    %1943 = vmatprep.subr.mxu0 %v192
    %1944 = vmatpush1.msra.mxu0 %v191
    %1945 = vmatprep.subr.mxu0 %v196
    %1946 = vmatpush1.msra.mxu0 %v195
    %1947 = vmatprep.subr.mxu0 %v200
    %1948 = vmatpush1.msra.mxu0 %v199
    %1949 = vmatprep.subr.mxu0 %v204
    %1950 = vmatpush1.msra.mxu0 %v203
    %1951 = vmatprep.subr.mxu0 %v208
    %1952 = vmatpush1.msra.mxu0 %v207
    %1953 = vmatprep.subr.mxu0 %v212
    %1954 = vmatpush1.msra.mxu0 %v211
    %1955 = vmatprep.subr.mxu0 %v216
    %1956 = vmatpush1.msra.mxu0 %v215
    %1957 = vmatprep.subr.mxu0 0.0
    %1958 = vmatpush1.msra.mxu0 0.0
    %1959 = vmatprep.subr.mxu0 0.0
    %1960 = vmatpush1.msra.mxu0 0.0
    %1961 = vmatprep.subr.mxu0 0.0
    %1962 = vmatpush1.msra.mxu0 0.0
    %1963 = vmatprep.subr.mxu0 0.0
    %1964 = vmatpush1.msra.mxu0 0.0
    %1965 = vmatprep.subr.mxu0 0.0
    %1966 = vmatpush1.msra.mxu0 0.0
    %1967 = vmatprep.subr.mxu0 0.0
    %1968 = vmatpush1.msra.mxu0 0.0
    %1969 = vmatprep.subr.mxu0 0.0
    %1970 = vmatpush1.msra.mxu0 0.0
    %1971 = vmatprep.subr.mxu0 0.0
    %1972 = vmatpush1.msra.mxu0 0.0
    %1973 = vmatprep.subr.mxu0 0.0
    %1974 = vmatpush1.msra.mxu0 0.0
    %1975 = vmatprep.subr.mxu0 0.0
    %1976 = vmatpush1.msra.mxu0 0.0
    %1977 = vmatprep.subr.mxu0 0.0
    %1978 = vmatpush1.msra.mxu0 0.0
    %1979 = vmatprep.subr.mxu0 0.0
    %1980 = vmatpush1.msra.mxu0 0.0
    %1981 = vmatprep.subr.mxu0 0.0
    %1982 = vmatpush1.msra.mxu0 0.0
    %1983 = vmatprep.subr.mxu0 0.0
    %1984 = vmatpush1.msra.mxu0 0.0
    %1985 = vmatprep.subr.mxu0 0.0
    %1986 = vmatpush1.msra.mxu0 0.0
    %1987 = vmatprep.subr.mxu0 0.0
    %1988 = vmatpush1.msra.mxu0 0.0
    %1989 = vmatprep.mubr.f32.mxu0 0.0
    %1990 = vmatmul.mubr.f32.gmra.mrb[0].mxu0 %v1749
    %v1991 = vpop.f32.mrb[0].mxu0
    %v1992 = vadd.f32 0.0, %v1991
    %v1993 = vpop.f32.mrb[0].mxu0
    %v1994 = vadd.f32 0.0, %v1993
    %1995 = vdwg.mxu0
    %1996 = vmatprep.subr.mxu0 %v158
    %1997 = vmatpush1.msra.mxu0 %v157
    %1998 = vmatprep.subr.mxu0 %v162
    %1999 = vmatpush1.msra.mxu0 %v161
    %2000 = vmatprep.subr.mxu0 %v166
    %2001 = vmatpush1.msra.mxu0 %v165
    %2002 = vmatprep.subr.mxu0 %v170
    %2003 = vmatpush1.msra.mxu0 %v169
    %2004 = vmatprep.subr.mxu0 %v174
    %2005 = vmatpush1.msra.mxu0 %v173
    %2006 = vmatprep.subr.mxu0 %v178
    %2007 = vmatpush1.msra.mxu0 %v177
    %2008 = vmatprep.subr.mxu0 %v182
    %2009 = vmatpush1.msra.mxu0 %v181
    %2010 = vmatprep.subr.mxu0 %v186
    %2011 = vmatpush1.msra.mxu0 %v185
    %2012 = vmatprep.subr.mxu0 %v190
    %2013 = vmatpush1.msra.mxu0 %v189
    %2014 = vmatprep.subr.mxu0 %v194
    %2015 = vmatpush1.msra.mxu0 %v193
    %2016 = vmatprep.subr.mxu0 %v198
    %2017 = vmatpush1.msra.mxu0 %v197
    %2018 = vmatprep.subr.mxu0 %v202
    %2019 = vmatpush1.msra.mxu0 %v201
    %2020 = vmatprep.subr.mxu0 %v206
    %2021 = vmatpush1.msra.mxu0 %v205
    %2022 = vmatprep.subr.mxu0 %v210
    %2023 = vmatpush1.msra.mxu0 %v209
    %2024 = vmatprep.subr.mxu0 %v214
    %2025 = vmatpush1.msra.mxu0 %v213
    %2026 = vmatprep.subr.mxu0 %v218
    %2027 = vmatpush1.msra.mxu0 %v217
    %2028 = vmatprep.subr.mxu0 0.0
    %2029 = vmatpush1.msra.mxu0 0.0
    %2030 = vmatprep.subr.mxu0 0.0
    %2031 = vmatpush1.msra.mxu0 0.0
    %2032 = vmatprep.subr.mxu0 0.0
    %2033 = vmatpush1.msra.mxu0 0.0
    %2034 = vmatprep.subr.mxu0 0.0
    %2035 = vmatpush1.msra.mxu0 0.0
    %2036 = vmatprep.subr.mxu0 0.0
    %2037 = vmatpush1.msra.mxu0 0.0
    %2038 = vmatprep.subr.mxu0 0.0
    %2039 = vmatpush1.msra.mxu0 0.0
    %2040 = vmatprep.subr.mxu0 0.0
    %2041 = vmatpush1.msra.mxu0 0.0
    %2042 = vmatprep.subr.mxu0 0.0
    %2043 = vmatpush1.msra.mxu0 0.0
    %2044 = vmatprep.subr.mxu0 0.0
    %2045 = vmatpush1.msra.mxu0 0.0
    %2046 = vmatprep.subr.mxu0 0.0
    %2047 = vmatpush1.msra.mxu0 0.0
    %2048 = vmatprep.subr.mxu0 0.0
    %2049 = vmatpush1.msra.mxu0 0.0
    %2050 = vmatprep.subr.mxu0 0.0
    %2051 = vmatpush1.msra.mxu0 0.0
    %2052 = vmatprep.subr.mxu0 0.0
    %2053 = vmatpush1.msra.mxu0 0.0
    %2054 = vmatprep.subr.mxu0 0.0
    %2055 = vmatpush1.msra.mxu0 0.0
    %2056 = vmatprep.subr.mxu0 0.0
    %2057 = vmatpush1.msra.mxu0 0.0
    %2058 = vmatprep.subr.mxu0 0.0
    %2059 = vmatpush1.msra.mxu0 0.0
    %2060 = vmatprep.mubr.f32.mxu0 0.0
    %2061 = vmatmul.mubr.f32.gmra.mrb[0].mxu0 %v1749
    %v2062 = vpop.f32.mrb[0].mxu0
    %v2063 = vadd.f32 0.0, %v2062
    %v2064 = vpop.f32.mrb[0].mxu0
    %v2065 = vadd.f32 0.0, %v2064
    %2066 = vdwg.mxu0
    %v2067 = vadd.f32 %v1921, %v1992
    %v2068 = vadd.f32 %v1922, %v1994
    %v2069 = vadd.f32 %v1923, %v2063
    %v2070 = vadd.f32 %v1924, %v2065
    %v2071 = vxor.u32 %v1916, 2147483648
    %v2072 = vmul.f32 %v2071, 1.442695
    %v2073 = vpow.pop %v2072
    %v2074 = vadd.f32 %v2073, 1.0
    %v2075 = vrcp.pop %v2074
    %v2076 = vmul.f32 1.0, %v2075
    %v2077 = vxor.u32 %v1917, 2147483648
    %v2078 = vmul.f32 %v2077, 1.442695
    %v2079 = vpow.pop %v2078
    %v2080 = vadd.f32 %v2079, 1.0
    %v2081 = vrcp.pop %v2080
    %v2082 = vmul.f32 1.0, %v2081
    %v2083 = vtanh.pop %v1918
    %v2084 = vxor.u32 %v1919, 2147483648
    %v2085 = vmul.f32 %v2084, 1.442695
    %v2086 = vpow.pop %v2085
    %v2087 = vadd.f32 %v2086, 1.0
    %v2088 = vrcp.pop %v2087
    %v2089 = vmul.f32 1.0, %v2088
    %v2090 = vmul.f32 %v2082, %v1748
    %v2091 = vmul.f32 %v2076, %v2083
    %v2092 = vadd.f32 %v2090, %v2091
    %v2093 = vtanh.pop %v2092
    %v2094 = vmul.f32 %v2089, %v2093
    %v2095 = vxor.u32 %v2067, 2147483648
    %v2096 = vmul.f32 %v2095, 1.442695
    %v2097 = vpow.pop %v2096
    %v2098 = vadd.f32 %v2097, 1.0
    %v2099 = vrcp.pop %v2098
    %v2100 = vmul.f32 1.0, %v2099
    %v2101 = vxor.u32 %v2068, 2147483648
    %v2102 = vmul.f32 %v2101, 1.442695
    %v2103 = vpow.pop %v2102
    %v2104 = vadd.f32 %v2103, 1.0
    %v2105 = vrcp.pop %v2104
    %v2106 = vmul.f32 1.0, %v2105
    %v2107 = vtanh.pop %v2069
    %v2108 = vxor.u32 %v2070, 2147483648
    %v2109 = vmul.f32 %v2108, 1.442695
    %v2110 = vpow.pop %v2109
    %v2111 = vadd.f32 %v2110, 1.0
    %v2112 = vrcp.pop %v2111
    %v2113 = vmul.f32 1.0, %v2112
    %v2114 = vmul.f32 %v2106, %v1750
    %v2115 = vmul.f32 %v2100, %v2107
    %v2116 = vadd.f32 %v2114, %v2115
    %v2117 = vtanh.pop %v2116
    %v2118 = vmul.f32 %v2113, %v2117
    %v2119 = vstv %s1767
    %vm2120 = vcmp.lt.s32.totalorder %v2119, %v90
    %v2121 = vsel %vm2120, 1, 0
    %2122 = vset.pattern.permute.xlu0 0
    %2123 = vperm.xlu0 %2122, %v2121
    %v2124 = vpop.permute.xlu0 %2123
    %vm2125 = vcmp.eq.s32.totalorder %v2124, 1
    %v2126 = vstv %s1768
    %vm2127 = vcmp.lt.s32.totalorder %v2126, %v90
    %v2128 = vsel %vm2127, 1, 0
    %2129 = vset.pattern.permute.xlu0 0
    %2130 = vperm.xlu0 %2129, %v2128
    %v2131 = vpop.permute.xlu0 %2130
    %vm2132 = vcmp.eq.s32.totalorder %v2131, 1
    %v2133 = vsel %vm2125, %v2094, %v1747
    %v2134 = vsel %vm2125, %v2092, %v1748
    %v2135 = vsel %vm2132, %v2118, %v1749
    %v2136 = vsel %vm2132, %v2116, %v1750
    %v2137 = vsel %vm2125, %v2094, 0.0
    %s2138 = scalar_lea.vmem %s6, 32
    %2139 = vst [vmem:[%s2138] sm:$0xff] %v2137
    %v2140 = vsel %vm2132, %v2118, 0.0
    %s2141 = scalar_lea.vmem %s76, 24
    %2142 = vst [vmem:[%s2141] sm:$0xff] %v2140
    %p2143 = scmp.lt.s32.totalorder %s1767, %s89
    %s2144 = scalar_select %p2143, 0.0, -inf
    %p2145 = scmp.lt.s32.totalorder %s1768, %s89
    %s2146 = scalar_select %p2145, 0.0, -inf
    %v2147 = vstv %s2144
    %v2148 = vsel %vm2125, %v2094, %v2147
    %v2149 = vmax.f32 %v1763, %v2148
    %v2150 = vstv %s2146
    %v2151 = vsel %vm2132, %v2118, %v2150
    %v2152 = vmax.f32 %v1766, %v2151
    %s2153 = sadd.s32 %s225, 5
    %s2154 = ssub.s32 2, %s225
    %s2155 = scalar_lea.vmem %s1, 160
    %v2156 = vld [vmem:[%s2155] sm:$0xff]
    %v2157 = vld [vmem:[%s2155 + $0x8] sm:$0xff]
    %v2158 = vld [vmem:[%s2155 + $0x10] sm:$0xff]
    %v2159 = vld [vmem:[%s2155 + $0x18] sm:$0xff]
    %2160 = vmatprep.subr.mxu0 %v92
    %2161 = vmatpush1.msra.mxu0 %v91
    %2162 = vmatprep.subr.mxu0 %v96
    %2163 = vmatpush1.msra.mxu0 %v95
    %2164 = vmatprep.subr.mxu0 %v100
    %2165 = vmatpush1.msra.mxu0 %v99
    %2166 = vmatprep.subr.mxu0 %v104
    %2167 = vmatpush1.msra.mxu0 %v103
    %2168 = vmatprep.subr.mxu0 %v108
    %2169 = vmatpush1.msra.mxu0 %v107
    %2170 = vmatprep.subr.mxu0 %v112
    %2171 = vmatpush1.msra.mxu0 %v111
    %2172 = vmatprep.subr.mxu0 %v116
    %2173 = vmatpush1.msra.mxu0 %v115
    %2174 = vmatprep.subr.mxu0 %v120
    %2175 = vmatpush1.msra.mxu0 %v119
    %2176 = vmatprep.subr.mxu0 %v124
    %2177 = vmatpush1.msra.mxu0 %v123
    %2178 = vmatprep.subr.mxu0 %v128
    %2179 = vmatpush1.msra.mxu0 %v127
    %2180 = vmatprep.subr.mxu0 %v132
    %2181 = vmatpush1.msra.mxu0 %v131
    %2182 = vmatprep.subr.mxu0 %v136
    %2183 = vmatpush1.msra.mxu0 %v135
    %2184 = vmatprep.subr.mxu0 %v140
    %2185 = vmatpush1.msra.mxu0 %v139
    %2186 = vmatprep.subr.mxu0 %v144
    %2187 = vmatpush1.msra.mxu0 %v143
    %2188 = vmatprep.subr.mxu0 %v148
    %2189 = vmatpush1.msra.mxu0 %v147
    %2190 = vmatprep.subr.mxu0 %v152
    %2191 = vmatpush1.msra.mxu0 %v151
    %2192 = vmatprep.subr.mxu0 0.0
    %2193 = vmatpush1.msra.mxu0 0.0
    %2194 = vmatprep.subr.mxu0 0.0
    %2195 = vmatpush1.msra.mxu0 0.0
    %2196 = vmatprep.subr.mxu0 0.0
    %2197 = vmatpush1.msra.mxu0 0.0
    %2198 = vmatprep.subr.mxu0 0.0
    %2199 = vmatpush1.msra.mxu0 0.0
    %2200 = vmatprep.subr.mxu0 0.0
    %2201 = vmatpush1.msra.mxu0 0.0
    %2202 = vmatprep.subr.mxu0 0.0
    %2203 = vmatpush1.msra.mxu0 0.0
    %2204 = vmatprep.subr.mxu0 0.0
    %2205 = vmatpush1.msra.mxu0 0.0
    %2206 = vmatprep.subr.mxu0 0.0
    %2207 = vmatpush1.msra.mxu0 0.0
    %2208 = vmatprep.subr.mxu0 0.0
    %2209 = vmatpush1.msra.mxu0 0.0
    %2210 = vmatprep.subr.mxu0 0.0
    %2211 = vmatpush1.msra.mxu0 0.0
    %2212 = vmatprep.subr.mxu0 0.0
    %2213 = vmatpush1.msra.mxu0 0.0
    %2214 = vmatprep.subr.mxu0 0.0
    %2215 = vmatpush1.msra.mxu0 0.0
    %2216 = vmatprep.subr.mxu0 0.0
    %2217 = vmatpush1.msra.mxu0 0.0
    %2218 = vmatprep.subr.mxu0 0.0
    %2219 = vmatpush1.msra.mxu0 0.0
    %2220 = vmatprep.subr.mxu0 0.0
    %2221 = vmatpush1.msra.mxu0 0.0
    %2222 = vmatprep.subr.mxu0 0.0
    %2223 = vmatpush1.msra.mxu0 0.0
    %2224 = vmatprep.mubr.f32.mxu0 0.0
    %2225 = vmatmul.mubr.f32.gmra.mrb[0].mxu0 %v2133
    %v2226 = vpop.f32.mrb[0].mxu0
    %v2227 = vadd.f32 0.0, %v2226
    %v2228 = vpop.f32.mrb[0].mxu0
    %v2229 = vadd.f32 0.0, %v2228
    %2230 = vdwg.mxu0
    %2231 = vmatprep.subr.mxu0 %v94
    %2232 = vmatpush1.msra.mxu0 %v93
    %2233 = vmatprep.subr.mxu0 %v98
    %2234 = vmatpush1.msra.mxu0 %v97
    %2235 = vmatprep.subr.mxu0 %v102
    %2236 = vmatpush1.msra.mxu0 %v101
    %2237 = vmatprep.subr.mxu0 %v106
    %2238 = vmatpush1.msra.mxu0 %v105
    %2239 = vmatprep.subr.mxu0 %v110
    %2240 = vmatpush1.msra.mxu0 %v109
    %2241 = vmatprep.subr.mxu0 %v114
    %2242 = vmatpush1.msra.mxu0 %v113
    %2243 = vmatprep.subr.mxu0 %v118
    %2244 = vmatpush1.msra.mxu0 %v117
    %2245 = vmatprep.subr.mxu0 %v122
    %2246 = vmatpush1.msra.mxu0 %v121
    %2247 = vmatprep.subr.mxu0 %v126
    %2248 = vmatpush1.msra.mxu0 %v125
    %2249 = vmatprep.subr.mxu0 %v130
    %2250 = vmatpush1.msra.mxu0 %v129
    %2251 = vmatprep.subr.mxu0 %v134
    %2252 = vmatpush1.msra.mxu0 %v133
    %2253 = vmatprep.subr.mxu0 %v138
    %2254 = vmatpush1.msra.mxu0 %v137
    %2255 = vmatprep.subr.mxu0 %v142
    %2256 = vmatpush1.msra.mxu0 %v141
    %2257 = vmatprep.subr.mxu0 %v146
    %2258 = vmatpush1.msra.mxu0 %v145
    %2259 = vmatprep.subr.mxu0 %v150
    %2260 = vmatpush1.msra.mxu0 %v149
    %2261 = vmatprep.subr.mxu0 %v154
    %2262 = vmatpush1.msra.mxu0 %v153
    %2263 = vmatprep.subr.mxu0 0.0
    %2264 = vmatpush1.msra.mxu0 0.0
    %2265 = vmatprep.subr.mxu0 0.0
    %2266 = vmatpush1.msra.mxu0 0.0
    %2267 = vmatprep.subr.mxu0 0.0
    %2268 = vmatpush1.msra.mxu0 0.0
    %2269 = vmatprep.subr.mxu0 0.0
    %2270 = vmatpush1.msra.mxu0 0.0
    %2271 = vmatprep.subr.mxu0 0.0
    %2272 = vmatpush1.msra.mxu0 0.0
    %2273 = vmatprep.subr.mxu0 0.0
    %2274 = vmatpush1.msra.mxu0 0.0
    %2275 = vmatprep.subr.mxu0 0.0
    %2276 = vmatpush1.msra.mxu0 0.0
    %2277 = vmatprep.subr.mxu0 0.0
    %2278 = vmatpush1.msra.mxu0 0.0
    %2279 = vmatprep.subr.mxu0 0.0
    %2280 = vmatpush1.msra.mxu0 0.0
    %2281 = vmatprep.subr.mxu0 0.0
    %2282 = vmatpush1.msra.mxu0 0.0
    %2283 = vmatprep.subr.mxu0 0.0
    %2284 = vmatpush1.msra.mxu0 0.0
    %2285 = vmatprep.subr.mxu0 0.0
    %2286 = vmatpush1.msra.mxu0 0.0
    %2287 = vmatprep.subr.mxu0 0.0
    %2288 = vmatpush1.msra.mxu0 0.0
    %2289 = vmatprep.subr.mxu0 0.0
    %2290 = vmatpush1.msra.mxu0 0.0
    %2291 = vmatprep.subr.mxu0 0.0
    %2292 = vmatpush1.msra.mxu0 0.0
    %2293 = vmatprep.subr.mxu0 0.0
    %2294 = vmatpush1.msra.mxu0 0.0
    %2295 = vmatprep.mubr.f32.mxu0 0.0
    %2296 = vmatmul.mubr.f32.gmra.mrb[0].mxu0 %v2133
    %v2297 = vpop.f32.mrb[0].mxu0
    %v2298 = vadd.f32 0.0, %v2297
    %v2299 = vpop.f32.mrb[0].mxu0
    %v2300 = vadd.f32 0.0, %v2299
    %2301 = vdwg.mxu0
    %v2302 = vadd.f32 %v2156, %v2227
    %v2303 = vadd.f32 %v2157, %v2229
    %v2304 = vadd.f32 %v2158, %v2298
    %v2305 = vadd.f32 %v2159, %v2300
    %s2306 = scalar_lea.vmem %s68, 64
    %v2307 = vld [vmem:[%s2306] sm:$0xff]
    %v2308 = vld [vmem:[%s2306 + $0x8] sm:$0xff]
    %v2309 = vld [vmem:[%s2306 + $0x10] sm:$0xff]
    %v2310 = vld [vmem:[%s2306 + $0x18] sm:$0xff]
    %2311 = vmatprep.subr.mxu0 %v156
    %2312 = vmatpush1.msra.mxu0 %v155
    %2313 = vmatprep.subr.mxu0 %v160
    %2314 = vmatpush1.msra.mxu0 %v159
    %2315 = vmatprep.subr.mxu0 %v164
    %2316 = vmatpush1.msra.mxu0 %v163
    %2317 = vmatprep.subr.mxu0 %v168
    %2318 = vmatpush1.msra.mxu0 %v167
    %2319 = vmatprep.subr.mxu0 %v172
    %2320 = vmatpush1.msra.mxu0 %v171
    %2321 = vmatprep.subr.mxu0 %v176
    %2322 = vmatpush1.msra.mxu0 %v175
    %2323 = vmatprep.subr.mxu0 %v180
    %2324 = vmatpush1.msra.mxu0 %v179
    %2325 = vmatprep.subr.mxu0 %v184
    %2326 = vmatpush1.msra.mxu0 %v183
    %2327 = vmatprep.subr.mxu0 %v188
    %2328 = vmatpush1.msra.mxu0 %v187
    %2329 = vmatprep.subr.mxu0 %v192
    %2330 = vmatpush1.msra.mxu0 %v191
    %2331 = vmatprep.subr.mxu0 %v196
    %2332 = vmatpush1.msra.mxu0 %v195
    %2333 = vmatprep.subr.mxu0 %v200
    %2334 = vmatpush1.msra.mxu0 %v199
    %2335 = vmatprep.subr.mxu0 %v204
    %2336 = vmatpush1.msra.mxu0 %v203
    %2337 = vmatprep.subr.mxu0 %v208
    %2338 = vmatpush1.msra.mxu0 %v207
    %2339 = vmatprep.subr.mxu0 %v212
    %2340 = vmatpush1.msra.mxu0 %v211
    %2341 = vmatprep.subr.mxu0 %v216
    %2342 = vmatpush1.msra.mxu0 %v215
    %2343 = vmatprep.subr.mxu0 0.0
    %2344 = vmatpush1.msra.mxu0 0.0
    %2345 = vmatprep.subr.mxu0 0.0
    %2346 = vmatpush1.msra.mxu0 0.0
    %2347 = vmatprep.subr.mxu0 0.0
    %2348 = vmatpush1.msra.mxu0 0.0
    %2349 = vmatprep.subr.mxu0 0.0
    %2350 = vmatpush1.msra.mxu0 0.0
    %2351 = vmatprep.subr.mxu0 0.0
    %2352 = vmatpush1.msra.mxu0 0.0
    %2353 = vmatprep.subr.mxu0 0.0
    %2354 = vmatpush1.msra.mxu0 0.0
    %2355 = vmatprep.subr.mxu0 0.0
    %2356 = vmatpush1.msra.mxu0 0.0
    %2357 = vmatprep.subr.mxu0 0.0
    %2358 = vmatpush1.msra.mxu0 0.0
    %2359 = vmatprep.subr.mxu0 0.0
    %2360 = vmatpush1.msra.mxu0 0.0
    %2361 = vmatprep.subr.mxu0 0.0
    %2362 = vmatpush1.msra.mxu0 0.0
    %2363 = vmatprep.subr.mxu0 0.0
    %2364 = vmatpush1.msra.mxu0 0.0
    %2365 = vmatprep.subr.mxu0 0.0
    %2366 = vmatpush1.msra.mxu0 0.0
    %2367 = vmatprep.subr.mxu0 0.0
    %2368 = vmatpush1.msra.mxu0 0.0
    %2369 = vmatprep.subr.mxu0 0.0
    %2370 = vmatpush1.msra.mxu0 0.0
    %2371 = vmatprep.subr.mxu0 0.0
    %2372 = vmatpush1.msra.mxu0 0.0
    %2373 = vmatprep.subr.mxu0 0.0
    %2374 = vmatpush1.msra.mxu0 0.0
    %2375 = vmatprep.mubr.f32.mxu0 0.0
    %2376 = vmatmul.mubr.f32.gmra.mrb[0].mxu0 %v2135
    %v2377 = vpop.f32.mrb[0].mxu0
    %v2378 = vadd.f32 0.0, %v2377
    %v2379 = vpop.f32.mrb[0].mxu0
    %v2380 = vadd.f32 0.0, %v2379
    %2381 = vdwg.mxu0
    %2382 = vmatprep.subr.mxu0 %v158
    %2383 = vmatpush1.msra.mxu0 %v157
    %2384 = vmatprep.subr.mxu0 %v162
    %2385 = vmatpush1.msra.mxu0 %v161
    %2386 = vmatprep.subr.mxu0 %v166
    %2387 = vmatpush1.msra.mxu0 %v165
    %2388 = vmatprep.subr.mxu0 %v170
    %2389 = vmatpush1.msra.mxu0 %v169
    %2390 = vmatprep.subr.mxu0 %v174
    %2391 = vmatpush1.msra.mxu0 %v173
    %2392 = vmatprep.subr.mxu0 %v178
    %2393 = vmatpush1.msra.mxu0 %v177
    %2394 = vmatprep.subr.mxu0 %v182
    %2395 = vmatpush1.msra.mxu0 %v181
    %2396 = vmatprep.subr.mxu0 %v186
    %2397 = vmatpush1.msra.mxu0 %v185
    %2398 = vmatprep.subr.mxu0 %v190
    %2399 = vmatpush1.msra.mxu0 %v189
    %2400 = vmatprep.subr.mxu0 %v194
    %2401 = vmatpush1.msra.mxu0 %v193
    %2402 = vmatprep.subr.mxu0 %v198
    %2403 = vmatpush1.msra.mxu0 %v197
    %2404 = vmatprep.subr.mxu0 %v202
    %2405 = vmatpush1.msra.mxu0 %v201
    %2406 = vmatprep.subr.mxu0 %v206
    %2407 = vmatpush1.msra.mxu0 %v205
    %2408 = vmatprep.subr.mxu0 %v210
    %2409 = vmatpush1.msra.mxu0 %v209
    %2410 = vmatprep.subr.mxu0 %v214
    %2411 = vmatpush1.msra.mxu0 %v213
    %2412 = vmatprep.subr.mxu0 %v218
    %2413 = vmatpush1.msra.mxu0 %v217
    %2414 = vmatprep.subr.mxu0 0.0
    %2415 = vmatpush1.msra.mxu0 0.0
    %2416 = vmatprep.subr.mxu0 0.0
    %2417 = vmatpush1.msra.mxu0 0.0
    %2418 = vmatprep.subr.mxu0 0.0
    %2419 = vmatpush1.msra.mxu0 0.0
    %2420 = vmatprep.subr.mxu0 0.0
    %2421 = vmatpush1.msra.mxu0 0.0
    %2422 = vmatprep.subr.mxu0 0.0
    %2423 = vmatpush1.msra.mxu0 0.0
    %2424 = vmatprep.subr.mxu0 0.0
    %2425 = vmatpush1.msra.mxu0 0.0
    %2426 = vmatprep.subr.mxu0 0.0
    %2427 = vmatpush1.msra.mxu0 0.0
    %2428 = vmatprep.subr.mxu0 0.0
    %2429 = vmatpush1.msra.mxu0 0.0
    %2430 = vmatprep.subr.mxu0 0.0
    %2431 = vmatpush1.msra.mxu0 0.0
    %2432 = vmatprep.subr.mxu0 0.0
    %2433 = vmatpush1.msra.mxu0 0.0
    %2434 = vmatprep.subr.mxu0 0.0
    %2435 = vmatpush1.msra.mxu0 0.0
    %2436 = vmatprep.subr.mxu0 0.0
    %2437 = vmatpush1.msra.mxu0 0.0
    %2438 = vmatprep.subr.mxu0 0.0
    %2439 = vmatpush1.msra.mxu0 0.0
    %2440 = vmatprep.subr.mxu0 0.0
    %2441 = vmatpush1.msra.mxu0 0.0
    %2442 = vmatprep.subr.mxu0 0.0
    %2443 = vmatpush1.msra.mxu0 0.0
    %2444 = vmatprep.subr.mxu0 0.0
    %2445 = vmatpush1.msra.mxu0 0.0
    %2446 = vmatprep.mubr.f32.mxu0 0.0
    %2447 = vmatmul.mubr.f32.gmra.mrb[0].mxu0 %v2135
    %v2448 = vpop.f32.mrb[0].mxu0
    %v2449 = vadd.f32 0.0, %v2448
    %v2450 = vpop.f32.mrb[0].mxu0
    %v2451 = vadd.f32 0.0, %v2450
    %2452 = vdwg.mxu0
    %v2453 = vadd.f32 %v2307, %v2378
    %v2454 = vadd.f32 %v2308, %v2380
    %v2455 = vadd.f32 %v2309, %v2449
    %v2456 = vadd.f32 %v2310, %v2451
    %v2457 = vxor.u32 %v2302, 2147483648
    %v2458 = vmul.f32 %v2457, 1.442695
    %v2459 = vpow.pop %v2458
    %v2460 = vadd.f32 %v2459, 1.0
    %v2461 = vrcp.pop %v2460
    %v2462 = vmul.f32 1.0, %v2461
    %v2463 = vxor.u32 %v2303, 2147483648
    %v2464 = vmul.f32 %v2463, 1.442695
    %v2465 = vpow.pop %v2464
    %v2466 = vadd.f32 %v2465, 1.0
    %v2467 = vrcp.pop %v2466
    %v2468 = vmul.f32 1.0, %v2467
    %v2469 = vtanh.pop %v2304
    %v2470 = vxor.u32 %v2305, 2147483648
    %v2471 = vmul.f32 %v2470, 1.442695
    %v2472 = vpow.pop %v2471
    %v2473 = vadd.f32 %v2472, 1.0
    %v2474 = vrcp.pop %v2473
    %v2475 = vmul.f32 1.0, %v2474
    %v2476 = vmul.f32 %v2468, %v2134
    %v2477 = vmul.f32 %v2462, %v2469
    %v2478 = vadd.f32 %v2476, %v2477
    %v2479 = vtanh.pop %v2478
    %v2480 = vmul.f32 %v2475, %v2479
    %v2481 = vxor.u32 %v2453, 2147483648
    %v2482 = vmul.f32 %v2481, 1.442695
    %v2483 = vpow.pop %v2482
    %v2484 = vadd.f32 %v2483, 1.0
    %v2485 = vrcp.pop %v2484
    %v2486 = vmul.f32 1.0, %v2485
    %v2487 = vxor.u32 %v2454, 2147483648
    %v2488 = vmul.f32 %v2487, 1.442695
    %v2489 = vpow.pop %v2488
    %v2490 = vadd.f32 %v2489, 1.0
    %v2491 = vrcp.pop %v2490
    %v2492 = vmul.f32 1.0, %v2491
    %v2493 = vtanh.pop %v2455
    %v2494 = vxor.u32 %v2456, 2147483648
    %v2495 = vmul.f32 %v2494, 1.442695
    %v2496 = vpow.pop %v2495
    %v2497 = vadd.f32 %v2496, 1.0
    %v2498 = vrcp.pop %v2497
    %v2499 = vmul.f32 1.0, %v2498
    %v2500 = vmul.f32 %v2492, %v2136
    %v2501 = vmul.f32 %v2486, %v2493
    %v2502 = vadd.f32 %v2500, %v2501
    %v2503 = vtanh.pop %v2502
    %v2504 = vmul.f32 %v2499, %v2503
    %v2505 = vstv %s2153
    %vm2506 = vcmp.lt.s32.totalorder %v2505, %v90
    %v2507 = vsel %vm2506, 1, 0
    %2508 = vset.pattern.permute.xlu0 0
    %2509 = vperm.xlu0 %2508, %v2507
    %v2510 = vpop.permute.xlu0 %2509
    %vm2511 = vcmp.eq.s32.totalorder %v2510, 1
    %v2512 = vstv %s2154
    %vm2513 = vcmp.lt.s32.totalorder %v2512, %v90
    %v2514 = vsel %vm2513, 1, 0
    %2515 = vset.pattern.permute.xlu0 0
    %2516 = vperm.xlu0 %2515, %v2514
    %v2517 = vpop.permute.xlu0 %2516
    %vm2518 = vcmp.eq.s32.totalorder %v2517, 1
    %v2519 = vsel %vm2511, %v2480, %v2133
    %v2520 = vsel %vm2511, %v2478, %v2134
    %v2521 = vsel %vm2518, %v2504, %v2135
    %v2522 = vsel %vm2518, %v2502, %v2136
    %v2523 = vsel %vm2511, %v2480, 0.0
    %s2524 = scalar_lea.vmem %s6, 40
    %2525 = vst [vmem:[%s2524] sm:$0xff] %v2523
    %v2526 = vsel %vm2518, %v2504, 0.0
    %s2527 = scalar_lea.vmem %s76, 16
    %2528 = vst [vmem:[%s2527] sm:$0xff] %v2526
    %p2529 = scmp.lt.s32.totalorder %s2153, %s89
    %s2530 = scalar_select %p2529, 0.0, -inf
    %p2531 = scmp.lt.s32.totalorder %s2154, %s89
    %s2532 = scalar_select %p2531, 0.0, -inf
    %v2533 = vstv %s2530
    %v2534 = vsel %vm2511, %v2480, %v2533
    %v2535 = vmax.f32 %v2149, %v2534
    %v2536 = vstv %s2532
    %v2537 = vsel %vm2518, %v2504, %v2536
    %v2538 = vmax.f32 %v2152, %v2537
    %s2539 = sadd.s32 %s225, 6
    %s2540 = ssub.s32 1, %s225
    %s2541 = scalar_lea.vmem %s1, 192
    %v2542 = vld [vmem:[%s2541] sm:$0xff]
    %v2543 = vld [vmem:[%s2541 + $0x8] sm:$0xff]
    %v2544 = vld [vmem:[%s2541 + $0x10] sm:$0xff]
    %v2545 = vld [vmem:[%s2541 + $0x18] sm:$0xff]
    %2546 = vmatprep.subr.mxu0 %v92
    %2547 = vmatpush1.msra.mxu0 %v91
    %2548 = vmatprep.subr.mxu0 %v96
    %2549 = vmatpush1.msra.mxu0 %v95
    %2550 = vmatprep.subr.mxu0 %v100
    %2551 = vmatpush1.msra.mxu0 %v99
    %2552 = vmatprep.subr.mxu0 %v104
    %2553 = vmatpush1.msra.mxu0 %v103
    %2554 = vmatprep.subr.mxu0 %v108
    %2555 = vmatpush1.msra.mxu0 %v107
    %2556 = vmatprep.subr.mxu0 %v112
    %2557 = vmatpush1.msra.mxu0 %v111
    %2558 = vmatprep.subr.mxu0 %v116
    %2559 = vmatpush1.msra.mxu0 %v115
    %2560 = vmatprep.subr.mxu0 %v120
    %2561 = vmatpush1.msra.mxu0 %v119
    %2562 = vmatprep.subr.mxu0 %v124
    %2563 = vmatpush1.msra.mxu0 %v123
    %2564 = vmatprep.subr.mxu0 %v128
    %2565 = vmatpush1.msra.mxu0 %v127
    %2566 = vmatprep.subr.mxu0 %v132
    %2567 = vmatpush1.msra.mxu0 %v131
    %2568 = vmatprep.subr.mxu0 %v136
    %2569 = vmatpush1.msra.mxu0 %v135
    %2570 = vmatprep.subr.mxu0 %v140
    %2571 = vmatpush1.msra.mxu0 %v139
    %2572 = vmatprep.subr.mxu0 %v144
    %2573 = vmatpush1.msra.mxu0 %v143
    %2574 = vmatprep.subr.mxu0 %v148
    %2575 = vmatpush1.msra.mxu0 %v147
    %2576 = vmatprep.subr.mxu0 %v152
    %2577 = vmatpush1.msra.mxu0 %v151
    %2578 = vmatprep.subr.mxu0 0.0
    %2579 = vmatpush1.msra.mxu0 0.0
    %2580 = vmatprep.subr.mxu0 0.0
    %2581 = vmatpush1.msra.mxu0 0.0
    %2582 = vmatprep.subr.mxu0 0.0
    %2583 = vmatpush1.msra.mxu0 0.0
    %2584 = vmatprep.subr.mxu0 0.0
    %2585 = vmatpush1.msra.mxu0 0.0
    %2586 = vmatprep.subr.mxu0 0.0
    %2587 = vmatpush1.msra.mxu0 0.0
    %2588 = vmatprep.subr.mxu0 0.0
    %2589 = vmatpush1.msra.mxu0 0.0
    %2590 = vmatprep.subr.mxu0 0.0
    %2591 = vmatpush1.msra.mxu0 0.0
    %2592 = vmatprep.subr.mxu0 0.0
    %2593 = vmatpush1.msra.mxu0 0.0
    %2594 = vmatprep.subr.mxu0 0.0
    %2595 = vmatpush1.msra.mxu0 0.0
    %2596 = vmatprep.subr.mxu0 0.0
    %2597 = vmatpush1.msra.mxu0 0.0
    %2598 = vmatprep.subr.mxu0 0.0
    %2599 = vmatpush1.msra.mxu0 0.0
    %2600 = vmatprep.subr.mxu0 0.0
    %2601 = vmatpush1.msra.mxu0 0.0
    %2602 = vmatprep.subr.mxu0 0.0
    %2603 = vmatpush1.msra.mxu0 0.0
    %2604 = vmatprep.subr.mxu0 0.0
    %2605 = vmatpush1.msra.mxu0 0.0
    %2606 = vmatprep.subr.mxu0 0.0
    %2607 = vmatpush1.msra.mxu0 0.0
    %2608 = vmatprep.subr.mxu0 0.0
    %2609 = vmatpush1.msra.mxu0 0.0
    %2610 = vmatprep.mubr.f32.mxu0 0.0
    %2611 = vmatmul.mubr.f32.gmra.mrb[0].mxu0 %v2519
    %v2612 = vpop.f32.mrb[0].mxu0
    %v2613 = vadd.f32 0.0, %v2612
    %v2614 = vpop.f32.mrb[0].mxu0
    %v2615 = vadd.f32 0.0, %v2614
    %2616 = vdwg.mxu0
    %2617 = vmatprep.subr.mxu0 %v94
    %2618 = vmatpush1.msra.mxu0 %v93
    %2619 = vmatprep.subr.mxu0 %v98
    %2620 = vmatpush1.msra.mxu0 %v97
    %2621 = vmatprep.subr.mxu0 %v102
    %2622 = vmatpush1.msra.mxu0 %v101
    %2623 = vmatprep.subr.mxu0 %v106
    %2624 = vmatpush1.msra.mxu0 %v105
    %2625 = vmatprep.subr.mxu0 %v110
    %2626 = vmatpush1.msra.mxu0 %v109
    %2627 = vmatprep.subr.mxu0 %v114
    %2628 = vmatpush1.msra.mxu0 %v113
    %2629 = vmatprep.subr.mxu0 %v118
    %2630 = vmatpush1.msra.mxu0 %v117
    %2631 = vmatprep.subr.mxu0 %v122
    %2632 = vmatpush1.msra.mxu0 %v121
    %2633 = vmatprep.subr.mxu0 %v126
    %2634 = vmatpush1.msra.mxu0 %v125
    %2635 = vmatprep.subr.mxu0 %v130
    %2636 = vmatpush1.msra.mxu0 %v129
    %2637 = vmatprep.subr.mxu0 %v134
    %2638 = vmatpush1.msra.mxu0 %v133
    %2639 = vmatprep.subr.mxu0 %v138
    %2640 = vmatpush1.msra.mxu0 %v137
    %2641 = vmatprep.subr.mxu0 %v142
    %2642 = vmatpush1.msra.mxu0 %v141
    %2643 = vmatprep.subr.mxu0 %v146
    %2644 = vmatpush1.msra.mxu0 %v145
    %2645 = vmatprep.subr.mxu0 %v150
    %2646 = vmatpush1.msra.mxu0 %v149
    %2647 = vmatprep.subr.mxu0 %v154
    %2648 = vmatpush1.msra.mxu0 %v153
    %2649 = vmatprep.subr.mxu0 0.0
    %2650 = vmatpush1.msra.mxu0 0.0
    %2651 = vmatprep.subr.mxu0 0.0
    %2652 = vmatpush1.msra.mxu0 0.0
    %2653 = vmatprep.subr.mxu0 0.0
    %2654 = vmatpush1.msra.mxu0 0.0
    %2655 = vmatprep.subr.mxu0 0.0
    %2656 = vmatpush1.msra.mxu0 0.0
    %2657 = vmatprep.subr.mxu0 0.0
    %2658 = vmatpush1.msra.mxu0 0.0
    %2659 = vmatprep.subr.mxu0 0.0
    %2660 = vmatpush1.msra.mxu0 0.0
    %2661 = vmatprep.subr.mxu0 0.0
    %2662 = vmatpush1.msra.mxu0 0.0
    %2663 = vmatprep.subr.mxu0 0.0
    %2664 = vmatpush1.msra.mxu0 0.0
    %2665 = vmatprep.subr.mxu0 0.0
    %2666 = vmatpush1.msra.mxu0 0.0
    %2667 = vmatprep.subr.mxu0 0.0
    %2668 = vmatpush1.msra.mxu0 0.0
    %2669 = vmatprep.subr.mxu0 0.0
    %2670 = vmatpush1.msra.mxu0 0.0
    %2671 = vmatprep.subr.mxu0 0.0
    %2672 = vmatpush1.msra.mxu0 0.0
    %2673 = vmatprep.subr.mxu0 0.0
    %2674 = vmatpush1.msra.mxu0 0.0
    %2675 = vmatprep.subr.mxu0 0.0
    %2676 = vmatpush1.msra.mxu0 0.0
    %2677 = vmatprep.subr.mxu0 0.0
    %2678 = vmatpush1.msra.mxu0 0.0
    %2679 = vmatprep.subr.mxu0 0.0
    %2680 = vmatpush1.msra.mxu0 0.0
    %2681 = vmatprep.mubr.f32.mxu0 0.0
    %2682 = vmatmul.mubr.f32.gmra.mrb[0].mxu0 %v2519
    %v2683 = vpop.f32.mrb[0].mxu0
    %v2684 = vadd.f32 0.0, %v2683
    %v2685 = vpop.f32.mrb[0].mxu0
    %v2686 = vadd.f32 0.0, %v2685
    %2687 = vdwg.mxu0
    %v2688 = vadd.f32 %v2542, %v2613
    %v2689 = vadd.f32 %v2543, %v2615
    %v2690 = vadd.f32 %v2544, %v2684
    %v2691 = vadd.f32 %v2545, %v2686
    %s2692 = scalar_lea.vmem %s68, 32
    %v2693 = vld [vmem:[%s2692] sm:$0xff]
    %v2694 = vld [vmem:[%s2692 + $0x8] sm:$0xff]
    %v2695 = vld [vmem:[%s2692 + $0x10] sm:$0xff]
    %v2696 = vld [vmem:[%s2692 + $0x18] sm:$0xff]
    %2697 = vmatprep.subr.mxu0 %v156
    %2698 = vmatpush1.msra.mxu0 %v155
    %2699 = vmatprep.subr.mxu0 %v160
    %2700 = vmatpush1.msra.mxu0 %v159
    %2701 = vmatprep.subr.mxu0 %v164
    %2702 = vmatpush1.msra.mxu0 %v163
    %2703 = vmatprep.subr.mxu0 %v168
    %2704 = vmatpush1.msra.mxu0 %v167
    %2705 = vmatprep.subr.mxu0 %v172
    %2706 = vmatpush1.msra.mxu0 %v171
    %2707 = vmatprep.subr.mxu0 %v176
    %2708 = vmatpush1.msra.mxu0 %v175
    %2709 = vmatprep.subr.mxu0 %v180
    %2710 = vmatpush1.msra.mxu0 %v179
    %2711 = vmatprep.subr.mxu0 %v184
    %2712 = vmatpush1.msra.mxu0 %v183
    %2713 = vmatprep.subr.mxu0 %v188
    %2714 = vmatpush1.msra.mxu0 %v187
    %2715 = vmatprep.subr.mxu0 %v192
    %2716 = vmatpush1.msra.mxu0 %v191
    %2717 = vmatprep.subr.mxu0 %v196
    %2718 = vmatpush1.msra.mxu0 %v195
    %2719 = vmatprep.subr.mxu0 %v200
    %2720 = vmatpush1.msra.mxu0 %v199
    %2721 = vmatprep.subr.mxu0 %v204
    %2722 = vmatpush1.msra.mxu0 %v203
    %2723 = vmatprep.subr.mxu0 %v208
    %2724 = vmatpush1.msra.mxu0 %v207
    %2725 = vmatprep.subr.mxu0 %v212
    %2726 = vmatpush1.msra.mxu0 %v211
    %2727 = vmatprep.subr.mxu0 %v216
    %2728 = vmatpush1.msra.mxu0 %v215
    %2729 = vmatprep.subr.mxu0 0.0
    %2730 = vmatpush1.msra.mxu0 0.0
    %2731 = vmatprep.subr.mxu0 0.0
    %2732 = vmatpush1.msra.mxu0 0.0
    %2733 = vmatprep.subr.mxu0 0.0
    %2734 = vmatpush1.msra.mxu0 0.0
    %2735 = vmatprep.subr.mxu0 0.0
    %2736 = vmatpush1.msra.mxu0 0.0
    %2737 = vmatprep.subr.mxu0 0.0
    %2738 = vmatpush1.msra.mxu0 0.0
    %2739 = vmatprep.subr.mxu0 0.0
    %2740 = vmatpush1.msra.mxu0 0.0
    %2741 = vmatprep.subr.mxu0 0.0
    %2742 = vmatpush1.msra.mxu0 0.0
    %2743 = vmatprep.subr.mxu0 0.0
    %2744 = vmatpush1.msra.mxu0 0.0
    %2745 = vmatprep.subr.mxu0 0.0
    %2746 = vmatpush1.msra.mxu0 0.0
    %2747 = vmatprep.subr.mxu0 0.0
    %2748 = vmatpush1.msra.mxu0 0.0
    %2749 = vmatprep.subr.mxu0 0.0
    %2750 = vmatpush1.msra.mxu0 0.0
    %2751 = vmatprep.subr.mxu0 0.0
    %2752 = vmatpush1.msra.mxu0 0.0
    %2753 = vmatprep.subr.mxu0 0.0
    %2754 = vmatpush1.msra.mxu0 0.0
    %2755 = vmatprep.subr.mxu0 0.0
    %2756 = vmatpush1.msra.mxu0 0.0
    %2757 = vmatprep.subr.mxu0 0.0
    %2758 = vmatpush1.msra.mxu0 0.0
    %2759 = vmatprep.subr.mxu0 0.0
    %2760 = vmatpush1.msra.mxu0 0.0
    %2761 = vmatprep.mubr.f32.mxu0 0.0
    %2762 = vmatmul.mubr.f32.gmra.mrb[0].mxu0 %v2521
    %v2763 = vpop.f32.mrb[0].mxu0
    %v2764 = vadd.f32 0.0, %v2763
    %v2765 = vpop.f32.mrb[0].mxu0
    %v2766 = vadd.f32 0.0, %v2765
    %2767 = vdwg.mxu0
    %2768 = vmatprep.subr.mxu0 %v158
    %2769 = vmatpush1.msra.mxu0 %v157
    %2770 = vmatprep.subr.mxu0 %v162
    %2771 = vmatpush1.msra.mxu0 %v161
    %2772 = vmatprep.subr.mxu0 %v166
    %2773 = vmatpush1.msra.mxu0 %v165
    %2774 = vmatprep.subr.mxu0 %v170
    %2775 = vmatpush1.msra.mxu0 %v169
    %2776 = vmatprep.subr.mxu0 %v174
    %2777 = vmatpush1.msra.mxu0 %v173
    %2778 = vmatprep.subr.mxu0 %v178
    %2779 = vmatpush1.msra.mxu0 %v177
    %2780 = vmatprep.subr.mxu0 %v182
    %2781 = vmatpush1.msra.mxu0 %v181
    %2782 = vmatprep.subr.mxu0 %v186
    %2783 = vmatpush1.msra.mxu0 %v185
    %2784 = vmatprep.subr.mxu0 %v190
    %2785 = vmatpush1.msra.mxu0 %v189
    %2786 = vmatprep.subr.mxu0 %v194
    %2787 = vmatpush1.msra.mxu0 %v193
    %2788 = vmatprep.subr.mxu0 %v198
    %2789 = vmatpush1.msra.mxu0 %v197
    %2790 = vmatprep.subr.mxu0 %v202
    %2791 = vmatpush1.msra.mxu0 %v201
    %2792 = vmatprep.subr.mxu0 %v206
    %2793 = vmatpush1.msra.mxu0 %v205
    %2794 = vmatprep.subr.mxu0 %v210
    %2795 = vmatpush1.msra.mxu0 %v209
    %2796 = vmatprep.subr.mxu0 %v214
    %2797 = vmatpush1.msra.mxu0 %v213
    %2798 = vmatprep.subr.mxu0 %v218
    %2799 = vmatpush1.msra.mxu0 %v217
    %2800 = vmatprep.subr.mxu0 0.0
    %2801 = vmatpush1.msra.mxu0 0.0
    %2802 = vmatprep.subr.mxu0 0.0
    %2803 = vmatpush1.msra.mxu0 0.0
    %2804 = vmatprep.subr.mxu0 0.0
    %2805 = vmatpush1.msra.mxu0 0.0
    %2806 = vmatprep.subr.mxu0 0.0
    %2807 = vmatpush1.msra.mxu0 0.0
    %2808 = vmatprep.subr.mxu0 0.0
    %2809 = vmatpush1.msra.mxu0 0.0
    %2810 = vmatprep.subr.mxu0 0.0
    %2811 = vmatpush1.msra.mxu0 0.0
    %2812 = vmatprep.subr.mxu0 0.0
    %2813 = vmatpush1.msra.mxu0 0.0
    %2814 = vmatprep.subr.mxu0 0.0
    %2815 = vmatpush1.msra.mxu0 0.0
    %2816 = vmatprep.subr.mxu0 0.0
    %2817 = vmatpush1.msra.mxu0 0.0
    %2818 = vmatprep.subr.mxu0 0.0
    %2819 = vmatpush1.msra.mxu0 0.0
    %2820 = vmatprep.subr.mxu0 0.0
    %2821 = vmatpush1.msra.mxu0 0.0
    %2822 = vmatprep.subr.mxu0 0.0
    %2823 = vmatpush1.msra.mxu0 0.0
    %2824 = vmatprep.subr.mxu0 0.0
    %2825 = vmatpush1.msra.mxu0 0.0
    %2826 = vmatprep.subr.mxu0 0.0
    %2827 = vmatpush1.msra.mxu0 0.0
    %2828 = vmatprep.subr.mxu0 0.0
    %2829 = vmatpush1.msra.mxu0 0.0
    %2830 = vmatprep.subr.mxu0 0.0
    %2831 = vmatpush1.msra.mxu0 0.0
    %2832 = vmatprep.mubr.f32.mxu0 0.0
    %2833 = vmatmul.mubr.f32.gmra.mrb[0].mxu0 %v2521
    %v2834 = vpop.f32.mrb[0].mxu0
    %v2835 = vadd.f32 0.0, %v2834
    %v2836 = vpop.f32.mrb[0].mxu0
    %v2837 = vadd.f32 0.0, %v2836
    %2838 = vdwg.mxu0
    %v2839 = vadd.f32 %v2693, %v2764
    %v2840 = vadd.f32 %v2694, %v2766
    %v2841 = vadd.f32 %v2695, %v2835
    %v2842 = vadd.f32 %v2696, %v2837
    %v2843 = vxor.u32 %v2688, 2147483648
    %v2844 = vmul.f32 %v2843, 1.442695
    %v2845 = vpow.pop %v2844
    %v2846 = vadd.f32 %v2845, 1.0
    %v2847 = vrcp.pop %v2846
    %v2848 = vmul.f32 1.0, %v2847
    %v2849 = vxor.u32 %v2689, 2147483648
    %v2850 = vmul.f32 %v2849, 1.442695
    %v2851 = vpow.pop %v2850
    %v2852 = vadd.f32 %v2851, 1.0
    %v2853 = vrcp.pop %v2852
    %v2854 = vmul.f32 1.0, %v2853
    %v2855 = vtanh.pop %v2690
    %v2856 = vxor.u32 %v2691, 2147483648
    %v2857 = vmul.f32 %v2856, 1.442695
    %v2858 = vpow.pop %v2857
    %v2859 = vadd.f32 %v2858, 1.0
    %v2860 = vrcp.pop %v2859
    %v2861 = vmul.f32 1.0, %v2860
    %v2862 = vmul.f32 %v2854, %v2520
    %v2863 = vmul.f32 %v2848, %v2855
    %v2864 = vadd.f32 %v2862, %v2863
    %v2865 = vtanh.pop %v2864
    %v2866 = vmul.f32 %v2861, %v2865
    %v2867 = vxor.u32 %v2839, 2147483648
    %v2868 = vmul.f32 %v2867, 1.442695
    %v2869 = vpow.pop %v2868
    %v2870 = vadd.f32 %v2869, 1.0
    %v2871 = vrcp.pop %v2870
    %v2872 = vmul.f32 1.0, %v2871
    %v2873 = vxor.u32 %v2840, 2147483648
    %v2874 = vmul.f32 %v2873, 1.442695
    %v2875 = vpow.pop %v2874
    %v2876 = vadd.f32 %v2875, 1.0
    %v2877 = vrcp.pop %v2876
    %v2878 = vmul.f32 1.0, %v2877
    %v2879 = vtanh.pop %v2841
    %v2880 = vxor.u32 %v2842, 2147483648
    %v2881 = vmul.f32 %v2880, 1.442695
    %v2882 = vpow.pop %v2881
    %v2883 = vadd.f32 %v2882, 1.0
    %v2884 = vrcp.pop %v2883
    %v2885 = vmul.f32 1.0, %v2884
    %v2886 = vmul.f32 %v2878, %v2522
    %v2887 = vmul.f32 %v2872, %v2879
    %v2888 = vadd.f32 %v2886, %v2887
    %v2889 = vtanh.pop %v2888
    %v2890 = vmul.f32 %v2885, %v2889
    %v2891 = vstv %s2539
    %vm2892 = vcmp.lt.s32.totalorder %v2891, %v90
    %v2893 = vsel %vm2892, 1, 0
    %2894 = vset.pattern.permute.xlu0 0
    %2895 = vperm.xlu0 %2894, %v2893
    %v2896 = vpop.permute.xlu0 %2895
    %vm2897 = vcmp.eq.s32.totalorder %v2896, 1
    %v2898 = vstv %s2540
    %vm2899 = vcmp.lt.s32.totalorder %v2898, %v90
    %v2900 = vsel %vm2899, 1, 0
    %2901 = vset.pattern.permute.xlu0 0
    %2902 = vperm.xlu0 %2901, %v2900
    %v2903 = vpop.permute.xlu0 %2902
    %vm2904 = vcmp.eq.s32.totalorder %v2903, 1
    %v2905 = vsel %vm2897, %v2866, %v2519
    %v2906 = vsel %vm2897, %v2864, %v2520
    %v2907 = vsel %vm2904, %v2890, %v2521
    %v2908 = vsel %vm2904, %v2888, %v2522
    %v2909 = vsel %vm2897, %v2866, 0.0
    %s2910 = scalar_lea.vmem %s6, 48
    %2911 = vst [vmem:[%s2910] sm:$0xff] %v2909
    %v2912 = vsel %vm2904, %v2890, 0.0
    %s2913 = scalar_lea.vmem %s76, 8
    %2914 = vst [vmem:[%s2913] sm:$0xff] %v2912
    %p2915 = scmp.lt.s32.totalorder %s2539, %s89
    %s2916 = scalar_select %p2915, 0.0, -inf
    %p2917 = scmp.lt.s32.totalorder %s2540, %s89
    %s2918 = scalar_select %p2917, 0.0, -inf
    %v2919 = vstv %s2916
    %v2920 = vsel %vm2897, %v2866, %v2919
    %v2921 = vmax.f32 %v2535, %v2920
    %v2922 = vstv %s2918
    %v2923 = vsel %vm2904, %v2890, %v2922
    %v2924 = vmax.f32 %v2538, %v2923
    %s2925 = sadd.s32 %s225, 7
    %s2926 = ssub.s32 0, %s225
    %s2927 = scalar_lea.vmem %s1, 224
    %v2928 = vld [vmem:[%s2927] sm:$0xff]
    %v2929 = vld [vmem:[%s2927 + $0x8] sm:$0xff]
    %v2930 = vld [vmem:[%s2927 + $0x10] sm:$0xff]
    %v2931 = vld [vmem:[%s2927 + $0x18] sm:$0xff]
    %2932 = vmatprep.subr.mxu0 %v92
    %2933 = vmatpush1.msra.mxu0 %v91
    %2934 = vmatprep.subr.mxu0 %v96
    %2935 = vmatpush1.msra.mxu0 %v95
    %2936 = vmatprep.subr.mxu0 %v100
    %2937 = vmatpush1.msra.mxu0 %v99
    %2938 = vmatprep.subr.mxu0 %v104
    %2939 = vmatpush1.msra.mxu0 %v103
    %2940 = vmatprep.subr.mxu0 %v108
    %2941 = vmatpush1.msra.mxu0 %v107
    %2942 = vmatprep.subr.mxu0 %v112
    %2943 = vmatpush1.msra.mxu0 %v111
    %2944 = vmatprep.subr.mxu0 %v116
    %2945 = vmatpush1.msra.mxu0 %v115
    %2946 = vmatprep.subr.mxu0 %v120
    %2947 = vmatpush1.msra.mxu0 %v119
    %2948 = vmatprep.subr.mxu0 %v124
    %2949 = vmatpush1.msra.mxu0 %v123
    %2950 = vmatprep.subr.mxu0 %v128
    %2951 = vmatpush1.msra.mxu0 %v127
    %2952 = vmatprep.subr.mxu0 %v132
    %2953 = vmatpush1.msra.mxu0 %v131
    %2954 = vmatprep.subr.mxu0 %v136
    %2955 = vmatpush1.msra.mxu0 %v135
    %2956 = vmatprep.subr.mxu0 %v140
    %2957 = vmatpush1.msra.mxu0 %v139
    %2958 = vmatprep.subr.mxu0 %v144
    %2959 = vmatpush1.msra.mxu0 %v143
    %2960 = vmatprep.subr.mxu0 %v148
    %2961 = vmatpush1.msra.mxu0 %v147
    %2962 = vmatprep.subr.mxu0 %v152
    %2963 = vmatpush1.msra.mxu0 %v151
    %2964 = vmatprep.subr.mxu0 0.0
    %2965 = vmatpush1.msra.mxu0 0.0
    %2966 = vmatprep.subr.mxu0 0.0
    %2967 = vmatpush1.msra.mxu0 0.0
    %2968 = vmatprep.subr.mxu0 0.0
    %2969 = vmatpush1.msra.mxu0 0.0
    %2970 = vmatprep.subr.mxu0 0.0
    %2971 = vmatpush1.msra.mxu0 0.0
    %2972 = vmatprep.subr.mxu0 0.0
    %2973 = vmatpush1.msra.mxu0 0.0
    %2974 = vmatprep.subr.mxu0 0.0
    %2975 = vmatpush1.msra.mxu0 0.0
    %2976 = vmatprep.subr.mxu0 0.0
    %2977 = vmatpush1.msra.mxu0 0.0
    %2978 = vmatprep.subr.mxu0 0.0
    %2979 = vmatpush1.msra.mxu0 0.0
    %2980 = vmatprep.subr.mxu0 0.0
    %2981 = vmatpush1.msra.mxu0 0.0
    %2982 = vmatprep.subr.mxu0 0.0
    %2983 = vmatpush1.msra.mxu0 0.0
    %2984 = vmatprep.subr.mxu0 0.0
    %2985 = vmatpush1.msra.mxu0 0.0
    %2986 = vmatprep.subr.mxu0 0.0
    %2987 = vmatpush1.msra.mxu0 0.0
    %2988 = vmatprep.subr.mxu0 0.0
    %2989 = vmatpush1.msra.mxu0 0.0
    %2990 = vmatprep.subr.mxu0 0.0
    %2991 = vmatpush1.msra.mxu0 0.0
    %2992 = vmatprep.subr.mxu0 0.0
    %2993 = vmatpush1.msra.mxu0 0.0
    %2994 = vmatprep.subr.mxu0 0.0
    %2995 = vmatpush1.msra.mxu0 0.0
    %2996 = vmatprep.mubr.f32.mxu0 0.0
    %2997 = vmatmul.mubr.f32.gmra.mrb[0].mxu0 %v2905
    %v2998 = vpop.f32.mrb[0].mxu0
    %v2999 = vadd.f32 0.0, %v2998
    %v3000 = vpop.f32.mrb[0].mxu0
    %v3001 = vadd.f32 0.0, %v3000
    %3002 = vdwg.mxu0
    %3003 = vmatprep.subr.mxu0 %v94
    %3004 = vmatpush1.msra.mxu0 %v93
    %3005 = vmatprep.subr.mxu0 %v98
    %3006 = vmatpush1.msra.mxu0 %v97
    %3007 = vmatprep.subr.mxu0 %v102
    %3008 = vmatpush1.msra.mxu0 %v101
    %3009 = vmatprep.subr.mxu0 %v106
    %3010 = vmatpush1.msra.mxu0 %v105
    %3011 = vmatprep.subr.mxu0 %v110
    %3012 = vmatpush1.msra.mxu0 %v109
    %3013 = vmatprep.subr.mxu0 %v114
    %3014 = vmatpush1.msra.mxu0 %v113
    %3015 = vmatprep.subr.mxu0 %v118
    %3016 = vmatpush1.msra.mxu0 %v117
    %3017 = vmatprep.subr.mxu0 %v122
    %3018 = vmatpush1.msra.mxu0 %v121
    %3019 = vmatprep.subr.mxu0 %v126
    %3020 = vmatpush1.msra.mxu0 %v125
    %3021 = vmatprep.subr.mxu0 %v130
    %3022 = vmatpush1.msra.mxu0 %v129
    %3023 = vmatprep.subr.mxu0 %v134
    %3024 = vmatpush1.msra.mxu0 %v133
    %3025 = vmatprep.subr.mxu0 %v138
    %3026 = vmatpush1.msra.mxu0 %v137
    %3027 = vmatprep.subr.mxu0 %v142
    %3028 = vmatpush1.msra.mxu0 %v141
    %3029 = vmatprep.subr.mxu0 %v146
    %3030 = vmatpush1.msra.mxu0 %v145
    %3031 = vmatprep.subr.mxu0 %v150
    %3032 = vmatpush1.msra.mxu0 %v149
    %3033 = vmatprep.subr.mxu0 %v154
    %3034 = vmatpush1.msra.mxu0 %v153
    %3035 = vmatprep.subr.mxu0 0.0
    %3036 = vmatpush1.msra.mxu0 0.0
    %3037 = vmatprep.subr.mxu0 0.0
    %3038 = vmatpush1.msra.mxu0 0.0
    %3039 = vmatprep.subr.mxu0 0.0
    %3040 = vmatpush1.msra.mxu0 0.0
    %3041 = vmatprep.subr.mxu0 0.0
    %3042 = vmatpush1.msra.mxu0 0.0
    %3043 = vmatprep.subr.mxu0 0.0
    %3044 = vmatpush1.msra.mxu0 0.0
    %3045 = vmatprep.subr.mxu0 0.0
    %3046 = vmatpush1.msra.mxu0 0.0
    %3047 = vmatprep.subr.mxu0 0.0
    %3048 = vmatpush1.msra.mxu0 0.0
    %3049 = vmatprep.subr.mxu0 0.0
    %3050 = vmatpush1.msra.mxu0 0.0
    %3051 = vmatprep.subr.mxu0 0.0
    %3052 = vmatpush1.msra.mxu0 0.0
    %3053 = vmatprep.subr.mxu0 0.0
    %3054 = vmatpush1.msra.mxu0 0.0
    %3055 = vmatprep.subr.mxu0 0.0
    %3056 = vmatpush1.msra.mxu0 0.0
    %3057 = vmatprep.subr.mxu0 0.0
    %3058 = vmatpush1.msra.mxu0 0.0
    %3059 = vmatprep.subr.mxu0 0.0
    %3060 = vmatpush1.msra.mxu0 0.0
    %3061 = vmatprep.subr.mxu0 0.0
    %3062 = vmatpush1.msra.mxu0 0.0
    %3063 = vmatprep.subr.mxu0 0.0
    %3064 = vmatpush1.msra.mxu0 0.0
    %3065 = vmatprep.subr.mxu0 0.0
    %3066 = vmatpush1.msra.mxu0 0.0
    %3067 = vmatprep.mubr.f32.mxu0 0.0
    %3068 = vmatmul.mubr.f32.gmra.mrb[0].mxu0 %v2905
    %v3069 = vpop.f32.mrb[0].mxu0
    %v3070 = vadd.f32 0.0, %v3069
    %v3071 = vpop.f32.mrb[0].mxu0
    %v3072 = vadd.f32 0.0, %v3071
    %3073 = vdwg.mxu0
    %v3074 = vadd.f32 %v2928, %v2999
    %v3075 = vadd.f32 %v2929, %v3001
    %v3076 = vadd.f32 %v2930, %v3070
    %v3077 = vadd.f32 %v2931, %v3072
    %v3078 = vld [vmem:[%s68] sm:$0xff]
    %v3079 = vld [vmem:[%s68 + $0x8] sm:$0xff]
    %v3080 = vld [vmem:[%s68 + $0x10] sm:$0xff]
    %v3081 = vld [vmem:[%s68 + $0x18] sm:$0xff]
    %3082 = vmatprep.subr.mxu0 %v156
    %3083 = vmatpush1.msra.mxu0 %v155
    %3084 = vmatprep.subr.mxu0 %v160
    %3085 = vmatpush1.msra.mxu0 %v159
    %3086 = vmatprep.subr.mxu0 %v164
    %3087 = vmatpush1.msra.mxu0 %v163
    %3088 = vmatprep.subr.mxu0 %v168
    %3089 = vmatpush1.msra.mxu0 %v167
    %3090 = vmatprep.subr.mxu0 %v172
    %3091 = vmatpush1.msra.mxu0 %v171
    %3092 = vmatprep.subr.mxu0 %v176
    %3093 = vmatpush1.msra.mxu0 %v175
    %3094 = vmatprep.subr.mxu0 %v180
    %3095 = vmatpush1.msra.mxu0 %v179
    %3096 = vmatprep.subr.mxu0 %v184
    %3097 = vmatpush1.msra.mxu0 %v183
    %3098 = vmatprep.subr.mxu0 %v188
    %3099 = vmatpush1.msra.mxu0 %v187
    %3100 = vmatprep.subr.mxu0 %v192
    %3101 = vmatpush1.msra.mxu0 %v191
    %3102 = vmatprep.subr.mxu0 %v196
    %3103 = vmatpush1.msra.mxu0 %v195
    %3104 = vmatprep.subr.mxu0 %v200
    %3105 = vmatpush1.msra.mxu0 %v199
    %3106 = vmatprep.subr.mxu0 %v204
    %3107 = vmatpush1.msra.mxu0 %v203
    %3108 = vmatprep.subr.mxu0 %v208
    %3109 = vmatpush1.msra.mxu0 %v207
    %3110 = vmatprep.subr.mxu0 %v212
    %3111 = vmatpush1.msra.mxu0 %v211
    %3112 = vmatprep.subr.mxu0 %v216
    %3113 = vmatpush1.msra.mxu0 %v215
    %3114 = vmatprep.subr.mxu0 0.0
    %3115 = vmatpush1.msra.mxu0 0.0
    %3116 = vmatprep.subr.mxu0 0.0
    %3117 = vmatpush1.msra.mxu0 0.0
    %3118 = vmatprep.subr.mxu0 0.0
    %3119 = vmatpush1.msra.mxu0 0.0
    %3120 = vmatprep.subr.mxu0 0.0
    %3121 = vmatpush1.msra.mxu0 0.0
    %3122 = vmatprep.subr.mxu0 0.0
    %3123 = vmatpush1.msra.mxu0 0.0
    %3124 = vmatprep.subr.mxu0 0.0
    %3125 = vmatpush1.msra.mxu0 0.0
    %3126 = vmatprep.subr.mxu0 0.0
    %3127 = vmatpush1.msra.mxu0 0.0
    %3128 = vmatprep.subr.mxu0 0.0
    %3129 = vmatpush1.msra.mxu0 0.0
    %3130 = vmatprep.subr.mxu0 0.0
    %3131 = vmatpush1.msra.mxu0 0.0
    %3132 = vmatprep.subr.mxu0 0.0
    %3133 = vmatpush1.msra.mxu0 0.0
    %3134 = vmatprep.subr.mxu0 0.0
    %3135 = vmatpush1.msra.mxu0 0.0
    %3136 = vmatprep.subr.mxu0 0.0
    %3137 = vmatpush1.msra.mxu0 0.0
    %3138 = vmatprep.subr.mxu0 0.0
    %3139 = vmatpush1.msra.mxu0 0.0
    %3140 = vmatprep.subr.mxu0 0.0
    %3141 = vmatpush1.msra.mxu0 0.0
    %3142 = vmatprep.subr.mxu0 0.0
    %3143 = vmatpush1.msra.mxu0 0.0
    %3144 = vmatprep.subr.mxu0 0.0
    %3145 = vmatpush1.msra.mxu0 0.0
    %3146 = vmatprep.mubr.f32.mxu0 0.0
    %3147 = vmatmul.mubr.f32.gmra.mrb[0].mxu0 %v2907
    %v3148 = vpop.f32.mrb[0].mxu0
    %v3149 = vadd.f32 0.0, %v3148
    %v3150 = vpop.f32.mrb[0].mxu0
    %v3151 = vadd.f32 0.0, %v3150
    %3152 = vdwg.mxu0
    %3153 = vmatprep.subr.mxu0 %v158
    %3154 = vmatpush1.msra.mxu0 %v157
    %3155 = vmatprep.subr.mxu0 %v162
    %3156 = vmatpush1.msra.mxu0 %v161
    %3157 = vmatprep.subr.mxu0 %v166
    %3158 = vmatpush1.msra.mxu0 %v165
    %3159 = vmatprep.subr.mxu0 %v170
    %3160 = vmatpush1.msra.mxu0 %v169
    %3161 = vmatprep.subr.mxu0 %v174
    %3162 = vmatpush1.msra.mxu0 %v173
    %3163 = vmatprep.subr.mxu0 %v178
    %3164 = vmatpush1.msra.mxu0 %v177
    %3165 = vmatprep.subr.mxu0 %v182
    %3166 = vmatpush1.msra.mxu0 %v181
    %3167 = vmatprep.subr.mxu0 %v186
    %3168 = vmatpush1.msra.mxu0 %v185
    %3169 = vmatprep.subr.mxu0 %v190
    %3170 = vmatpush1.msra.mxu0 %v189
    %3171 = vmatprep.subr.mxu0 %v194
    %3172 = vmatpush1.msra.mxu0 %v193
    %3173 = vmatprep.subr.mxu0 %v198
    %3174 = vmatpush1.msra.mxu0 %v197
    %3175 = vmatprep.subr.mxu0 %v202
    %3176 = vmatpush1.msra.mxu0 %v201
    %3177 = vmatprep.subr.mxu0 %v206
    %3178 = vmatpush1.msra.mxu0 %v205
    %3179 = vmatprep.subr.mxu0 %v210
    %3180 = vmatpush1.msra.mxu0 %v209
    %3181 = vmatprep.subr.mxu0 %v214
    %3182 = vmatpush1.msra.mxu0 %v213
    %3183 = vmatprep.subr.mxu0 %v218
    %3184 = vmatpush1.msra.mxu0 %v217
    %3185 = vmatprep.subr.mxu0 0.0
    %3186 = vmatpush1.msra.mxu0 0.0
    %3187 = vmatprep.subr.mxu0 0.0
    %3188 = vmatpush1.msra.mxu0 0.0
    %3189 = vmatprep.subr.mxu0 0.0
    %3190 = vmatpush1.msra.mxu0 0.0
    %3191 = vmatprep.subr.mxu0 0.0
    %3192 = vmatpush1.msra.mxu0 0.0
    %3193 = vmatprep.subr.mxu0 0.0
    %3194 = vmatpush1.msra.mxu0 0.0
    %3195 = vmatprep.subr.mxu0 0.0
    %3196 = vmatpush1.msra.mxu0 0.0
    %3197 = vmatprep.subr.mxu0 0.0
    %3198 = vmatpush1.msra.mxu0 0.0
    %3199 = vmatprep.subr.mxu0 0.0
    %3200 = vmatpush1.msra.mxu0 0.0
    %3201 = vmatprep.subr.mxu0 0.0
    %3202 = vmatpush1.msra.mxu0 0.0
    %3203 = vmatprep.subr.mxu0 0.0
    %3204 = vmatpush1.msra.mxu0 0.0
    %3205 = vmatprep.subr.mxu0 0.0
    %3206 = vmatpush1.msra.mxu0 0.0
    %3207 = vmatprep.subr.mxu0 0.0
    %3208 = vmatpush1.msra.mxu0 0.0
    %3209 = vmatprep.subr.mxu0 0.0
    %3210 = vmatpush1.msra.mxu0 0.0
    %3211 = vmatprep.subr.mxu0 0.0
    %3212 = vmatpush1.msra.mxu0 0.0
    %3213 = vmatprep.subr.mxu0 0.0
    %3214 = vmatpush1.msra.mxu0 0.0
    %3215 = vmatprep.subr.mxu0 0.0
    %3216 = vmatpush1.msra.mxu0 0.0
    %3217 = vmatprep.mubr.f32.mxu0 0.0
    %3218 = vmatmul.mubr.f32.gmra.mrb[0].mxu0 %v2907
    %v3219 = vpop.f32.mrb[0].mxu0
    %v3220 = vadd.f32 0.0, %v3219
    %v3221 = vpop.f32.mrb[0].mxu0
    %v3222 = vadd.f32 0.0, %v3221
    %3223 = vdwg.mxu0
    %v3224 = vadd.f32 %v3078, %v3149
    %v3225 = vadd.f32 %v3079, %v3151
    %v3226 = vadd.f32 %v3080, %v3220
    %v3227 = vadd.f32 %v3081, %v3222
    %v3228 = vxor.u32 %v3074, 2147483648
    %v3229 = vmul.f32 %v3228, 1.442695
    %v3230 = vpow.pop %v3229
    %v3231 = vadd.f32 %v3230, 1.0
    %v3232 = vrcp.pop %v3231
    %v3233 = vmul.f32 1.0, %v3232
    %v3234 = vxor.u32 %v3075, 2147483648
    %v3235 = vmul.f32 %v3234, 1.442695
    %v3236 = vpow.pop %v3235
    %v3237 = vadd.f32 %v3236, 1.0
    %v3238 = vrcp.pop %v3237
    %v3239 = vmul.f32 1.0, %v3238
    %v3240 = vtanh.pop %v3076
    %v3241 = vxor.u32 %v3077, 2147483648
    %v3242 = vmul.f32 %v3241, 1.442695
    %v3243 = vpow.pop %v3242
    %v3244 = vadd.f32 %v3243, 1.0
    %v3245 = vrcp.pop %v3244
    %v3246 = vmul.f32 1.0, %v3245
    %v3247 = vmul.f32 %v3239, %v2906
    %v3248 = vmul.f32 %v3233, %v3240
    %v3249 = vadd.f32 %v3247, %v3248
    %v3250 = vtanh.pop %v3249
    %v3251 = vmul.f32 %v3246, %v3250
    %v3252 = vxor.u32 %v3224, 2147483648
    %v3253 = vmul.f32 %v3252, 1.442695
    %v3254 = vpow.pop %v3253
    %v3255 = vadd.f32 %v3254, 1.0
    %v3256 = vrcp.pop %v3255
    %v3257 = vmul.f32 1.0, %v3256
    %v3258 = vxor.u32 %v3225, 2147483648
    %v3259 = vmul.f32 %v3258, 1.442695
    %v3260 = vpow.pop %v3259
    %v3261 = vadd.f32 %v3260, 1.0
    %v3262 = vrcp.pop %v3261
    %v3263 = vmul.f32 1.0, %v3262
    %v3264 = vtanh.pop %v3226
    %v3265 = vxor.u32 %v3227, 2147483648
    %v3266 = vmul.f32 %v3265, 1.442695
    %v3267 = vpow.pop %v3266
    %v3268 = vadd.f32 %v3267, 1.0
    %v3269 = vrcp.pop %v3268
    %v3270 = vmul.f32 1.0, %v3269
    %v3271 = vmul.f32 %v3263, %v2908
    %v3272 = vmul.f32 %v3257, %v3264
    %v3273 = vadd.f32 %v3271, %v3272
    %v3274 = vtanh.pop %v3273
    %v3275 = vmul.f32 %v3270, %v3274
    %v3276 = vstv %s2925
    %vm3277 = vcmp.lt.s32.totalorder %v3276, %v90
    %v3278 = vsel %vm3277, 1, 0
    %3279 = vset.pattern.permute.xlu0 0
    %3280 = vperm.xlu0 %3279, %v3278
    %v3281 = vpop.permute.xlu0 %3280
    %vm3282 = vcmp.eq.s32.totalorder %v3281, 1
    %v3283 = vstv %s2926
    %vm3284 = vcmp.lt.s32.totalorder %v3283, %v90
    %v3285 = vsel %vm3284, 1, 0
    %3286 = vset.pattern.permute.xlu0 0
    %3287 = vperm.xlu0 %3286, %v3285
    %v3288 = vpop.permute.xlu0 %3287
    %vm3289 = vcmp.eq.s32.totalorder %v3288, 1
    %v3290 = vsel %vm3282, %v3251, %v2905
    %v3291 = vsel %vm3282, %v3249, %v2906
    %v3292 = vsel %vm3289, %v3275, %v2907
    %v3293 = vsel %vm3289, %v3273, %v2908
    %v3294 = vsel %vm3282, %v3251, 0.0
    %s3295 = scalar_lea.vmem %s6, 56
    %3296 = vst [vmem:[%s3295] sm:$0xff] %v3294
    %v3297 = vsel %vm3289, %v3275, 0.0
    %3298 = vst [vmem:[%s76] sm:$0xff] %v3297
    %p3299 = scmp.lt.s32.totalorder %s2925, %s89
    %s3300 = scalar_select %p3299, 0.0, -inf
    %p3301 = scmp.lt.s32.totalorder %s2926, %s89
    %s3302 = scalar_select %p3301, 0.0, -inf
    %v3303 = vstv %s3300
    %v3304 = vsel %vm3282, %v3251, %v3303
    %v3305 = vmax.f32 %v2921, %v3304
    %v3306 = vstv %s3302
    %v3307 = vsel %vm3289, %v3275, %v3306
    %v3308 = vmax.f32 %v2924, %v3307
    %3309 = vst [vmem:[#allocation2] sm:$0xff] %v3290
    %3310 = vst [vmem:[#allocation3] sm:$0xff] %v3291
    %3311 = vst [vmem:[#allocation4] sm:$0xff] %v3292
    %3312 = vst [vmem:[#allocation5] sm:$0xff] %v3293
    %3313 = vst [vmem:[#allocation11] sm:$0xff] %v3305
    %3314 = vst [vmem:[#allocation11 + $0x8] sm:$0xff] %v3308
    %s3315 = ssub.s32 0, 0
    %s3316 = smul.u32 8, %s3315
    %p3317 = scmp.lt.s32.totalorder %s3316, 7
    %s3318 = scalar_select %p3317, %s3316, 7
    %s3319 = smul.addr %s3318, 8
    %s3320 = scalar_lea.vmem %s7, %s3319
    // Predicated region
    $region30: #{bilstm_maxpool_encoder.2} parent=1 // pred_check
      _
    $region31: #{bilstm_maxpool_encoder.2} parent=1 // pred_check_branch
      %3322 = sbr.rel (0) target = $region33
    $region32: #{bilstm_maxpool_encoder.2} parent=1 // pred_region
      _
    $region33: #{bilstm_maxpool_encoder.2} parent=1 // pred_fallthru
      _
    // Predicated region
    $region34: #{bilstm_maxpool_encoder.2} parent=1 // pred_check
      _
    $region35: #{bilstm_maxpool_encoder.2} parent=1 // pred_check_branch
      %3324 = sbr.rel (0) target = $region37
    $region36: #{bilstm_maxpool_encoder.2} parent=1 // pred_region
      %s3325 = ssub.s32 0, 0
      %s3326 = smul.u32 8, %s3325
    $region37: #{bilstm_maxpool_encoder.2} parent=1 // pred_fallthru
      _
    // Predicated region
    $region38: #{bilstm_maxpool_encoder.2} parent=1 // pred_check
      _
    $region39: #{bilstm_maxpool_encoder.2} parent=1 // pred_check_branch
      %3328 = sbr.rel (0) target = $region41
    $region40: #{bilstm_maxpool_encoder.2} parent=1 // pred_region
      %s3330 = ssub.s32 256, 256
      %3331 = vsyncadd [#allocation10], %s3330
      %s3333 = sshll.u32 [#allocation11], 4
      %s3334 = int_to_ptr.vmem [resolvable:$true] %s3333
      %3336 = dma.vmem_to_hbm [thread:$0]  %s3334, 256, %s8, [#allocation10]
    $region41: #{bilstm_maxpool_encoder.2} parent=1 // pred_fallthru
      _
    // Predicated region
    $region42: #{bilstm_maxpool_encoder.2} parent=1 // pred_check
      _
    $region43: #{bilstm_maxpool_encoder.2} parent=1 // pred_check_branch
      %3338 = sbr.rel (0) target = $region45
    $region44: #{bilstm_maxpool_encoder.2} parent=1 // pred_region
      _
    $region45: #{bilstm_maxpool_encoder.2} parent=1 // pred_fallthru
      _
    // Predicated region
    $region46: #{bilstm_maxpool_encoder.2} parent=1 // pred_check
      _
    $region47: #{bilstm_maxpool_encoder.2} parent=1 // pred_check_branch
      %3340 = sbr.rel (0) target = $region49
    $region48: #{bilstm_maxpool_encoder.2} parent=1 // pred_region
      %s3341 = ssub.s32 0, 0
      %s3342 = smul.u32 8, %s3341
      %p3343 = scmp.lt.s32.totalorder %s3342, 7
      %s3344 = scalar_select %p3343, %s3342, 7
      %s3345 = smul.addr %s3344, 8
      %s3346 = scalar_lea.vmem %s7, %s3345
    $region49: #{bilstm_maxpool_encoder.2} parent=1 // pred_fallthru
      _
    // Predicated region
    $region50: #{bilstm_maxpool_encoder.2} parent=1 // pred_check
      _
    $region51: #{bilstm_maxpool_encoder.2} parent=1 // pred_check_branch
      %3348 = sbr.rel (0) target = $region53
    $region52: #{bilstm_maxpool_encoder.2} parent=1 // pred_region
      %3349 = dma.done [#allocation10], 256
    $region53: #{bilstm_maxpool_encoder.2} parent=1 // pred_fallthru
      _
    %3350 = vsyncpa [#allocation9], 1
    %3351 = vsyncpa [#allocation10], 1

</llo_original>
